<compile_context>
chip_gen: v7x
topology: tpu7x:2x2x1
jax: 0.10.0
libtpu: 0.0.40
codegen_flags: <defaults>
</compile_context>

<pallas_src>
import functools

import jax
import jax.numpy as jnp
from jax.experimental import pallas as pl
from jax.experimental.pallas import tpu as pltpu

_LANES = 128
_EPS = 1e-5
_VMEM = pl.BlockSpec(memory_space=pltpu.MemorySpace.VMEM)

# demo problem sizes (NCHW input, CIFAR-ish but small)
N, C_IN, H, W = 2, 16, 16, 16
C_MID, C_OUT = 16, 32          # block A: 16->16 s=1 (identity); block B: 16->32 s=2 (projection)


def _round_up(x, m):
    return (x + m - 1) // m * m


def _pad_to(x, shape):
    return jnp.pad(x, [(0, s - d) for d, s in zip(x.shape, shape)])


# ------------------------------ fused kernel -------------------------------

def _bn_f32(x, g, b, eps):
    """Train-mode BatchNorm (biased variance) over rows of x:(M,C), all f32.
    Two-pass variance; reductions on the XLU (jnp.sum) so the MXU push slot
    stays free for the conv matmuls."""
    rows = x.shape[0]
    mean = jnp.sum(x, axis=0, keepdims=True) * (1.0 / rows)
    xc = x - mean
    var = jnp.sum(xc * xc, axis=0, keepdims=True) * (1.0 / rows)
    return xc * jax.lax.rsqrt(var + eps) * g + b


def _basic_block_kernel(patches_ref, w1_ref, g1_ref, b1_ref,
                        w2_ref, g2_ref, b2_ref, *rest,
                        n, ho, wo, eps, has_proj):
    if has_proj:
        wsc_ref, gsc_ref, bsc_ref, o_ref, y1p_ref = rest
    else:
        res_ref, o_ref, y1p_ref = rest

    m = n * ho * wo
    cout_p = o_ref.shape[-1]

    # ---- conv1: taps pre-packed along the contraction dim -> one bf16 matmul
    a1 = patches_ref[...]                                    # (m, k1) bf16
    acc = jnp.dot(a1, w1_ref[...], preferred_element_type=jnp.float32)

    # ---- bn1 + relu (f32 batch statistics)
    y1 = jnp.maximum(_bn_f32(acc, g1_ref[...], b1_ref[...], eps), 0.0)

    # ---- halo scratch: zero only the 1-px border, then store the interior
    zr = jnp.zeros((n, 1, wo + 2, cout_p), jnp.float32)
    zc = jnp.zeros((n, ho, 1, cout_p), jnp.float32)
    y1p_ref[:, 0:1, :, :] = zr
    y1p_ref[:, ho + 1:ho + 2, :, :] = zr
    y1p_ref[:, 1:1 + ho, 0:1, :] = zc
    y1p_ref[:, 1:1 + ho, wo + 1:wo + 2, :] = zc
    y1p_ref[:, 1:1 + ho, 1:1 + wo, :] = y1.reshape(n, ho, wo, cout_p)

    # ---- conv2: 9 shifted slabs packed along the lane/contraction dim ->
    #      one K=9*128 bf16 matmul (each slab is a full 128-lane column).
    slabs = [y1p_ref[:, dy:dy + ho, dx:dx + wo, :]
             .reshape(m, cout_p).astype(jnp.bfloat16)
             for dy in range(3) for dx in range(3)]
    a2 = jnp.concatenate(slabs, axis=-1)                     # (m, 9*cout_p) bf16
    acc2 = jnp.dot(a2, w2_ref[...], preferred_element_type=jnp.float32)
    y2 = _bn_f32(acc2, g2_ref[...], b2_ref[...], eps)

    # ---- shortcut: projection (1x1 conv folded into a packed K weight whose
    #      only non-zero rows are the centre tap) + BN, or identity (f32 res).
    if has_proj:
        sc = jnp.dot(a1, wsc_ref[...], preferred_element_type=jnp.float32)
        res = _bn_f32(sc, gsc_ref[...], bsc_ref[...], eps)
    else:
        res = res_ref[...]

    # ---- residual add + relu; lane-dense (m, 128) store
    o_ref[...] = jnp.maximum(y2 + res, 0.0).astype(o_ref.dtype)


# ------------------------------ block wrapper ------------------------------

def _make_patches(x, cin, stride):
    """im2col at *real* channel count: (N,H,W,C>=cin) -> (M, round_up(9*cin,256))
    bf16, with taps (dy,dx) concatenated along the contraction dim and the
    spatial pad=1 baked in."""
    n, h, w, _ = x.shape
    x = x[..., :cin]
    ho, wo = h // stride, w // stride
    xp = jnp.pad(x, ((0, 0), (1, 1), (1, 1), (0, 0)))
    taps = [xp[:, dy::stride, dx::stride, :][:, :ho, :wo, :]
            for dy in range(3) for dx in range(3)]
    pat = jnp.concatenate(taps, axis=-1).reshape(n * ho * wo, 9 * cin)
    k1 = _round_up(9 * cin, 2 * _LANES)    # multiple of 256: fills v6e/v7x MXU
    return _pad_to(pat, (n * ho * wo, k1)).astype(jnp.bfloat16)


def basic_block(x, p, *, cin, stride, eps=_EPS, out_dtype=jnp.float32):
    """x: (N, H, W, C>=cin) NHWC, f32 or bf16 (real channels in leading lanes).
    Returns (N, H//stride, W//stride, Cout_p) `out_dtype`, lane-padded."""
    n, h, w, _ = x.shape
    has_proj = 'w_sc' in p
    if not has_proj:
        assert stride == 1, "identity shortcut requires stride == 1"
    assert h % stride == 0 and w % stride == 0
    ho, wo = h // stride, w // stride
    m = n * ho * wo
    cout_p = p['w1'].shape[-1]

    patches = _make_patches(x, cin, stride)          # (m, k1) bf16
    assert patches.shape[-1] == p['w1'].shape[0]

    ins = [patches, p['w1'], p['g1'], p['b1'], p['w2'], p['g2'], p['b2']]
    if has_proj:
        ins += [p['w_sc'], p['g_sc'], p['b_sc']]
    else:
        # identity residual kept in f32 so the residual add matches the ref exactly
        res = _pad_to(x[..., :cin].astype(jnp.float32).reshape(m, cin), (m, cout_p))
        ins += [res]

    kern = functools.partial(_basic_block_kernel, n=n, ho=ho, wo=wo, eps=eps,
                             has_proj=has_proj)
    out = pl.pallas_call(
        kern,
        out_shape=jax.ShapeDtypeStruct((m, cout_p), out_dtype),
        in_specs=[_VMEM] * len(ins),
        out_specs=_VMEM,
        scratch_shapes=[pltpu.VMEM((n, ho + 2, wo + 2, cout_p), jnp.float32)],
        compiler_params=pltpu.CompilerParams(
            vmem_limit_bytes=48 * 1024 * 1024),
    )(*ins)
    return out.reshape(n, ho, wo, cout_p)


# ------------------------------ parameters ---------------------------------

def make_block_params(key, cin, cout):
    """Returns (logical f32 params for the reference, MXU-packed params for
    the Pallas kernel)."""
    cout_p = _round_up(cout, _LANES)
    k1 = _round_up(9 * cin, 2 * _LANES)
    ks = jax.random.split(key, 8)
    w1 = (2.0 / (9 * cin)) ** 0.5 * jax.random.normal(ks[0], (3, 3, cin, cout), jnp.float32)
    w2 = (2.0 / (9 * cout)) ** 0.5 * jax.random.normal(ks[1], (3, 3, cout, cout), jnp.float32)
    g1 = 1.0 + 0.2 * jax.random.normal(ks[2], (cout,), jnp.float32)
    b1 = 0.2 * jax.random.normal(ks[3], (cout,), jnp.float32)
    g2 = 1.0 + 0.2 * jax.random.normal(ks[4], (cout,), jnp.float32)
    b2 = 0.2 * jax.random.normal(ks[5], (cout,), jnp.float32)
    logical = dict(w1=w1, g1=g1, b1=b1, w2=w2, g2=g2, b2=b2)

    # conv1 weight packed along the contraction dim: row (dy*3+dx)*cin + c
    w1p = _pad_to(w1.reshape(9 * cin, cout), (k1, cout_p)).astype(jnp.bfloat16)
    # conv2 weight packed against 128-lane y1 slabs: rows t*cout_p + c
    w2p = jnp.zeros((9 * cout_p, cout_p), jnp.float32)
    w2r = w2.reshape(9, cout, cout)
    for t in range(9):
        w2p = w2p.at[t * cout_p:t * cout_p + cout, :cout].set(w2r[t])
    packed = {
        'w1': w1p, 'w2': w2p.astype(jnp.bfloat16),
        'g1': _pad_to(g1.reshape(1, cout), (1, cout_p)),
        'b1': _pad_to(b1.reshape(1, cout), (1, cout_p)),
        'g2': _pad_to(g2.reshape(1, cout), (1, cout_p)),
        'b2': _pad_to(b2.reshape(1, cout), (1, cout_p)),
    }
    if cin != cout:   # projection shortcut: 1x1 conv + BN
        wsc = (2.0 / cin) ** 0.5 * jax.random.normal(ks[6], (cin, cout), jnp.float32)
        gsc = 1.0 + 0.2 * jax.random.normal(ks[7], (cout,), jnp.float32)
        bsc = jnp.zeros((cout,), jnp.float32)
        logical.update(w_sc=wsc, g_sc=gsc, b_sc=bsc)
        # folded into the packed-patches contraction dim: only centre-tap rows
        wscp = jnp.zeros((k1, cout_p), jnp.float32).at[4 * cin:5 * cin, :cout].set(wsc)
        packed.update(
            w_sc=wscp.astype(jnp.bfloat16),
            g_sc=_pad_to(gsc.reshape(1, cout), (1, cout_p)),
            b_sc=_pad_to(bsc.reshape(1, cout), (1, cout_p)))
    return logical, packed


# ------------------------------ forward pass --------------------------------

@jax.jit
def forward(packed_params, x_nchw):
    """Chains the two BasicBlock configurations (identity & projection).
    NCHW in / NCHW out, matching the PyTorch module interface.  The
    inter-block activation is carried in bf16, lane-dense (review item)."""
    x = jnp.transpose(x_nchw, (0, 2, 3, 1)).astype(jnp.float32)     # -> NHWC
    y = basic_block(x, packed_params['A'], cin=C_IN, stride=1,
                    out_dtype=jnp.bfloat16)                         # 16 -> 16, identity
    y = basic_block(y, packed_params['B'], cin=C_MID, stride=2,
                    out_dtype=jnp.float32)                          # 16 -> 32, projection
    return jnp.transpose(y[..., :C_OUT], (0, 3, 1, 2))  # slice pad, -> NCHW


# ------------------------- pure-JAX reference (check) ------------------------

def _bf16(x):
    return x.astype(jnp.bfloat16).astype(jnp.float32)


def _ref_bn(x, g, b, eps=_EPS):
    mean = jnp.mean(x, axis=(0, 1, 2), keepdims=True)
    var = jnp.mean(jnp.square(x - mean), axis=(0, 1, 2), keepdims=True)
    return (x - mean) * jax.lax.rsqrt(var + eps) * g.reshape(1, 1, 1, -1) \
        + b.reshape(1, 1, 1, -1)


def ref_basic_block(x, p, stride, eps=_EPS):
    def conv3(h, w, s):
        return jax.lax.conv_general_dilated(
            _bf16(h), _bf16(w), window_strides=(s, s), padding=((1, 1), (1, 1)),
            dimension_numbers=('NHWC', 'HWIO', 'NHWC'),
            precision=jax.lax.Precision.HIGHEST)
    y = jax.nn.relu(_ref_bn(conv3(x, p['w1'], stride), p['g1'], p['b1'], eps))
    y = _ref_bn(conv3(y, p['w2'], 1), p['g2'], p['b2'], eps)
    if 'w_sc' in p:
        xs = x[:, ::stride, ::stride, :]
        sc = jnp.einsum('nhwc,cf->nhwf', _bf16(xs), _bf16(p['w_sc']),
                        precision=jax.lax.Precision.HIGHEST)
        s = _ref_bn(sc, p['g_sc'], p['b_sc'], eps)
    else:
        s = x
    return jax.nn.relu(y + s)


# ----------------------------------- main ------------------------------------

if __name__ == "__main__":
    key = jax.random.PRNGKey(0)
    kx, ka, kb = jax.random.split(key, 3)

    logA, packA = make_block_params(ka, C_IN, C_MID)    # identity shortcut
    logB, packB = make_block_params(kb, C_MID, C_OUT)   # projection shortcut
    packed = {'A': packA, 'B': packB}

    x_nchw = jax.random.normal(kx, (N, C_IN, H, W), jnp.float32)

    out = forward(packed, x_nchw)
    out = jax.block_until_ready(out)
    assert out.shape == (N, C_OUT, H // 2, W // 2) and out.dtype == jnp.float32

    # Reference with the same bf16-rounded matmul operands; the inter-block
    # activation is bf16-rounded as well, mirroring the kernel's deliberate
    # bf16 inter-block carry (all other math f32).
    x_nhwc = jnp.transpose(x_nchw, (0, 2, 3, 1))
    ref = ref_basic_block(x_nhwc, logA, 1)
    ref = ref_basic_block(_bf16(ref), logB, 2)
    ref_nchw = jnp.transpose(ref, (0, 3, 1, 2))
    err = float(jnp.max(jnp.abs(out - ref_nchw)))
    assert err < 3e-2, f"mismatch vs reference: max|diff|={err}"

    print("KERNEL_OK")
</pallas_src>

<mosaic_0001>
module attributes {stable_mosaic.version = 11 : i64} {
  func.func @_basic_block_kernel(%arg0: memref<512x256xbf16, #tpu.memory_space<vmem>>, %arg1: memref<256x128xbf16, #tpu.memory_space<vmem>>, %arg2: memref<1x128xf32, #tpu.memory_space<vmem>>, %arg3: memref<1x128xf32, #tpu.memory_space<vmem>>, %arg4: memref<1152x128xbf16, #tpu.memory_space<vmem>>, %arg5: memref<1x128xf32, #tpu.memory_space<vmem>>, %arg6: memref<1x128xf32, #tpu.memory_space<vmem>>, %arg7: memref<512x128xf32, #tpu.memory_space<vmem>>, %arg8: memref<512x128xbf16, #tpu.memory_space<vmem>>, %arg9: memref<2x18x18x128xf32, #tpu.memory_space<vmem>>) attributes {dimension_semantics = [], scalar_prefetch = 0 : i64, scratch_operands = 1 : i64, tpu.core_type = #tpu.core_type<tc>} {
    %c0 = arith.constant 0 : index
    %c0_0 = arith.constant 0 : index
    %0 = vector.load %arg0[%c0, %c0_0] : memref<512x256xbf16, #tpu.memory_space<vmem>>, vector<512x256xbf16>
    %c0_1 = arith.constant 0 : index
    %c0_2 = arith.constant 0 : index
    %1 = vector.load %arg1[%c0_1, %c0_2] : memref<256x128xbf16, #tpu.memory_space<vmem>>, vector<256x128xbf16>
    %cst = arith.constant dense<0.000000e+00> : vector<512x128xf32>
    %2 = tpu.matmul %0, %1, %cst {dimension_numbers = #tpu.dot_dimension_numbers<[1], [0], [0], [1], [0, 0, 1, 1], [], []>} : vector<512x256xbf16>, vector<256x128xbf16>, vector<512x128xf32> -> vector<512x128xf32>
    %c0_3 = arith.constant 0 : index
    %c0_4 = arith.constant 0 : index
    %3 = vector.load %arg2[%c0_3, %c0_4] : memref<1x128xf32, #tpu.memory_space<vmem>>, vector<1x128xf32>
    %c0_5 = arith.constant 0 : index
    %c0_6 = arith.constant 0 : index
    %4 = vector.load %arg3[%c0_5, %c0_6] : memref<1x128xf32, #tpu.memory_space<vmem>>, vector<1x128xf32>
    %cst_7 = arith.constant dense<0.000000e+00> : vector<128xf32>
    %5 = vector.multi_reduction <add>, %2, %cst_7 [0] : vector<512x128xf32> to vector<128xf32>
    %6 = vector.shape_cast %5 : vector<128xf32> to vector<1x128xf32>
    %cst_8 = arith.constant 0.001953125 : f32
    %7 = vector.broadcast %cst_8 : f32 to vector<1x128xf32>
    %8 = arith.mulf %6, %7 : vector<1x128xf32>
    %9 = vector.broadcast %8 : vector<1x128xf32> to vector<512x128xf32>
    %10 = arith.subf %2, %9 : vector<512x128xf32>
    %11 = arith.mulf %10, %10 : vector<512x128xf32>
    %cst_9 = arith.constant dense<0.000000e+00> : vector<128xf32>
    %12 = vector.multi_reduction <add>, %11, %cst_9 [0] : vector<512x128xf32> to vector<128xf32>
    %13 = vector.shape_cast %12 : vector<128xf32> to vector<1x128xf32>
    %cst_10 = arith.constant 0.001953125 : f32
    %14 = vector.broadcast %cst_10 : f32 to vector<1x128xf32>
    %15 = arith.mulf %13, %14 : vector<1x128xf32>
    %cst_11 = arith.constant 9.99999974E-6 : f32
    %16 = vector.broadcast %cst_11 : f32 to vector<1x128xf32>
    %17 = arith.addf %15, %16 : vector<1x128xf32>
    %18 = math.rsqrt %17 : vector<1x128xf32>
    %19 = vector.broadcast %18 : vector<1x128xf32> to vector<512x128xf32>
    %20 = arith.mulf %10, %19 : vector<512x128xf32>
    %21 = vector.broadcast %3 : vector<1x128xf32> to vector<512x128xf32>
    %22 = arith.mulf %20, %21 : vector<512x128xf32>
    %23 = vector.broadcast %4 : vector<1x128xf32> to vector<512x128xf32>
    %24 = arith.addf %22, %23 : vector<512x128xf32>
    %cst_12 = arith.constant 0.000000e+00 : f32
    %25 = vector.broadcast %cst_12 : f32 to vector<512x128xf32>
    %26 = arith.maximumf %24, %25 : vector<512x128xf32>
    %cst_13 = arith.constant 0.000000e+00 : f32
    %27 = vector.broadcast %cst_13 : f32 to vector<2x1x18x128xf32>
    %cst_14 = arith.constant 0.000000e+00 : f32
    %28 = vector.broadcast %cst_14 : f32 to vector<2x16x1x128xf32>
    %c0_15 = arith.constant 0 : index
    %c0_16 = arith.constant 0 : index
    %c0_17 = arith.constant 0 : index
    %c0_18 = arith.constant 0 : index
    %29 = vector.load %arg9[%c0_15, %c0_16, %c0_17, %c0_18] : memref<2x18x18x128xf32, #tpu.memory_space<vmem>>, vector<2x1x18x128xf32>
    tpu.vector_store %arg9[%c0_15, %c0_16, %c0_17, %c0_18], %27 {strides = array<i32>} : memref<2x18x18x128xf32, #tpu.memory_space<vmem>>, vector<2x1x18x128xf32>,
    %c0_19 = arith.constant 0 : index
    %c17 = arith.constant 17 : index
    %c0_20 = arith.constant 0 : index
    %c0_21 = arith.constant 0 : index
    %30 = vector.load %arg9[%c0_19, %c17, %c0_20, %c0_21] : memref<2x18x18x128xf32, #tpu.memory_space<vmem>>, vector<2x1x18x128xf32>
    tpu.vector_store %arg9[%c0_19, %c17, %c0_20, %c0_21], %27 {strides = array<i32>} : memref<2x18x18x128xf32, #tpu.memory_space<vmem>>, vector<2x1x18x128xf32>,
    %c0_22 = arith.constant 0 : index
    %c1 = arith.constant 1 : index
    %c0_23 = arith.constant 0 : index
    %c0_24 = arith.constant 0 : index
    %31 = vector.load %arg9[%c0_22, %c1, %c0_23, %c0_24] : memref<2x18x18x128xf32, #tpu.memory_space<vmem>>, vector<2x16x1x128xf32>
    tpu.vector_store %arg9[%c0_22, %c1, %c0_23, %c0_24], %28 {strides = array<i32>} : memref<2x18x18x128xf32, #tpu.memory_space<vmem>>, vector<2x16x1x128xf32>,
    %c0_25 = arith.constant 0 : index
    %c1_26 = arith.constant 1 : index
    %c17_27 = arith.constant 17 : index
    %c0_28 = arith.constant 0 : index
    %32 = vector.load %arg9[%c0_25, %c1_26, %c17_27, %c0_28] : memref<2x18x18x128xf32, #tpu.memory_space<vmem>>, vector<2x16x1x128xf32>
    tpu.vector_store %arg9[%c0_25, %c1_26, %c17_27, %c0_28], %28 {strides = array<i32>} : memref<2x18x18x128xf32, #tpu.memory_space<vmem>>, vector<2x16x1x128xf32>,
    %33 = vector.shape_cast %26 : vector<512x128xf32> to vector<2x16x16x128xf32>
    %c0_29 = arith.constant 0 : index
    %c1_30 = arith.constant 1 : index
    %c1_31 = arith.constant 1 : index
    %c0_32 = arith.constant 0 : index
    %34 = vector.load %arg9[%c0_29, %c1_30, %c1_31, %c0_32] : memref<2x18x18x128xf32, #tpu.memory_space<vmem>>, vector<2x16x16x128xf32>
    tpu.vector_store %arg9[%c0_29, %c1_30, %c1_31, %c0_32], %33 {strides = array<i32>} : memref<2x18x18x128xf32, #tpu.memory_space<vmem>>, vector<2x16x16x128xf32>,
    %c0_33 = arith.constant 0 : index
    %c0_34 = arith.constant 0 : index
    %c0_35 = arith.constant 0 : index
    %c0_36 = arith.constant 0 : index
    %35 = vector.load %arg9[%c0_33, %c0_34, %c0_35, %c0_36] : memref<2x18x18x128xf32, #tpu.memory_space<vmem>>, vector<2x16x16x128xf32>
    %36 = vector.shape_cast %35 : vector<2x16x16x128xf32> to vector<512x128xf32>
    %37 = arith.truncf %36 : vector<512x128xf32> to vector<512x128xbf16>
    %c0_37 = arith.constant 0 : index
    %c0_38 = arith.constant 0 : index
    %c1_39 = arith.constant 1 : index
    %c0_40 = arith.constant 0 : index
    %38 = vector.load %arg9[%c0_37, %c0_38, %c1_39, %c0_40] : memref<2x18x18x128xf32, #tpu.memory_space<vmem>>, vector<2x16x16x128xf32>
    %39 = vector.shape_cast %38 : vector<2x16x16x128xf32> to vector<512x128xf32>
    %40 = arith.truncf %39 : vector<512x128xf32> to vector<512x128xbf16>
    %c0_41 = arith.constant 0 : index
    %c0_42 = arith.constant 0 : index
    %c2 = arith.constant 2 : index
    %c0_43 = arith.constant 0 : index
    %41 = vector.load %arg9[%c0_41, %c0_42, %c2, %c0_43] : memref<2x18x18x128xf32, #tpu.memory_space<vmem>>, vector<2x16x16x128xf32>
    %42 = vector.shape_cast %41 : vector<2x16x16x128xf32> to vector<512x128xf32>
    %43 = arith.truncf %42 : vector<512x128xf32> to vector<512x128xbf16>
    %c0_44 = arith.constant 0 : index
    %c1_45 = arith.constant 1 : index
    %c0_46 = arith.constant 0 : index
    %c0_47 = arith.constant 0 : index
    %44 = vector.load %arg9[%c0_44, %c1_45, %c0_46, %c0_47] : memref<2x18x18x128xf32, #tpu.memory_space<vmem>>, vector<2x16x16x128xf32>
    %45 = vector.shape_cast %44 : vector<2x16x16x128xf32> to vector<512x128xf32>
    %46 = arith.truncf %45 : vector<512x128xf32> to vector<512x128xbf16>
    %c0_48 = arith.constant 0 : index
    %c1_49 = arith.constant 1 : index
    %c1_50 = arith.constant 1 : index
    %c0_51 = arith.constant 0 : index
    %47 = vector.load %arg9[%c0_48, %c1_49, %c1_50, %c0_51] : memref<2x18x18x128xf32, #tpu.memory_space<vmem>>, vector<2x16x16x128xf32>
    %48 = vector.shape_cast %47 : vector<2x16x16x128xf32> to vector<512x128xf32>
    %49 = arith.truncf %48 : vector<512x128xf32> to vector<512x128xbf16>
    %c0_52 = arith.constant 0 : index
    %c1_53 = arith.constant 1 : index
    %c2_54 = arith.constant 2 : index
    %c0_55 = arith.constant 0 : index
    %50 = vector.load %arg9[%c0_52, %c1_53, %c2_54, %c0_55] : memref<2x18x18x128xf32, #tpu.memory_space<vmem>>, vector<2x16x16x128xf32>
    %51 = vector.shape_cast %50 : vector<2x16x16x128xf32> to vector<512x128xf32>
    %52 = arith.truncf %51 : vector<512x128xf32> to vector<512x128xbf16>
    %c0_56 = arith.constant 0 : index
    %c2_57 = arith.constant 2 : index
    %c0_58 = arith.constant 0 : index
    %c0_59 = arith.constant 0 : index
    %53 = vector.load %arg9[%c0_56, %c2_57, %c0_58, %c0_59] : memref<2x18x18x128xf32, #tpu.memory_space<vmem>>, vector<2x16x16x128xf32>
    %54 = vector.shape_cast %53 : vector<2x16x16x128xf32> to vector<512x128xf32>
    %55 = arith.truncf %54 : vector<512x128xf32> to vector<512x128xbf16>
    %c0_60 = arith.constant 0 : index
    %c2_61 = arith.constant 2 : index
    %c1_62 = arith.constant 1 : index
    %c0_63 = arith.constant 0 : index
    %56 = vector.load %arg9[%c0_60, %c2_61, %c1_62, %c0_63] : memref<2x18x18x128xf32, #tpu.memory_space<vmem>>, vector<2x16x16x128xf32>
    %57 = vector.shape_cast %56 : vector<2x16x16x128xf32> to vector<512x128xf32>
    %58 = arith.truncf %57 : vector<512x128xf32> to vector<512x128xbf16>
    %c0_64 = arith.constant 0 : index
    %c2_65 = arith.constant 2 : index
    %c2_66 = arith.constant 2 : index
    %c0_67 = arith.constant 0 : index
    %59 = vector.load %arg9[%c0_64, %c2_65, %c2_66, %c0_67] : memref<2x18x18x128xf32, #tpu.memory_space<vmem>>, vector<2x16x16x128xf32>
    %60 = vector.shape_cast %59 : vector<2x16x16x128xf32> to vector<512x128xf32>
    %61 = arith.truncf %60 : vector<512x128xf32> to vector<512x128xbf16>
    %62 = tpu.concatenate %37, %40, %43, %46, %49, %52, %55, %58, %61 in 1 : vector<512x128xbf16>, vector<512x128xbf16>, vector<512x128xbf16>, vector<512x128xbf16>, vector<512x128xbf16>, vector<512x128xbf16>, vector<512x128xbf16>, vector<512x128xbf16>, vector<512x128xbf16> -> vector<512x1152xbf16>
    %c0_68 = arith.constant 0 : index
    %c0_69 = arith.constant 0 : index
    %63 = vector.load %arg4[%c0_68, %c0_69] : memref<1152x128xbf16, #tpu.memory_space<vmem>>, vector<1152x128xbf16>
    %cst_70 = arith.constant dense<0.000000e+00> : vector<512x128xf32>
    %64 = tpu.matmul %62, %63, %cst_70 {dimension_numbers = #tpu.dot_dimension_numbers<[1], [0], [0], [1], [0, 0, 1, 1], [], []>} : vector<512x1152xbf16>, vector<1152x128xbf16>, vector<512x128xf32> -> vector<512x128xf32>
    %c0_71 = arith.constant 0 : index
    %c0_72 = arith.constant 0 : index
    %65 = vector.load %arg5[%c0_71, %c0_72] : memref<1x128xf32, #tpu.memory_space<vmem>>, vector<1x128xf32>
    %c0_73 = arith.constant 0 : index
    %c0_74 = arith.constant 0 : index
    %66 = vector.load %arg6[%c0_73, %c0_74] : memref<1x128xf32, #tpu.memory_space<vmem>>, vector<1x128xf32>
    %cst_75 = arith.constant dense<0.000000e+00> : vector<128xf32>
    %67 = vector.multi_reduction <add>, %64, %cst_75 [0] : vector<512x128xf32> to vector<128xf32>
    %68 = vector.shape_cast %67 : vector<128xf32> to vector<1x128xf32>
    %cst_76 = arith.constant 0.001953125 : f32
    %69 = vector.broadcast %cst_76 : f32 to vector<1x128xf32>
    %70 = arith.mulf %68, %69 : vector<1x128xf32>
    %71 = vector.broadcast %70 : vector<1x128xf32> to vector<512x128xf32>
    %72 = arith.subf %64, %71 : vector<512x128xf32>
    %73 = arith.mulf %72, %72 : vector<512x128xf32>
    %cst_77 = arith.constant dense<0.000000e+00> : vector<128xf32>
    %74 = vector.multi_reduction <add>, %73, %cst_77 [0] : vector<512x128xf32> to vector<128xf32>
    %75 = vector.shape_cast %74 : vector<128xf32> to vector<1x128xf32>
    %cst_78 = arith.constant 0.001953125 : f32
    %76 = vector.broadcast %cst_78 : f32 to vector<1x128xf32>
    %77 = arith.mulf %75, %76 : vector<1x128xf32>
    %cst_79 = arith.constant 9.99999974E-6 : f32
    %78 = vector.broadcast %cst_79 : f32 to vector<1x128xf32>
    %79 = arith.addf %77, %78 : vector<1x128xf32>
    %80 = math.rsqrt %79 : vector<1x128xf32>
    %81 = vector.broadcast %80 : vector<1x128xf32> to vector<512x128xf32>
    %82 = arith.mulf %72, %81 : vector<512x128xf32>
    %83 = vector.broadcast %65 : vector<1x128xf32> to vector<512x128xf32>
    %84 = arith.mulf %82, %83 : vector<512x128xf32>
    %85 = vector.broadcast %66 : vector<1x128xf32> to vector<512x128xf32>
    %86 = arith.addf %84, %85 : vector<512x128xf32>
    %c0_80 = arith.constant 0 : index
    %c0_81 = arith.constant 0 : index
    %87 = vector.load %arg7[%c0_80, %c0_81] : memref<512x128xf32, #tpu.memory_space<vmem>>, vector<512x128xf32>
    %88 = arith.addf %86, %87 : vector<512x128xf32>
    %cst_82 = arith.constant 0.000000e+00 : f32
    %89 = vector.broadcast %cst_82 : f32 to vector<512x128xf32>
    %90 = arith.maximumf %88, %89 : vector<512x128xf32>
    %91 = arith.truncf %90 : vector<512x128xf32> to vector<512x128xbf16>
    %c0_83 = arith.constant 0 : index
    %c0_84 = arith.constant 0 : index
    %92 = vector.load %arg8[%c0_83, %c0_84] : memref<512x128xbf16, #tpu.memory_space<vmem>>, vector<512x128xbf16>
    tpu.vector_store %arg8[%c0_83, %c0_84], %91 {strides = array<i32>} : memref<512x128xbf16, #tpu.memory_space<vmem>>, vector<512x128xbf16>,
    return
  }
}

module attributes {stable_mosaic.version = 11 : i64} {
  func.func @_basic_block_kernel(%arg0: memref<128x256xbf16, #tpu.memory_space<vmem>>, %arg1: memref<256x128xbf16, #tpu.memory_space<vmem>>, %arg2: memref<1x128xf32, #tpu.memory_space<vmem>>, %arg3: memref<1x128xf32, #tpu.memory_space<vmem>>, %arg4: memref<1152x128xbf16, #tpu.memory_space<vmem>>, %arg5: memref<1x128xf32, #tpu.memory_space<vmem>>, %arg6: memref<1x128xf32, #tpu.memory_space<vmem>>, %arg7: memref<256x128xbf16, #tpu.memory_space<vmem>>, %arg8: memref<1x128xf32, #tpu.memory_space<vmem>>, %arg9: memref<1x128xf32, #tpu.memory_space<vmem>>, %arg10: memref<128x128xf32, #tpu.memory_space<vmem>>, %arg11: memref<2x10x10x128xf32, #tpu.memory_space<vmem>>) attributes {dimension_semantics = [], scalar_prefetch = 0 : i64, scratch_operands = 1 : i64, tpu.core_type = #tpu.core_type<tc>} {
    %c0 = arith.constant 0 : index
    %c0_0 = arith.constant 0 : index
    %0 = vector.load %arg0[%c0, %c0_0] : memref<128x256xbf16, #tpu.memory_space<vmem>>, vector<128x256xbf16>
    %c0_1 = arith.constant 0 : index
    %c0_2 = arith.constant 0 : index
    %1 = vector.load %arg1[%c0_1, %c0_2] : memref<256x128xbf16, #tpu.memory_space<vmem>>, vector<256x128xbf16>
    %cst = arith.constant dense<0.000000e+00> : vector<128x128xf32>
    %2 = tpu.matmul %0, %1, %cst {dimension_numbers = #tpu.dot_dimension_numbers<[1], [0], [0], [1], [0, 0, 1, 1], [], []>} : vector<128x256xbf16>, vector<256x128xbf16>, vector<128x128xf32> -> vector<128x128xf32>
    %c0_3 = arith.constant 0 : index
    %c0_4 = arith.constant 0 : index
    %3 = vector.load %arg2[%c0_3, %c0_4] : memref<1x128xf32, #tpu.memory_space<vmem>>, vector<1x128xf32>
    %c0_5 = arith.constant 0 : index
    %c0_6 = arith.constant 0 : index
    %4 = vector.load %arg3[%c0_5, %c0_6] : memref<1x128xf32, #tpu.memory_space<vmem>>, vector<1x128xf32>
    %cst_7 = arith.constant dense<0.000000e+00> : vector<128xf32>
    %5 = vector.multi_reduction <add>, %2, %cst_7 [0] : vector<128x128xf32> to vector<128xf32>
    %6 = vector.shape_cast %5 : vector<128xf32> to vector<1x128xf32>
    %cst_8 = arith.constant 7.812500e-03 : f32
    %7 = vector.broadcast %cst_8 : f32 to vector<1x128xf32>
    %8 = arith.mulf %6, %7 : vector<1x128xf32>
    %9 = vector.broadcast %8 : vector<1x128xf32> to vector<128x128xf32>
    %10 = arith.subf %2, %9 : vector<128x128xf32>
    %11 = arith.mulf %10, %10 : vector<128x128xf32>
    %cst_9 = arith.constant dense<0.000000e+00> : vector<128xf32>
    %12 = vector.multi_reduction <add>, %11, %cst_9 [0] : vector<128x128xf32> to vector<128xf32>
    %13 = vector.shape_cast %12 : vector<128xf32> to vector<1x128xf32>
    %cst_10 = arith.constant 7.812500e-03 : f32
    %14 = vector.broadcast %cst_10 : f32 to vector<1x128xf32>
    %15 = arith.mulf %13, %14 : vector<1x128xf32>
    %cst_11 = arith.constant 9.99999974E-6 : f32
    %16 = vector.broadcast %cst_11 : f32 to vector<1x128xf32>
    %17 = arith.addf %15, %16 : vector<1x128xf32>
    %18 = math.rsqrt %17 : vector<1x128xf32>
    %19 = vector.broadcast %18 : vector<1x128xf32> to vector<128x128xf32>
    %20 = arith.mulf %10, %19 : vector<128x128xf32>
    %21 = vector.broadcast %3 : vector<1x128xf32> to vector<128x128xf32>
    %22 = arith.mulf %20, %21 : vector<128x128xf32>
    %23 = vector.broadcast %4 : vector<1x128xf32> to vector<128x128xf32>
    %24 = arith.addf %22, %23 : vector<128x128xf32>
    %cst_12 = arith.constant 0.000000e+00 : f32
    %25 = vector.broadcast %cst_12 : f32 to vector<128x128xf32>
    %26 = arith.maximumf %24, %25 : vector<128x128xf32>
    %cst_13 = arith.constant 0.000000e+00 : f32
    %27 = vector.broadcast %cst_13 : f32 to vector<2x1x10x128xf32>
    %cst_14 = arith.constant 0.000000e+00 : f32
    %28 = vector.broadcast %cst_14 : f32 to vector<2x8x1x128xf32>
    %c0_15 = arith.constant 0 : index
    %c0_16 = arith.constant 0 : index
    %c0_17 = arith.constant 0 : index
    %c0_18 = arith.constant 0 : index
    %29 = vector.load %arg11[%c0_15, %c0_16, %c0_17, %c0_18] : memref<2x10x10x128xf32, #tpu.memory_space<vmem>>, vector<2x1x10x128xf32>
    tpu.vector_store %arg11[%c0_15, %c0_16, %c0_17, %c0_18], %27 {strides = array<i32>} : memref<2x10x10x128xf32, #tpu.memory_space<vmem>>, vector<2x1x10x128xf32>,
    %c0_19 = arith.constant 0 : index
    %c9 = arith.constant 9 : index
    %c0_20 = arith.constant 0 : index
    %c0_21 = arith.constant 0 : index
    %30 = vector.load %arg11[%c0_19, %c9, %c0_20, %c0_21] : memref<2x10x10x128xf32, #tpu.memory_space<vmem>>, vector<2x1x10x128xf32>
    tpu.vector_store %arg11[%c0_19, %c9, %c0_20, %c0_21], %27 {strides = array<i32>} : memref<2x10x10x128xf32, #tpu.memory_space<vmem>>, vector<2x1x10x128xf32>,
    %c0_22 = arith.constant 0 : index
    %c1 = arith.constant 1 : index
    %c0_23 = arith.constant 0 : index
    %c0_24 = arith.constant 0 : index
    %31 = vector.load %arg11[%c0_22, %c1, %c0_23, %c0_24] : memref<2x10x10x128xf32, #tpu.memory_space<vmem>>, vector<2x8x1x128xf32>
    tpu.vector_store %arg11[%c0_22, %c1, %c0_23, %c0_24], %28 {strides = array<i32>} : memref<2x10x10x128xf32, #tpu.memory_space<vmem>>, vector<2x8x1x128xf32>,
    %c0_25 = arith.constant 0 : index
    %c1_26 = arith.constant 1 : index
    %c9_27 = arith.constant 9 : index
    %c0_28 = arith.constant 0 : index
    %32 = vector.load %arg11[%c0_25, %c1_26, %c9_27, %c0_28] : memref<2x10x10x128xf32, #tpu.memory_space<vmem>>, vector<2x8x1x128xf32>
    tpu.vector_store %arg11[%c0_25, %c1_26, %c9_27, %c0_28], %28 {strides = array<i32>} : memref<2x10x10x128xf32, #tpu.memory_space<vmem>>, vector<2x8x1x128xf32>,
    %33 = vector.shape_cast %26 : vector<128x128xf32> to vector<2x8x8x128xf32>
    %c0_29 = arith.constant 0 : index
    %c1_30 = arith.constant 1 : index
    %c1_31 = arith.constant 1 : index
    %c0_32 = arith.constant 0 : index
    %34 = vector.load %arg11[%c0_29, %c1_30, %c1_31, %c0_32] : memref<2x10x10x128xf32, #tpu.memory_space<vmem>>, vector<2x8x8x128xf32>
    tpu.vector_store %arg11[%c0_29, %c1_30, %c1_31, %c0_32], %33 {strides = array<i32>} : memref<2x10x10x128xf32, #tpu.memory_space<vmem>>, vector<2x8x8x128xf32>,
    %c0_33 = arith.constant 0 : index
    %c0_34 = arith.constant 0 : index
    %c0_35 = arith.constant 0 : index
    %c0_36 = arith.constant 0 : index
    %35 = vector.load %arg11[%c0_33, %c0_34, %c0_35, %c0_36] : memref<2x10x10x128xf32, #tpu.memory_space<vmem>>, vector<2x8x8x128xf32>
    %36 = vector.shape_cast %35 : vector<2x8x8x128xf32> to vector<128x128xf32>
    %37 = arith.truncf %36 : vector<128x128xf32> to vector<128x128xbf16>
    %c0_37 = arith.constant 0 : index
    %c0_38 = arith.constant 0 : index
    %c1_39 = arith.constant 1 : index
    %c0_40 = arith.constant 0 : index
    %38 = vector.load %arg11[%c0_37, %c0_38, %c1_39, %c0_40] : memref<2x10x10x128xf32, #tpu.memory_space<vmem>>, vector<2x8x8x128xf32>
    %39 = vector.shape_cast %38 : vector<2x8x8x128xf32> to vector<128x128xf32>
    %40 = arith.truncf %39 : vector<128x128xf32> to vector<128x128xbf16>
    %c0_41 = arith.constant 0 : index
    %c0_42 = arith.constant 0 : index
    %c2 = arith.constant 2 : index
    %c0_43 = arith.constant 0 : index
    %41 = vector.load %arg11[%c0_41, %c0_42, %c2, %c0_43] : memref<2x10x10x128xf32, #tpu.memory_space<vmem>>, vector<2x8x8x128xf32>
    %42 = vector.shape_cast %41 : vector<2x8x8x128xf32> to vector<128x128xf32>
    %43 = arith.truncf %42 : vector<128x128xf32> to vector<128x128xbf16>
    %c0_44 = arith.constant 0 : index
    %c1_45 = arith.constant 1 : index
    %c0_46 = arith.constant 0 : index
    %c0_47 = arith.constant 0 : index
    %44 = vector.load %arg11[%c0_44, %c1_45, %c0_46, %c0_47] : memref<2x10x10x128xf32, #tpu.memory_space<vmem>>, vector<2x8x8x128xf32>
    %45 = vector.shape_cast %44 : vector<2x8x8x128xf32> to vector<128x128xf32>
    %46 = arith.truncf %45 : vector<128x128xf32> to vector<128x128xbf16>
    %c0_48 = arith.constant 0 : index
    %c1_49 = arith.constant 1 : index
    %c1_50 = arith.constant 1 : index
    %c0_51 = arith.constant 0 : index
    %47 = vector.load %arg11[%c0_48, %c1_49, %c1_50, %c0_51] : memref<2x10x10x128xf32, #tpu.memory_space<vmem>>, vector<2x8x8x128xf32>
    %48 = vector.shape_cast %47 : vector<2x8x8x128xf32> to vector<128x128xf32>
    %49 = arith.truncf %48 : vector<128x128xf32> to vector<128x128xbf16>
    %c0_52 = arith.constant 0 : index
    %c1_53 = arith.constant 1 : index
    %c2_54 = arith.constant 2 : index
    %c0_55 = arith.constant 0 : index
    %50 = vector.load %arg11[%c0_52, %c1_53, %c2_54, %c0_55] : memref<2x10x10x128xf32, #tpu.memory_space<vmem>>, vector<2x8x8x128xf32>
    %51 = vector.shape_cast %50 : vector<2x8x8x128xf32> to vector<128x128xf32>
    %52 = arith.truncf %51 : vector<128x128xf32> to vector<128x128xbf16>
    %c0_56 = arith.constant 0 : index
    %c2_57 = arith.constant 2 : index
    %c0_58 = arith.constant 0 : index
    %c0_59 = arith.constant 0 : index
    %53 = vector.load %arg11[%c0_56, %c2_57, %c0_58, %c0_59] : memref<2x10x10x128xf32, #tpu.memory_space<vmem>>, vector<2x8x8x128xf32>
    %54 = vector.shape_cast %53 : vector<2x8x8x128xf32> to vector<128x128xf32>
    %55 = arith.truncf %54 : vector<128x128xf32> to vector<128x128xbf16>
    %c0_60 = arith.constant 0 : index
    %c2_61 = arith.constant 2 : index
    %c1_62 = arith.constant 1 : index
    %c0_63 = arith.constant 0 : index
    %56 = vector.load %arg11[%c0_60, %c2_61, %c1_62, %c0_63] : memref<2x10x10x128xf32, #tpu.memory_space<vmem>>, vector<2x8x8x128xf32>
    %57 = vector.shape_cast %56 : vector<2x8x8x128xf32> to vector<128x128xf32>
    %58 = arith.truncf %57 : vector<128x128xf32> to vector<128x128xbf16>
    %c0_64 = arith.constant 0 : index
    %c2_65 = arith.constant 2 : index
    %c2_66 = arith.constant 2 : index
    %c0_67 = arith.constant 0 : index
    %59 = vector.load %arg11[%c0_64, %c2_65, %c2_66, %c0_67] : memref<2x10x10x128xf32, #tpu.memory_space<vmem>>, vector<2x8x8x128xf32>
    %60 = vector.shape_cast %59 : vector<2x8x8x128xf32> to vector<128x128xf32>
    %61 = arith.truncf %60 : vector<128x128xf32> to vector<128x128xbf16>
    %62 = tpu.concatenate %37, %40, %43, %46, %49, %52, %55, %58, %61 in 1 : vector<128x128xbf16>, vector<128x128xbf16>, vector<128x128xbf16>, vector<128x128xbf16>, vector<128x128xbf16>, vector<128x128xbf16>, vector<128x128xbf16>, vector<128x128xbf16>, vector<128x128xbf16> -> vector<128x1152xbf16>
    %c0_68 = arith.constant 0 : index
    %c0_69 = arith.constant 0 : index
    %63 = vector.load %arg4[%c0_68, %c0_69] : memref<1152x128xbf16, #tpu.memory_space<vmem>>, vector<1152x128xbf16>
    %cst_70 = arith.constant dense<0.000000e+00> : vector<128x128xf32>
    %64 = tpu.matmul %62, %63, %cst_70 {dimension_numbers = #tpu.dot_dimension_numbers<[1], [0], [0], [1], [0, 0, 1, 1], [], []>} : vector<128x1152xbf16>, vector<1152x128xbf16>, vector<128x128xf32> -> vector<128x128xf32>
    %c0_71 = arith.constant 0 : index
    %c0_72 = arith.constant 0 : index
    %65 = vector.load %arg5[%c0_71, %c0_72] : memref<1x128xf32, #tpu.memory_space<vmem>>, vector<1x128xf32>
    %c0_73 = arith.constant 0 : index
    %c0_74 = arith.constant 0 : index
    %66 = vector.load %arg6[%c0_73, %c0_74] : memref<1x128xf32, #tpu.memory_space<vmem>>, vector<1x128xf32>
    %cst_75 = arith.constant dense<0.000000e+00> : vector<128xf32>
    %67 = vector.multi_reduction <add>, %64, %cst_75 [0] : vector<128x128xf32> to vector<128xf32>
    %68 = vector.shape_cast %67 : vector<128xf32> to vector<1x128xf32>
    %cst_76 = arith.constant 7.812500e-03 : f32
    %69 = vector.broadcast %cst_76 : f32 to vector<1x128xf32>
    %70 = arith.mulf %68, %69 : vector<1x128xf32>
    %71 = vector.broadcast %70 : vector<1x128xf32> to vector<128x128xf32>
    %72 = arith.subf %64, %71 : vector<128x128xf32>
    %73 = arith.mulf %72, %72 : vector<128x128xf32>
    %cst_77 = arith.constant dense<0.000000e+00> : vector<128xf32>
    %74 = vector.multi_reduction <add>, %73, %cst_77 [0] : vector<128x128xf32> to vector<128xf32>
    %75 = vector.shape_cast %74 : vector<128xf32> to vector<1x128xf32>
    %cst_78 = arith.constant 7.812500e-03 : f32
    %76 = vector.broadcast %cst_78 : f32 to vector<1x128xf32>
    %77 = arith.mulf %75, %76 : vector<1x128xf32>
    %cst_79 = arith.constant 9.99999974E-6 : f32
    %78 = vector.broadcast %cst_79 : f32 to vector<1x128xf32>
    %79 = arith.addf %77, %78 : vector<1x128xf32>
    %80 = math.rsqrt %79 : vector<1x128xf32>
    %81 = vector.broadcast %80 : vector<1x128xf32> to vector<128x128xf32>
    %82 = arith.mulf %72, %81 : vector<128x128xf32>
    %83 = vector.broadcast %65 : vector<1x128xf32> to vector<128x128xf32>
    %84 = arith.mulf %82, %83 : vector<128x128xf32>
    %85 = vector.broadcast %66 : vector<1x128xf32> to vector<128x128xf32>
    %86 = arith.addf %84, %85 : vector<128x128xf32>
    %c0_80 = arith.constant 0 : index
    %c0_81 = arith.constant 0 : index
    %87 = vector.load %arg7[%c0_80, %c0_81] : memref<256x128xbf16, #tpu.memory_space<vmem>>, vector<256x128xbf16>
    %cst_82 = arith.constant dense<0.000000e+00> : vector<128x128xf32>
    %88 = tpu.matmul %0, %87, %cst_82 {dimension_numbers = #tpu.dot_dimension_numbers<[1], [0], [0], [1], [0, 0, 1, 1], [], []>} : vector<128x256xbf16>, vector<256x128xbf16>, vector<128x128xf32> -> vector<128x128xf32>
    %c0_83 = arith.constant 0 : index
    %c0_84 = arith.constant 0 : index
    %89 = vector.load %arg8[%c0_83, %c0_84] : memref<1x128xf32, #tpu.memory_space<vmem>>, vector<1x128xf32>
    %c0_85 = arith.constant 0 : index
    %c0_86 = arith.constant 0 : index
    %90 = vector.load %arg9[%c0_85, %c0_86] : memref<1x128xf32, #tpu.memory_space<vmem>>, vector<1x128xf32>
    %cst_87 = arith.constant dense<0.000000e+00> : vector<128xf32>
    %91 = vector.multi_reduction <add>, %88, %cst_87 [0] : vector<128x128xf32> to vector<128xf32>
    %92 = vector.shape_cast %91 : vector<128xf32> to vector<1x128xf32>
    %cst_88 = arith.constant 7.812500e-03 : f32
    %93 = vector.broadcast %cst_88 : f32 to vector<1x128xf32>
    %94 = arith.mulf %92, %93 : vector<1x128xf32>
    %95 = vector.broadcast %94 : vector<1x128xf32> to vector<128x128xf32>
    %96 = arith.subf %88, %95 : vector<128x128xf32>
    %97 = arith.mulf %96, %96 : vector<128x128xf32>
    %cst_89 = arith.constant dense<0.000000e+00> : vector<128xf32>
    %98 = vector.multi_reduction <add>, %97, %cst_89 [0] : vector<128x128xf32> to vector<128xf32>
    %99 = vector.shape_cast %98 : vector<128xf32> to vector<1x128xf32>
    %cst_90 = arith.constant 7.812500e-03 : f32
    %100 = vector.broadcast %cst_90 : f32 to vector<1x128xf32>
    %101 = arith.mulf %99, %100 : vector<1x128xf32>
    %cst_91 = arith.constant 9.99999974E-6 : f32
    %102 = vector.broadcast %cst_91 : f32 to vector<1x128xf32>
    %103 = arith.addf %101, %102 : vector<1x128xf32>
    %104 = math.rsqrt %103 : vector<1x128xf32>
    %105 = vector.broadcast %104 : vector<1x128xf32> to vector<128x128xf32>
    %106 = arith.mulf %96, %105 : vector<128x128xf32>
    %107 = vector.broadcast %89 : vector<1x128xf32> to vector<128x128xf32>
    %108 = arith.mulf %106, %107 : vector<128x128xf32>
    %109 = vector.broadcast %90 : vector<1x128xf32> to vector<128x128xf32>
    %110 = arith.addf %108, %109 : vector<128x128xf32>
    %111 = arith.addf %86, %110 : vector<128x128xf32>
    %cst_92 = arith.constant 0.000000e+00 : f32
    %112 = vector.broadcast %cst_92 : f32 to vector<128x128xf32>
    %113 = arith.maximumf %111, %112 : vector<128x128xf32>
    %c0_93 = arith.constant 0 : index
    %c0_94 = arith.constant 0 : index
    %114 = vector.load %arg10[%c0_93, %c0_94] : memref<128x128xf32, #tpu.memory_space<vmem>>, vector<128x128xf32>
    tpu.vector_store %arg10[%c0_93, %c0_94], %113 {strides = array<i32>} : memref<128x128xf32, #tpu.memory_space<vmem>>, vector<128x128xf32>,
    return
  }
}

</mosaic_0001>

<llo_original>
// kernel: forward.3
$region0: #{forward.3}
  #allocation0 [shape = 'u32[]', space=smem, size = 0x4, offset = 0x4, fixed_abs, tag = 'smem constant byte address 0x4 - core index']
  #allocation1 [shape = 'u32[144,128]{1,0:T(1,128)}', space=vmem, size = 0x12000, scoped, tag = 'internal scratch']
  #allocation2 [shape = 'f32[2,10,10,128]{3,2,1,0:T(8,128)}', space=vmem, size = 0x28000, scoped, tag = 'scratch operand']
  %s0 = inlined_call_operand.vmem [shape: bf16[128,256], index: 0, kind: input, shape index: {}]
  %s1 = inlined_call_operand.vmem [shape: bf16[256,128], index: 1, kind: input, shape index: {}]
  %s2 = inlined_call_operand.vmem [shape: f32[1,128], index: 2, kind: input, shape index: {}]
  %s3 = inlined_call_operand.vmem [shape: f32[1,128], index: 3, kind: input, shape index: {}]
  %s4 = inlined_call_operand.vmem [shape: bf16[1152,128], index: 4, kind: input, shape index: {}]
  %s5 = inlined_call_operand.vmem [shape: f32[1,128], index: 5, kind: input, shape index: {}]
  %s6 = inlined_call_operand.vmem [shape: f32[1,128], index: 6, kind: input, shape index: {}]
  %s7 = inlined_call_operand.vmem [shape: bf16[256,128], index: 7, kind: input, shape index: {}]
  %s8 = inlined_call_operand.vmem [shape: f32[1,128], index: 8, kind: input, shape index: {}]
  %s9 = inlined_call_operand.vmem [shape: f32[1,128], index: 9, kind: input, shape index: {}]
  %s10 = inlined_call_operand.vmem [shape: f32[128,128], index: 10, kind: output, shape index: {}]
  %s11 = sld [smem:[#allocation0]]
  $region50: #{forward.3} parent=0
    _
  %s13 = ssub.s32 1, %s11
  %s14 = scalar_select 0, %s13, %s11
  // Predicated region
  $region2: #{forward.3} parent=0 // pred_check
    _
  $region3: #{forward.3} parent=0 // pred_check_branch
    %16 = sbr.rel (0) target = $region5
  $region4: #{forward.3} parent=0 // pred_region
    _
  $region5: #{forward.3} parent=0 // pred_fallthru
    _
  // Predicated region
  $region6: #{forward.3} parent=0 // pred_check
    _
  $region7: #{forward.3} parent=0 // pred_check_branch
    %18 = sbr.rel (0) target = $region9
  $region8: #{forward.3} parent=0 // pred_region
    _
  $region9: #{forward.3} parent=0 // pred_fallthru
    _
  // Predicated region
  $region10: #{forward.3} parent=0 // pred_check
    _
  $region11: #{forward.3} parent=0 // pred_check_branch
    %20 = sbr.rel (0) target = $region13
  $region12: #{forward.3} parent=0 // pred_region
    _
  $region13: #{forward.3} parent=0 // pred_fallthru
    _
  // Predicated region
  $region14: #{forward.3} parent=0 // pred_check
    _
  $region15: #{forward.3} parent=0 // pred_check_branch
    %22 = sbr.rel (0) target = $region17
  $region16: #{forward.3} parent=0 // pred_region
    _
  $region17: #{forward.3} parent=0 // pred_fallthru
    _
  // Predicated region
  $region18: #{forward.3} parent=0 // pred_check
    _
  $region19: #{forward.3} parent=0 // pred_check_branch
    %24 = sbr.rel (0) target = $region21
  $region20: #{forward.3} parent=0 // pred_region
    _
  $region21: #{forward.3} parent=0 // pred_fallthru
    _
  // Predicated region
  $region22: #{forward.3} parent=0 // pred_check
    _
  $region23: #{forward.3} parent=0 // pred_check_branch
    %26 = sbr.rel (0) target = $region25
  $region24: #{forward.3} parent=0 // pred_region
    _
  $region25: #{forward.3} parent=0 // pred_fallthru
    _
  // Predicated region
  $region26: #{forward.3} parent=0 // pred_check
    _
  $region27: #{forward.3} parent=0 // pred_check_branch
    %28 = sbr.rel (0) target = $region29
  $region28: #{forward.3} parent=0 // pred_region
    _
  $region29: #{forward.3} parent=0 // pred_fallthru
    _
  // Predicated region
  $region30: #{forward.3} parent=0 // pred_check
    _
  $region31: #{forward.3} parent=0 // pred_check_branch
    %30 = sbr.rel (0) target = $region33
  $region32: #{forward.3} parent=0 // pred_region
    _
  $region33: #{forward.3} parent=0 // pred_fallthru
    _
  // Predicated region
  $region34: #{forward.3} parent=0 // pred_check
    _
  $region35: #{forward.3} parent=0 // pred_check_branch
    %32 = sbr.rel (0) target = $region37
  $region36: #{forward.3} parent=0 // pred_region
    _
  $region37: #{forward.3} parent=0 // pred_fallthru
    _
  // Predicated region
  $region38: #{forward.3} parent=0 // pred_check
    _
  $region39: #{forward.3} parent=0 // pred_check_branch
    %34 = sbr.rel (0) target = $region41
  $region40: #{forward.3} parent=0 // pred_region
    _
  $region41: #{forward.3} parent=0 // pred_fallthru
    _
  %v36 = vld [vmem:[%s0] sm:$0xff]
  %v37 = vld [vmem:[%s0 + $0x8] sm:$0xff]
  %v38 = vld [vmem:[%s0 + $0x10] sm:$0xff]
  %v39 = vld [vmem:[%s0 + $0x18] sm:$0xff]
  %v40 = vld [vmem:[%s0 + $0x20] sm:$0xff]
  %v41 = vld [vmem:[%s0 + $0x28] sm:$0xff]
  %v42 = vld [vmem:[%s0 + $0x30] sm:$0xff]
  %v43 = vld [vmem:[%s0 + $0x38] sm:$0xff]
  %v44 = vld [vmem:[%s0 + $0x40] sm:$0xff]
  %v45 = vld [vmem:[%s0 + $0x48] sm:$0xff]
  %v46 = vld [vmem:[%s0 + $0x50] sm:$0xff]
  %v47 = vld [vmem:[%s0 + $0x58] sm:$0xff]
  %v48 = vld [vmem:[%s0 + $0x60] sm:$0xff]
  %v49 = vld [vmem:[%s0 + $0x68] sm:$0xff]
  %v50 = vld [vmem:[%s0 + $0x70] sm:$0xff]
  %v51 = vld [vmem:[%s0 + $0x78] sm:$0xff]
  %v52 = vld [vmem:[%s1] sm:$0xf]
  %v53 = vld [vmem:[%s1 + $0x4] sm:$0xf]
  %v54 = vld [vmem:[%s1 + $0x8] sm:$0xf]
  %v55 = vld [vmem:[%s1 + $0xc] sm:$0xf]
  %v56 = vld [vmem:[%s1 + $0x10] sm:$0xf]
  %v57 = vld [vmem:[%s1 + $0x14] sm:$0xf]
  %v58 = vld [vmem:[%s1 + $0x18] sm:$0xf]
  %v59 = vld [vmem:[%s1 + $0x1c] sm:$0xf]
  %v60 = vld [vmem:[%s1 + $0x20] sm:$0xf]
  %v61 = vld [vmem:[%s1 + $0x24] sm:$0xf]
  %v62 = vld [vmem:[%s1 + $0x28] sm:$0xf]
  %v63 = vld [vmem:[%s1 + $0x2c] sm:$0xf]
  %v64 = vld [vmem:[%s1 + $0x30] sm:$0xf]
  %v65 = vld [vmem:[%s1 + $0x34] sm:$0xf]
  %v66 = vld [vmem:[%s1 + $0x38] sm:$0xf]
  %v67 = vld [vmem:[%s1 + $0x3c] sm:$0xf]
  %v68 = vld [vmem:[%s1 + $0x40] sm:$0xf]
  %v69 = vld [vmem:[%s1 + $0x44] sm:$0xf]
  %v70 = vld [vmem:[%s1 + $0x48] sm:$0xf]
  %v71 = vld [vmem:[%s1 + $0x4c] sm:$0xf]
  %v72 = vld [vmem:[%s1 + $0x50] sm:$0xf]
  %v73 = vld [vmem:[%s1 + $0x54] sm:$0xf]
  %v74 = vld [vmem:[%s1 + $0x58] sm:$0xf]
  %v75 = vld [vmem:[%s1 + $0x5c] sm:$0xf]
  %v76 = vld [vmem:[%s1 + $0x60] sm:$0xf]
  %v77 = vld [vmem:[%s1 + $0x64] sm:$0xf]
  %v78 = vld [vmem:[%s1 + $0x68] sm:$0xf]
  %v79 = vld [vmem:[%s1 + $0x6c] sm:$0xf]
  %v80 = vld [vmem:[%s1 + $0x70] sm:$0xf]
  %v81 = vld [vmem:[%s1 + $0x74] sm:$0xf]
  %v82 = vld [vmem:[%s1 + $0x78] sm:$0xf]
  %v83 = vld [vmem:[%s1 + $0x7c] sm:$0xf]
  %v100 = vunpack.c.l.b16 %v36
  %v101 = vunpack.c.h.b16 %v36
  %v102 = vunpack.c.l.b16 %v37
  %v103 = vunpack.c.h.b16 %v37
  %v104 = vunpack.c.l.b16 %v38
  %v105 = vunpack.c.h.b16 %v38
  %v106 = vunpack.c.l.b16 %v39
  %v107 = vunpack.c.h.b16 %v39
  %v108 = vunpack.c.l.b16 %v40
  %v109 = vunpack.c.h.b16 %v40
  %v110 = vunpack.c.l.b16 %v41
  %v111 = vunpack.c.h.b16 %v41
  %v112 = vunpack.c.l.b16 %v42
  %v113 = vunpack.c.h.b16 %v42
  %v114 = vunpack.c.l.b16 %v43
  %v115 = vunpack.c.h.b16 %v43
  %v116 = vunpack.c.l.b16 %v44
  %v117 = vunpack.c.h.b16 %v44
  %v118 = vunpack.c.l.b16 %v45
  %v119 = vunpack.c.h.b16 %v45
  %v120 = vunpack.c.l.b16 %v46
  %v121 = vunpack.c.h.b16 %v46
  %v122 = vunpack.c.l.b16 %v47
  %v123 = vunpack.c.h.b16 %v47
  %v124 = vunpack.c.l.b16 %v48
  %v125 = vunpack.c.h.b16 %v48
  %v126 = vunpack.c.l.b16 %v49
  %v127 = vunpack.c.h.b16 %v49
  %v128 = vunpack.c.l.b16 %v50
  %v129 = vunpack.c.h.b16 %v50
  %v130 = vunpack.c.l.b16 %v51
  %v131 = vunpack.c.h.b16 %v51
  %v132 = vpack.c.b16 %v102, %v100
  %v133 = vpack.c.b16 %v103, %v101
  %v134 = vpack.c.b16 %v106, %v104
  %v135 = vpack.c.b16 %v107, %v105
  %v136 = vpack.c.b16 %v110, %v108
  %v137 = vpack.c.b16 %v111, %v109
  %v138 = vpack.c.b16 %v114, %v112
  %v139 = vpack.c.b16 %v115, %v113
  %v140 = vpack.c.b16 %v118, %v116
  %v141 = vpack.c.b16 %v119, %v117
  %v142 = vpack.c.b16 %v122, %v120
  %v143 = vpack.c.b16 %v123, %v121
  %v144 = vpack.c.b16 %v126, %v124
  %v145 = vpack.c.b16 %v127, %v125
  %v146 = vpack.c.b16 %v130, %v128
  %v147 = vpack.c.b16 %v131, %v129
  %v196 = vunpack.c.l.b16 %v52
  %v197 = vunpack.c.l.b16 %v53
  %v198 = vunpack.c.l.b16 %v54
  %v199 = vunpack.c.l.b16 %v55
  %v200 = vunpack.c.l.b16 %v56
  %v201 = vunpack.c.l.b16 %v57
  %v202 = vunpack.c.l.b16 %v58
  %v203 = vunpack.c.l.b16 %v59
  %v204 = vunpack.c.l.b16 %v60
  %v205 = vunpack.c.l.b16 %v61
  %v206 = vunpack.c.l.b16 %v62
  %v207 = vunpack.c.l.b16 %v63
  %v208 = vunpack.c.l.b16 %v64
  %v209 = vunpack.c.l.b16 %v65
  %v210 = vunpack.c.l.b16 %v66
  %v211 = vunpack.c.l.b16 %v67
  %v212 = vunpack.c.l.b16 %v68
  %v213 = vunpack.c.l.b16 %v69
  %v214 = vunpack.c.l.b16 %v70
  %v215 = vunpack.c.l.b16 %v71
  %v216 = vunpack.c.l.b16 %v72
  %v217 = vunpack.c.l.b16 %v73
  %v218 = vunpack.c.l.b16 %v74
  %v219 = vunpack.c.l.b16 %v75
  %v220 = vunpack.c.l.b16 %v76
  %v221 = vunpack.c.l.b16 %v77
  %v222 = vunpack.c.l.b16 %v78
  %v223 = vunpack.c.l.b16 %v79
  %v224 = vunpack.c.l.b16 %v80
  %v225 = vunpack.c.l.b16 %v81
  %v226 = vunpack.c.l.b16 %v82
  %v227 = vunpack.c.l.b16 %v83
  %v228 = vpack.c.b16 %v197, %v196
  %v229 = vpack.c.b16 %v199, %v198
  %v230 = vpack.c.b16 %v201, %v200
  %v231 = vpack.c.b16 %v203, %v202
  %v232 = vpack.c.b16 %v205, %v204
  %v233 = vpack.c.b16 %v207, %v206
  %v234 = vpack.c.b16 %v209, %v208
  %v235 = vpack.c.b16 %v211, %v210
  %v236 = vpack.c.b16 %v213, %v212
  %v237 = vpack.c.b16 %v215, %v214
  %v238 = vpack.c.b16 %v217, %v216
  %v239 = vpack.c.b16 %v219, %v218
  %v240 = vpack.c.b16 %v221, %v220
  %v241 = vpack.c.b16 %v223, %v222
  %v242 = vpack.c.b16 %v225, %v224
  %v243 = vpack.c.b16 %v227, %v226
  %260 = vmatprep.subr.bf16.mxu0 0
  %261 = vmatpush1.bf16.msra.mxu0 %v228
  %262 = vmatprep.subr.bf16.mxu0 0
  %263 = vmatpush1.bf16.msra.mxu0 %v229
  %264 = vmatprep.subr.bf16.mxu0 0
  %265 = vmatpush1.bf16.msra.mxu0 %v230
  %266 = vmatprep.subr.bf16.mxu0 0
  %267 = vmatpush1.bf16.msra.mxu0 %v231
  %268 = vmatprep.subr.bf16.mxu0 0
  %269 = vmatpush1.bf16.msra.mxu0 %v232
  %270 = vmatprep.subr.bf16.mxu0 0
  %271 = vmatpush1.bf16.msra.mxu0 %v233
  %272 = vmatprep.subr.bf16.mxu0 0
  %273 = vmatpush1.bf16.msra.mxu0 %v234
  %274 = vmatprep.subr.bf16.mxu0 0
  %275 = vmatpush1.bf16.msra.mxu0 %v235
  %276 = vmatprep.subr.bf16.mxu0 0
  %277 = vmatpush1.bf16.msra.mxu0 %v236
  %278 = vmatprep.subr.bf16.mxu0 0
  %279 = vmatpush1.bf16.msra.mxu0 %v237
  %280 = vmatprep.subr.bf16.mxu0 0
  %281 = vmatpush1.bf16.msra.mxu0 %v238
  %282 = vmatprep.subr.bf16.mxu0 0
  %283 = vmatpush1.bf16.msra.mxu0 %v239
  %284 = vmatprep.subr.bf16.mxu0 0
  %285 = vmatpush1.bf16.msra.mxu0 %v240
  %286 = vmatprep.subr.bf16.mxu0 0
  %287 = vmatpush1.bf16.msra.mxu0 %v241
  %288 = vmatprep.subr.bf16.mxu0 0
  %289 = vmatpush1.bf16.msra.mxu0 %v242
  %290 = vmatprep.subr.bf16.mxu0 0
  %291 = vmatpush1.bf16.msra.mxu0 %v243
  %292 = vmatprep.mubr.bf16.mxu0 %v133
  %293 = vmatmul.mubr.bf16.gmra.mrb[0].mxu0 %v132
  %v294 = vpop.f32.mrb[0].mxu0
  %v295 = vadd.f32 0.0, %v294
  %v296 = vpop.f32.mrb[0].mxu0
  %v297 = vpop.f32.mrb[0].mxu0
  %v298 = vadd.f32 0.0, %v297
  %v299 = vpop.f32.mrb[0].mxu0
  %300 = vmatprep.mubr.bf16.mxu0 %v135
  %301 = vmatmul.mubr.bf16.gmra.mrb[0].mxu0 %v134
  %v302 = vpop.f32.mrb[0].mxu0
  %v303 = vadd.f32 0.0, %v302
  %v304 = vpop.f32.mrb[0].mxu0
  %v305 = vpop.f32.mrb[0].mxu0
  %v306 = vadd.f32 0.0, %v305
  %v307 = vpop.f32.mrb[0].mxu0
  %308 = vmatprep.mubr.bf16.mxu0 %v137
  %309 = vmatmul.mubr.bf16.gmra.mrb[0].mxu0 %v136
  %v310 = vpop.f32.mrb[0].mxu0
  %v311 = vadd.f32 0.0, %v310
  %v312 = vpop.f32.mrb[0].mxu0
  %v313 = vpop.f32.mrb[0].mxu0
  %v314 = vadd.f32 0.0, %v313
  %v315 = vpop.f32.mrb[0].mxu0
  %316 = vmatprep.mubr.bf16.mxu0 %v139
  %317 = vmatmul.mubr.bf16.gmra.mrb[0].mxu0 %v138
  %v318 = vpop.f32.mrb[0].mxu0
  %v319 = vadd.f32 0.0, %v318
  %v320 = vpop.f32.mrb[0].mxu0
  %v321 = vpop.f32.mrb[0].mxu0
  %v322 = vadd.f32 0.0, %v321
  %v323 = vpop.f32.mrb[0].mxu0
  %324 = vmatprep.mubr.bf16.mxu0 %v141
  %325 = vmatmul.mubr.bf16.gmra.mrb[0].mxu0 %v140
  %v326 = vpop.f32.mrb[0].mxu0
  %v327 = vadd.f32 0.0, %v326
  %v328 = vpop.f32.mrb[0].mxu0
  %v329 = vpop.f32.mrb[0].mxu0
  %v330 = vadd.f32 0.0, %v329
  %v331 = vpop.f32.mrb[0].mxu0
  %332 = vmatprep.mubr.bf16.mxu0 %v143
  %333 = vmatmul.mubr.bf16.gmra.mrb[0].mxu0 %v142
  %v334 = vpop.f32.mrb[0].mxu0
  %v335 = vadd.f32 0.0, %v334
  %v336 = vpop.f32.mrb[0].mxu0
  %v337 = vpop.f32.mrb[0].mxu0
  %v338 = vadd.f32 0.0, %v337
  %v339 = vpop.f32.mrb[0].mxu0
  %340 = vmatprep.mubr.bf16.mxu0 %v145
  %341 = vmatmul.mubr.bf16.gmra.mrb[0].mxu0 %v144
  %v342 = vpop.f32.mrb[0].mxu0
  %v343 = vadd.f32 0.0, %v342
  %v344 = vpop.f32.mrb[0].mxu0
  %v345 = vpop.f32.mrb[0].mxu0
  %v346 = vadd.f32 0.0, %v345
  %v347 = vpop.f32.mrb[0].mxu0
  %348 = vmatprep.mubr.bf16.mxu0 %v147
  %349 = vmatmul.mubr.bf16.gmra.mrb[0].mxu0 %v146
  %v350 = vpop.f32.mrb[0].mxu0
  %v351 = vadd.f32 0.0, %v350
  %v352 = vpop.f32.mrb[0].mxu0
  %v353 = vpop.f32.mrb[0].mxu0
  %v354 = vadd.f32 0.0, %v353
  %v355 = vpop.f32.mrb[0].mxu0
  %356 = vdwg.mxu0
  %v357 = vld [vmem:[%s2] sm:$0x1]
  %v358 = vld [vmem:[%s3] sm:$0x1]
  %v359 = vadd.f32 %v295, %v298
  %v360 = vadd.f32 %v359, %v303
  %v361 = vadd.f32 %v360, %v306
  %v362 = vadd.f32 %v361, %v311
  %v363 = vadd.f32 %v362, %v314
  %v364 = vadd.f32 %v363, %v319
  %v365 = vadd.f32 %v364, %v322
  %v366 = vadd.f32 %v365, %v327
  %v367 = vadd.f32 %v366, %v330
  %v368 = vadd.f32 %v367, %v335
  %v369 = vadd.f32 %v368, %v338
  %v370 = vadd.f32 %v369, %v343
  %v371 = vadd.f32 %v370, %v346
  %v372 = vadd.f32 %v371, %v351
  %v373 = vadd.f32 %v372, %v354
  %v374 = vrot.slane %v373, 4
  %v375 = vadd.f32 %v373, %v374
  %v376 = vrot.slane %v375, 2
  %v377 = vadd.f32 %v375, %v376
  %v378 = vrot.slane %v377, 1
  %v379 = vadd.f32 %v377, %v378
  %v380 = vmul.f32 %v379, 0.0078125
  %v381 = vsub.f32 %v295, %v380
  %v382 = vsub.f32 %v298, %v380
  %v383 = vsub.f32 %v303, %v380
  %v384 = vsub.f32 %v306, %v380
  %v385 = vsub.f32 %v311, %v380
  %v386 = vsub.f32 %v314, %v380
  %v387 = vsub.f32 %v319, %v380
  %v388 = vsub.f32 %v322, %v380
  %v389 = vsub.f32 %v327, %v380
  %v390 = vsub.f32 %v330, %v380
  %v391 = vsub.f32 %v335, %v380
  %v392 = vsub.f32 %v338, %v380
  %v393 = vsub.f32 %v343, %v380
  %v394 = vsub.f32 %v346, %v380
  %v395 = vsub.f32 %v351, %v380
  %v396 = vsub.f32 %v354, %v380
  %v397 = vmul.f32 %v381, %v381
  %v398 = vmul.f32 %v382, %v382
  %v399 = vmul.f32 %v383, %v383
  %v400 = vmul.f32 %v384, %v384
  %v401 = vmul.f32 %v385, %v385
  %v402 = vmul.f32 %v386, %v386
  %v403 = vmul.f32 %v387, %v387
  %v404 = vmul.f32 %v388, %v388
  %v405 = vmul.f32 %v389, %v389
  %v406 = vmul.f32 %v390, %v390
  %v407 = vmul.f32 %v391, %v391
  %v408 = vmul.f32 %v392, %v392
  %v409 = vmul.f32 %v393, %v393
  %v410 = vmul.f32 %v394, %v394
  %v411 = vmul.f32 %v395, %v395
  %v412 = vmul.f32 %v396, %v396
  %v413 = vadd.f32 %v397, %v398
  %v414 = vadd.f32 %v413, %v399
  %v415 = vadd.f32 %v414, %v400
  %v416 = vadd.f32 %v415, %v401
  %v417 = vadd.f32 %v416, %v402
  %v418 = vadd.f32 %v417, %v403
  %v419 = vadd.f32 %v418, %v404
  %v420 = vadd.f32 %v419, %v405
  %v421 = vadd.f32 %v420, %v406
  %v422 = vadd.f32 %v421, %v407
  %v423 = vadd.f32 %v422, %v408
  %v424 = vadd.f32 %v423, %v409
  %v425 = vadd.f32 %v424, %v410
  %v426 = vadd.f32 %v425, %v411
  %v427 = vadd.f32 %v426, %v412
  %v428 = vrot.slane %v427, 4
  %v429 = vadd.f32 %v427, %v428
  %v430 = vrot.slane %v429, 2
  %v431 = vadd.f32 %v429, %v430
  %v432 = vrot.slane %v431, 1
  %v433 = vadd.f32 %v431, %v432
  %v434 = vmul.f32 %v433, 0.0078125
  %v435 = vadd.f32 %v434, 1e-05
  %v436 = vrsqrt.pop %v435
  %v437 = vmul.f32 %v381, %v436
  %v438 = vmul.f32 %v382, %v436
  %v439 = vmul.f32 %v383, %v436
  %v440 = vmul.f32 %v384, %v436
  %v441 = vmul.f32 %v385, %v436
  %v442 = vmul.f32 %v386, %v436
  %v443 = vmul.f32 %v387, %v436
  %v444 = vmul.f32 %v388, %v436
  %v445 = vmul.f32 %v389, %v436
  %v446 = vmul.f32 %v390, %v436
  %v447 = vmul.f32 %v391, %v436
  %v448 = vmul.f32 %v392, %v436
  %v449 = vmul.f32 %v393, %v436
  %v450 = vmul.f32 %v394, %v436
  %v451 = vmul.f32 %v395, %v436
  %v452 = vmul.f32 %v396, %v436
  %v454 = vlaneseq
  %v455 = vshrl.u32 %v454, 7
  %v456 = vsub.s32 0, %v455
  %v457 = vrot.slane %v357, %v456
  %v459 = vmul.f32 %v437, %v457
  %v460 = vmul.f32 %v438, %v457
  %v461 = vmul.f32 %v439, %v457
  %v462 = vmul.f32 %v440, %v457
  %v463 = vmul.f32 %v441, %v457
  %v464 = vmul.f32 %v442, %v457
  %v465 = vmul.f32 %v443, %v457
  %v466 = vmul.f32 %v444, %v457
  %v467 = vmul.f32 %v445, %v457
  %v468 = vmul.f32 %v446, %v457
  %v469 = vmul.f32 %v447, %v457
  %v470 = vmul.f32 %v448, %v457
  %v471 = vmul.f32 %v449, %v457
  %v472 = vmul.f32 %v450, %v457
  %v473 = vmul.f32 %v451, %v457
  %v474 = vmul.f32 %v452, %v457
  %v476 = vlaneseq
  %v477 = vshrl.u32 %v476, 7
  %v478 = vsub.s32 0, %v477
  %v479 = vrot.slane %v358, %v478
  %v481 = vadd.f32 %v459, %v479
  %v482 = vadd.f32 %v460, %v479
  %v483 = vadd.f32 %v461, %v479
  %v484 = vadd.f32 %v462, %v479
  %v485 = vadd.f32 %v463, %v479
  %v486 = vadd.f32 %v464, %v479
  %v487 = vadd.f32 %v465, %v479
  %v488 = vadd.f32 %v466, %v479
  %v489 = vadd.f32 %v467, %v479
  %v490 = vadd.f32 %v468, %v479
  %v491 = vadd.f32 %v469, %v479
  %v492 = vadd.f32 %v470, %v479
  %v493 = vadd.f32 %v471, %v479
  %v494 = vadd.f32 %v472, %v479
  %v495 = vadd.f32 %v473, %v479
  %v496 = vadd.f32 %v474, %v479
  %v497 = vmax.f32 %v481, 0.0
  %v498 = vmax.f32 %v482, 0.0
  %v499 = vmax.f32 %v483, 0.0
  %v500 = vmax.f32 %v484, 0.0
  %v501 = vmax.f32 %v485, 0.0
  %v502 = vmax.f32 %v486, 0.0
  %v503 = vmax.f32 %v487, 0.0
  %v504 = vmax.f32 %v488, 0.0
  %v505 = vmax.f32 %v489, 0.0
  %v506 = vmax.f32 %v490, 0.0
  %v507 = vmax.f32 %v491, 0.0
  %v508 = vmax.f32 %v492, 0.0
  %v509 = vmax.f32 %v493, 0.0
  %v510 = vmax.f32 %v494, 0.0
  %v511 = vmax.f32 %v495, 0.0
  %v512 = vmax.f32 %v496, 0.0
  %513 = vst [vmem:[#allocation2] sm:$0xff] 0.0
  %514 = vst [vmem:[#allocation2 + $0x8] sm:$0x3] 0.0
  %515 = vst [vmem:[#allocation2 + $0xa0] sm:$0xff] 0.0
  %516 = vst [vmem:[#allocation2 + $0xa8] sm:$0x3] 0.0
  %s517 = scalar_lea.vmem [#allocation2], 144
  %518 = vst [vmem:[%s517] sm:$0xff] 0.0
  %519 = vst [vmem:[%s517 + $0x8] sm:$0x3] 0.0
  %520 = vst [vmem:[%s517 + $0xa0] sm:$0xff] 0.0
  %521 = vst [vmem:[%s517 + $0xa8] sm:$0x3] 0.0
  %s522 = scalar_lea.vmem [#allocation2], 16
  %523 = vst [vmem:[%s522] sm:$0x1] 0.0
  %524 = vst [vmem:[%s522 + $0x10] sm:$0x1] 0.0
  %525 = vst [vmem:[%s522 + $0x20] sm:$0x1] 0.0
  %526 = vst [vmem:[%s522 + $0x30] sm:$0x1] 0.0
  %527 = vst [vmem:[%s522 + $0x40] sm:$0x1] 0.0
  %528 = vst [vmem:[%s522 + $0x50] sm:$0x1] 0.0
  %529 = vst [vmem:[%s522 + $0x60] sm:$0x1] 0.0
  %530 = vst [vmem:[%s522 + $0x70] sm:$0x1] 0.0
  %531 = vst [vmem:[%s522 + $0xa0] sm:$0x1] 0.0
  %532 = vst [vmem:[%s522 + $0xb0] sm:$0x1] 0.0
  %533 = vst [vmem:[%s522 + $0xc0] sm:$0x1] 0.0
  %534 = vst [vmem:[%s522 + $0xd0] sm:$0x1] 0.0
  %535 = vst [vmem:[%s522 + $0xe0] sm:$0x1] 0.0
  %536 = vst [vmem:[%s522 + $0xf0] sm:$0x1] 0.0
  %537 = vst [vmem:[%s522 + $0x100] sm:$0x1] 0.0
  %538 = vst [vmem:[%s522 + $0x110] sm:$0x1] 0.0
  %539 = vst [vmem:[%s522 + $0x9] sm:$0x1] 0.0
  %540 = vst [vmem:[%s522 + $0x19] sm:$0x1] 0.0
  %541 = vst [vmem:[%s522 + $0x29] sm:$0x1] 0.0
  %542 = vst [vmem:[%s522 + $0x39] sm:$0x1] 0.0
  %543 = vst [vmem:[%s522 + $0x49] sm:$0x1] 0.0
  %544 = vst [vmem:[%s522 + $0x59] sm:$0x1] 0.0
  %545 = vst [vmem:[%s522 + $0x69] sm:$0x1] 0.0
  %546 = vst [vmem:[%s522 + $0x79] sm:$0x1] 0.0
  %547 = vst [vmem:[%s522 + $0xa9] sm:$0x1] 0.0
  %548 = vst [vmem:[%s522 + $0xb9] sm:$0x1] 0.0
  %549 = vst [vmem:[%s522 + $0xc9] sm:$0x1] 0.0
  %550 = vst [vmem:[%s522 + $0xd9] sm:$0x1] 0.0
  %551 = vst [vmem:[%s522 + $0xe9] sm:$0x1] 0.0
  %552 = vst [vmem:[%s522 + $0xf9] sm:$0x1] 0.0
  %553 = vst [vmem:[%s522 + $0x109] sm:$0x1] 0.0
  %554 = vst [vmem:[%s522 + $0x119] sm:$0x1] 0.0
  %555 = vst [vmem:[%s522 + $0x1] sm:$0xff] %v497
  %556 = vst [vmem:[%s522 + $0x11] sm:$0xff] %v498
  %557 = vst [vmem:[%s522 + $0x21] sm:$0xff] %v499
  %558 = vst [vmem:[%s522 + $0x31] sm:$0xff] %v500
  %559 = vst [vmem:[%s522 + $0x41] sm:$0xff] %v501
  %560 = vst [vmem:[%s522 + $0x51] sm:$0xff] %v502
  %561 = vst [vmem:[%s522 + $0x61] sm:$0xff] %v503
  %562 = vst [vmem:[%s522 + $0x71] sm:$0xff] %v504
  %563 = vst [vmem:[%s522 + $0xa1] sm:$0xff] %v505
  %564 = vst [vmem:[%s522 + $0xb1] sm:$0xff] %v506
  %565 = vst [vmem:[%s522 + $0xc1] sm:$0xff] %v507
  %566 = vst [vmem:[%s522 + $0xd1] sm:$0xff] %v508
  %567 = vst [vmem:[%s522 + $0xe1] sm:$0xff] %v509
  %568 = vst [vmem:[%s522 + $0xf1] sm:$0xff] %v510
  %569 = vst [vmem:[%s522 + $0x101] sm:$0xff] %v511
  %570 = vst [vmem:[%s522 + $0x111] sm:$0xff] %v512
  %v571 = vld [vmem:[#allocation2] sm:$0xff]
  %v572 = vld [vmem:[#allocation2 + $0x10] sm:$0xff]
  %v573 = vld [vmem:[#allocation2 + $0x20] sm:$0xff]
  %v574 = vld [vmem:[#allocation2 + $0x30] sm:$0xff]
  %v575 = vld [vmem:[#allocation2 + $0x40] sm:$0xff]
  %v576 = vld [vmem:[#allocation2 + $0x50] sm:$0xff]
  %v577 = vld [vmem:[#allocation2 + $0x60] sm:$0xff]
  %v578 = vld [vmem:[#allocation2 + $0x70] sm:$0xff]
  %v579 = vld [vmem:[#allocation2 + $0xa0] sm:$0xff]
  %v580 = vld [vmem:[#allocation2 + $0xb0] sm:$0xff]
  %v581 = vld [vmem:[#allocation2 + $0xc0] sm:$0xff]
  %v582 = vld [vmem:[#allocation2 + $0xd0] sm:$0xff]
  %v583 = vld [vmem:[#allocation2 + $0xe0] sm:$0xff]
  %v584 = vld [vmem:[#allocation2 + $0xf0] sm:$0xff]
  %v585 = vld [vmem:[#allocation2 + $0x100] sm:$0xff]
  %v586 = vld [vmem:[#allocation2 + $0x110] sm:$0xff]
  %v587 = vpack.c.bf16 %v572, %v571
  %v588 = vpack.c.bf16 %v574, %v573
  %v589 = vpack.c.bf16 %v576, %v575
  %v590 = vpack.c.bf16 %v578, %v577
  %v591 = vpack.c.bf16 %v580, %v579
  %v592 = vpack.c.bf16 %v582, %v581
  %v593 = vpack.c.bf16 %v584, %v583
  %v594 = vpack.c.bf16 %v586, %v585
  %v595 = vld [vmem:[#allocation2 + $0x1] sm:$0xff]
  %v596 = vld [vmem:[#allocation2 + $0x11] sm:$0xff]
  %v597 = vld [vmem:[#allocation2 + $0x21] sm:$0xff]
  %v598 = vld [vmem:[#allocation2 + $0x31] sm:$0xff]
  %v599 = vld [vmem:[#allocation2 + $0x41] sm:$0xff]
  %v600 = vld [vmem:[#allocation2 + $0x51] sm:$0xff]
  %v601 = vld [vmem:[#allocation2 + $0x61] sm:$0xff]
  %v602 = vld [vmem:[#allocation2 + $0x71] sm:$0xff]
  %v603 = vld [vmem:[#allocation2 + $0xa1] sm:$0xff]
  %v604 = vld [vmem:[#allocation2 + $0xb1] sm:$0xff]
  %v605 = vld [vmem:[#allocation2 + $0xc1] sm:$0xff]
  %v606 = vld [vmem:[#allocation2 + $0xd1] sm:$0xff]
  %v607 = vld [vmem:[#allocation2 + $0xe1] sm:$0xff]
  %v608 = vld [vmem:[#allocation2 + $0xf1] sm:$0xff]
  %v609 = vld [vmem:[#allocation2 + $0x101] sm:$0xff]
  %v610 = vld [vmem:[#allocation2 + $0x111] sm:$0xff]
  %v611 = vpack.c.bf16 %v596, %v595
  %v612 = vpack.c.bf16 %v598, %v597
  %v613 = vpack.c.bf16 %v600, %v599
  %v614 = vpack.c.bf16 %v602, %v601
  %v615 = vpack.c.bf16 %v604, %v603
  %v616 = vpack.c.bf16 %v606, %v605
  %v617 = vpack.c.bf16 %v608, %v607
  %v618 = vpack.c.bf16 %v610, %v609
  %v619 = vld [vmem:[#allocation2 + $0x2] sm:$0xff]
  %v620 = vld [vmem:[#allocation2 + $0x12] sm:$0xff]
  %v621 = vld [vmem:[#allocation2 + $0x22] sm:$0xff]
  %v622 = vld [vmem:[#allocation2 + $0x32] sm:$0xff]
  %v623 = vld [vmem:[#allocation2 + $0x42] sm:$0xff]
  %v624 = vld [vmem:[#allocation2 + $0x52] sm:$0xff]
  %v625 = vld [vmem:[#allocation2 + $0x62] sm:$0xff]
  %v626 = vld [vmem:[#allocation2 + $0x72] sm:$0xff]
  %v627 = vld [vmem:[#allocation2 + $0xa2] sm:$0xff]
  %v628 = vld [vmem:[#allocation2 + $0xb2] sm:$0xff]
  %v629 = vld [vmem:[#allocation2 + $0xc2] sm:$0xff]
  %v630 = vld [vmem:[#allocation2 + $0xd2] sm:$0xff]
  %v631 = vld [vmem:[#allocation2 + $0xe2] sm:$0xff]
  %v632 = vld [vmem:[#allocation2 + $0xf2] sm:$0xff]
  %v633 = vld [vmem:[#allocation2 + $0x102] sm:$0xff]
  %v634 = vld [vmem:[#allocation2 + $0x112] sm:$0xff]
  %v635 = vpack.c.bf16 %v620, %v619
  %v636 = vpack.c.bf16 %v622, %v621
  %v637 = vpack.c.bf16 %v624, %v623
  %v638 = vpack.c.bf16 %v626, %v625
  %v639 = vpack.c.bf16 %v628, %v627
  %v640 = vpack.c.bf16 %v630, %v629
  %v641 = vpack.c.bf16 %v632, %v631
  %v642 = vpack.c.bf16 %v634, %v633
  %v643 = vld [vmem:[%s522] sm:$0xff]
  %v644 = vld [vmem:[%s522 + $0x10] sm:$0xff]
  %v645 = vld [vmem:[%s522 + $0x20] sm:$0xff]
  %v646 = vld [vmem:[%s522 + $0x30] sm:$0xff]
  %v647 = vld [vmem:[%s522 + $0x40] sm:$0xff]
  %v648 = vld [vmem:[%s522 + $0x50] sm:$0xff]
  %v649 = vld [vmem:[%s522 + $0x60] sm:$0xff]
  %v650 = vld [vmem:[%s522 + $0x70] sm:$0xff]
  %v651 = vld [vmem:[%s522 + $0xa0] sm:$0xff]
  %v652 = vld [vmem:[%s522 + $0xb0] sm:$0xff]
  %v653 = vld [vmem:[%s522 + $0xc0] sm:$0xff]
  %v654 = vld [vmem:[%s522 + $0xd0] sm:$0xff]
  %v655 = vld [vmem:[%s522 + $0xe0] sm:$0xff]
  %v656 = vld [vmem:[%s522 + $0xf0] sm:$0xff]
  %v657 = vld [vmem:[%s522 + $0x100] sm:$0xff]
  %v658 = vld [vmem:[%s522 + $0x110] sm:$0xff]
  %v659 = vpack.c.bf16 %v644, %v643
  %v660 = vpack.c.bf16 %v646, %v645
  %v661 = vpack.c.bf16 %v648, %v647
  %v662 = vpack.c.bf16 %v650, %v649
  %v663 = vpack.c.bf16 %v652, %v651
  %v664 = vpack.c.bf16 %v654, %v653
  %v665 = vpack.c.bf16 %v656, %v655
  %v666 = vpack.c.bf16 %v658, %v657
  %v667 = vld [vmem:[%s522 + $0x1] sm:$0xff]
  %v668 = vld [vmem:[%s522 + $0x11] sm:$0xff]
  %v669 = vld [vmem:[%s522 + $0x21] sm:$0xff]
  %v670 = vld [vmem:[%s522 + $0x31] sm:$0xff]
  %v671 = vld [vmem:[%s522 + $0x41] sm:$0xff]
  %v672 = vld [vmem:[%s522 + $0x51] sm:$0xff]
  %v673 = vld [vmem:[%s522 + $0x61] sm:$0xff]
  %v674 = vld [vmem:[%s522 + $0x71] sm:$0xff]
  %v675 = vld [vmem:[%s522 + $0xa1] sm:$0xff]
  %v676 = vld [vmem:[%s522 + $0xb1] sm:$0xff]
  %v677 = vld [vmem:[%s522 + $0xc1] sm:$0xff]
  %v678 = vld [vmem:[%s522 + $0xd1] sm:$0xff]
  %v679 = vld [vmem:[%s522 + $0xe1] sm:$0xff]
  %v680 = vld [vmem:[%s522 + $0xf1] sm:$0xff]
  %v681 = vld [vmem:[%s522 + $0x101] sm:$0xff]
  %v682 = vld [vmem:[%s522 + $0x111] sm:$0xff]
  %v683 = vpack.c.bf16 %v668, %v667
  %v684 = vpack.c.bf16 %v670, %v669
  %v685 = vpack.c.bf16 %v672, %v671
  %v686 = vpack.c.bf16 %v674, %v673
  %v687 = vpack.c.bf16 %v676, %v675
  %v688 = vpack.c.bf16 %v678, %v677
  %v689 = vpack.c.bf16 %v680, %v679
  %v690 = vpack.c.bf16 %v682, %v681
  %v691 = vld [vmem:[%s522 + $0x2] sm:$0xff]
  %v692 = vld [vmem:[%s522 + $0x12] sm:$0xff]
  %v693 = vld [vmem:[%s522 + $0x22] sm:$0xff]
  %v694 = vld [vmem:[%s522 + $0x32] sm:$0xff]
  %v695 = vld [vmem:[%s522 + $0x42] sm:$0xff]
  %v696 = vld [vmem:[%s522 + $0x52] sm:$0xff]
  %v697 = vld [vmem:[%s522 + $0x62] sm:$0xff]
  %v698 = vld [vmem:[%s522 + $0x72] sm:$0xff]
  %v699 = vld [vmem:[%s522 + $0xa2] sm:$0xff]
  %v700 = vld [vmem:[%s522 + $0xb2] sm:$0xff]
  %v701 = vld [vmem:[%s522 + $0xc2] sm:$0xff]
  %v702 = vld [vmem:[%s522 + $0xd2] sm:$0xff]
  %v703 = vld [vmem:[%s522 + $0xe2] sm:$0xff]
  %v704 = vld [vmem:[%s522 + $0xf2] sm:$0xff]
  %v705 = vld [vmem:[%s522 + $0x102] sm:$0xff]
  %v706 = vld [vmem:[%s522 + $0x112] sm:$0xff]
  %v707 = vpack.c.bf16 %v692, %v691
  %v708 = vpack.c.bf16 %v694, %v693
  %v709 = vpack.c.bf16 %v696, %v695
  %v710 = vpack.c.bf16 %v698, %v697
  %v711 = vpack.c.bf16 %v700, %v699
  %v712 = vpack.c.bf16 %v702, %v701
  %v713 = vpack.c.bf16 %v704, %v703
  %v714 = vpack.c.bf16 %v706, %v705
  %s715 = scalar_lea.vmem [#allocation2], 32
  %v716 = vld [vmem:[%s715] sm:$0xff]
  %v717 = vld [vmem:[%s715 + $0x10] sm:$0xff]
  %v718 = vld [vmem:[%s715 + $0x20] sm:$0xff]
  %v719 = vld [vmem:[%s715 + $0x30] sm:$0xff]
  %v720 = vld [vmem:[%s715 + $0x40] sm:$0xff]
  %v721 = vld [vmem:[%s715 + $0x50] sm:$0xff]
  %v722 = vld [vmem:[%s715 + $0x60] sm:$0xff]
  %v723 = vld [vmem:[%s715 + $0x70] sm:$0xff]
  %v724 = vld [vmem:[%s715 + $0xa0] sm:$0xff]
  %v725 = vld [vmem:[%s715 + $0xb0] sm:$0xff]
  %v726 = vld [vmem:[%s715 + $0xc0] sm:$0xff]
  %v727 = vld [vmem:[%s715 + $0xd0] sm:$0xff]
  %v728 = vld [vmem:[%s715 + $0xe0] sm:$0xff]
  %v729 = vld [vmem:[%s715 + $0xf0] sm:$0xff]
  %v730 = vld [vmem:[%s715 + $0x100] sm:$0xff]
  %v731 = vld [vmem:[%s715 + $0x110] sm:$0xff]
  %v732 = vpack.c.bf16 %v717, %v716
  %v733 = vpack.c.bf16 %v719, %v718
  %v734 = vpack.c.bf16 %v721, %v720
  %v735 = vpack.c.bf16 %v723, %v722
  %v736 = vpack.c.bf16 %v725, %v724
  %v737 = vpack.c.bf16 %v727, %v726
  %v738 = vpack.c.bf16 %v729, %v728
  %v739 = vpack.c.bf16 %v731, %v730
  %v740 = vld [vmem:[%s715 + $0x1] sm:$0xff]
  %v741 = vld [vmem:[%s715 + $0x11] sm:$0xff]
  %v742 = vld [vmem:[%s715 + $0x21] sm:$0xff]
  %v743 = vld [vmem:[%s715 + $0x31] sm:$0xff]
  %v744 = vld [vmem:[%s715 + $0x41] sm:$0xff]
  %v745 = vld [vmem:[%s715 + $0x51] sm:$0xff]
  %v746 = vld [vmem:[%s715 + $0x61] sm:$0xff]
  %v747 = vld [vmem:[%s715 + $0x71] sm:$0xff]
  %v748 = vld [vmem:[%s715 + $0xa1] sm:$0xff]
  %v749 = vld [vmem:[%s715 + $0xb1] sm:$0xff]
  %v750 = vld [vmem:[%s715 + $0xc1] sm:$0xff]
  %v751 = vld [vmem:[%s715 + $0xd1] sm:$0xff]
  %v752 = vld [vmem:[%s715 + $0xe1] sm:$0xff]
  %v753 = vld [vmem:[%s715 + $0xf1] sm:$0xff]
  %v754 = vld [vmem:[%s715 + $0x101] sm:$0xff]
  %v755 = vld [vmem:[%s715 + $0x111] sm:$0xff]
  %v756 = vpack.c.bf16 %v741, %v740
  %v757 = vpack.c.bf16 %v743, %v742
  %v758 = vpack.c.bf16 %v745, %v744
  %v759 = vpack.c.bf16 %v747, %v746
  %v760 = vpack.c.bf16 %v749, %v748
  %v761 = vpack.c.bf16 %v751, %v750
  %v762 = vpack.c.bf16 %v753, %v752
  %v763 = vpack.c.bf16 %v755, %v754
  %v764 = vld [vmem:[%s715 + $0x2] sm:$0xff]
  %v765 = vld [vmem:[%s715 + $0x12] sm:$0xff]
  %v766 = vld [vmem:[%s715 + $0x22] sm:$0xff]
  %v767 = vld [vmem:[%s715 + $0x32] sm:$0xff]
  %v768 = vld [vmem:[%s715 + $0x42] sm:$0xff]
  %v769 = vld [vmem:[%s715 + $0x52] sm:$0xff]
  %v770 = vld [vmem:[%s715 + $0x62] sm:$0xff]
  %v771 = vld [vmem:[%s715 + $0x72] sm:$0xff]
  %v772 = vld [vmem:[%s715 + $0xa2] sm:$0xff]
  %v773 = vld [vmem:[%s715 + $0xb2] sm:$0xff]
  %v774 = vld [vmem:[%s715 + $0xc2] sm:$0xff]
  %v775 = vld [vmem:[%s715 + $0xd2] sm:$0xff]
  %v776 = vld [vmem:[%s715 + $0xe2] sm:$0xff]
  %v777 = vld [vmem:[%s715 + $0xf2] sm:$0xff]
  %v778 = vld [vmem:[%s715 + $0x102] sm:$0xff]
  %v779 = vld [vmem:[%s715 + $0x112] sm:$0xff]
  %v780 = vpack.c.bf16 %v765, %v764
  %v781 = vpack.c.bf16 %v767, %v766
  %v782 = vpack.c.bf16 %v769, %v768
  %v783 = vpack.c.bf16 %v771, %v770
  %v784 = vpack.c.bf16 %v773, %v772
  %v785 = vpack.c.bf16 %v775, %v774
  %v786 = vpack.c.bf16 %v777, %v776
  %v787 = vpack.c.bf16 %v779, %v778
  %v788 = vld [vmem:[%s4] sm:$0xf]
  %v789 = vld [vmem:[%s4 + $0x4] sm:$0xf]
  %v790 = vld [vmem:[%s4 + $0x8] sm:$0xf]
  %v791 = vld [vmem:[%s4 + $0xc] sm:$0xf]
  %v792 = vld [vmem:[%s4 + $0x10] sm:$0xf]
  %v793 = vld [vmem:[%s4 + $0x14] sm:$0xf]
  %v794 = vld [vmem:[%s4 + $0x18] sm:$0xf]
  %v795 = vld [vmem:[%s4 + $0x1c] sm:$0xf]
  %v796 = vld [vmem:[%s4 + $0x20] sm:$0xf]
  %v797 = vld [vmem:[%s4 + $0x24] sm:$0xf]
  %v798 = vld [vmem:[%s4 + $0x28] sm:$0xf]
  %v799 = vld [vmem:[%s4 + $0x2c] sm:$0xf]
  %v800 = vld [vmem:[%s4 + $0x30] sm:$0xf]
  %v801 = vld [vmem:[%s4 + $0x34] sm:$0xf]
  %v802 = vld [vmem:[%s4 + $0x38] sm:$0xf]
  %v803 = vld [vmem:[%s4 + $0x3c] sm:$0xf]
  %v804 = vld [vmem:[%s4 + $0x40] sm:$0xf]
  %v805 = vld [vmem:[%s4 + $0x44] sm:$0xf]
  %v806 = vld [vmem:[%s4 + $0x48] sm:$0xf]
  %v807 = vld [vmem:[%s4 + $0x4c] sm:$0xf]
  %v808 = vld [vmem:[%s4 + $0x50] sm:$0xf]
  %v809 = vld [vmem:[%s4 + $0x54] sm:$0xf]
  %v810 = vld [vmem:[%s4 + $0x58] sm:$0xf]
  %v811 = vld [vmem:[%s4 + $0x5c] sm:$0xf]
  %v812 = vld [vmem:[%s4 + $0x60] sm:$0xf]
  %v813 = vld [vmem:[%s4 + $0x64] sm:$0xf]
  %v814 = vld [vmem:[%s4 + $0x68] sm:$0xf]
  %v815 = vld [vmem:[%s4 + $0x6c] sm:$0xf]
  %v816 = vld [vmem:[%s4 + $0x70] sm:$0xf]
  %v817 = vld [vmem:[%s4 + $0x74] sm:$0xf]
  %v818 = vld [vmem:[%s4 + $0x78] sm:$0xf]
  %v819 = vld [vmem:[%s4 + $0x7c] sm:$0xf]
  %v820 = vld [vmem:[%s4 + $0x80] sm:$0xf]
  %v821 = vld [vmem:[%s4 + $0x84] sm:$0xf]
  %v822 = vld [vmem:[%s4 + $0x88] sm:$0xf]
  %v823 = vld [vmem:[%s4 + $0x8c] sm:$0xf]
  %v824 = vld [vmem:[%s4 + $0x90] sm:$0xf]
  %v825 = vld [vmem:[%s4 + $0x94] sm:$0xf]
  %v826 = vld [vmem:[%s4 + $0x98] sm:$0xf]
  %v827 = vld [vmem:[%s4 + $0x9c] sm:$0xf]
  %v828 = vld [vmem:[%s4 + $0xa0] sm:$0xf]
  %v829 = vld [vmem:[%s4 + $0xa4] sm:$0xf]
  %v830 = vld [vmem:[%s4 + $0xa8] sm:$0xf]
  %v831 = vld [vmem:[%s4 + $0xac] sm:$0xf]
  %v832 = vld [vmem:[%s4 + $0xb0] sm:$0xf]
  %v833 = vld [vmem:[%s4 + $0xb4] sm:$0xf]
  %v834 = vld [vmem:[%s4 + $0xb8] sm:$0xf]
  %v835 = vld [vmem:[%s4 + $0xbc] sm:$0xf]
  %v836 = vld [vmem:[%s4 + $0xc0] sm:$0xf]
  %v837 = vld [vmem:[%s4 + $0xc4] sm:$0xf]
  %v838 = vld [vmem:[%s4 + $0xc8] sm:$0xf]
  %v839 = vld [vmem:[%s4 + $0xcc] sm:$0xf]
  %v840 = vld [vmem:[%s4 + $0xd0] sm:$0xf]
  %v841 = vld [vmem:[%s4 + $0xd4] sm:$0xf]
  %v842 = vld [vmem:[%s4 + $0xd8] sm:$0xf]
  %v843 = vld [vmem:[%s4 + $0xdc] sm:$0xf]
  %v844 = vld [vmem:[%s4 + $0xe0] sm:$0xf]
  %v845 = vld [vmem:[%s4 + $0xe4] sm:$0xf]
  %v846 = vld [vmem:[%s4 + $0xe8] sm:$0xf]
  %v847 = vld [vmem:[%s4 + $0xec] sm:$0xf]
  %v848 = vld [vmem:[%s4 + $0xf0] sm:$0xf]
  %v849 = vld [vmem:[%s4 + $0xf4] sm:$0xf]
  %v850 = vld [vmem:[%s4 + $0xf8] sm:$0xf]
  %v851 = vld [vmem:[%s4 + $0xfc] sm:$0xf]
  %v852 = vld [vmem:[%s4 + $0x100] sm:$0xf]
  %v853 = vld [vmem:[%s4 + $0x104] sm:$0xf]
  %v854 = vld [vmem:[%s4 + $0x108] sm:$0xf]
  %v855 = vld [vmem:[%s4 + $0x10c] sm:$0xf]
  %v856 = vld [vmem:[%s4 + $0x110] sm:$0xf]
  %v857 = vld [vmem:[%s4 + $0x114] sm:$0xf]
  %v858 = vld [vmem:[%s4 + $0x118] sm:$0xf]
  %v859 = vld [vmem:[%s4 + $0x11c] sm:$0xf]
  %v860 = vld [vmem:[%s4 + $0x120] sm:$0xf]
  %v861 = vld [vmem:[%s4 + $0x124] sm:$0xf]
  %v862 = vld [vmem:[%s4 + $0x128] sm:$0xf]
  %v863 = vld [vmem:[%s4 + $0x12c] sm:$0xf]
  %v864 = vld [vmem:[%s4 + $0x130] sm:$0xf]
  %v865 = vld [vmem:[%s4 + $0x134] sm:$0xf]
  %v866 = vld [vmem:[%s4 + $0x138] sm:$0xf]
  %v867 = vld [vmem:[%s4 + $0x13c] sm:$0xf]
  %v868 = vld [vmem:[%s4 + $0x140] sm:$0xf]
  %v869 = vld [vmem:[%s4 + $0x144] sm:$0xf]
  %v870 = vld [vmem:[%s4 + $0x148] sm:$0xf]
  %v871 = vld [vmem:[%s4 + $0x14c] sm:$0xf]
  %v872 = vld [vmem:[%s4 + $0x150] sm:$0xf]
  %v873 = vld [vmem:[%s4 + $0x154] sm:$0xf]
  %v874 = vld [vmem:[%s4 + $0x158] sm:$0xf]
  %v875 = vld [vmem:[%s4 + $0x15c] sm:$0xf]
  %v876 = vld [vmem:[%s4 + $0x160] sm:$0xf]
  %v877 = vld [vmem:[%s4 + $0x164] sm:$0xf]
  %v878 = vld [vmem:[%s4 + $0x168] sm:$0xf]
  %v879 = vld [vmem:[%s4 + $0x16c] sm:$0xf]
  %v880 = vld [vmem:[%s4 + $0x170] sm:$0xf]
  %v881 = vld [vmem:[%s4 + $0x174] sm:$0xf]
  %v882 = vld [vmem:[%s4 + $0x178] sm:$0xf]
  %v883 = vld [vmem:[%s4 + $0x17c] sm:$0xf]
  %v884 = vld [vmem:[%s4 + $0x180] sm:$0xf]
  %v885 = vld [vmem:[%s4 + $0x184] sm:$0xf]
  %v886 = vld [vmem:[%s4 + $0x188] sm:$0xf]
  %v887 = vld [vmem:[%s4 + $0x18c] sm:$0xf]
  %v888 = vld [vmem:[%s4 + $0x190] sm:$0xf]
  %v889 = vld [vmem:[%s4 + $0x194] sm:$0xf]
  %v890 = vld [vmem:[%s4 + $0x198] sm:$0xf]
  %v891 = vld [vmem:[%s4 + $0x19c] sm:$0xf]
  %v892 = vld [vmem:[%s4 + $0x1a0] sm:$0xf]
  %v893 = vld [vmem:[%s4 + $0x1a4] sm:$0xf]
  %v894 = vld [vmem:[%s4 + $0x1a8] sm:$0xf]
  %v895 = vld [vmem:[%s4 + $0x1ac] sm:$0xf]
  %v896 = vld [vmem:[%s4 + $0x1b0] sm:$0xf]
  %v897 = vld [vmem:[%s4 + $0x1b4] sm:$0xf]
  %v898 = vld [vmem:[%s4 + $0x1b8] sm:$0xf]
  %v899 = vld [vmem:[%s4 + $0x1bc] sm:$0xf]
  %v900 = vld [vmem:[%s4 + $0x1c0] sm:$0xf]
  %v901 = vld [vmem:[%s4 + $0x1c4] sm:$0xf]
  %v902 = vld [vmem:[%s4 + $0x1c8] sm:$0xf]
  %v903 = vld [vmem:[%s4 + $0x1cc] sm:$0xf]
  %v904 = vld [vmem:[%s4 + $0x1d0] sm:$0xf]
  %v905 = vld [vmem:[%s4 + $0x1d4] sm:$0xf]
  %v906 = vld [vmem:[%s4 + $0x1d8] sm:$0xf]
  %v907 = vld [vmem:[%s4 + $0x1dc] sm:$0xf]
  %v908 = vld [vmem:[%s4 + $0x1e0] sm:$0xf]
  %v909 = vld [vmem:[%s4 + $0x1e4] sm:$0xf]
  %v910 = vld [vmem:[%s4 + $0x1e8] sm:$0xf]
  %v911 = vld [vmem:[%s4 + $0x1ec] sm:$0xf]
  %v912 = vld [vmem:[%s4 + $0x1f0] sm:$0xf]
  %v913 = vld [vmem:[%s4 + $0x1f4] sm:$0xf]
  %v914 = vld [vmem:[%s4 + $0x1f8] sm:$0xf]
  %v915 = vld [vmem:[%s4 + $0x1fc] sm:$0xf]
  %v916 = vld [vmem:[%s4 + $0x200] sm:$0xf]
  %v917 = vld [vmem:[%s4 + $0x204] sm:$0xf]
  %v918 = vld [vmem:[%s4 + $0x208] sm:$0xf]
  %v919 = vld [vmem:[%s4 + $0x20c] sm:$0xf]
  %v920 = vld [vmem:[%s4 + $0x210] sm:$0xf]
  %v921 = vld [vmem:[%s4 + $0x214] sm:$0xf]
  %v922 = vld [vmem:[%s4 + $0x218] sm:$0xf]
  %v923 = vld [vmem:[%s4 + $0x21c] sm:$0xf]
  %v924 = vld [vmem:[%s4 + $0x220] sm:$0xf]
  %v925 = vld [vmem:[%s4 + $0x224] sm:$0xf]
  %v926 = vld [vmem:[%s4 + $0x228] sm:$0xf]
  %v927 = vld [vmem:[%s4 + $0x22c] sm:$0xf]
  %v928 = vld [vmem:[%s4 + $0x230] sm:$0xf]
  %v929 = vld [vmem:[%s4 + $0x234] sm:$0xf]
  %v930 = vld [vmem:[%s4 + $0x238] sm:$0xf]
  %v931 = vld [vmem:[%s4 + $0x23c] sm:$0xf]
  %v1076 = vunpack.c.l.b16 %v788
  %v1077 = vunpack.c.l.b16 %v789
  %v1078 = vunpack.c.l.b16 %v790
  %v1079 = vunpack.c.l.b16 %v791
  %v1080 = vunpack.c.l.b16 %v792
  %v1081 = vunpack.c.l.b16 %v793
  %v1082 = vunpack.c.l.b16 %v794
  %v1083 = vunpack.c.l.b16 %v795
  %v1084 = vunpack.c.l.b16 %v796
  %v1085 = vunpack.c.l.b16 %v797
  %v1086 = vunpack.c.l.b16 %v798
  %v1087 = vunpack.c.l.b16 %v799
  %v1088 = vunpack.c.l.b16 %v800
  %v1089 = vunpack.c.l.b16 %v801
  %v1090 = vunpack.c.l.b16 %v802
  %v1091 = vunpack.c.l.b16 %v803
  %v1092 = vunpack.c.l.b16 %v804
  %v1093 = vunpack.c.l.b16 %v805
  %v1094 = vunpack.c.l.b16 %v806
  %v1095 = vunpack.c.l.b16 %v807
  %v1096 = vunpack.c.l.b16 %v808
  %v1097 = vunpack.c.l.b16 %v809
  %v1098 = vunpack.c.l.b16 %v810
  %v1099 = vunpack.c.l.b16 %v811
  %v1100 = vunpack.c.l.b16 %v812
  %v1101 = vunpack.c.l.b16 %v813
  %v1102 = vunpack.c.l.b16 %v814
  %v1103 = vunpack.c.l.b16 %v815
  %v1104 = vunpack.c.l.b16 %v816
  %v1105 = vunpack.c.l.b16 %v817
  %v1106 = vunpack.c.l.b16 %v818
  %v1107 = vunpack.c.l.b16 %v819
  %v1108 = vunpack.c.l.b16 %v820
  %v1109 = vunpack.c.l.b16 %v821
  %v1110 = vunpack.c.l.b16 %v822
  %v1111 = vunpack.c.l.b16 %v823
  %v1112 = vunpack.c.l.b16 %v824
  %v1113 = vunpack.c.l.b16 %v825
  %v1114 = vunpack.c.l.b16 %v826
  %v1115 = vunpack.c.l.b16 %v827
  %v1116 = vunpack.c.l.b16 %v828
  %v1117 = vunpack.c.l.b16 %v829
  %v1118 = vunpack.c.l.b16 %v830
  %v1119 = vunpack.c.l.b16 %v831
  %v1120 = vunpack.c.l.b16 %v832
  %v1121 = vunpack.c.l.b16 %v833
  %v1122 = vunpack.c.l.b16 %v834
  %v1123 = vunpack.c.l.b16 %v835
  %v1124 = vunpack.c.l.b16 %v836
  %v1125 = vunpack.c.l.b16 %v837
  %v1126 = vunpack.c.l.b16 %v838
  %v1127 = vunpack.c.l.b16 %v839
  %v1128 = vunpack.c.l.b16 %v840
  %v1129 = vunpack.c.l.b16 %v841
  %v1130 = vunpack.c.l.b16 %v842
  %v1131 = vunpack.c.l.b16 %v843
  %v1132 = vunpack.c.l.b16 %v844
  %v1133 = vunpack.c.l.b16 %v845
  %v1134 = vunpack.c.l.b16 %v846
  %v1135 = vunpack.c.l.b16 %v847
  %v1136 = vunpack.c.l.b16 %v848
  %v1137 = vunpack.c.l.b16 %v849
  %v1138 = vunpack.c.l.b16 %v850
  %v1139 = vunpack.c.l.b16 %v851
  %v1140 = vunpack.c.l.b16 %v852
  %v1141 = vunpack.c.l.b16 %v853
  %v1142 = vunpack.c.l.b16 %v854
  %v1143 = vunpack.c.l.b16 %v855
  %v1144 = vunpack.c.l.b16 %v856
  %v1145 = vunpack.c.l.b16 %v857
  %v1146 = vunpack.c.l.b16 %v858
  %v1147 = vunpack.c.l.b16 %v859
  %v1148 = vunpack.c.l.b16 %v860
  %v1149 = vunpack.c.l.b16 %v861
  %v1150 = vunpack.c.l.b16 %v862
  %v1151 = vunpack.c.l.b16 %v863
  %v1152 = vunpack.c.l.b16 %v864
  %v1153 = vunpack.c.l.b16 %v865
  %v1154 = vunpack.c.l.b16 %v866
  %v1155 = vunpack.c.l.b16 %v867
  %v1156 = vunpack.c.l.b16 %v868
  %v1157 = vunpack.c.l.b16 %v869
  %v1158 = vunpack.c.l.b16 %v870
  %v1159 = vunpack.c.l.b16 %v871
  %v1160 = vunpack.c.l.b16 %v872
  %v1161 = vunpack.c.l.b16 %v873
  %v1162 = vunpack.c.l.b16 %v874
  %v1163 = vunpack.c.l.b16 %v875
  %v1164 = vunpack.c.l.b16 %v876
  %v1165 = vunpack.c.l.b16 %v877
  %v1166 = vunpack.c.l.b16 %v878
  %v1167 = vunpack.c.l.b16 %v879
  %v1168 = vunpack.c.l.b16 %v880
  %v1169 = vunpack.c.l.b16 %v881
  %v1170 = vunpack.c.l.b16 %v882
  %v1171 = vunpack.c.l.b16 %v883
  %v1172 = vunpack.c.l.b16 %v884
  %v1173 = vunpack.c.l.b16 %v885
  %v1174 = vunpack.c.l.b16 %v886
  %v1175 = vunpack.c.l.b16 %v887
  %v1176 = vunpack.c.l.b16 %v888
  %v1177 = vunpack.c.l.b16 %v889
  %v1178 = vunpack.c.l.b16 %v890
  %v1179 = vunpack.c.l.b16 %v891
  %v1180 = vunpack.c.l.b16 %v892
  %v1181 = vunpack.c.l.b16 %v893
  %v1182 = vunpack.c.l.b16 %v894
  %v1183 = vunpack.c.l.b16 %v895
  %v1184 = vunpack.c.l.b16 %v896
  %v1185 = vunpack.c.l.b16 %v897
  %v1186 = vunpack.c.l.b16 %v898
  %v1187 = vunpack.c.l.b16 %v899
  %v1188 = vunpack.c.l.b16 %v900
  %v1189 = vunpack.c.l.b16 %v901
  %v1190 = vunpack.c.l.b16 %v902
  %v1191 = vunpack.c.l.b16 %v903
  %v1192 = vunpack.c.l.b16 %v904
  %v1193 = vunpack.c.l.b16 %v905
  %v1194 = vunpack.c.l.b16 %v906
  %v1195 = vunpack.c.l.b16 %v907
  %v1196 = vunpack.c.l.b16 %v908
  %v1197 = vunpack.c.l.b16 %v909
  %v1198 = vunpack.c.l.b16 %v910
  %v1199 = vunpack.c.l.b16 %v911
  %v1200 = vunpack.c.l.b16 %v912
  %v1201 = vunpack.c.l.b16 %v913
  %v1202 = vunpack.c.l.b16 %v914
  %v1203 = vunpack.c.l.b16 %v915
  %v1204 = vunpack.c.l.b16 %v916
  %v1205 = vunpack.c.l.b16 %v917
  %v1206 = vunpack.c.l.b16 %v918
  %v1207 = vunpack.c.l.b16 %v919
  %v1208 = vunpack.c.l.b16 %v920
  %v1209 = vunpack.c.l.b16 %v921
  %v1210 = vunpack.c.l.b16 %v922
  %v1211 = vunpack.c.l.b16 %v923
  %v1212 = vunpack.c.l.b16 %v924
  %v1213 = vunpack.c.l.b16 %v925
  %v1214 = vunpack.c.l.b16 %v926
  %v1215 = vunpack.c.l.b16 %v927
  %v1216 = vunpack.c.l.b16 %v928
  %v1217 = vunpack.c.l.b16 %v929
  %v1218 = vunpack.c.l.b16 %v930
  %v1219 = vunpack.c.l.b16 %v931
  %v1220 = vpack.c.b16 %v1077, %v1076
  %v1221 = vpack.c.b16 %v1079, %v1078
  %v1222 = vpack.c.b16 %v1081, %v1080
  %v1223 = vpack.c.b16 %v1083, %v1082
  %v1224 = vpack.c.b16 %v1085, %v1084
  %v1225 = vpack.c.b16 %v1087, %v1086
  %v1226 = vpack.c.b16 %v1089, %v1088
  %v1227 = vpack.c.b16 %v1091, %v1090
  %v1228 = vpack.c.b16 %v1093, %v1092
  %v1229 = vpack.c.b16 %v1095, %v1094
  %v1230 = vpack.c.b16 %v1097, %v1096
  %v1231 = vpack.c.b16 %v1099, %v1098
  %v1232 = vpack.c.b16 %v1101, %v1100
  %v1233 = vpack.c.b16 %v1103, %v1102
  %v1234 = vpack.c.b16 %v1105, %v1104
  %v1235 = vpack.c.b16 %v1107, %v1106
  %v1236 = vpack.c.b16 %v1109, %v1108
  %v1237 = vpack.c.b16 %v1111, %v1110
  %v1238 = vpack.c.b16 %v1113, %v1112
  %v1239 = vpack.c.b16 %v1115, %v1114
  %v1240 = vpack.c.b16 %v1117, %v1116
  %v1241 = vpack.c.b16 %v1119, %v1118
  %v1242 = vpack.c.b16 %v1121, %v1120
  %v1243 = vpack.c.b16 %v1123, %v1122
  %v1244 = vpack.c.b16 %v1125, %v1124
  %v1245 = vpack.c.b16 %v1127, %v1126
  %v1246 = vpack.c.b16 %v1129, %v1128
  %v1247 = vpack.c.b16 %v1131, %v1130
  %v1248 = vpack.c.b16 %v1133, %v1132
  %v1249 = vpack.c.b16 %v1135, %v1134
  %v1250 = vpack.c.b16 %v1137, %v1136
  %v1251 = vpack.c.b16 %v1139, %v1138
  %v1252 = vpack.c.b16 %v1141, %v1140
  %v1253 = vpack.c.b16 %v1143, %v1142
  %v1254 = vpack.c.b16 %v1145, %v1144
  %v1255 = vpack.c.b16 %v1147, %v1146
  %v1256 = vpack.c.b16 %v1149, %v1148
  %v1257 = vpack.c.b16 %v1151, %v1150
  %v1258 = vpack.c.b16 %v1153, %v1152
  %v1259 = vpack.c.b16 %v1155, %v1154
  %v1260 = vpack.c.b16 %v1157, %v1156
  %v1261 = vpack.c.b16 %v1159, %v1158
  %v1262 = vpack.c.b16 %v1161, %v1160
  %v1263 = vpack.c.b16 %v1163, %v1162
  %v1264 = vpack.c.b16 %v1165, %v1164
  %v1265 = vpack.c.b16 %v1167, %v1166
  %v1266 = vpack.c.b16 %v1169, %v1168
  %v1267 = vpack.c.b16 %v1171, %v1170
  %v1268 = vpack.c.b16 %v1173, %v1172
  %v1269 = vpack.c.b16 %v1175, %v1174
  %v1270 = vpack.c.b16 %v1177, %v1176
  %v1271 = vpack.c.b16 %v1179, %v1178
  %v1272 = vpack.c.b16 %v1181, %v1180
  %v1273 = vpack.c.b16 %v1183, %v1182
  %v1274 = vpack.c.b16 %v1185, %v1184
  %v1275 = vpack.c.b16 %v1187, %v1186
  %v1276 = vpack.c.b16 %v1189, %v1188
  %v1277 = vpack.c.b16 %v1191, %v1190
  %v1278 = vpack.c.b16 %v1193, %v1192
  %v1279 = vpack.c.b16 %v1195, %v1194
  %v1280 = vpack.c.b16 %v1197, %v1196
  %v1281 = vpack.c.b16 %v1199, %v1198
  %v1282 = vpack.c.b16 %v1201, %v1200
  %v1283 = vpack.c.b16 %v1203, %v1202
  %v1284 = vpack.c.b16 %v1205, %v1204
  %v1285 = vpack.c.b16 %v1207, %v1206
  %v1286 = vpack.c.b16 %v1209, %v1208
  %v1287 = vpack.c.b16 %v1211, %v1210
  %v1288 = vpack.c.b16 %v1213, %v1212
  %v1289 = vpack.c.b16 %v1215, %v1214
  %v1290 = vpack.c.b16 %v1217, %v1216
  %v1291 = vpack.c.b16 %v1219, %v1218
  %1364 = vmatprep.subr.bf16.mxu0 0
  %1365 = vmatpush1.bf16.msra.mxu0 %v1220
  %1366 = vmatprep.subr.bf16.mxu0 0
  %1367 = vmatpush1.bf16.msra.mxu0 %v1221
  %1368 = vmatprep.subr.bf16.mxu0 0
  %1369 = vmatpush1.bf16.msra.mxu0 %v1222
  %1370 = vmatprep.subr.bf16.mxu0 0
  %1371 = vmatpush1.bf16.msra.mxu0 %v1223
  %1372 = vmatprep.subr.bf16.mxu0 0
  %1373 = vmatpush1.bf16.msra.mxu0 %v1224
  %1374 = vmatprep.subr.bf16.mxu0 0
  %1375 = vmatpush1.bf16.msra.mxu0 %v1225
  %1376 = vmatprep.subr.bf16.mxu0 0
  %1377 = vmatpush1.bf16.msra.mxu0 %v1226
  %1378 = vmatprep.subr.bf16.mxu0 0
  %1379 = vmatpush1.bf16.msra.mxu0 %v1227
  %1380 = vmatprep.subr.bf16.mxu0 0
  %1381 = vmatpush1.bf16.msra.mxu0 %v1228
  %1382 = vmatprep.subr.bf16.mxu0 0
  %1383 = vmatpush1.bf16.msra.mxu0 %v1229
  %1384 = vmatprep.subr.bf16.mxu0 0
  %1385 = vmatpush1.bf16.msra.mxu0 %v1230
  %1386 = vmatprep.subr.bf16.mxu0 0
  %1387 = vmatpush1.bf16.msra.mxu0 %v1231
  %1388 = vmatprep.subr.bf16.mxu0 0
  %1389 = vmatpush1.bf16.msra.mxu0 %v1232
  %1390 = vmatprep.subr.bf16.mxu0 0
  %1391 = vmatpush1.bf16.msra.mxu0 %v1233
  %1392 = vmatprep.subr.bf16.mxu0 0
  %1393 = vmatpush1.bf16.msra.mxu0 %v1234
  %1394 = vmatprep.subr.bf16.mxu0 0
  %1395 = vmatpush1.bf16.msra.mxu0 %v1235
  %1396 = vmatprep.mubr.bf16.mxu0 %v611
  %1397 = vmatmul.mubr.bf16.gmra.mrb[0].mxu0 %v587
  %v1398 = vpop.f32.mrb[0].mxu0
  %v1399 = vadd.f32 0.0, %v1398
  %v1400 = vpop.f32.mrb[0].mxu0
  %v1401 = vpop.f32.mrb[0].mxu0
  %v1402 = vadd.f32 0.0, %v1401
  %v1403 = vpop.f32.mrb[0].mxu0
  %1404 = vmatprep.mubr.bf16.mxu0 %v612
  %1405 = vmatmul.mubr.bf16.gmra.mrb[0].mxu0 %v588
  %v1406 = vpop.f32.mrb[0].mxu0
  %v1407 = vadd.f32 0.0, %v1406
  %v1408 = vpop.f32.mrb[0].mxu0
  %v1409 = vpop.f32.mrb[0].mxu0
  %v1410 = vadd.f32 0.0, %v1409
  %v1411 = vpop.f32.mrb[0].mxu0
  %1412 = vmatprep.mubr.bf16.mxu0 %v613
  %1413 = vmatmul.mubr.bf16.gmra.mrb[0].mxu0 %v589
  %v1414 = vpop.f32.mrb[0].mxu0
  %v1415 = vadd.f32 0.0, %v1414
  %v1416 = vpop.f32.mrb[0].mxu0
  %v1417 = vpop.f32.mrb[0].mxu0
  %v1418 = vadd.f32 0.0, %v1417
  %v1419 = vpop.f32.mrb[0].mxu0
  %1420 = vmatprep.mubr.bf16.mxu0 %v614
  %1421 = vmatmul.mubr.bf16.gmra.mrb[0].mxu0 %v590
  %v1422 = vpop.f32.mrb[0].mxu0
  %v1423 = vadd.f32 0.0, %v1422
  %v1424 = vpop.f32.mrb[0].mxu0
  %v1425 = vpop.f32.mrb[0].mxu0
  %v1426 = vadd.f32 0.0, %v1425
  %v1427 = vpop.f32.mrb[0].mxu0
  %1428 = vmatprep.mubr.bf16.mxu0 %v615
  %1429 = vmatmul.mubr.bf16.gmra.mrb[0].mxu0 %v591
  %v1430 = vpop.f32.mrb[0].mxu0
  %v1431 = vadd.f32 0.0, %v1430
  %v1432 = vpop.f32.mrb[0].mxu0
  %v1433 = vpop.f32.mrb[0].mxu0
  %v1434 = vadd.f32 0.0, %v1433
  %v1435 = vpop.f32.mrb[0].mxu0
  %1436 = vmatprep.mubr.bf16.mxu0 %v616
  %1437 = vmatmul.mubr.bf16.gmra.mrb[0].mxu0 %v592
  %v1438 = vpop.f32.mrb[0].mxu0
  %v1439 = vadd.f32 0.0, %v1438
  %v1440 = vpop.f32.mrb[0].mxu0
  %v1441 = vpop.f32.mrb[0].mxu0
  %v1442 = vadd.f32 0.0, %v1441
  %v1443 = vpop.f32.mrb[0].mxu0
  %1444 = vmatprep.mubr.bf16.mxu0 %v617
  %1445 = vmatmul.mubr.bf16.gmra.mrb[0].mxu0 %v593
  %v1446 = vpop.f32.mrb[0].mxu0
  %v1447 = vadd.f32 0.0, %v1446
  %v1448 = vpop.f32.mrb[0].mxu0
  %v1449 = vpop.f32.mrb[0].mxu0
  %v1450 = vadd.f32 0.0, %v1449
  %v1451 = vpop.f32.mrb[0].mxu0
  %1452 = vmatprep.mubr.bf16.mxu0 %v618
  %1453 = vmatmul.mubr.bf16.gmra.mrb[0].mxu0 %v594
  %v1454 = vpop.f32.mrb[0].mxu0
  %v1455 = vadd.f32 0.0, %v1454
  %v1456 = vpop.f32.mrb[0].mxu0
  %v1457 = vpop.f32.mrb[0].mxu0
  %v1458 = vadd.f32 0.0, %v1457
  %v1459 = vpop.f32.mrb[0].mxu0
  %1460 = vdwg.mxu0
  %1461 = vmatprep.subr.bf16.mxu0 0
  %1462 = vmatpush1.bf16.msra.mxu0 %v1236
  %1463 = vmatprep.subr.bf16.mxu0 0
  %1464 = vmatpush1.bf16.msra.mxu0 %v1237
  %1465 = vmatprep.subr.bf16.mxu0 0
  %1466 = vmatpush1.bf16.msra.mxu0 %v1238
  %1467 = vmatprep.subr.bf16.mxu0 0
  %1468 = vmatpush1.bf16.msra.mxu0 %v1239
  %1469 = vmatprep.subr.bf16.mxu0 0
  %1470 = vmatpush1.bf16.msra.mxu0 %v1240
  %1471 = vmatprep.subr.bf16.mxu0 0
  %1472 = vmatpush1.bf16.msra.mxu0 %v1241
  %1473 = vmatprep.subr.bf16.mxu0 0
  %1474 = vmatpush1.bf16.msra.mxu0 %v1242
  %1475 = vmatprep.subr.bf16.mxu0 0
  %1476 = vmatpush1.bf16.msra.mxu0 %v1243
  %1477 = vmatprep.subr.bf16.mxu0 0
  %1478 = vmatpush1.bf16.msra.mxu0 %v1244
  %1479 = vmatprep.subr.bf16.mxu0 0
  %1480 = vmatpush1.bf16.msra.mxu0 %v1245
  %1481 = vmatprep.subr.bf16.mxu0 0
  %1482 = vmatpush1.bf16.msra.mxu0 %v1246
  %1483 = vmatprep.subr.bf16.mxu0 0
  %1484 = vmatpush1.bf16.msra.mxu0 %v1247
  %1485 = vmatprep.subr.bf16.mxu0 0
  %1486 = vmatpush1.bf16.msra.mxu0 %v1248
  %1487 = vmatprep.subr.bf16.mxu0 0
  %1488 = vmatpush1.bf16.msra.mxu0 %v1249
  %1489 = vmatprep.subr.bf16.mxu0 0
  %1490 = vmatpush1.bf16.msra.mxu0 %v1250
  %1491 = vmatprep.subr.bf16.mxu0 0
  %1492 = vmatpush1.bf16.msra.mxu0 %v1251
  %1493 = vmatprep.mubr.bf16.mxu0 %v659
  %1494 = vmatmul.mubr.bf16.gmra.mrb[0].mxu0 %v635
  %v1495 = vpop.f32.mrb[0].mxu0
  %v1496 = vadd.f32 %v1399, %v1495
  %v1497 = vpop.f32.mrb[0].mxu0
  %v1498 = vpop.f32.mrb[0].mxu0
  %v1499 = vadd.f32 %v1402, %v1498
  %v1500 = vpop.f32.mrb[0].mxu0
  %1501 = vmatprep.mubr.bf16.mxu0 %v660
  %1502 = vmatmul.mubr.bf16.gmra.mrb[0].mxu0 %v636
  %v1503 = vpop.f32.mrb[0].mxu0
  %v1504 = vadd.f32 %v1407, %v1503
  %v1505 = vpop.f32.mrb[0].mxu0
  %v1506 = vpop.f32.mrb[0].mxu0
  %v1507 = vadd.f32 %v1410, %v1506
  %v1508 = vpop.f32.mrb[0].mxu0
  %1509 = vmatprep.mubr.bf16.mxu0 %v661
  %1510 = vmatmul.mubr.bf16.gmra.mrb[0].mxu0 %v637
  %v1511 = vpop.f32.mrb[0].mxu0
  %v1512 = vadd.f32 %v1415, %v1511
  %v1513 = vpop.f32.mrb[0].mxu0
  %v1514 = vpop.f32.mrb[0].mxu0
  %v1515 = vadd.f32 %v1418, %v1514
  %v1516 = vpop.f32.mrb[0].mxu0
  %1517 = vmatprep.mubr.bf16.mxu0 %v662
  %1518 = vmatmul.mubr.bf16.gmra.mrb[0].mxu0 %v638
  %v1519 = vpop.f32.mrb[0].mxu0
  %v1520 = vadd.f32 %v1423, %v1519
  %v1521 = vpop.f32.mrb[0].mxu0
  %v1522 = vpop.f32.mrb[0].mxu0
  %v1523 = vadd.f32 %v1426, %v1522
  %v1524 = vpop.f32.mrb[0].mxu0
  %1525 = vmatprep.mubr.bf16.mxu0 %v663
  %1526 = vmatmul.mubr.bf16.gmra.mrb[0].mxu0 %v639
  %v1527 = vpop.f32.mrb[0].mxu0
  %v1528 = vadd.f32 %v1431, %v1527
  %v1529 = vpop.f32.mrb[0].mxu0
  %v1530 = vpop.f32.mrb[0].mxu0
  %v1531 = vadd.f32 %v1434, %v1530
  %v1532 = vpop.f32.mrb[0].mxu0
  %1533 = vmatprep.mubr.bf16.mxu0 %v664
  %1534 = vmatmul.mubr.bf16.gmra.mrb[0].mxu0 %v640
  %v1535 = vpop.f32.mrb[0].mxu0
  %v1536 = vadd.f32 %v1439, %v1535
  %v1537 = vpop.f32.mrb[0].mxu0
  %v1538 = vpop.f32.mrb[0].mxu0
  %v1539 = vadd.f32 %v1442, %v1538
  %v1540 = vpop.f32.mrb[0].mxu0
  %1541 = vmatprep.mubr.bf16.mxu0 %v665
  %1542 = vmatmul.mubr.bf16.gmra.mrb[0].mxu0 %v641
  %v1543 = vpop.f32.mrb[0].mxu0
  %v1544 = vadd.f32 %v1447, %v1543
  %v1545 = vpop.f32.mrb[0].mxu0
  %v1546 = vpop.f32.mrb[0].mxu0
  %v1547 = vadd.f32 %v1450, %v1546
  %v1548 = vpop.f32.mrb[0].mxu0
  %1549 = vmatprep.mubr.bf16.mxu0 %v666
  %1550 = vmatmul.mubr.bf16.gmra.mrb[0].mxu0 %v642
  %v1551 = vpop.f32.mrb[0].mxu0
  %v1552 = vadd.f32 %v1455, %v1551
  %v1553 = vpop.f32.mrb[0].mxu0
  %v1554 = vpop.f32.mrb[0].mxu0
  %v1555 = vadd.f32 %v1458, %v1554
  %v1556 = vpop.f32.mrb[0].mxu0
  %1557 = vdwg.mxu0
  %1558 = vmatprep.subr.bf16.mxu0 0
  %1559 = vmatpush1.bf16.msra.mxu0 %v1252
  %1560 = vmatprep.subr.bf16.mxu0 0
  %1561 = vmatpush1.bf16.msra.mxu0 %v1253
  %1562 = vmatprep.subr.bf16.mxu0 0
  %1563 = vmatpush1.bf16.msra.mxu0 %v1254
  %1564 = vmatprep.subr.bf16.mxu0 0
  %1565 = vmatpush1.bf16.msra.mxu0 %v1255
  %1566 = vmatprep.subr.bf16.mxu0 0
  %1567 = vmatpush1.bf16.msra.mxu0 %v1256
  %1568 = vmatprep.subr.bf16.mxu0 0
  %1569 = vmatpush1.bf16.msra.mxu0 %v1257
  %1570 = vmatprep.subr.bf16.mxu0 0
  %1571 = vmatpush1.bf16.msra.mxu0 %v1258
  %1572 = vmatprep.subr.bf16.mxu0 0
  %1573 = vmatpush1.bf16.msra.mxu0 %v1259
  %1574 = vmatprep.subr.bf16.mxu0 0
  %1575 = vmatpush1.bf16.msra.mxu0 %v1260
  %1576 = vmatprep.subr.bf16.mxu0 0
  %1577 = vmatpush1.bf16.msra.mxu0 %v1261
  %1578 = vmatprep.subr.bf16.mxu0 0
  %1579 = vmatpush1.bf16.msra.mxu0 %v1262
  %1580 = vmatprep.subr.bf16.mxu0 0
  %1581 = vmatpush1.bf16.msra.mxu0 %v1263
  %1582 = vmatprep.subr.bf16.mxu0 0
  %1583 = vmatpush1.bf16.msra.mxu0 %v1264
  %1584 = vmatprep.subr.bf16.mxu0 0
  %1585 = vmatpush1.bf16.msra.mxu0 %v1265
  %1586 = vmatprep.subr.bf16.mxu0 0
  %1587 = vmatpush1.bf16.msra.mxu0 %v1266
  %1588 = vmatprep.subr.bf16.mxu0 0
  %1589 = vmatpush1.bf16.msra.mxu0 %v1267
  %1590 = vmatprep.mubr.bf16.mxu0 %v707
  %1591 = vmatmul.mubr.bf16.gmra.mrb[0].mxu0 %v683
  %v1592 = vpop.f32.mrb[0].mxu0
  %v1593 = vadd.f32 %v1496, %v1592
  %v1594 = vpop.f32.mrb[0].mxu0
  %v1595 = vpop.f32.mrb[0].mxu0
  %v1596 = vadd.f32 %v1499, %v1595
  %v1597 = vpop.f32.mrb[0].mxu0
  %1598 = vmatprep.mubr.bf16.mxu0 %v708
  %1599 = vmatmul.mubr.bf16.gmra.mrb[0].mxu0 %v684
  %v1600 = vpop.f32.mrb[0].mxu0
  %v1601 = vadd.f32 %v1504, %v1600
  %v1602 = vpop.f32.mrb[0].mxu0
  %v1603 = vpop.f32.mrb[0].mxu0
  %v1604 = vadd.f32 %v1507, %v1603
  %v1605 = vpop.f32.mrb[0].mxu0
  %1606 = vmatprep.mubr.bf16.mxu0 %v709
  %1607 = vmatmul.mubr.bf16.gmra.mrb[0].mxu0 %v685
  %v1608 = vpop.f32.mrb[0].mxu0
  %v1609 = vadd.f32 %v1512, %v1608
  %v1610 = vpop.f32.mrb[0].mxu0
  %v1611 = vpop.f32.mrb[0].mxu0
  %v1612 = vadd.f32 %v1515, %v1611
  %v1613 = vpop.f32.mrb[0].mxu0
  %1614 = vmatprep.mubr.bf16.mxu0 %v710
  %1615 = vmatmul.mubr.bf16.gmra.mrb[0].mxu0 %v686
  %v1616 = vpop.f32.mrb[0].mxu0
  %v1617 = vadd.f32 %v1520, %v1616
  %v1618 = vpop.f32.mrb[0].mxu0
  %v1619 = vpop.f32.mrb[0].mxu0
  %v1620 = vadd.f32 %v1523, %v1619
  %v1621 = vpop.f32.mrb[0].mxu0
  %1622 = vmatprep.mubr.bf16.mxu0 %v711
  %1623 = vmatmul.mubr.bf16.gmra.mrb[0].mxu0 %v687
  %v1624 = vpop.f32.mrb[0].mxu0
  %v1625 = vadd.f32 %v1528, %v1624
  %v1626 = vpop.f32.mrb[0].mxu0
  %v1627 = vpop.f32.mrb[0].mxu0
  %v1628 = vadd.f32 %v1531, %v1627
  %v1629 = vpop.f32.mrb[0].mxu0
  %1630 = vmatprep.mubr.bf16.mxu0 %v712
  %1631 = vmatmul.mubr.bf16.gmra.mrb[0].mxu0 %v688
  %v1632 = vpop.f32.mrb[0].mxu0
  %v1633 = vadd.f32 %v1536, %v1632
  %v1634 = vpop.f32.mrb[0].mxu0
  %v1635 = vpop.f32.mrb[0].mxu0
  %v1636 = vadd.f32 %v1539, %v1635
  %v1637 = vpop.f32.mrb[0].mxu0
  %1638 = vmatprep.mubr.bf16.mxu0 %v713
  %1639 = vmatmul.mubr.bf16.gmra.mrb[0].mxu0 %v689
  %v1640 = vpop.f32.mrb[0].mxu0
  %v1641 = vadd.f32 %v1544, %v1640
  %v1642 = vpop.f32.mrb[0].mxu0
  %v1643 = vpop.f32.mrb[0].mxu0
  %v1644 = vadd.f32 %v1547, %v1643
  %v1645 = vpop.f32.mrb[0].mxu0
  %1646 = vmatprep.mubr.bf16.mxu0 %v714
  %1647 = vmatmul.mubr.bf16.gmra.mrb[0].mxu0 %v690
  %v1648 = vpop.f32.mrb[0].mxu0
  %v1649 = vadd.f32 %v1552, %v1648
  %v1650 = vpop.f32.mrb[0].mxu0
  %v1651 = vpop.f32.mrb[0].mxu0
  %v1652 = vadd.f32 %v1555, %v1651
  %v1653 = vpop.f32.mrb[0].mxu0
  %1654 = vdwg.mxu0
  %1655 = vmatprep.subr.bf16.mxu0 0
  %1656 = vmatpush1.bf16.msra.mxu0 %v1268
  %1657 = vmatprep.subr.bf16.mxu0 0
  %1658 = vmatpush1.bf16.msra.mxu0 %v1269
  %1659 = vmatprep.subr.bf16.mxu0 0
  %1660 = vmatpush1.bf16.msra.mxu0 %v1270
  %1661 = vmatprep.subr.bf16.mxu0 0
  %1662 = vmatpush1.bf16.msra.mxu0 %v1271
  %1663 = vmatprep.subr.bf16.mxu0 0
  %1664 = vmatpush1.bf16.msra.mxu0 %v1272
  %1665 = vmatprep.subr.bf16.mxu0 0
  %1666 = vmatpush1.bf16.msra.mxu0 %v1273
  %1667 = vmatprep.subr.bf16.mxu0 0
  %1668 = vmatpush1.bf16.msra.mxu0 %v1274
  %1669 = vmatprep.subr.bf16.mxu0 0
  %1670 = vmatpush1.bf16.msra.mxu0 %v1275
  %1671 = vmatprep.subr.bf16.mxu0 0
  %1672 = vmatpush1.bf16.msra.mxu0 %v1276
  %1673 = vmatprep.subr.bf16.mxu0 0
  %1674 = vmatpush1.bf16.msra.mxu0 %v1277
  %1675 = vmatprep.subr.bf16.mxu0 0
  %1676 = vmatpush1.bf16.msra.mxu0 %v1278
  %1677 = vmatprep.subr.bf16.mxu0 0
  %1678 = vmatpush1.bf16.msra.mxu0 %v1279
  %1679 = vmatprep.subr.bf16.mxu0 0
  %1680 = vmatpush1.bf16.msra.mxu0 %v1280
  %1681 = vmatprep.subr.bf16.mxu0 0
  %1682 = vmatpush1.bf16.msra.mxu0 %v1281
  %1683 = vmatprep.subr.bf16.mxu0 0
  %1684 = vmatpush1.bf16.msra.mxu0 %v1282
  %1685 = vmatprep.subr.bf16.mxu0 0
  %1686 = vmatpush1.bf16.msra.mxu0 %v1283
  %1687 = vmatprep.mubr.bf16.mxu0 %v756
  %1688 = vmatmul.mubr.bf16.gmra.mrb[0].mxu0 %v732
  %v1689 = vpop.f32.mrb[0].mxu0
  %v1690 = vadd.f32 %v1593, %v1689
  %v1691 = vpop.f32.mrb[0].mxu0
  %v1692 = vpop.f32.mrb[0].mxu0
  %v1693 = vadd.f32 %v1596, %v1692
  %v1694 = vpop.f32.mrb[0].mxu0
  %1695 = vmatprep.mubr.bf16.mxu0 %v757
  %1696 = vmatmul.mubr.bf16.gmra.mrb[0].mxu0 %v733
  %v1697 = vpop.f32.mrb[0].mxu0
  %v1698 = vadd.f32 %v1601, %v1697
  %v1699 = vpop.f32.mrb[0].mxu0
  %v1700 = vpop.f32.mrb[0].mxu0
  %v1701 = vadd.f32 %v1604, %v1700
  %v1702 = vpop.f32.mrb[0].mxu0
  %1703 = vmatprep.mubr.bf16.mxu0 %v758
  %1704 = vmatmul.mubr.bf16.gmra.mrb[0].mxu0 %v734
  %v1705 = vpop.f32.mrb[0].mxu0
  %v1706 = vadd.f32 %v1609, %v1705
  %v1707 = vpop.f32.mrb[0].mxu0
  %v1708 = vpop.f32.mrb[0].mxu0
  %v1709 = vadd.f32 %v1612, %v1708
  %v1710 = vpop.f32.mrb[0].mxu0
  %1711 = vmatprep.mubr.bf16.mxu0 %v759
  %1712 = vmatmul.mubr.bf16.gmra.mrb[0].mxu0 %v735
  %v1713 = vpop.f32.mrb[0].mxu0
  %v1714 = vadd.f32 %v1617, %v1713
  %v1715 = vpop.f32.mrb[0].mxu0
  %v1716 = vpop.f32.mrb[0].mxu0
  %v1717 = vadd.f32 %v1620, %v1716
  %v1718 = vpop.f32.mrb[0].mxu0
  %1719 = vmatprep.mubr.bf16.mxu0 %v760
  %1720 = vmatmul.mubr.bf16.gmra.mrb[0].mxu0 %v736
  %v1721 = vpop.f32.mrb[0].mxu0
  %v1722 = vadd.f32 %v1625, %v1721
  %v1723 = vpop.f32.mrb[0].mxu0
  %v1724 = vpop.f32.mrb[0].mxu0
  %v1725 = vadd.f32 %v1628, %v1724
  %v1726 = vpop.f32.mrb[0].mxu0
  %1727 = vmatprep.mubr.bf16.mxu0 %v761
  %1728 = vmatmul.mubr.bf16.gmra.mrb[0].mxu0 %v737
  %v1729 = vpop.f32.mrb[0].mxu0
  %v1730 = vadd.f32 %v1633, %v1729
  %v1731 = vpop.f32.mrb[0].mxu0
  %v1732 = vpop.f32.mrb[0].mxu0
  %v1733 = vadd.f32 %v1636, %v1732
  %v1734 = vpop.f32.mrb[0].mxu0
  %1735 = vmatprep.mubr.bf16.mxu0 %v762
  %1736 = vmatmul.mubr.bf16.gmra.mrb[0].mxu0 %v738
  %v1737 = vpop.f32.mrb[0].mxu0
  %v1738 = vadd.f32 %v1641, %v1737
  %v1739 = vpop.f32.mrb[0].mxu0
  %v1740 = vpop.f32.mrb[0].mxu0
  %v1741 = vadd.f32 %v1644, %v1740
  %v1742 = vpop.f32.mrb[0].mxu0
  %1743 = vmatprep.mubr.bf16.mxu0 %v763
  %1744 = vmatmul.mubr.bf16.gmra.mrb[0].mxu0 %v739
  %v1745 = vpop.f32.mrb[0].mxu0
  %v1746 = vadd.f32 %v1649, %v1745
  %v1747 = vpop.f32.mrb[0].mxu0
  %v1748 = vpop.f32.mrb[0].mxu0
  %v1749 = vadd.f32 %v1652, %v1748
  %v1750 = vpop.f32.mrb[0].mxu0
  %1751 = vdwg.mxu0
  %1752 = vmatprep.subr.bf16.mxu0 0
  %1753 = vmatpush1.bf16.msra.mxu0 %v1284
  %1754 = vmatprep.subr.bf16.mxu0 0
  %1755 = vmatpush1.bf16.msra.mxu0 %v1285
  %1756 = vmatprep.subr.bf16.mxu0 0
  %1757 = vmatpush1.bf16.msra.mxu0 %v1286
  %1758 = vmatprep.subr.bf16.mxu0 0
  %1759 = vmatpush1.bf16.msra.mxu0 %v1287
  %1760 = vmatprep.subr.bf16.mxu0 0
  %1761 = vmatpush1.bf16.msra.mxu0 %v1288
  %1762 = vmatprep.subr.bf16.mxu0 0
  %1763 = vmatpush1.bf16.msra.mxu0 %v1289
  %1764 = vmatprep.subr.bf16.mxu0 0
  %1765 = vmatpush1.bf16.msra.mxu0 %v1290
  %1766 = vmatprep.subr.bf16.mxu0 0
  %1767 = vmatpush1.bf16.msra.mxu0 %v1291
  %1768 = vmatprep.subr.bf16.mxu0 0
  %1769 = vmatpush1.bf16.msra.mxu0 0
  %1770 = vmatprep.subr.bf16.mxu0 0
  %1771 = vmatpush1.bf16.msra.mxu0 0
  %1772 = vmatprep.subr.bf16.mxu0 0
  %1773 = vmatpush1.bf16.msra.mxu0 0
  %1774 = vmatprep.subr.bf16.mxu0 0
  %1775 = vmatpush1.bf16.msra.mxu0 0
  %1776 = vmatprep.subr.bf16.mxu0 0
  %1777 = vmatpush1.bf16.msra.mxu0 0
  %1778 = vmatprep.subr.bf16.mxu0 0
  %1779 = vmatpush1.bf16.msra.mxu0 0
  %1780 = vmatprep.subr.bf16.mxu0 0
  %1781 = vmatpush1.bf16.msra.mxu0 0
  %1782 = vmatprep.subr.bf16.mxu0 0
  %1783 = vmatpush1.bf16.msra.mxu0 0
  %1784 = vmatprep.mubr.bf16.mxu0 0
  %1785 = vmatmul.mubr.bf16.gmra.mrb[0].mxu0 %v780
  %v1786 = vpop.f32.mrb[0].mxu0
  %v1787 = vadd.f32 %v1690, %v1786
  %v1788 = vpop.f32.mrb[0].mxu0
  %v1789 = vpop.f32.mrb[0].mxu0
  %v1790 = vadd.f32 %v1693, %v1789
  %v1791 = vpop.f32.mrb[0].mxu0
  %1792 = vmatprep.mubr.bf16.mxu0 0
  %1793 = vmatmul.mubr.bf16.gmra.mrb[0].mxu0 %v781
  %v1794 = vpop.f32.mrb[0].mxu0
  %v1795 = vadd.f32 %v1698, %v1794
  %v1796 = vpop.f32.mrb[0].mxu0
  %v1797 = vpop.f32.mrb[0].mxu0
  %v1798 = vadd.f32 %v1701, %v1797
  %v1799 = vpop.f32.mrb[0].mxu0
  %1800 = vmatprep.mubr.bf16.mxu0 0
  %1801 = vmatmul.mubr.bf16.gmra.mrb[0].mxu0 %v782
  %v1802 = vpop.f32.mrb[0].mxu0
  %v1803 = vadd.f32 %v1706, %v1802
  %v1804 = vpop.f32.mrb[0].mxu0
  %v1805 = vpop.f32.mrb[0].mxu0
  %v1806 = vadd.f32 %v1709, %v1805
  %v1807 = vpop.f32.mrb[0].mxu0
  %1808 = vmatprep.mubr.bf16.mxu0 0
  %1809 = vmatmul.mubr.bf16.gmra.mrb[0].mxu0 %v783
  %v1810 = vpop.f32.mrb[0].mxu0
  %v1811 = vadd.f32 %v1714, %v1810
  %v1812 = vpop.f32.mrb[0].mxu0
  %v1813 = vpop.f32.mrb[0].mxu0
  %v1814 = vadd.f32 %v1717, %v1813
  %v1815 = vpop.f32.mrb[0].mxu0
  %1816 = vmatprep.mubr.bf16.mxu0 0
  %1817 = vmatmul.mubr.bf16.gmra.mrb[0].mxu0 %v784
  %v1818 = vpop.f32.mrb[0].mxu0
  %v1819 = vadd.f32 %v1722, %v1818
  %v1820 = vpop.f32.mrb[0].mxu0
  %v1821 = vpop.f32.mrb[0].mxu0
  %v1822 = vadd.f32 %v1725, %v1821
  %v1823 = vpop.f32.mrb[0].mxu0
  %1824 = vmatprep.mubr.bf16.mxu0 0
  %1825 = vmatmul.mubr.bf16.gmra.mrb[0].mxu0 %v785
  %v1826 = vpop.f32.mrb[0].mxu0
  %v1827 = vadd.f32 %v1730, %v1826
  %v1828 = vpop.f32.mrb[0].mxu0
  %v1829 = vpop.f32.mrb[0].mxu0
  %v1830 = vadd.f32 %v1733, %v1829
  %v1831 = vpop.f32.mrb[0].mxu0
  %1832 = vmatprep.mubr.bf16.mxu0 0
  %1833 = vmatmul.mubr.bf16.gmra.mrb[0].mxu0 %v786
  %v1834 = vpop.f32.mrb[0].mxu0
  %v1835 = vadd.f32 %v1738, %v1834
  %v1836 = vpop.f32.mrb[0].mxu0
  %v1837 = vpop.f32.mrb[0].mxu0
  %v1838 = vadd.f32 %v1741, %v1837
  %v1839 = vpop.f32.mrb[0].mxu0
  %1840 = vmatprep.mubr.bf16.mxu0 0
  %1841 = vmatmul.mubr.bf16.gmra.mrb[0].mxu0 %v787
  %v1842 = vpop.f32.mrb[0].mxu0
  %v1843 = vadd.f32 %v1746, %v1842
  %v1844 = vpop.f32.mrb[0].mxu0
  %v1845 = vpop.f32.mrb[0].mxu0
  %v1846 = vadd.f32 %v1749, %v1845
  %v1847 = vpop.f32.mrb[0].mxu0
  %1848 = vdwg.mxu0
  %v1849 = vld [vmem:[%s5] sm:$0x1]
  %v1850 = vld [vmem:[%s6] sm:$0x1]
  %v1851 = vadd.f32 %v1787, %v1790
  %v1852 = vadd.f32 %v1851, %v1795
  %v1853 = vadd.f32 %v1852, %v1798
  %v1854 = vadd.f32 %v1853, %v1803
  %v1855 = vadd.f32 %v1854, %v1806
  %v1856 = vadd.f32 %v1855, %v1811
  %v1857 = vadd.f32 %v1856, %v1814
  %v1858 = vadd.f32 %v1857, %v1819
  %v1859 = vadd.f32 %v1858, %v1822
  %v1860 = vadd.f32 %v1859, %v1827
  %v1861 = vadd.f32 %v1860, %v1830
  %v1862 = vadd.f32 %v1861, %v1835
  %v1863 = vadd.f32 %v1862, %v1838
  %v1864 = vadd.f32 %v1863, %v1843
  %v1865 = vadd.f32 %v1864, %v1846
  %v1866 = vrot.slane %v1865, 4
  %v1867 = vadd.f32 %v1865, %v1866
  %v1868 = vrot.slane %v1867, 2
  %v1869 = vadd.f32 %v1867, %v1868
  %v1870 = vrot.slane %v1869, 1
  %v1871 = vadd.f32 %v1869, %v1870
  %v1872 = vmul.f32 %v1871, 0.0078125
  %v1873 = vsub.f32 %v1787, %v1872
  %v1874 = vsub.f32 %v1790, %v1872
  %v1875 = vsub.f32 %v1795, %v1872
  %v1876 = vsub.f32 %v1798, %v1872
  %v1877 = vsub.f32 %v1803, %v1872
  %v1878 = vsub.f32 %v1806, %v1872
  %v1879 = vsub.f32 %v1811, %v1872
  %v1880 = vsub.f32 %v1814, %v1872
  %v1881 = vsub.f32 %v1819, %v1872
  %v1882 = vsub.f32 %v1822, %v1872
  %v1883 = vsub.f32 %v1827, %v1872
  %v1884 = vsub.f32 %v1830, %v1872
  %v1885 = vsub.f32 %v1835, %v1872
  %v1886 = vsub.f32 %v1838, %v1872
  %v1887 = vsub.f32 %v1843, %v1872
  %v1888 = vsub.f32 %v1846, %v1872
  %v1889 = vmul.f32 %v1873, %v1873
  %v1890 = vmul.f32 %v1874, %v1874
  %v1891 = vmul.f32 %v1875, %v1875
  %v1892 = vmul.f32 %v1876, %v1876
  %v1893 = vmul.f32 %v1877, %v1877
  %v1894 = vmul.f32 %v1878, %v1878
  %v1895 = vmul.f32 %v1879, %v1879
  %v1896 = vmul.f32 %v1880, %v1880
  %v1897 = vmul.f32 %v1881, %v1881
  %v1898 = vmul.f32 %v1882, %v1882
  %v1899 = vmul.f32 %v1883, %v1883
  %v1900 = vmul.f32 %v1884, %v1884
  %v1901 = vmul.f32 %v1885, %v1885
  %v1902 = vmul.f32 %v1886, %v1886
  %v1903 = vmul.f32 %v1887, %v1887
  %v1904 = vmul.f32 %v1888, %v1888
  %v1905 = vadd.f32 %v1889, %v1890
  %v1906 = vadd.f32 %v1905, %v1891
  %v1907 = vadd.f32 %v1906, %v1892
  %v1908 = vadd.f32 %v1907, %v1893
  %v1909 = vadd.f32 %v1908, %v1894
  %v1910 = vadd.f32 %v1909, %v1895
  %v1911 = vadd.f32 %v1910, %v1896
  %v1912 = vadd.f32 %v1911, %v1897
  %v1913 = vadd.f32 %v1912, %v1898
  %v1914 = vadd.f32 %v1913, %v1899
  %v1915 = vadd.f32 %v1914, %v1900
  %v1916 = vadd.f32 %v1915, %v1901
  %v1917 = vadd.f32 %v1916, %v1902
  %v1918 = vadd.f32 %v1917, %v1903
  %v1919 = vadd.f32 %v1918, %v1904
  %v1920 = vrot.slane %v1919, 4
  %v1921 = vadd.f32 %v1919, %v1920
  %v1922 = vrot.slane %v1921, 2
  %v1923 = vadd.f32 %v1921, %v1922
  %v1924 = vrot.slane %v1923, 1
  %v1925 = vadd.f32 %v1923, %v1924
  %v1926 = vmul.f32 %v1925, 0.0078125
  %v1927 = vadd.f32 %v1926, 1e-05
  %v1928 = vrsqrt.pop %v1927
  %v1929 = vmul.f32 %v1873, %v1928
  %v1930 = vmul.f32 %v1874, %v1928
  %v1931 = vmul.f32 %v1875, %v1928
  %v1932 = vmul.f32 %v1876, %v1928
  %v1933 = vmul.f32 %v1877, %v1928
  %v1934 = vmul.f32 %v1878, %v1928
  %v1935 = vmul.f32 %v1879, %v1928
  %v1936 = vmul.f32 %v1880, %v1928
  %v1937 = vmul.f32 %v1881, %v1928
  %v1938 = vmul.f32 %v1882, %v1928
  %v1939 = vmul.f32 %v1883, %v1928
  %v1940 = vmul.f32 %v1884, %v1928
  %v1941 = vmul.f32 %v1885, %v1928
  %v1942 = vmul.f32 %v1886, %v1928
  %v1943 = vmul.f32 %v1887, %v1928
  %v1944 = vmul.f32 %v1888, %v1928
  %v1946 = vlaneseq
  %v1947 = vshrl.u32 %v1946, 7
  %v1948 = vsub.s32 0, %v1947
  %v1949 = vrot.slane %v1849, %v1948
  %v1951 = vmul.f32 %v1929, %v1949
  %v1952 = vmul.f32 %v1930, %v1949
  %v1953 = vmul.f32 %v1931, %v1949
  %v1954 = vmul.f32 %v1932, %v1949
  %v1955 = vmul.f32 %v1933, %v1949
  %v1956 = vmul.f32 %v1934, %v1949
  %v1957 = vmul.f32 %v1935, %v1949
  %v1958 = vmul.f32 %v1936, %v1949
  %v1959 = vmul.f32 %v1937, %v1949
  %v1960 = vmul.f32 %v1938, %v1949
  %v1961 = vmul.f32 %v1939, %v1949
  %v1962 = vmul.f32 %v1940, %v1949
  %v1963 = vmul.f32 %v1941, %v1949
  %v1964 = vmul.f32 %v1942, %v1949
  %v1965 = vmul.f32 %v1943, %v1949
  %v1966 = vmul.f32 %v1944, %v1949
  %v1968 = vlaneseq
  %v1969 = vshrl.u32 %v1968, 7
  %v1970 = vsub.s32 0, %v1969
  %v1971 = vrot.slane %v1850, %v1970
  %v1973 = vadd.f32 %v1951, %v1971
  %v1974 = vadd.f32 %v1952, %v1971
  %v1975 = vadd.f32 %v1953, %v1971
  %v1976 = vadd.f32 %v1954, %v1971
  %v1977 = vadd.f32 %v1955, %v1971
  %v1978 = vadd.f32 %v1956, %v1971
  %v1979 = vadd.f32 %v1957, %v1971
  %v1980 = vadd.f32 %v1958, %v1971
  %v1981 = vadd.f32 %v1959, %v1971
  %v1982 = vadd.f32 %v1960, %v1971
  %v1983 = vadd.f32 %v1961, %v1971
  %v1984 = vadd.f32 %v1962, %v1971
  %v1985 = vadd.f32 %v1963, %v1971
  %v1986 = vadd.f32 %v1964, %v1971
  %v1987 = vadd.f32 %v1965, %v1971
  %v1988 = vadd.f32 %v1966, %v1971
  %v1989 = vld [vmem:[%s7] sm:$0xf]
  %v1990 = vld [vmem:[%s7 + $0x4] sm:$0xf]
  %v1991 = vld [vmem:[%s7 + $0x8] sm:$0xf]
  %v1992 = vld [vmem:[%s7 + $0xc] sm:$0xf]
  %v1993 = vld [vmem:[%s7 + $0x10] sm:$0xf]
  %v1994 = vld [vmem:[%s7 + $0x14] sm:$0xf]
  %v1995 = vld [vmem:[%s7 + $0x18] sm:$0xf]
  %v1996 = vld [vmem:[%s7 + $0x1c] sm:$0xf]
  %v1997 = vld [vmem:[%s7 + $0x20] sm:$0xf]
  %v1998 = vld [vmem:[%s7 + $0x24] sm:$0xf]
  %v1999 = vld [vmem:[%s7 + $0x28] sm:$0xf]
  %v2000 = vld [vmem:[%s7 + $0x2c] sm:$0xf]
  %v2001 = vld [vmem:[%s7 + $0x30] sm:$0xf]
  %v2002 = vld [vmem:[%s7 + $0x34] sm:$0xf]
  %v2003 = vld [vmem:[%s7 + $0x38] sm:$0xf]
  %v2004 = vld [vmem:[%s7 + $0x3c] sm:$0xf]
  %v2005 = vld [vmem:[%s7 + $0x40] sm:$0xf]
  %v2006 = vld [vmem:[%s7 + $0x44] sm:$0xf]
  %v2007 = vld [vmem:[%s7 + $0x48] sm:$0xf]
  %v2008 = vld [vmem:[%s7 + $0x4c] sm:$0xf]
  %v2009 = vld [vmem:[%s7 + $0x50] sm:$0xf]
  %v2010 = vld [vmem:[%s7 + $0x54] sm:$0xf]
  %v2011 = vld [vmem:[%s7 + $0x58] sm:$0xf]
  %v2012 = vld [vmem:[%s7 + $0x5c] sm:$0xf]
  %v2013 = vld [vmem:[%s7 + $0x60] sm:$0xf]
  %v2014 = vld [vmem:[%s7 + $0x64] sm:$0xf]
  %v2015 = vld [vmem:[%s7 + $0x68] sm:$0xf]
  %v2016 = vld [vmem:[%s7 + $0x6c] sm:$0xf]
  %v2017 = vld [vmem:[%s7 + $0x70] sm:$0xf]
  %v2018 = vld [vmem:[%s7 + $0x74] sm:$0xf]
  %v2019 = vld [vmem:[%s7 + $0x78] sm:$0xf]
  %v2020 = vld [vmem:[%s7 + $0x7c] sm:$0xf]
  %v2053 = vunpack.c.l.b16 %v1989
  %v2054 = vunpack.c.l.b16 %v1990
  %v2055 = vunpack.c.l.b16 %v1991
  %v2056 = vunpack.c.l.b16 %v1992
  %v2057 = vunpack.c.l.b16 %v1993
  %v2058 = vunpack.c.l.b16 %v1994
  %v2059 = vunpack.c.l.b16 %v1995
  %v2060 = vunpack.c.l.b16 %v1996
  %v2061 = vunpack.c.l.b16 %v1997
  %v2062 = vunpack.c.l.b16 %v1998
  %v2063 = vunpack.c.l.b16 %v1999
  %v2064 = vunpack.c.l.b16 %v2000
  %v2065 = vunpack.c.l.b16 %v2001
  %v2066 = vunpack.c.l.b16 %v2002
  %v2067 = vunpack.c.l.b16 %v2003
  %v2068 = vunpack.c.l.b16 %v2004
  %v2069 = vunpack.c.l.b16 %v2005
  %v2070 = vunpack.c.l.b16 %v2006
  %v2071 = vunpack.c.l.b16 %v2007
  %v2072 = vunpack.c.l.b16 %v2008
  %v2073 = vunpack.c.l.b16 %v2009
  %v2074 = vunpack.c.l.b16 %v2010
  %v2075 = vunpack.c.l.b16 %v2011
  %v2076 = vunpack.c.l.b16 %v2012
  %v2077 = vunpack.c.l.b16 %v2013
  %v2078 = vunpack.c.l.b16 %v2014
  %v2079 = vunpack.c.l.b16 %v2015
  %v2080 = vunpack.c.l.b16 %v2016
  %v2081 = vunpack.c.l.b16 %v2017
  %v2082 = vunpack.c.l.b16 %v2018
  %v2083 = vunpack.c.l.b16 %v2019
  %v2084 = vunpack.c.l.b16 %v2020
  %v2085 = vpack.c.b16 %v2054, %v2053
  %v2086 = vpack.c.b16 %v2056, %v2055
  %v2087 = vpack.c.b16 %v2058, %v2057
  %v2088 = vpack.c.b16 %v2060, %v2059
  %v2089 = vpack.c.b16 %v2062, %v2061
  %v2090 = vpack.c.b16 %v2064, %v2063
  %v2091 = vpack.c.b16 %v2066, %v2065
  %v2092 = vpack.c.b16 %v2068, %v2067
  %v2093 = vpack.c.b16 %v2070, %v2069
  %v2094 = vpack.c.b16 %v2072, %v2071
  %v2095 = vpack.c.b16 %v2074, %v2073
  %v2096 = vpack.c.b16 %v2076, %v2075
  %v2097 = vpack.c.b16 %v2078, %v2077
  %v2098 = vpack.c.b16 %v2080, %v2079
  %v2099 = vpack.c.b16 %v2082, %v2081
  %v2100 = vpack.c.b16 %v2084, %v2083
  %2117 = vmatprep.subr.bf16.mxu0 0
  %2118 = vmatpush1.bf16.msra.mxu0 %v2085
  %2119 = vmatprep.subr.bf16.mxu0 0
  %2120 = vmatpush1.bf16.msra.mxu0 %v2086
  %2121 = vmatprep.subr.bf16.mxu0 0
  %2122 = vmatpush1.bf16.msra.mxu0 %v2087
  %2123 = vmatprep.subr.bf16.mxu0 0
  %2124 = vmatpush1.bf16.msra.mxu0 %v2088
  %2125 = vmatprep.subr.bf16.mxu0 0
  %2126 = vmatpush1.bf16.msra.mxu0 %v2089
  %2127 = vmatprep.subr.bf16.mxu0 0
  %2128 = vmatpush1.bf16.msra.mxu0 %v2090
  %2129 = vmatprep.subr.bf16.mxu0 0
  %2130 = vmatpush1.bf16.msra.mxu0 %v2091
  %2131 = vmatprep.subr.bf16.mxu0 0
  %2132 = vmatpush1.bf16.msra.mxu0 %v2092
  %2133 = vmatprep.subr.bf16.mxu0 0
  %2134 = vmatpush1.bf16.msra.mxu0 %v2093
  %2135 = vmatprep.subr.bf16.mxu0 0
  %2136 = vmatpush1.bf16.msra.mxu0 %v2094
  %2137 = vmatprep.subr.bf16.mxu0 0
  %2138 = vmatpush1.bf16.msra.mxu0 %v2095
  %2139 = vmatprep.subr.bf16.mxu0 0
  %2140 = vmatpush1.bf16.msra.mxu0 %v2096
  %2141 = vmatprep.subr.bf16.mxu0 0
  %2142 = vmatpush1.bf16.msra.mxu0 %v2097
  %2143 = vmatprep.subr.bf16.mxu0 0
  %2144 = vmatpush1.bf16.msra.mxu0 %v2098
  %2145 = vmatprep.subr.bf16.mxu0 0
  %2146 = vmatpush1.bf16.msra.mxu0 %v2099
  %2147 = vmatprep.subr.bf16.mxu0 0
  %2148 = vmatpush1.bf16.msra.mxu0 %v2100
  %2149 = vmatprep.mubr.bf16.mxu0 %v133
  %2150 = vmatmul.mubr.bf16.gmra.mrb[0].mxu0 %v132
  %v2151 = vpop.f32.mrb[0].mxu0
  %v2152 = vadd.f32 0.0, %v2151
  %v2153 = vpop.f32.mrb[0].mxu0
  %v2154 = vpop.f32.mrb[0].mxu0
  %v2155 = vadd.f32 0.0, %v2154
  %v2156 = vpop.f32.mrb[0].mxu0
  %2157 = vmatprep.mubr.bf16.mxu0 %v135
  %2158 = vmatmul.mubr.bf16.gmra.mrb[0].mxu0 %v134
  %v2159 = vpop.f32.mrb[0].mxu0
  %v2160 = vadd.f32 0.0, %v2159
  %v2161 = vpop.f32.mrb[0].mxu0
  %v2162 = vpop.f32.mrb[0].mxu0
  %v2163 = vadd.f32 0.0, %v2162
  %v2164 = vpop.f32.mrb[0].mxu0
  %2165 = vmatprep.mubr.bf16.mxu0 %v137
  %2166 = vmatmul.mubr.bf16.gmra.mrb[0].mxu0 %v136
  %v2167 = vpop.f32.mrb[0].mxu0
  %v2168 = vadd.f32 0.0, %v2167
  %v2169 = vpop.f32.mrb[0].mxu0
  %v2170 = vpop.f32.mrb[0].mxu0
  %v2171 = vadd.f32 0.0, %v2170
  %v2172 = vpop.f32.mrb[0].mxu0
  %2173 = vmatprep.mubr.bf16.mxu0 %v139
  %2174 = vmatmul.mubr.bf16.gmra.mrb[0].mxu0 %v138
  %v2175 = vpop.f32.mrb[0].mxu0
  %v2176 = vadd.f32 0.0, %v2175
  %v2177 = vpop.f32.mrb[0].mxu0
  %v2178 = vpop.f32.mrb[0].mxu0
  %v2179 = vadd.f32 0.0, %v2178
  %v2180 = vpop.f32.mrb[0].mxu0
  %2181 = vmatprep.mubr.bf16.mxu0 %v141
  %2182 = vmatmul.mubr.bf16.gmra.mrb[0].mxu0 %v140
  %v2183 = vpop.f32.mrb[0].mxu0
  %v2184 = vadd.f32 0.0, %v2183
  %v2185 = vpop.f32.mrb[0].mxu0
  %v2186 = vpop.f32.mrb[0].mxu0
  %v2187 = vadd.f32 0.0, %v2186
  %v2188 = vpop.f32.mrb[0].mxu0
  %2189 = vmatprep.mubr.bf16.mxu0 %v143
  %2190 = vmatmul.mubr.bf16.gmra.mrb[0].mxu0 %v142
  %v2191 = vpop.f32.mrb[0].mxu0
  %v2192 = vadd.f32 0.0, %v2191
  %v2193 = vpop.f32.mrb[0].mxu0
  %v2194 = vpop.f32.mrb[0].mxu0
  %v2195 = vadd.f32 0.0, %v2194
  %v2196 = vpop.f32.mrb[0].mxu0
  %2197 = vmatprep.mubr.bf16.mxu0 %v145
  %2198 = vmatmul.mubr.bf16.gmra.mrb[0].mxu0 %v144
  %v2199 = vpop.f32.mrb[0].mxu0
  %v2200 = vadd.f32 0.0, %v2199
  %v2201 = vpop.f32.mrb[0].mxu0
  %v2202 = vpop.f32.mrb[0].mxu0
  %v2203 = vadd.f32 0.0, %v2202
  %v2204 = vpop.f32.mrb[0].mxu0
  %2205 = vmatprep.mubr.bf16.mxu0 %v147
  %2206 = vmatmul.mubr.bf16.gmra.mrb[0].mxu0 %v146
  %v2207 = vpop.f32.mrb[0].mxu0
  %v2208 = vadd.f32 0.0, %v2207
  %v2209 = vpop.f32.mrb[0].mxu0
  %v2210 = vpop.f32.mrb[0].mxu0
  %v2211 = vadd.f32 0.0, %v2210
  %v2212 = vpop.f32.mrb[0].mxu0
  %2213 = vdwg.mxu0
  %v2214 = vld [vmem:[%s8] sm:$0x1]
  %v2215 = vld [vmem:[%s9] sm:$0x1]
  %v2216 = vadd.f32 %v2152, %v2155
  %v2217 = vadd.f32 %v2216, %v2160
  %v2218 = vadd.f32 %v2217, %v2163
  %v2219 = vadd.f32 %v2218, %v2168
  %v2220 = vadd.f32 %v2219, %v2171
  %v2221 = vadd.f32 %v2220, %v2176
  %v2222 = vadd.f32 %v2221, %v2179
  %v2223 = vadd.f32 %v2222, %v2184
  %v2224 = vadd.f32 %v2223, %v2187
  %v2225 = vadd.f32 %v2224, %v2192
  %v2226 = vadd.f32 %v2225, %v2195
  %v2227 = vadd.f32 %v2226, %v2200
  %v2228 = vadd.f32 %v2227, %v2203
  %v2229 = vadd.f32 %v2228, %v2208
  %v2230 = vadd.f32 %v2229, %v2211
  %v2231 = vrot.slane %v2230, 4
  %v2232 = vadd.f32 %v2230, %v2231
  %v2233 = vrot.slane %v2232, 2
  %v2234 = vadd.f32 %v2232, %v2233
  %v2235 = vrot.slane %v2234, 1
  %v2236 = vadd.f32 %v2234, %v2235
  %v2237 = vmul.f32 %v2236, 0.0078125
  %v2238 = vsub.f32 %v2152, %v2237
  %v2239 = vsub.f32 %v2155, %v2237
  %v2240 = vsub.f32 %v2160, %v2237
  %v2241 = vsub.f32 %v2163, %v2237
  %v2242 = vsub.f32 %v2168, %v2237
  %v2243 = vsub.f32 %v2171, %v2237
  %v2244 = vsub.f32 %v2176, %v2237
  %v2245 = vsub.f32 %v2179, %v2237
  %v2246 = vsub.f32 %v2184, %v2237
  %v2247 = vsub.f32 %v2187, %v2237
  %v2248 = vsub.f32 %v2192, %v2237
  %v2249 = vsub.f32 %v2195, %v2237
  %v2250 = vsub.f32 %v2200, %v2237
  %v2251 = vsub.f32 %v2203, %v2237
  %v2252 = vsub.f32 %v2208, %v2237
  %v2253 = vsub.f32 %v2211, %v2237
  %v2254 = vmul.f32 %v2238, %v2238
  %v2255 = vmul.f32 %v2239, %v2239
  %v2256 = vmul.f32 %v2240, %v2240
  %v2257 = vmul.f32 %v2241, %v2241
  %v2258 = vmul.f32 %v2242, %v2242
  %v2259 = vmul.f32 %v2243, %v2243
  %v2260 = vmul.f32 %v2244, %v2244
  %v2261 = vmul.f32 %v2245, %v2245
  %v2262 = vmul.f32 %v2246, %v2246
  %v2263 = vmul.f32 %v2247, %v2247
  %v2264 = vmul.f32 %v2248, %v2248
  %v2265 = vmul.f32 %v2249, %v2249
  %v2266 = vmul.f32 %v2250, %v2250
  %v2267 = vmul.f32 %v2251, %v2251
  %v2268 = vmul.f32 %v2252, %v2252
  %v2269 = vmul.f32 %v2253, %v2253
  %v2270 = vadd.f32 %v2254, %v2255
  %v2271 = vadd.f32 %v2270, %v2256
  %v2272 = vadd.f32 %v2271, %v2257
  %v2273 = vadd.f32 %v2272, %v2258
  %v2274 = vadd.f32 %v2273, %v2259
  %v2275 = vadd.f32 %v2274, %v2260
  %v2276 = vadd.f32 %v2275, %v2261
  %v2277 = vadd.f32 %v2276, %v2262
  %v2278 = vadd.f32 %v2277, %v2263
  %v2279 = vadd.f32 %v2278, %v2264
  %v2280 = vadd.f32 %v2279, %v2265
  %v2281 = vadd.f32 %v2280, %v2266
  %v2282 = vadd.f32 %v2281, %v2267
  %v2283 = vadd.f32 %v2282, %v2268
  %v2284 = vadd.f32 %v2283, %v2269
  %v2285 = vrot.slane %v2284, 4
  %v2286 = vadd.f32 %v2284, %v2285
  %v2287 = vrot.slane %v2286, 2
  %v2288 = vadd.f32 %v2286, %v2287
  %v2289 = vrot.slane %v2288, 1
  %v2290 = vadd.f32 %v2288, %v2289
  %v2291 = vmul.f32 %v2290, 0.0078125
  %v2292 = vadd.f32 %v2291, 1e-05
  %v2293 = vrsqrt.pop %v2292
  %v2294 = vmul.f32 %v2238, %v2293
  %v2295 = vmul.f32 %v2239, %v2293
  %v2296 = vmul.f32 %v2240, %v2293
  %v2297 = vmul.f32 %v2241, %v2293
  %v2298 = vmul.f32 %v2242, %v2293
  %v2299 = vmul.f32 %v2243, %v2293
  %v2300 = vmul.f32 %v2244, %v2293
  %v2301 = vmul.f32 %v2245, %v2293
  %v2302 = vmul.f32 %v2246, %v2293
  %v2303 = vmul.f32 %v2247, %v2293
  %v2304 = vmul.f32 %v2248, %v2293
  %v2305 = vmul.f32 %v2249, %v2293
  %v2306 = vmul.f32 %v2250, %v2293
  %v2307 = vmul.f32 %v2251, %v2293
  %v2308 = vmul.f32 %v2252, %v2293
  %v2309 = vmul.f32 %v2253, %v2293
  %v2311 = vlaneseq
  %v2312 = vshrl.u32 %v2311, 7
  %v2313 = vsub.s32 0, %v2312
  %v2314 = vrot.slane %v2214, %v2313
  %v2316 = vmul.f32 %v2294, %v2314
  %v2317 = vmul.f32 %v2295, %v2314
  %v2318 = vmul.f32 %v2296, %v2314
  %v2319 = vmul.f32 %v2297, %v2314
  %v2320 = vmul.f32 %v2298, %v2314
  %v2321 = vmul.f32 %v2299, %v2314
  %v2322 = vmul.f32 %v2300, %v2314
  %v2323 = vmul.f32 %v2301, %v2314
  %v2324 = vmul.f32 %v2302, %v2314
  %v2325 = vmul.f32 %v2303, %v2314
  %v2326 = vmul.f32 %v2304, %v2314
  %v2327 = vmul.f32 %v2305, %v2314
  %v2328 = vmul.f32 %v2306, %v2314
  %v2329 = vmul.f32 %v2307, %v2314
  %v2330 = vmul.f32 %v2308, %v2314
  %v2331 = vmul.f32 %v2309, %v2314
  %v2333 = vlaneseq
  %v2334 = vshrl.u32 %v2333, 7
  %v2335 = vsub.s32 0, %v2334
  %v2336 = vrot.slane %v2215, %v2335
  %v2338 = vadd.f32 %v2316, %v2336
  %v2339 = vadd.f32 %v2317, %v2336
  %v2340 = vadd.f32 %v2318, %v2336
  %v2341 = vadd.f32 %v2319, %v2336
  %v2342 = vadd.f32 %v2320, %v2336
  %v2343 = vadd.f32 %v2321, %v2336
  %v2344 = vadd.f32 %v2322, %v2336
  %v2345 = vadd.f32 %v2323, %v2336
  %v2346 = vadd.f32 %v2324, %v2336
  %v2347 = vadd.f32 %v2325, %v2336
  %v2348 = vadd.f32 %v2326, %v2336
  %v2349 = vadd.f32 %v2327, %v2336
  %v2350 = vadd.f32 %v2328, %v2336
  %v2351 = vadd.f32 %v2329, %v2336
  %v2352 = vadd.f32 %v2330, %v2336
  %v2353 = vadd.f32 %v2331, %v2336
  %v2354 = vadd.f32 %v1973, %v2338
  %v2355 = vadd.f32 %v1974, %v2339
  %v2356 = vadd.f32 %v1975, %v2340
  %v2357 = vadd.f32 %v1976, %v2341
  %v2358 = vadd.f32 %v1977, %v2342
  %v2359 = vadd.f32 %v1978, %v2343
  %v2360 = vadd.f32 %v1979, %v2344
  %v2361 = vadd.f32 %v1980, %v2345
  %v2362 = vadd.f32 %v1981, %v2346
  %v2363 = vadd.f32 %v1982, %v2347
  %v2364 = vadd.f32 %v1983, %v2348
  %v2365 = vadd.f32 %v1984, %v2349
  %v2366 = vadd.f32 %v1985, %v2350
  %v2367 = vadd.f32 %v1986, %v2351
  %v2368 = vadd.f32 %v1987, %v2352
  %v2369 = vadd.f32 %v1988, %v2353
  %v2370 = vmax.f32 %v2354, 0.0
  %v2371 = vmax.f32 %v2355, 0.0
  %v2372 = vmax.f32 %v2356, 0.0
  %v2373 = vmax.f32 %v2357, 0.0
  %v2374 = vmax.f32 %v2358, 0.0
  %v2375 = vmax.f32 %v2359, 0.0
  %v2376 = vmax.f32 %v2360, 0.0
  %v2377 = vmax.f32 %v2361, 0.0
  %v2378 = vmax.f32 %v2362, 0.0
  %v2379 = vmax.f32 %v2363, 0.0
  %v2380 = vmax.f32 %v2364, 0.0
  %v2381 = vmax.f32 %v2365, 0.0
  %v2382 = vmax.f32 %v2366, 0.0
  %v2383 = vmax.f32 %v2367, 0.0
  %v2384 = vmax.f32 %v2368, 0.0
  %v2385 = vmax.f32 %v2369, 0.0
  %2386 = vst [vmem:[%s10] sm:$0xff] %v2370
  %2387 = vst [vmem:[%s10 + $0x8] sm:$0xff] %v2371
  %2388 = vst [vmem:[%s10 + $0x10] sm:$0xff] %v2372
  %2389 = vst [vmem:[%s10 + $0x18] sm:$0xff] %v2373
  %2390 = vst [vmem:[%s10 + $0x20] sm:$0xff] %v2374
  %2391 = vst [vmem:[%s10 + $0x28] sm:$0xff] %v2375
  %2392 = vst [vmem:[%s10 + $0x30] sm:$0xff] %v2376
  %2393 = vst [vmem:[%s10 + $0x38] sm:$0xff] %v2377
  %2394 = vst [vmem:[%s10 + $0x40] sm:$0xff] %v2378
  %2395 = vst [vmem:[%s10 + $0x48] sm:$0xff] %v2379
  %2396 = vst [vmem:[%s10 + $0x50] sm:$0xff] %v2380
  %2397 = vst [vmem:[%s10 + $0x58] sm:$0xff] %v2381
  %2398 = vst [vmem:[%s10 + $0x60] sm:$0xff] %v2382
  %2399 = vst [vmem:[%s10 + $0x68] sm:$0xff] %v2383
  %2400 = vst [vmem:[%s10 + $0x70] sm:$0xff] %v2384
  %2401 = vst [vmem:[%s10 + $0x78] sm:$0xff] %v2385
  // Predicated region
  $region42: #{forward.3} parent=0 // pred_check
    _
  $region43: #{forward.3} parent=0 // pred_check_branch
    %2403 = sbr.rel (0) target = $region45
  $region44: #{forward.3} parent=0 // pred_region
    _
  $region45: #{forward.3} parent=0 // pred_fallthru
    _
  // Predicated region
  $region46: #{forward.3} parent=0 // pred_check
    _
  $region47: #{forward.3} parent=0 // pred_check_branch
    %2405 = sbr.rel (0) target = $region49
  $region48: #{forward.3} parent=0 // pred_region
    _
  $region49: #{forward.3} parent=0 // pred_fallthru
    _

// kernel: forward.2
$region0: #{forward.2}
  #allocation0 [shape = 'u32[]', space=smem, size = 0x4, offset = 0x4, fixed_abs, tag = 'smem constant byte address 0x4 - core index']
  #allocation1 [shape = 'u32[144,128]{1,0:T(1,128)}', space=vmem, size = 0x12000, scoped, tag = 'internal scratch']
  #allocation2 [shape = 'f32[2,18,18,128]{3,2,1,0:T(8,128)}', space=vmem, size = 0x6c000, scoped, tag = 'scratch operand']
  %s0 = inlined_call_operand.vmem [shape: bf16[512,256], index: 0, kind: input, shape index: {}]
  %s1 = inlined_call_operand.vmem [shape: bf16[256,128], index: 1, kind: input, shape index: {}]
  %s2 = inlined_call_operand.vmem [shape: f32[1,128], index: 2, kind: input, shape index: {}]
  %s3 = inlined_call_operand.vmem [shape: f32[1,128], index: 3, kind: input, shape index: {}]
  %s4 = inlined_call_operand.vmem [shape: bf16[1152,128], index: 4, kind: input, shape index: {}]
  %s5 = inlined_call_operand.vmem [shape: f32[1,128], index: 5, kind: input, shape index: {}]
  %s6 = inlined_call_operand.vmem [shape: f32[1,128], index: 6, kind: input, shape index: {}]
  %s7 = inlined_call_operand.vmem [shape: f32[512,128], index: 7, kind: input, shape index: {}]
  %s8 = inlined_call_operand.vmem [shape: bf16[512,128], index: 8, kind: output, shape index: {}]
  %s9 = sld [smem:[#allocation0]]
  $region42: #{forward.2} parent=0
    _
  %s11 = ssub.s32 1, %s9
  %s12 = scalar_select 0, %s11, %s9
  // Predicated region
  $region2: #{forward.2} parent=0 // pred_check
    _
  $region3: #{forward.2} parent=0 // pred_check_branch
    %14 = sbr.rel (0) target = $region5
  $region4: #{forward.2} parent=0 // pred_region
    _
  $region5: #{forward.2} parent=0 // pred_fallthru
    _
  // Predicated region
  $region6: #{forward.2} parent=0 // pred_check
    _
  $region7: #{forward.2} parent=0 // pred_check_branch
    %16 = sbr.rel (0) target = $region9
  $region8: #{forward.2} parent=0 // pred_region
    _
  $region9: #{forward.2} parent=0 // pred_fallthru
    _
  // Predicated region
  $region10: #{forward.2} parent=0 // pred_check
    _
  $region11: #{forward.2} parent=0 // pred_check_branch
    %18 = sbr.rel (0) target = $region13
  $region12: #{forward.2} parent=0 // pred_region
    _
  $region13: #{forward.2} parent=0 // pred_fallthru
    _
  // Predicated region
  $region14: #{forward.2} parent=0 // pred_check
    _
  $region15: #{forward.2} parent=0 // pred_check_branch
    %20 = sbr.rel (0) target = $region17
  $region16: #{forward.2} parent=0 // pred_region
    _
  $region17: #{forward.2} parent=0 // pred_fallthru
    _
  // Predicated region
  $region18: #{forward.2} parent=0 // pred_check
    _
  $region19: #{forward.2} parent=0 // pred_check_branch
    %22 = sbr.rel (0) target = $region21
  $region20: #{forward.2} parent=0 // pred_region
    _
  $region21: #{forward.2} parent=0 // pred_fallthru
    _
  // Predicated region
  $region22: #{forward.2} parent=0 // pred_check
    _
  $region23: #{forward.2} parent=0 // pred_check_branch
    %24 = sbr.rel (0) target = $region25
  $region24: #{forward.2} parent=0 // pred_region
    _
  $region25: #{forward.2} parent=0 // pred_fallthru
    _
  // Predicated region
  $region26: #{forward.2} parent=0 // pred_check
    _
  $region27: #{forward.2} parent=0 // pred_check_branch
    %26 = sbr.rel (0) target = $region29
  $region28: #{forward.2} parent=0 // pred_region
    _
  $region29: #{forward.2} parent=0 // pred_fallthru
    _
  // Predicated region
  $region30: #{forward.2} parent=0 // pred_check
    _
  $region31: #{forward.2} parent=0 // pred_check_branch
    %28 = sbr.rel (0) target = $region33
  $region32: #{forward.2} parent=0 // pred_region
    _
  $region33: #{forward.2} parent=0 // pred_fallthru
    _
  %v30 = vld [vmem:[%s0] sm:$0xff]
  %v31 = vld [vmem:[%s0 + $0x8] sm:$0xff]
  %v32 = vld [vmem:[%s0 + $0x10] sm:$0xff]
  %v33 = vld [vmem:[%s0 + $0x18] sm:$0xff]
  %v34 = vld [vmem:[%s0 + $0x20] sm:$0xff]
  %v35 = vld [vmem:[%s0 + $0x28] sm:$0xff]
  %v36 = vld [vmem:[%s0 + $0x30] sm:$0xff]
  %v37 = vld [vmem:[%s0 + $0x38] sm:$0xff]
  %v38 = vld [vmem:[%s0 + $0x40] sm:$0xff]
  %v39 = vld [vmem:[%s0 + $0x48] sm:$0xff]
  %v40 = vld [vmem:[%s0 + $0x50] sm:$0xff]
  %v41 = vld [vmem:[%s0 + $0x58] sm:$0xff]
  %v42 = vld [vmem:[%s0 + $0x60] sm:$0xff]
  %v43 = vld [vmem:[%s0 + $0x68] sm:$0xff]
  %v44 = vld [vmem:[%s0 + $0x70] sm:$0xff]
  %v45 = vld [vmem:[%s0 + $0x78] sm:$0xff]
  %v46 = vld [vmem:[%s0 + $0x80] sm:$0xff]
  %v47 = vld [vmem:[%s0 + $0x88] sm:$0xff]
  %v48 = vld [vmem:[%s0 + $0x90] sm:$0xff]
  %v49 = vld [vmem:[%s0 + $0x98] sm:$0xff]
  %v50 = vld [vmem:[%s0 + $0xa0] sm:$0xff]
  %v51 = vld [vmem:[%s0 + $0xa8] sm:$0xff]
  %v52 = vld [vmem:[%s0 + $0xb0] sm:$0xff]
  %v53 = vld [vmem:[%s0 + $0xb8] sm:$0xff]
  %v54 = vld [vmem:[%s0 + $0xc0] sm:$0xff]
  %v55 = vld [vmem:[%s0 + $0xc8] sm:$0xff]
  %v56 = vld [vmem:[%s0 + $0xd0] sm:$0xff]
  %v57 = vld [vmem:[%s0 + $0xd8] sm:$0xff]
  %v58 = vld [vmem:[%s0 + $0xe0] sm:$0xff]
  %v59 = vld [vmem:[%s0 + $0xe8] sm:$0xff]
  %v60 = vld [vmem:[%s0 + $0xf0] sm:$0xff]
  %v61 = vld [vmem:[%s0 + $0xf8] sm:$0xff]
  %v62 = vld [vmem:[%s0 + $0x100] sm:$0xff]
  %v63 = vld [vmem:[%s0 + $0x108] sm:$0xff]
  %v64 = vld [vmem:[%s0 + $0x110] sm:$0xff]
  %v65 = vld [vmem:[%s0 + $0x118] sm:$0xff]
  %v66 = vld [vmem:[%s0 + $0x120] sm:$0xff]
  %v67 = vld [vmem:[%s0 + $0x128] sm:$0xff]
  %v68 = vld [vmem:[%s0 + $0x130] sm:$0xff]
  %v69 = vld [vmem:[%s0 + $0x138] sm:$0xff]
  %v70 = vld [vmem:[%s0 + $0x140] sm:$0xff]
  %v71 = vld [vmem:[%s0 + $0x148] sm:$0xff]
  %v72 = vld [vmem:[%s0 + $0x150] sm:$0xff]
  %v73 = vld [vmem:[%s0 + $0x158] sm:$0xff]
  %v74 = vld [vmem:[%s0 + $0x160] sm:$0xff]
  %v75 = vld [vmem:[%s0 + $0x168] sm:$0xff]
  %v76 = vld [vmem:[%s0 + $0x170] sm:$0xff]
  %v77 = vld [vmem:[%s0 + $0x178] sm:$0xff]
  %v78 = vld [vmem:[%s0 + $0x180] sm:$0xff]
  %v79 = vld [vmem:[%s0 + $0x188] sm:$0xff]
  %v80 = vld [vmem:[%s0 + $0x190] sm:$0xff]
  %v81 = vld [vmem:[%s0 + $0x198] sm:$0xff]
  %v82 = vld [vmem:[%s0 + $0x1a0] sm:$0xff]
  %v83 = vld [vmem:[%s0 + $0x1a8] sm:$0xff]
  %v84 = vld [vmem:[%s0 + $0x1b0] sm:$0xff]
  %v85 = vld [vmem:[%s0 + $0x1b8] sm:$0xff]
  %v86 = vld [vmem:[%s0 + $0x1c0] sm:$0xff]
  %v87 = vld [vmem:[%s0 + $0x1c8] sm:$0xff]
  %v88 = vld [vmem:[%s0 + $0x1d0] sm:$0xff]
  %v89 = vld [vmem:[%s0 + $0x1d8] sm:$0xff]
  %v90 = vld [vmem:[%s0 + $0x1e0] sm:$0xff]
  %v91 = vld [vmem:[%s0 + $0x1e8] sm:$0xff]
  %v92 = vld [vmem:[%s0 + $0x1f0] sm:$0xff]
  %v93 = vld [vmem:[%s0 + $0x1f8] sm:$0xff]
  %v94 = vld [vmem:[%s1] sm:$0xf]
  %v95 = vld [vmem:[%s1 + $0x4] sm:$0xf]
  %v96 = vld [vmem:[%s1 + $0x8] sm:$0xf]
  %v97 = vld [vmem:[%s1 + $0xc] sm:$0xf]
  %v98 = vld [vmem:[%s1 + $0x10] sm:$0xf]
  %v99 = vld [vmem:[%s1 + $0x14] sm:$0xf]
  %v100 = vld [vmem:[%s1 + $0x18] sm:$0xf]
  %v101 = vld [vmem:[%s1 + $0x1c] sm:$0xf]
  %v102 = vld [vmem:[%s1 + $0x20] sm:$0xf]
  %v103 = vld [vmem:[%s1 + $0x24] sm:$0xf]
  %v104 = vld [vmem:[%s1 + $0x28] sm:$0xf]
  %v105 = vld [vmem:[%s1 + $0x2c] sm:$0xf]
  %v106 = vld [vmem:[%s1 + $0x30] sm:$0xf]
  %v107 = vld [vmem:[%s1 + $0x34] sm:$0xf]
  %v108 = vld [vmem:[%s1 + $0x38] sm:$0xf]
  %v109 = vld [vmem:[%s1 + $0x3c] sm:$0xf]
  %v110 = vld [vmem:[%s1 + $0x40] sm:$0xf]
  %v111 = vld [vmem:[%s1 + $0x44] sm:$0xf]
  %v112 = vld [vmem:[%s1 + $0x48] sm:$0xf]
  %v113 = vld [vmem:[%s1 + $0x4c] sm:$0xf]
  %v114 = vld [vmem:[%s1 + $0x50] sm:$0xf]
  %v115 = vld [vmem:[%s1 + $0x54] sm:$0xf]
  %v116 = vld [vmem:[%s1 + $0x58] sm:$0xf]
  %v117 = vld [vmem:[%s1 + $0x5c] sm:$0xf]
  %v118 = vld [vmem:[%s1 + $0x60] sm:$0xf]
  %v119 = vld [vmem:[%s1 + $0x64] sm:$0xf]
  %v120 = vld [vmem:[%s1 + $0x68] sm:$0xf]
  %v121 = vld [vmem:[%s1 + $0x6c] sm:$0xf]
  %v122 = vld [vmem:[%s1 + $0x70] sm:$0xf]
  %v123 = vld [vmem:[%s1 + $0x74] sm:$0xf]
  %v124 = vld [vmem:[%s1 + $0x78] sm:$0xf]
  %v125 = vld [vmem:[%s1 + $0x7c] sm:$0xf]
  %v190 = vunpack.c.l.b16 %v30
  %v191 = vunpack.c.h.b16 %v30
  %v192 = vunpack.c.l.b16 %v31
  %v193 = vunpack.c.h.b16 %v31
  %v194 = vunpack.c.l.b16 %v32
  %v195 = vunpack.c.h.b16 %v32
  %v196 = vunpack.c.l.b16 %v33
  %v197 = vunpack.c.h.b16 %v33
  %v198 = vunpack.c.l.b16 %v34
  %v199 = vunpack.c.h.b16 %v34
  %v200 = vunpack.c.l.b16 %v35
  %v201 = vunpack.c.h.b16 %v35
  %v202 = vunpack.c.l.b16 %v36
  %v203 = vunpack.c.h.b16 %v36
  %v204 = vunpack.c.l.b16 %v37
  %v205 = vunpack.c.h.b16 %v37
  %v206 = vunpack.c.l.b16 %v38
  %v207 = vunpack.c.h.b16 %v38
  %v208 = vunpack.c.l.b16 %v39
  %v209 = vunpack.c.h.b16 %v39
  %v210 = vunpack.c.l.b16 %v40
  %v211 = vunpack.c.h.b16 %v40
  %v212 = vunpack.c.l.b16 %v41
  %v213 = vunpack.c.h.b16 %v41
  %v214 = vunpack.c.l.b16 %v42
  %v215 = vunpack.c.h.b16 %v42
  %v216 = vunpack.c.l.b16 %v43
  %v217 = vunpack.c.h.b16 %v43
  %v218 = vunpack.c.l.b16 %v44
  %v219 = vunpack.c.h.b16 %v44
  %v220 = vunpack.c.l.b16 %v45
  %v221 = vunpack.c.h.b16 %v45
  %v222 = vunpack.c.l.b16 %v46
  %v223 = vunpack.c.h.b16 %v46
  %v224 = vunpack.c.l.b16 %v47
  %v225 = vunpack.c.h.b16 %v47
  %v226 = vunpack.c.l.b16 %v48
  %v227 = vunpack.c.h.b16 %v48
  %v228 = vunpack.c.l.b16 %v49
  %v229 = vunpack.c.h.b16 %v49
  %v230 = vunpack.c.l.b16 %v50
  %v231 = vunpack.c.h.b16 %v50
  %v232 = vunpack.c.l.b16 %v51
  %v233 = vunpack.c.h.b16 %v51
  %v234 = vunpack.c.l.b16 %v52
  %v235 = vunpack.c.h.b16 %v52
  %v236 = vunpack.c.l.b16 %v53
  %v237 = vunpack.c.h.b16 %v53
  %v238 = vunpack.c.l.b16 %v54
  %v239 = vunpack.c.h.b16 %v54
  %v240 = vunpack.c.l.b16 %v55
  %v241 = vunpack.c.h.b16 %v55
  %v242 = vunpack.c.l.b16 %v56
  %v243 = vunpack.c.h.b16 %v56
  %v244 = vunpack.c.l.b16 %v57
  %v245 = vunpack.c.h.b16 %v57
  %v246 = vunpack.c.l.b16 %v58
  %v247 = vunpack.c.h.b16 %v58
  %v248 = vunpack.c.l.b16 %v59
  %v249 = vunpack.c.h.b16 %v59
  %v250 = vunpack.c.l.b16 %v60
  %v251 = vunpack.c.h.b16 %v60
  %v252 = vunpack.c.l.b16 %v61
  %v253 = vunpack.c.h.b16 %v61
  %v254 = vunpack.c.l.b16 %v62
  %v255 = vunpack.c.h.b16 %v62
  %v256 = vunpack.c.l.b16 %v63
  %v257 = vunpack.c.h.b16 %v63
  %v258 = vunpack.c.l.b16 %v64
  %v259 = vunpack.c.h.b16 %v64
  %v260 = vunpack.c.l.b16 %v65
  %v261 = vunpack.c.h.b16 %v65
  %v262 = vunpack.c.l.b16 %v66
  %v263 = vunpack.c.h.b16 %v66
  %v264 = vunpack.c.l.b16 %v67
  %v265 = vunpack.c.h.b16 %v67
  %v266 = vunpack.c.l.b16 %v68
  %v267 = vunpack.c.h.b16 %v68
  %v268 = vunpack.c.l.b16 %v69
  %v269 = vunpack.c.h.b16 %v69
  %v270 = vunpack.c.l.b16 %v70
  %v271 = vunpack.c.h.b16 %v70
  %v272 = vunpack.c.l.b16 %v71
  %v273 = vunpack.c.h.b16 %v71
  %v274 = vunpack.c.l.b16 %v72
  %v275 = vunpack.c.h.b16 %v72
  %v276 = vunpack.c.l.b16 %v73
  %v277 = vunpack.c.h.b16 %v73
  %v278 = vunpack.c.l.b16 %v74
  %v279 = vunpack.c.h.b16 %v74
  %v280 = vunpack.c.l.b16 %v75
  %v281 = vunpack.c.h.b16 %v75
  %v282 = vunpack.c.l.b16 %v76
  %v283 = vunpack.c.h.b16 %v76
  %v284 = vunpack.c.l.b16 %v77
  %v285 = vunpack.c.h.b16 %v77
  %v286 = vunpack.c.l.b16 %v78
  %v287 = vunpack.c.h.b16 %v78
  %v288 = vunpack.c.l.b16 %v79
  %v289 = vunpack.c.h.b16 %v79
  %v290 = vunpack.c.l.b16 %v80
  %v291 = vunpack.c.h.b16 %v80
  %v292 = vunpack.c.l.b16 %v81
  %v293 = vunpack.c.h.b16 %v81
  %v294 = vunpack.c.l.b16 %v82
  %v295 = vunpack.c.h.b16 %v82
  %v296 = vunpack.c.l.b16 %v83
  %v297 = vunpack.c.h.b16 %v83
  %v298 = vunpack.c.l.b16 %v84
  %v299 = vunpack.c.h.b16 %v84
  %v300 = vunpack.c.l.b16 %v85
  %v301 = vunpack.c.h.b16 %v85
  %v302 = vunpack.c.l.b16 %v86
  %v303 = vunpack.c.h.b16 %v86
  %v304 = vunpack.c.l.b16 %v87
  %v305 = vunpack.c.h.b16 %v87
  %v306 = vunpack.c.l.b16 %v88
  %v307 = vunpack.c.h.b16 %v88
  %v308 = vunpack.c.l.b16 %v89
  %v309 = vunpack.c.h.b16 %v89
  %v310 = vunpack.c.l.b16 %v90
  %v311 = vunpack.c.h.b16 %v90
  %v312 = vunpack.c.l.b16 %v91
  %v313 = vunpack.c.h.b16 %v91
  %v314 = vunpack.c.l.b16 %v92
  %v315 = vunpack.c.h.b16 %v92
  %v316 = vunpack.c.l.b16 %v93
  %v317 = vunpack.c.h.b16 %v93
  %v318 = vpack.c.b16 %v192, %v190
  %v319 = vpack.c.b16 %v193, %v191
  %v320 = vpack.c.b16 %v196, %v194
  %v321 = vpack.c.b16 %v197, %v195
  %v322 = vpack.c.b16 %v200, %v198
  %v323 = vpack.c.b16 %v201, %v199
  %v324 = vpack.c.b16 %v204, %v202
  %v325 = vpack.c.b16 %v205, %v203
  %v326 = vpack.c.b16 %v208, %v206
  %v327 = vpack.c.b16 %v209, %v207
  %v328 = vpack.c.b16 %v212, %v210
  %v329 = vpack.c.b16 %v213, %v211
  %v330 = vpack.c.b16 %v216, %v214
  %v331 = vpack.c.b16 %v217, %v215
  %v332 = vpack.c.b16 %v220, %v218
  %v333 = vpack.c.b16 %v221, %v219
  %v334 = vpack.c.b16 %v224, %v222
  %v335 = vpack.c.b16 %v225, %v223
  %v336 = vpack.c.b16 %v228, %v226
  %v337 = vpack.c.b16 %v229, %v227
  %v338 = vpack.c.b16 %v232, %v230
  %v339 = vpack.c.b16 %v233, %v231
  %v340 = vpack.c.b16 %v236, %v234
  %v341 = vpack.c.b16 %v237, %v235
  %v342 = vpack.c.b16 %v240, %v238
  %v343 = vpack.c.b16 %v241, %v239
  %v344 = vpack.c.b16 %v244, %v242
  %v345 = vpack.c.b16 %v245, %v243
  %v346 = vpack.c.b16 %v248, %v246
  %v347 = vpack.c.b16 %v249, %v247
  %v348 = vpack.c.b16 %v252, %v250
  %v349 = vpack.c.b16 %v253, %v251
  %v350 = vpack.c.b16 %v256, %v254
  %v351 = vpack.c.b16 %v257, %v255
  %v352 = vpack.c.b16 %v260, %v258
  %v353 = vpack.c.b16 %v261, %v259
  %v354 = vpack.c.b16 %v264, %v262
  %v355 = vpack.c.b16 %v265, %v263
  %v356 = vpack.c.b16 %v268, %v266
  %v357 = vpack.c.b16 %v269, %v267
  %v358 = vpack.c.b16 %v272, %v270
  %v359 = vpack.c.b16 %v273, %v271
  %v360 = vpack.c.b16 %v276, %v274
  %v361 = vpack.c.b16 %v277, %v275
  %v362 = vpack.c.b16 %v280, %v278
  %v363 = vpack.c.b16 %v281, %v279
  %v364 = vpack.c.b16 %v284, %v282
  %v365 = vpack.c.b16 %v285, %v283
  %v366 = vpack.c.b16 %v288, %v286
  %v367 = vpack.c.b16 %v289, %v287
  %v368 = vpack.c.b16 %v292, %v290
  %v369 = vpack.c.b16 %v293, %v291
  %v370 = vpack.c.b16 %v296, %v294
  %v371 = vpack.c.b16 %v297, %v295
  %v372 = vpack.c.b16 %v300, %v298
  %v373 = vpack.c.b16 %v301, %v299
  %v374 = vpack.c.b16 %v304, %v302
  %v375 = vpack.c.b16 %v305, %v303
  %v376 = vpack.c.b16 %v308, %v306
  %v377 = vpack.c.b16 %v309, %v307
  %v378 = vpack.c.b16 %v312, %v310
  %v379 = vpack.c.b16 %v313, %v311
  %v380 = vpack.c.b16 %v316, %v314
  %v381 = vpack.c.b16 %v317, %v315
  %v478 = vunpack.c.l.b16 %v94
  %v479 = vunpack.c.l.b16 %v95
  %v480 = vunpack.c.l.b16 %v96
  %v481 = vunpack.c.l.b16 %v97
  %v482 = vunpack.c.l.b16 %v98
  %v483 = vunpack.c.l.b16 %v99
  %v484 = vunpack.c.l.b16 %v100
  %v485 = vunpack.c.l.b16 %v101
  %v486 = vunpack.c.l.b16 %v102
  %v487 = vunpack.c.l.b16 %v103
  %v488 = vunpack.c.l.b16 %v104
  %v489 = vunpack.c.l.b16 %v105
  %v490 = vunpack.c.l.b16 %v106
  %v491 = vunpack.c.l.b16 %v107
  %v492 = vunpack.c.l.b16 %v108
  %v493 = vunpack.c.l.b16 %v109
  %v494 = vunpack.c.l.b16 %v110
  %v495 = vunpack.c.l.b16 %v111
  %v496 = vunpack.c.l.b16 %v112
  %v497 = vunpack.c.l.b16 %v113
  %v498 = vunpack.c.l.b16 %v114
  %v499 = vunpack.c.l.b16 %v115
  %v500 = vunpack.c.l.b16 %v116
  %v501 = vunpack.c.l.b16 %v117
  %v502 = vunpack.c.l.b16 %v118
  %v503 = vunpack.c.l.b16 %v119
  %v504 = vunpack.c.l.b16 %v120
  %v505 = vunpack.c.l.b16 %v121
  %v506 = vunpack.c.l.b16 %v122
  %v507 = vunpack.c.l.b16 %v123
  %v508 = vunpack.c.l.b16 %v124
  %v509 = vunpack.c.l.b16 %v125
  %v510 = vpack.c.b16 %v479, %v478
  %v511 = vpack.c.b16 %v481, %v480
  %v512 = vpack.c.b16 %v483, %v482
  %v513 = vpack.c.b16 %v485, %v484
  %v514 = vpack.c.b16 %v487, %v486
  %v515 = vpack.c.b16 %v489, %v488
  %v516 = vpack.c.b16 %v491, %v490
  %v517 = vpack.c.b16 %v493, %v492
  %v518 = vpack.c.b16 %v495, %v494
  %v519 = vpack.c.b16 %v497, %v496
  %v520 = vpack.c.b16 %v499, %v498
  %v521 = vpack.c.b16 %v501, %v500
  %v522 = vpack.c.b16 %v503, %v502
  %v523 = vpack.c.b16 %v505, %v504
  %v524 = vpack.c.b16 %v507, %v506
  %v525 = vpack.c.b16 %v509, %v508
  %542 = vmatprep.subr.bf16.mxu0 0
  %543 = vmatpush1.bf16.msra.mxu0 %v510
  %544 = vmatprep.subr.bf16.mxu0 0
  %545 = vmatpush1.bf16.msra.mxu0 %v511
  %546 = vmatprep.subr.bf16.mxu0 0
  %547 = vmatpush1.bf16.msra.mxu0 %v512
  %548 = vmatprep.subr.bf16.mxu0 0
  %549 = vmatpush1.bf16.msra.mxu0 %v513
  %550 = vmatprep.subr.bf16.mxu0 0
  %551 = vmatpush1.bf16.msra.mxu0 %v514
  %552 = vmatprep.subr.bf16.mxu0 0
  %553 = vmatpush1.bf16.msra.mxu0 %v515
  %554 = vmatprep.subr.bf16.mxu0 0
  %555 = vmatpush1.bf16.msra.mxu0 %v516
  %556 = vmatprep.subr.bf16.mxu0 0
  %557 = vmatpush1.bf16.msra.mxu0 %v517
  %558 = vmatprep.subr.bf16.mxu0 0
  %559 = vmatpush1.bf16.msra.mxu0 %v518
  %560 = vmatprep.subr.bf16.mxu0 0
  %561 = vmatpush1.bf16.msra.mxu0 %v519
  %562 = vmatprep.subr.bf16.mxu0 0
  %563 = vmatpush1.bf16.msra.mxu0 %v520
  %564 = vmatprep.subr.bf16.mxu0 0
  %565 = vmatpush1.bf16.msra.mxu0 %v521
  %566 = vmatprep.subr.bf16.mxu0 0
  %567 = vmatpush1.bf16.msra.mxu0 %v522
  %568 = vmatprep.subr.bf16.mxu0 0
  %569 = vmatpush1.bf16.msra.mxu0 %v523
  %570 = vmatprep.subr.bf16.mxu0 0
  %571 = vmatpush1.bf16.msra.mxu0 %v524
  %572 = vmatprep.subr.bf16.mxu0 0
  %573 = vmatpush1.bf16.msra.mxu0 %v525
  %574 = vmatprep.mubr.bf16.mxu0 %v319
  %575 = vmatmul.mubr.bf16.gmra.mrb[0].mxu0 %v318
  %v576 = vpop.f32.mrb[0].mxu0
  %v577 = vadd.f32 0.0, %v576
  %v578 = vpop.f32.mrb[0].mxu0
  %v579 = vpop.f32.mrb[0].mxu0
  %v580 = vadd.f32 0.0, %v579
  %v581 = vpop.f32.mrb[0].mxu0
  %582 = vmatprep.mubr.bf16.mxu0 %v321
  %583 = vmatmul.mubr.bf16.gmra.mrb[0].mxu0 %v320
  %v584 = vpop.f32.mrb[0].mxu0
  %v585 = vadd.f32 0.0, %v584
  %v586 = vpop.f32.mrb[0].mxu0
  %v587 = vpop.f32.mrb[0].mxu0
  %v588 = vadd.f32 0.0, %v587
  %v589 = vpop.f32.mrb[0].mxu0
  %590 = vmatprep.mubr.bf16.mxu0 %v323
  %591 = vmatmul.mubr.bf16.gmra.mrb[0].mxu0 %v322
  %v592 = vpop.f32.mrb[0].mxu0
  %v593 = vadd.f32 0.0, %v592
  %v594 = vpop.f32.mrb[0].mxu0
  %v595 = vpop.f32.mrb[0].mxu0
  %v596 = vadd.f32 0.0, %v595
  %v597 = vpop.f32.mrb[0].mxu0
  %598 = vmatprep.mubr.bf16.mxu0 %v325
  %599 = vmatmul.mubr.bf16.gmra.mrb[0].mxu0 %v324
  %v600 = vpop.f32.mrb[0].mxu0
  %v601 = vadd.f32 0.0, %v600
  %v602 = vpop.f32.mrb[0].mxu0
  %v603 = vpop.f32.mrb[0].mxu0
  %v604 = vadd.f32 0.0, %v603
  %v605 = vpop.f32.mrb[0].mxu0
  %606 = vmatprep.mubr.bf16.mxu0 %v327
  %607 = vmatmul.mubr.bf16.gmra.mrb[0].mxu0 %v326
  %v608 = vpop.f32.mrb[0].mxu0
  %v609 = vadd.f32 0.0, %v608
  %v610 = vpop.f32.mrb[0].mxu0
  %v611 = vpop.f32.mrb[0].mxu0
  %v612 = vadd.f32 0.0, %v611
  %v613 = vpop.f32.mrb[0].mxu0
  %614 = vmatprep.mubr.bf16.mxu0 %v329
  %615 = vmatmul.mubr.bf16.gmra.mrb[0].mxu0 %v328
  %v616 = vpop.f32.mrb[0].mxu0
  %v617 = vadd.f32 0.0, %v616
  %v618 = vpop.f32.mrb[0].mxu0
  %v619 = vpop.f32.mrb[0].mxu0
  %v620 = vadd.f32 0.0, %v619
  %v621 = vpop.f32.mrb[0].mxu0
  %622 = vmatprep.mubr.bf16.mxu0 %v331
  %623 = vmatmul.mubr.bf16.gmra.mrb[0].mxu0 %v330
  %v624 = vpop.f32.mrb[0].mxu0
  %v625 = vadd.f32 0.0, %v624
  %v626 = vpop.f32.mrb[0].mxu0
  %v627 = vpop.f32.mrb[0].mxu0
  %v628 = vadd.f32 0.0, %v627
  %v629 = vpop.f32.mrb[0].mxu0
  %630 = vmatprep.mubr.bf16.mxu0 %v333
  %631 = vmatmul.mubr.bf16.gmra.mrb[0].mxu0 %v332
  %v632 = vpop.f32.mrb[0].mxu0
  %v633 = vadd.f32 0.0, %v632
  %v634 = vpop.f32.mrb[0].mxu0
  %v635 = vpop.f32.mrb[0].mxu0
  %v636 = vadd.f32 0.0, %v635
  %v637 = vpop.f32.mrb[0].mxu0
  %638 = vmatprep.mubr.bf16.mxu0 %v335
  %639 = vmatmul.mubr.bf16.gmra.mrb[0].mxu0 %v334
  %v640 = vpop.f32.mrb[0].mxu0
  %v641 = vadd.f32 0.0, %v640
  %v642 = vpop.f32.mrb[0].mxu0
  %v643 = vpop.f32.mrb[0].mxu0
  %v644 = vadd.f32 0.0, %v643
  %v645 = vpop.f32.mrb[0].mxu0
  %646 = vmatprep.mubr.bf16.mxu0 %v337
  %647 = vmatmul.mubr.bf16.gmra.mrb[0].mxu0 %v336
  %v648 = vpop.f32.mrb[0].mxu0
  %v649 = vadd.f32 0.0, %v648
  %v650 = vpop.f32.mrb[0].mxu0
  %v651 = vpop.f32.mrb[0].mxu0
  %v652 = vadd.f32 0.0, %v651
  %v653 = vpop.f32.mrb[0].mxu0
  %654 = vmatprep.mubr.bf16.mxu0 %v339
  %655 = vmatmul.mubr.bf16.gmra.mrb[0].mxu0 %v338
  %v656 = vpop.f32.mrb[0].mxu0
  %v657 = vadd.f32 0.0, %v656
  %v658 = vpop.f32.mrb[0].mxu0
  %v659 = vpop.f32.mrb[0].mxu0
  %v660 = vadd.f32 0.0, %v659
  %v661 = vpop.f32.mrb[0].mxu0
  %662 = vmatprep.mubr.bf16.mxu0 %v341
  %663 = vmatmul.mubr.bf16.gmra.mrb[0].mxu0 %v340
  %v664 = vpop.f32.mrb[0].mxu0
  %v665 = vadd.f32 0.0, %v664
  %v666 = vpop.f32.mrb[0].mxu0
  %v667 = vpop.f32.mrb[0].mxu0
  %v668 = vadd.f32 0.0, %v667
  %v669 = vpop.f32.mrb[0].mxu0
  %670 = vmatprep.mubr.bf16.mxu0 %v343
  %671 = vmatmul.mubr.bf16.gmra.mrb[0].mxu0 %v342
  %v672 = vpop.f32.mrb[0].mxu0
  %v673 = vadd.f32 0.0, %v672
  %v674 = vpop.f32.mrb[0].mxu0
  %v675 = vpop.f32.mrb[0].mxu0
  %v676 = vadd.f32 0.0, %v675
  %v677 = vpop.f32.mrb[0].mxu0
  %678 = vmatprep.mubr.bf16.mxu0 %v345
  %679 = vmatmul.mubr.bf16.gmra.mrb[0].mxu0 %v344
  %v680 = vpop.f32.mrb[0].mxu0
  %v681 = vadd.f32 0.0, %v680
  %v682 = vpop.f32.mrb[0].mxu0
  %v683 = vpop.f32.mrb[0].mxu0
  %v684 = vadd.f32 0.0, %v683
  %v685 = vpop.f32.mrb[0].mxu0
  %686 = vmatprep.mubr.bf16.mxu0 %v347
  %687 = vmatmul.mubr.bf16.gmra.mrb[0].mxu0 %v346
  %v688 = vpop.f32.mrb[0].mxu0
  %v689 = vadd.f32 0.0, %v688
  %v690 = vpop.f32.mrb[0].mxu0
  %v691 = vpop.f32.mrb[0].mxu0
  %v692 = vadd.f32 0.0, %v691
  %v693 = vpop.f32.mrb[0].mxu0
  %694 = vmatprep.mubr.bf16.mxu0 %v349
  %695 = vmatmul.mubr.bf16.gmra.mrb[0].mxu0 %v348
  %v696 = vpop.f32.mrb[0].mxu0
  %v697 = vadd.f32 0.0, %v696
  %v698 = vpop.f32.mrb[0].mxu0
  %v699 = vpop.f32.mrb[0].mxu0
  %v700 = vadd.f32 0.0, %v699
  %v701 = vpop.f32.mrb[0].mxu0
  %702 = vmatprep.mubr.bf16.mxu0 %v351
  %703 = vmatmul.mubr.bf16.gmra.mrb[0].mxu0 %v350
  %v704 = vpop.f32.mrb[0].mxu0
  %v705 = vadd.f32 0.0, %v704
  %v706 = vpop.f32.mrb[0].mxu0
  %v707 = vpop.f32.mrb[0].mxu0
  %v708 = vadd.f32 0.0, %v707
  %v709 = vpop.f32.mrb[0].mxu0
  %710 = vmatprep.mubr.bf16.mxu0 %v353
  %711 = vmatmul.mubr.bf16.gmra.mrb[0].mxu0 %v352
  %v712 = vpop.f32.mrb[0].mxu0
  %v713 = vadd.f32 0.0, %v712
  %v714 = vpop.f32.mrb[0].mxu0
  %v715 = vpop.f32.mrb[0].mxu0
  %v716 = vadd.f32 0.0, %v715
  %v717 = vpop.f32.mrb[0].mxu0
  %718 = vmatprep.mubr.bf16.mxu0 %v355
  %719 = vmatmul.mubr.bf16.gmra.mrb[0].mxu0 %v354
  %v720 = vpop.f32.mrb[0].mxu0
  %v721 = vadd.f32 0.0, %v720
  %v722 = vpop.f32.mrb[0].mxu0
  %v723 = vpop.f32.mrb[0].mxu0
  %v724 = vadd.f32 0.0, %v723
  %v725 = vpop.f32.mrb[0].mxu0
  %726 = vmatprep.mubr.bf16.mxu0 %v357
  %727 = vmatmul.mubr.bf16.gmra.mrb[0].mxu0 %v356
  %v728 = vpop.f32.mrb[0].mxu0
  %v729 = vadd.f32 0.0, %v728
  %v730 = vpop.f32.mrb[0].mxu0
  %v731 = vpop.f32.mrb[0].mxu0
  %v732 = vadd.f32 0.0, %v731
  %v733 = vpop.f32.mrb[0].mxu0
  %734 = vmatprep.mubr.bf16.mxu0 %v359
  %735 = vmatmul.mubr.bf16.gmra.mrb[0].mxu0 %v358
  %v736 = vpop.f32.mrb[0].mxu0
  %v737 = vadd.f32 0.0, %v736
  %v738 = vpop.f32.mrb[0].mxu0
  %v739 = vpop.f32.mrb[0].mxu0
  %v740 = vadd.f32 0.0, %v739
  %v741 = vpop.f32.mrb[0].mxu0
  %742 = vmatprep.mubr.bf16.mxu0 %v361
  %743 = vmatmul.mubr.bf16.gmra.mrb[0].mxu0 %v360
  %v744 = vpop.f32.mrb[0].mxu0
  %v745 = vadd.f32 0.0, %v744
  %v746 = vpop.f32.mrb[0].mxu0
  %v747 = vpop.f32.mrb[0].mxu0
  %v748 = vadd.f32 0.0, %v747
  %v749 = vpop.f32.mrb[0].mxu0
  %750 = vmatprep.mubr.bf16.mxu0 %v363
  %751 = vmatmul.mubr.bf16.gmra.mrb[0].mxu0 %v362
  %v752 = vpop.f32.mrb[0].mxu0
  %v753 = vadd.f32 0.0, %v752
  %v754 = vpop.f32.mrb[0].mxu0
  %v755 = vpop.f32.mrb[0].mxu0
  %v756 = vadd.f32 0.0, %v755
  %v757 = vpop.f32.mrb[0].mxu0
  %758 = vmatprep.mubr.bf16.mxu0 %v365
  %759 = vmatmul.mubr.bf16.gmra.mrb[0].mxu0 %v364
  %v760 = vpop.f32.mrb[0].mxu0
  %v761 = vadd.f32 0.0, %v760
  %v762 = vpop.f32.mrb[0].mxu0
  %v763 = vpop.f32.mrb[0].mxu0
  %v764 = vadd.f32 0.0, %v763
  %v765 = vpop.f32.mrb[0].mxu0
  %766 = vmatprep.mubr.bf16.mxu0 %v367
  %767 = vmatmul.mubr.bf16.gmra.mrb[0].mxu0 %v366
  %v768 = vpop.f32.mrb[0].mxu0
  %v769 = vadd.f32 0.0, %v768
  %v770 = vpop.f32.mrb[0].mxu0
  %v771 = vpop.f32.mrb[0].mxu0
  %v772 = vadd.f32 0.0, %v771
  %v773 = vpop.f32.mrb[0].mxu0
  %774 = vmatprep.mubr.bf16.mxu0 %v369
  %775 = vmatmul.mubr.bf16.gmra.mrb[0].mxu0 %v368
  %v776 = vpop.f32.mrb[0].mxu0
  %v777 = vadd.f32 0.0, %v776
  %v778 = vpop.f32.mrb[0].mxu0
  %v779 = vpop.f32.mrb[0].mxu0
  %v780 = vadd.f32 0.0, %v779
  %v781 = vpop.f32.mrb[0].mxu0
  %782 = vmatprep.mubr.bf16.mxu0 %v371
  %783 = vmatmul.mubr.bf16.gmra.mrb[0].mxu0 %v370
  %v784 = vpop.f32.mrb[0].mxu0
  %v785 = vadd.f32 0.0, %v784
  %v786 = vpop.f32.mrb[0].mxu0
  %v787 = vpop.f32.mrb[0].mxu0
  %v788 = vadd.f32 0.0, %v787
  %v789 = vpop.f32.mrb[0].mxu0
  %790 = vmatprep.mubr.bf16.mxu0 %v373
  %791 = vmatmul.mubr.bf16.gmra.mrb[0].mxu0 %v372
  %v792 = vpop.f32.mrb[0].mxu0
  %v793 = vadd.f32 0.0, %v792
  %v794 = vpop.f32.mrb[0].mxu0
  %v795 = vpop.f32.mrb[0].mxu0
  %v796 = vadd.f32 0.0, %v795
  %v797 = vpop.f32.mrb[0].mxu0
  %798 = vmatprep.mubr.bf16.mxu0 %v375
  %799 = vmatmul.mubr.bf16.gmra.mrb[0].mxu0 %v374
  %v800 = vpop.f32.mrb[0].mxu0
  %v801 = vadd.f32 0.0, %v800
  %v802 = vpop.f32.mrb[0].mxu0
  %v803 = vpop.f32.mrb[0].mxu0
  %v804 = vadd.f32 0.0, %v803
  %v805 = vpop.f32.mrb[0].mxu0
  %806 = vmatprep.mubr.bf16.mxu0 %v377
  %807 = vmatmul.mubr.bf16.gmra.mrb[0].mxu0 %v376
  %v808 = vpop.f32.mrb[0].mxu0
  %v809 = vadd.f32 0.0, %v808
  %v810 = vpop.f32.mrb[0].mxu0
  %v811 = vpop.f32.mrb[0].mxu0
  %v812 = vadd.f32 0.0, %v811
  %v813 = vpop.f32.mrb[0].mxu0
  %814 = vmatprep.mubr.bf16.mxu0 %v379
  %815 = vmatmul.mubr.bf16.gmra.mrb[0].mxu0 %v378
  %v816 = vpop.f32.mrb[0].mxu0
  %v817 = vadd.f32 0.0, %v816
  %v818 = vpop.f32.mrb[0].mxu0
  %v819 = vpop.f32.mrb[0].mxu0
  %v820 = vadd.f32 0.0, %v819
  %v821 = vpop.f32.mrb[0].mxu0
  %822 = vmatprep.mubr.bf16.mxu0 %v381
  %823 = vmatmul.mubr.bf16.gmra.mrb[0].mxu0 %v380
  %v824 = vpop.f32.mrb[0].mxu0
  %v825 = vadd.f32 0.0, %v824
  %v826 = vpop.f32.mrb[0].mxu0
  %v827 = vpop.f32.mrb[0].mxu0
  %v828 = vadd.f32 0.0, %v827
  %v829 = vpop.f32.mrb[0].mxu0
  %830 = vdwg.mxu0
  %v831 = vld [vmem:[%s2] sm:$0x1]
  %v832 = vld [vmem:[%s3] sm:$0x1]
  %v833 = vadd.f32 %v577, %v580
  %v834 = vadd.f32 %v833, %v585
  %v835 = vadd.f32 %v834, %v588
  %v836 = vadd.f32 %v835, %v593
  %v837 = vadd.f32 %v836, %v596
  %v838 = vadd.f32 %v837, %v601
  %v839 = vadd.f32 %v838, %v604
  %v840 = vadd.f32 %v839, %v609
  %v841 = vadd.f32 %v840, %v612
  %v842 = vadd.f32 %v841, %v617
  %v843 = vadd.f32 %v842, %v620
  %v844 = vadd.f32 %v843, %v625
  %v845 = vadd.f32 %v844, %v628
  %v846 = vadd.f32 %v845, %v633
  %v847 = vadd.f32 %v846, %v636
  %v848 = vadd.f32 %v847, %v641
  %v849 = vadd.f32 %v848, %v644
  %v850 = vadd.f32 %v849, %v649
  %v851 = vadd.f32 %v850, %v652
  %v852 = vadd.f32 %v851, %v657
  %v853 = vadd.f32 %v852, %v660
  %v854 = vadd.f32 %v853, %v665
  %v855 = vadd.f32 %v854, %v668
  %v856 = vadd.f32 %v855, %v673
  %v857 = vadd.f32 %v856, %v676
  %v858 = vadd.f32 %v857, %v681
  %v859 = vadd.f32 %v858, %v684
  %v860 = vadd.f32 %v859, %v689
  %v861 = vadd.f32 %v860, %v692
  %v862 = vadd.f32 %v861, %v697
  %v863 = vadd.f32 %v862, %v700
  %v864 = vadd.f32 %v863, %v705
  %v865 = vadd.f32 %v864, %v708
  %v866 = vadd.f32 %v865, %v713
  %v867 = vadd.f32 %v866, %v716
  %v868 = vadd.f32 %v867, %v721
  %v869 = vadd.f32 %v868, %v724
  %v870 = vadd.f32 %v869, %v729
  %v871 = vadd.f32 %v870, %v732
  %v872 = vadd.f32 %v871, %v737
  %v873 = vadd.f32 %v872, %v740
  %v874 = vadd.f32 %v873, %v745
  %v875 = vadd.f32 %v874, %v748
  %v876 = vadd.f32 %v875, %v753
  %v877 = vadd.f32 %v876, %v756
  %v878 = vadd.f32 %v877, %v761
  %v879 = vadd.f32 %v878, %v764
  %v880 = vadd.f32 %v879, %v769
  %v881 = vadd.f32 %v880, %v772
  %v882 = vadd.f32 %v881, %v777
  %v883 = vadd.f32 %v882, %v780
  %v884 = vadd.f32 %v883, %v785
  %v885 = vadd.f32 %v884, %v788
  %v886 = vadd.f32 %v885, %v793
  %v887 = vadd.f32 %v886, %v796
  %v888 = vadd.f32 %v887, %v801
  %v889 = vadd.f32 %v888, %v804
  %v890 = vadd.f32 %v889, %v809
  %v891 = vadd.f32 %v890, %v812
  %v892 = vadd.f32 %v891, %v817
  %v893 = vadd.f32 %v892, %v820
  %v894 = vadd.f32 %v893, %v825
  %v895 = vadd.f32 %v894, %v828
  %v896 = vrot.slane %v895, 4
  %v897 = vadd.f32 %v895, %v896
  %v898 = vrot.slane %v897, 2
  %v899 = vadd.f32 %v897, %v898
  %v900 = vrot.slane %v899, 1
  %v901 = vadd.f32 %v899, %v900
  %v902 = vmul.f32 %v901, 0.001953125
  %v903 = vsub.f32 %v577, %v902
  %v904 = vsub.f32 %v580, %v902
  %v905 = vsub.f32 %v585, %v902
  %v906 = vsub.f32 %v588, %v902
  %v907 = vsub.f32 %v593, %v902
  %v908 = vsub.f32 %v596, %v902
  %v909 = vsub.f32 %v601, %v902
  %v910 = vsub.f32 %v604, %v902
  %v911 = vsub.f32 %v609, %v902
  %v912 = vsub.f32 %v612, %v902
  %v913 = vsub.f32 %v617, %v902
  %v914 = vsub.f32 %v620, %v902
  %v915 = vsub.f32 %v625, %v902
  %v916 = vsub.f32 %v628, %v902
  %v917 = vsub.f32 %v633, %v902
  %v918 = vsub.f32 %v636, %v902
  %v919 = vsub.f32 %v641, %v902
  %v920 = vsub.f32 %v644, %v902
  %v921 = vsub.f32 %v649, %v902
  %v922 = vsub.f32 %v652, %v902
  %v923 = vsub.f32 %v657, %v902
  %v924 = vsub.f32 %v660, %v902
  %v925 = vsub.f32 %v665, %v902
  %v926 = vsub.f32 %v668, %v902
  %v927 = vsub.f32 %v673, %v902
  %v928 = vsub.f32 %v676, %v902
  %v929 = vsub.f32 %v681, %v902
  %v930 = vsub.f32 %v684, %v902
  %v931 = vsub.f32 %v689, %v902
  %v932 = vsub.f32 %v692, %v902
  %v933 = vsub.f32 %v697, %v902
  %v934 = vsub.f32 %v700, %v902
  %v935 = vsub.f32 %v705, %v902
  %v936 = vsub.f32 %v708, %v902
  %v937 = vsub.f32 %v713, %v902
  %v938 = vsub.f32 %v716, %v902
  %v939 = vsub.f32 %v721, %v902
  %v940 = vsub.f32 %v724, %v902
  %v941 = vsub.f32 %v729, %v902
  %v942 = vsub.f32 %v732, %v902
  %v943 = vsub.f32 %v737, %v902
  %v944 = vsub.f32 %v740, %v902
  %v945 = vsub.f32 %v745, %v902
  %v946 = vsub.f32 %v748, %v902
  %v947 = vsub.f32 %v753, %v902
  %v948 = vsub.f32 %v756, %v902
  %v949 = vsub.f32 %v761, %v902
  %v950 = vsub.f32 %v764, %v902
  %v951 = vsub.f32 %v769, %v902
  %v952 = vsub.f32 %v772, %v902
  %v953 = vsub.f32 %v777, %v902
  %v954 = vsub.f32 %v780, %v902
  %v955 = vsub.f32 %v785, %v902
  %v956 = vsub.f32 %v788, %v902
  %v957 = vsub.f32 %v793, %v902
  %v958 = vsub.f32 %v796, %v902
  %v959 = vsub.f32 %v801, %v902
  %v960 = vsub.f32 %v804, %v902
  %v961 = vsub.f32 %v809, %v902
  %v962 = vsub.f32 %v812, %v902
  %v963 = vsub.f32 %v817, %v902
  %v964 = vsub.f32 %v820, %v902
  %v965 = vsub.f32 %v825, %v902
  %v966 = vsub.f32 %v828, %v902
  %v967 = vmul.f32 %v903, %v903
  %v968 = vmul.f32 %v904, %v904
  %v969 = vmul.f32 %v905, %v905
  %v970 = vmul.f32 %v906, %v906
  %v971 = vmul.f32 %v907, %v907
  %v972 = vmul.f32 %v908, %v908
  %v973 = vmul.f32 %v909, %v909
  %v974 = vmul.f32 %v910, %v910
  %v975 = vmul.f32 %v911, %v911
  %v976 = vmul.f32 %v912, %v912
  %v977 = vmul.f32 %v913, %v913
  %v978 = vmul.f32 %v914, %v914
  %v979 = vmul.f32 %v915, %v915
  %v980 = vmul.f32 %v916, %v916
  %v981 = vmul.f32 %v917, %v917
  %v982 = vmul.f32 %v918, %v918
  %v983 = vmul.f32 %v919, %v919
  %v984 = vmul.f32 %v920, %v920
  %v985 = vmul.f32 %v921, %v921
  %v986 = vmul.f32 %v922, %v922
  %v987 = vmul.f32 %v923, %v923
  %v988 = vmul.f32 %v924, %v924
  %v989 = vmul.f32 %v925, %v925
  %v990 = vmul.f32 %v926, %v926
  %v991 = vmul.f32 %v927, %v927
  %v992 = vmul.f32 %v928, %v928
  %v993 = vmul.f32 %v929, %v929
  %v994 = vmul.f32 %v930, %v930
  %v995 = vmul.f32 %v931, %v931
  %v996 = vmul.f32 %v932, %v932
  %v997 = vmul.f32 %v933, %v933
  %v998 = vmul.f32 %v934, %v934
  %v999 = vmul.f32 %v935, %v935
  %v1000 = vmul.f32 %v936, %v936
  %v1001 = vmul.f32 %v937, %v937
  %v1002 = vmul.f32 %v938, %v938
  %v1003 = vmul.f32 %v939, %v939
  %v1004 = vmul.f32 %v940, %v940
  %v1005 = vmul.f32 %v941, %v941
  %v1006 = vmul.f32 %v942, %v942
  %v1007 = vmul.f32 %v943, %v943
  %v1008 = vmul.f32 %v944, %v944
  %v1009 = vmul.f32 %v945, %v945
  %v1010 = vmul.f32 %v946, %v946
  %v1011 = vmul.f32 %v947, %v947
  %v1012 = vmul.f32 %v948, %v948
  %v1013 = vmul.f32 %v949, %v949
  %v1014 = vmul.f32 %v950, %v950
  %v1015 = vmul.f32 %v951, %v951
  %v1016 = vmul.f32 %v952, %v952
  %v1017 = vmul.f32 %v953, %v953
  %v1018 = vmul.f32 %v954, %v954
  %v1019 = vmul.f32 %v955, %v955
  %v1020 = vmul.f32 %v956, %v956
  %v1021 = vmul.f32 %v957, %v957
  %v1022 = vmul.f32 %v958, %v958
  %v1023 = vmul.f32 %v959, %v959
  %v1024 = vmul.f32 %v960, %v960
  %v1025 = vmul.f32 %v961, %v961
  %v1026 = vmul.f32 %v962, %v962
  %v1027 = vmul.f32 %v963, %v963
  %v1028 = vmul.f32 %v964, %v964
  %v1029 = vmul.f32 %v965, %v965
  %v1030 = vmul.f32 %v966, %v966
  %v1031 = vadd.f32 %v967, %v968
  %v1032 = vadd.f32 %v1031, %v969
  %v1033 = vadd.f32 %v1032, %v970
  %v1034 = vadd.f32 %v1033, %v971
  %v1035 = vadd.f32 %v1034, %v972
  %v1036 = vadd.f32 %v1035, %v973
  %v1037 = vadd.f32 %v1036, %v974
  %v1038 = vadd.f32 %v1037, %v975
  %v1039 = vadd.f32 %v1038, %v976
  %v1040 = vadd.f32 %v1039, %v977
  %v1041 = vadd.f32 %v1040, %v978
  %v1042 = vadd.f32 %v1041, %v979
  %v1043 = vadd.f32 %v1042, %v980
  %v1044 = vadd.f32 %v1043, %v981
  %v1045 = vadd.f32 %v1044, %v982
  %v1046 = vadd.f32 %v1045, %v983
  %v1047 = vadd.f32 %v1046, %v984
  %v1048 = vadd.f32 %v1047, %v985
  %v1049 = vadd.f32 %v1048, %v986
  %v1050 = vadd.f32 %v1049, %v987
  %v1051 = vadd.f32 %v1050, %v988
  %v1052 = vadd.f32 %v1051, %v989
  %v1053 = vadd.f32 %v1052, %v990
  %v1054 = vadd.f32 %v1053, %v991
  %v1055 = vadd.f32 %v1054, %v992
  %v1056 = vadd.f32 %v1055, %v993
  %v1057 = vadd.f32 %v1056, %v994
  %v1058 = vadd.f32 %v1057, %v995
  %v1059 = vadd.f32 %v1058, %v996
  %v1060 = vadd.f32 %v1059, %v997
  %v1061 = vadd.f32 %v1060, %v998
  %v1062 = vadd.f32 %v1061, %v999
  %v1063 = vadd.f32 %v1062, %v1000
  %v1064 = vadd.f32 %v1063, %v1001
  %v1065 = vadd.f32 %v1064, %v1002
  %v1066 = vadd.f32 %v1065, %v1003
  %v1067 = vadd.f32 %v1066, %v1004
  %v1068 = vadd.f32 %v1067, %v1005
  %v1069 = vadd.f32 %v1068, %v1006
  %v1070 = vadd.f32 %v1069, %v1007
  %v1071 = vadd.f32 %v1070, %v1008
  %v1072 = vadd.f32 %v1071, %v1009
  %v1073 = vadd.f32 %v1072, %v1010
  %v1074 = vadd.f32 %v1073, %v1011
  %v1075 = vadd.f32 %v1074, %v1012
  %v1076 = vadd.f32 %v1075, %v1013
  %v1077 = vadd.f32 %v1076, %v1014
  %v1078 = vadd.f32 %v1077, %v1015
  %v1079 = vadd.f32 %v1078, %v1016
  %v1080 = vadd.f32 %v1079, %v1017
  %v1081 = vadd.f32 %v1080, %v1018
  %v1082 = vadd.f32 %v1081, %v1019
  %v1083 = vadd.f32 %v1082, %v1020
  %v1084 = vadd.f32 %v1083, %v1021
  %v1085 = vadd.f32 %v1084, %v1022
  %v1086 = vadd.f32 %v1085, %v1023
  %v1087 = vadd.f32 %v1086, %v1024
  %v1088 = vadd.f32 %v1087, %v1025
  %v1089 = vadd.f32 %v1088, %v1026
  %v1090 = vadd.f32 %v1089, %v1027
  %v1091 = vadd.f32 %v1090, %v1028
  %v1092 = vadd.f32 %v1091, %v1029
  %v1093 = vadd.f32 %v1092, %v1030
  %v1094 = vrot.slane %v1093, 4
  %v1095 = vadd.f32 %v1093, %v1094
  %v1096 = vrot.slane %v1095, 2
  %v1097 = vadd.f32 %v1095, %v1096
  %v1098 = vrot.slane %v1097, 1
  %v1099 = vadd.f32 %v1097, %v1098
  %v1100 = vmul.f32 %v1099, 0.001953125
  %v1101 = vadd.f32 %v1100, 1e-05
  %v1102 = vrsqrt.pop %v1101
  %v1103 = vmul.f32 %v903, %v1102
  %v1104 = vmul.f32 %v904, %v1102
  %v1105 = vmul.f32 %v905, %v1102
  %v1106 = vmul.f32 %v906, %v1102
  %v1107 = vmul.f32 %v907, %v1102
  %v1108 = vmul.f32 %v908, %v1102
  %v1109 = vmul.f32 %v909, %v1102
  %v1110 = vmul.f32 %v910, %v1102
  %v1111 = vmul.f32 %v911, %v1102
  %v1112 = vmul.f32 %v912, %v1102
  %v1113 = vmul.f32 %v913, %v1102
  %v1114 = vmul.f32 %v914, %v1102
  %v1115 = vmul.f32 %v915, %v1102
  %v1116 = vmul.f32 %v916, %v1102
  %v1117 = vmul.f32 %v917, %v1102
  %v1118 = vmul.f32 %v918, %v1102
  %v1119 = vmul.f32 %v919, %v1102
  %v1120 = vmul.f32 %v920, %v1102
  %v1121 = vmul.f32 %v921, %v1102
  %v1122 = vmul.f32 %v922, %v1102
  %v1123 = vmul.f32 %v923, %v1102
  %v1124 = vmul.f32 %v924, %v1102
  %v1125 = vmul.f32 %v925, %v1102
  %v1126 = vmul.f32 %v926, %v1102
  %v1127 = vmul.f32 %v927, %v1102
  %v1128 = vmul.f32 %v928, %v1102
  %v1129 = vmul.f32 %v929, %v1102
  %v1130 = vmul.f32 %v930, %v1102
  %v1131 = vmul.f32 %v931, %v1102
  %v1132 = vmul.f32 %v932, %v1102
  %v1133 = vmul.f32 %v933, %v1102
  %v1134 = vmul.f32 %v934, %v1102
  %v1135 = vmul.f32 %v935, %v1102
  %v1136 = vmul.f32 %v936, %v1102
  %v1137 = vmul.f32 %v937, %v1102
  %v1138 = vmul.f32 %v938, %v1102
  %v1139 = vmul.f32 %v939, %v1102
  %v1140 = vmul.f32 %v940, %v1102
  %v1141 = vmul.f32 %v941, %v1102
  %v1142 = vmul.f32 %v942, %v1102
  %v1143 = vmul.f32 %v943, %v1102
  %v1144 = vmul.f32 %v944, %v1102
  %v1145 = vmul.f32 %v945, %v1102
  %v1146 = vmul.f32 %v946, %v1102
  %v1147 = vmul.f32 %v947, %v1102
  %v1148 = vmul.f32 %v948, %v1102
  %v1149 = vmul.f32 %v949, %v1102
  %v1150 = vmul.f32 %v950, %v1102
  %v1151 = vmul.f32 %v951, %v1102
  %v1152 = vmul.f32 %v952, %v1102
  %v1153 = vmul.f32 %v953, %v1102
  %v1154 = vmul.f32 %v954, %v1102
  %v1155 = vmul.f32 %v955, %v1102
  %v1156 = vmul.f32 %v956, %v1102
  %v1157 = vmul.f32 %v957, %v1102
  %v1158 = vmul.f32 %v958, %v1102
  %v1159 = vmul.f32 %v959, %v1102
  %v1160 = vmul.f32 %v960, %v1102
  %v1161 = vmul.f32 %v961, %v1102
  %v1162 = vmul.f32 %v962, %v1102
  %v1163 = vmul.f32 %v963, %v1102
  %v1164 = vmul.f32 %v964, %v1102
  %v1165 = vmul.f32 %v965, %v1102
  %v1166 = vmul.f32 %v966, %v1102
  %v1168 = vlaneseq
  %v1169 = vshrl.u32 %v1168, 7
  %v1170 = vsub.s32 0, %v1169
  %v1171 = vrot.slane %v831, %v1170
  %v1173 = vmul.f32 %v1103, %v1171
  %v1174 = vmul.f32 %v1104, %v1171
  %v1175 = vmul.f32 %v1105, %v1171
  %v1176 = vmul.f32 %v1106, %v1171
  %v1177 = vmul.f32 %v1107, %v1171
  %v1178 = vmul.f32 %v1108, %v1171
  %v1179 = vmul.f32 %v1109, %v1171
  %v1180 = vmul.f32 %v1110, %v1171
  %v1181 = vmul.f32 %v1111, %v1171
  %v1182 = vmul.f32 %v1112, %v1171
  %v1183 = vmul.f32 %v1113, %v1171
  %v1184 = vmul.f32 %v1114, %v1171
  %v1185 = vmul.f32 %v1115, %v1171
  %v1186 = vmul.f32 %v1116, %v1171
  %v1187 = vmul.f32 %v1117, %v1171
  %v1188 = vmul.f32 %v1118, %v1171
  %v1189 = vmul.f32 %v1119, %v1171
  %v1190 = vmul.f32 %v1120, %v1171
  %v1191 = vmul.f32 %v1121, %v1171
  %v1192 = vmul.f32 %v1122, %v1171
  %v1193 = vmul.f32 %v1123, %v1171
  %v1194 = vmul.f32 %v1124, %v1171
  %v1195 = vmul.f32 %v1125, %v1171
  %v1196 = vmul.f32 %v1126, %v1171
  %v1197 = vmul.f32 %v1127, %v1171
  %v1198 = vmul.f32 %v1128, %v1171
  %v1199 = vmul.f32 %v1129, %v1171
  %v1200 = vmul.f32 %v1130, %v1171
  %v1201 = vmul.f32 %v1131, %v1171
  %v1202 = vmul.f32 %v1132, %v1171
  %v1203 = vmul.f32 %v1133, %v1171
  %v1204 = vmul.f32 %v1134, %v1171
  %v1205 = vmul.f32 %v1135, %v1171
  %v1206 = vmul.f32 %v1136, %v1171
  %v1207 = vmul.f32 %v1137, %v1171
  %v1208 = vmul.f32 %v1138, %v1171
  %v1209 = vmul.f32 %v1139, %v1171
  %v1210 = vmul.f32 %v1140, %v1171
  %v1211 = vmul.f32 %v1141, %v1171
  %v1212 = vmul.f32 %v1142, %v1171
  %v1213 = vmul.f32 %v1143, %v1171
  %v1214 = vmul.f32 %v1144, %v1171
  %v1215 = vmul.f32 %v1145, %v1171
  %v1216 = vmul.f32 %v1146, %v1171
  %v1217 = vmul.f32 %v1147, %v1171
  %v1218 = vmul.f32 %v1148, %v1171
  %v1219 = vmul.f32 %v1149, %v1171
  %v1220 = vmul.f32 %v1150, %v1171
  %v1221 = vmul.f32 %v1151, %v1171
  %v1222 = vmul.f32 %v1152, %v1171
  %v1223 = vmul.f32 %v1153, %v1171
  %v1224 = vmul.f32 %v1154, %v1171
  %v1225 = vmul.f32 %v1155, %v1171
  %v1226 = vmul.f32 %v1156, %v1171
  %v1227 = vmul.f32 %v1157, %v1171
  %v1228 = vmul.f32 %v1158, %v1171
  %v1229 = vmul.f32 %v1159, %v1171
  %v1230 = vmul.f32 %v1160, %v1171
  %v1231 = vmul.f32 %v1161, %v1171
  %v1232 = vmul.f32 %v1162, %v1171
  %v1233 = vmul.f32 %v1163, %v1171
  %v1234 = vmul.f32 %v1164, %v1171
  %v1235 = vmul.f32 %v1165, %v1171
  %v1236 = vmul.f32 %v1166, %v1171
  %v1238 = vlaneseq
  %v1239 = vshrl.u32 %v1238, 7
  %v1240 = vsub.s32 0, %v1239
  %v1241 = vrot.slane %v832, %v1240
  %v1243 = vadd.f32 %v1173, %v1241
  %v1244 = vadd.f32 %v1174, %v1241
  %v1245 = vadd.f32 %v1175, %v1241
  %v1246 = vadd.f32 %v1176, %v1241
  %v1247 = vadd.f32 %v1177, %v1241
  %v1248 = vadd.f32 %v1178, %v1241
  %v1249 = vadd.f32 %v1179, %v1241
  %v1250 = vadd.f32 %v1180, %v1241
  %v1251 = vadd.f32 %v1181, %v1241
  %v1252 = vadd.f32 %v1182, %v1241
  %v1253 = vadd.f32 %v1183, %v1241
  %v1254 = vadd.f32 %v1184, %v1241
  %v1255 = vadd.f32 %v1185, %v1241
  %v1256 = vadd.f32 %v1186, %v1241
  %v1257 = vadd.f32 %v1187, %v1241
  %v1258 = vadd.f32 %v1188, %v1241
  %v1259 = vadd.f32 %v1189, %v1241
  %v1260 = vadd.f32 %v1190, %v1241
  %v1261 = vadd.f32 %v1191, %v1241
  %v1262 = vadd.f32 %v1192, %v1241
  %v1263 = vadd.f32 %v1193, %v1241
  %v1264 = vadd.f32 %v1194, %v1241
  %v1265 = vadd.f32 %v1195, %v1241
  %v1266 = vadd.f32 %v1196, %v1241
  %v1267 = vadd.f32 %v1197, %v1241
  %v1268 = vadd.f32 %v1198, %v1241
  %v1269 = vadd.f32 %v1199, %v1241
  %v1270 = vadd.f32 %v1200, %v1241
  %v1271 = vadd.f32 %v1201, %v1241
  %v1272 = vadd.f32 %v1202, %v1241
  %v1273 = vadd.f32 %v1203, %v1241
  %v1274 = vadd.f32 %v1204, %v1241
  %v1275 = vadd.f32 %v1205, %v1241
  %v1276 = vadd.f32 %v1206, %v1241
  %v1277 = vadd.f32 %v1207, %v1241
  %v1278 = vadd.f32 %v1208, %v1241
  %v1279 = vadd.f32 %v1209, %v1241
  %v1280 = vadd.f32 %v1210, %v1241
  %v1281 = vadd.f32 %v1211, %v1241
  %v1282 = vadd.f32 %v1212, %v1241
  %v1283 = vadd.f32 %v1213, %v1241
  %v1284 = vadd.f32 %v1214, %v1241
  %v1285 = vadd.f32 %v1215, %v1241
  %v1286 = vadd.f32 %v1216, %v1241
  %v1287 = vadd.f32 %v1217, %v1241
  %v1288 = vadd.f32 %v1218, %v1241
  %v1289 = vadd.f32 %v1219, %v1241
  %v1290 = vadd.f32 %v1220, %v1241
  %v1291 = vadd.f32 %v1221, %v1241
  %v1292 = vadd.f32 %v1222, %v1241
  %v1293 = vadd.f32 %v1223, %v1241
  %v1294 = vadd.f32 %v1224, %v1241
  %v1295 = vadd.f32 %v1225, %v1241
  %v1296 = vadd.f32 %v1226, %v1241
  %v1297 = vadd.f32 %v1227, %v1241
  %v1298 = vadd.f32 %v1228, %v1241
  %v1299 = vadd.f32 %v1229, %v1241
  %v1300 = vadd.f32 %v1230, %v1241
  %v1301 = vadd.f32 %v1231, %v1241
  %v1302 = vadd.f32 %v1232, %v1241
  %v1303 = vadd.f32 %v1233, %v1241
  %v1304 = vadd.f32 %v1234, %v1241
  %v1305 = vadd.f32 %v1235, %v1241
  %v1306 = vadd.f32 %v1236, %v1241
  %v1307 = vmax.f32 %v1243, 0.0
  %v1308 = vmax.f32 %v1244, 0.0
  %v1309 = vmax.f32 %v1245, 0.0
  %v1310 = vmax.f32 %v1246, 0.0
  %v1311 = vmax.f32 %v1247, 0.0
  %v1312 = vmax.f32 %v1248, 0.0
  %v1313 = vmax.f32 %v1249, 0.0
  %v1314 = vmax.f32 %v1250, 0.0
  %v1315 = vmax.f32 %v1251, 0.0
  %v1316 = vmax.f32 %v1252, 0.0
  %v1317 = vmax.f32 %v1253, 0.0
  %v1318 = vmax.f32 %v1254, 0.0
  %v1319 = vmax.f32 %v1255, 0.0
  %v1320 = vmax.f32 %v1256, 0.0
  %v1321 = vmax.f32 %v1257, 0.0
  %v1322 = vmax.f32 %v1258, 0.0
  %v1323 = vmax.f32 %v1259, 0.0
  %v1324 = vmax.f32 %v1260, 0.0
  %v1325 = vmax.f32 %v1261, 0.0
  %v1326 = vmax.f32 %v1262, 0.0
  %v1327 = vmax.f32 %v1263, 0.0
  %v1328 = vmax.f32 %v1264, 0.0
  %v1329 = vmax.f32 %v1265, 0.0
  %v1330 = vmax.f32 %v1266, 0.0
  %v1331 = vmax.f32 %v1267, 0.0
  %v1332 = vmax.f32 %v1268, 0.0
  %v1333 = vmax.f32 %v1269, 0.0
  %v1334 = vmax.f32 %v1270, 0.0
  %v1335 = vmax.f32 %v1271, 0.0
  %v1336 = vmax.f32 %v1272, 0.0
  %v1337 = vmax.f32 %v1273, 0.0
  %v1338 = vmax.f32 %v1274, 0.0
  %v1339 = vmax.f32 %v1275, 0.0
  %v1340 = vmax.f32 %v1276, 0.0
  %v1341 = vmax.f32 %v1277, 0.0
  %v1342 = vmax.f32 %v1278, 0.0
  %v1343 = vmax.f32 %v1279, 0.0
  %v1344 = vmax.f32 %v1280, 0.0
  %v1345 = vmax.f32 %v1281, 0.0
  %v1346 = vmax.f32 %v1282, 0.0
  %v1347 = vmax.f32 %v1283, 0.0
  %v1348 = vmax.f32 %v1284, 0.0
  %v1349 = vmax.f32 %v1285, 0.0
  %v1350 = vmax.f32 %v1286, 0.0
  %v1351 = vmax.f32 %v1287, 0.0
  %v1352 = vmax.f32 %v1288, 0.0
  %v1353 = vmax.f32 %v1289, 0.0
  %v1354 = vmax.f32 %v1290, 0.0
  %v1355 = vmax.f32 %v1291, 0.0
  %v1356 = vmax.f32 %v1292, 0.0
  %v1357 = vmax.f32 %v1293, 0.0
  %v1358 = vmax.f32 %v1294, 0.0
  %v1359 = vmax.f32 %v1295, 0.0
  %v1360 = vmax.f32 %v1296, 0.0
  %v1361 = vmax.f32 %v1297, 0.0
  %v1362 = vmax.f32 %v1298, 0.0
  %v1363 = vmax.f32 %v1299, 0.0
  %v1364 = vmax.f32 %v1300, 0.0
  %v1365 = vmax.f32 %v1301, 0.0
  %v1366 = vmax.f32 %v1302, 0.0
  %v1367 = vmax.f32 %v1303, 0.0
  %v1368 = vmax.f32 %v1304, 0.0
  %v1369 = vmax.f32 %v1305, 0.0
  %v1370 = vmax.f32 %v1306, 0.0
  %1371 = vst [vmem:[#allocation2] sm:$0xff] 0.0
  %1372 = vst [vmem:[#allocation2 + $0x8] sm:$0xff] 0.0
  %1373 = vst [vmem:[#allocation2 + $0x10] sm:$0x3] 0.0
  %1374 = vst [vmem:[#allocation2 + $0x1b0] sm:$0xff] 0.0
  %1375 = vst [vmem:[#allocation2 + $0x1b8] sm:$0xff] 0.0
  %1376 = vst [vmem:[#allocation2 + $0x1c0] sm:$0x3] 0.0
  %s1377 = scalar_lea.vmem [#allocation2], 408
  %1378 = vst [vmem:[%s1377] sm:$0xff] 0.0
  %1379 = vst [vmem:[%s1377 + $0x8] sm:$0xff] 0.0
  %1380 = vst [vmem:[%s1377 + $0x10] sm:$0x3] 0.0
  %1381 = vst [vmem:[%s1377 + $0x1b0] sm:$0xff] 0.0
  %1382 = vst [vmem:[%s1377 + $0x1b8] sm:$0xff] 0.0
  %1383 = vst [vmem:[%s1377 + $0x1c0] sm:$0x3] 0.0
  %s1384 = scalar_lea.vmem [#allocation2], 24
  %1385 = vst [vmem:[%s1384] sm:$0x1] 0.0
  %1386 = vst [vmem:[%s1384 + $0x18] sm:$0x1] 0.0
  %1387 = vst [vmem:[%s1384 + $0x30] sm:$0x1] 0.0
  %1388 = vst [vmem:[%s1384 + $0x48] sm:$0x1] 0.0
  %1389 = vst [vmem:[%s1384 + $0x60] sm:$0x1] 0.0
  %1390 = vst [vmem:[%s1384 + $0x78] sm:$0x1] 0.0
  %1391 = vst [vmem:[%s1384 + $0x90] sm:$0x1] 0.0
  %1392 = vst [vmem:[%s1384 + $0xa8] sm:$0x1] 0.0
  %1393 = vst [vmem:[%s1384 + $0xc0] sm:$0x1] 0.0
  %1394 = vst [vmem:[%s1384 + $0xd8] sm:$0x1] 0.0
  %1395 = vst [vmem:[%s1384 + $0xf0] sm:$0x1] 0.0
  %1396 = vst [vmem:[%s1384 + $0x108] sm:$0x1] 0.0
  %1397 = vst [vmem:[%s1384 + $0x120] sm:$0x1] 0.0
  %1398 = vst [vmem:[%s1384 + $0x138] sm:$0x1] 0.0
  %1399 = vst [vmem:[%s1384 + $0x150] sm:$0x1] 0.0
  %1400 = vst [vmem:[%s1384 + $0x168] sm:$0x1] 0.0
  %1401 = vst [vmem:[%s1384 + $0x1b0] sm:$0x1] 0.0
  %1402 = vst [vmem:[%s1384 + $0x1c8] sm:$0x1] 0.0
  %1403 = vst [vmem:[%s1384 + $0x1e0] sm:$0x1] 0.0
  %1404 = vst [vmem:[%s1384 + $0x1f8] sm:$0x1] 0.0
  %1405 = vst [vmem:[%s1384 + $0x210] sm:$0x1] 0.0
  %1406 = vst [vmem:[%s1384 + $0x228] sm:$0x1] 0.0
  %1407 = vst [vmem:[%s1384 + $0x240] sm:$0x1] 0.0
  %1408 = vst [vmem:[%s1384 + $0x258] sm:$0x1] 0.0
  %1409 = vst [vmem:[%s1384 + $0x270] sm:$0x1] 0.0
  %1410 = vst [vmem:[%s1384 + $0x288] sm:$0x1] 0.0
  %1411 = vst [vmem:[%s1384 + $0x2a0] sm:$0x1] 0.0
  %1412 = vst [vmem:[%s1384 + $0x2b8] sm:$0x1] 0.0
  %1413 = vst [vmem:[%s1384 + $0x2d0] sm:$0x1] 0.0
  %1414 = vst [vmem:[%s1384 + $0x2e8] sm:$0x1] 0.0
  %1415 = vst [vmem:[%s1384 + $0x300] sm:$0x1] 0.0
  %1416 = vst [vmem:[%s1384 + $0x318] sm:$0x1] 0.0
  %1417 = vst [vmem:[%s1384 + $0x11] sm:$0x1] 0.0
  %1418 = vst [vmem:[%s1384 + $0x29] sm:$0x1] 0.0
  %1419 = vst [vmem:[%s1384 + $0x41] sm:$0x1] 0.0
  %1420 = vst [vmem:[%s1384 + $0x59] sm:$0x1] 0.0
  %1421 = vst [vmem:[%s1384 + $0x71] sm:$0x1] 0.0
  %1422 = vst [vmem:[%s1384 + $0x89] sm:$0x1] 0.0
  %1423 = vst [vmem:[%s1384 + $0xa1] sm:$0x1] 0.0
  %1424 = vst [vmem:[%s1384 + $0xb9] sm:$0x1] 0.0
  %1425 = vst [vmem:[%s1384 + $0xd1] sm:$0x1] 0.0
  %1426 = vst [vmem:[%s1384 + $0xe9] sm:$0x1] 0.0
  %1427 = vst [vmem:[%s1384 + $0x101] sm:$0x1] 0.0
  %1428 = vst [vmem:[%s1384 + $0x119] sm:$0x1] 0.0
  %1429 = vst [vmem:[%s1384 + $0x131] sm:$0x1] 0.0
  %1430 = vst [vmem:[%s1384 + $0x149] sm:$0x1] 0.0
  %1431 = vst [vmem:[%s1384 + $0x161] sm:$0x1] 0.0
  %1432 = vst [vmem:[%s1384 + $0x179] sm:$0x1] 0.0
  %1433 = vst [vmem:[%s1384 + $0x1c1] sm:$0x1] 0.0
  %1434 = vst [vmem:[%s1384 + $0x1d9] sm:$0x1] 0.0
  %1435 = vst [vmem:[%s1384 + $0x1f1] sm:$0x1] 0.0
  %1436 = vst [vmem:[%s1384 + $0x209] sm:$0x1] 0.0
  %1437 = vst [vmem:[%s1384 + $0x221] sm:$0x1] 0.0
  %1438 = vst [vmem:[%s1384 + $0x239] sm:$0x1] 0.0
  %1439 = vst [vmem:[%s1384 + $0x251] sm:$0x1] 0.0
  %1440 = vst [vmem:[%s1384 + $0x269] sm:$0x1] 0.0
  %1441 = vst [vmem:[%s1384 + $0x281] sm:$0x1] 0.0
  %1442 = vst [vmem:[%s1384 + $0x299] sm:$0x1] 0.0
  %1443 = vst [vmem:[%s1384 + $0x2b1] sm:$0x1] 0.0
  %1444 = vst [vmem:[%s1384 + $0x2c9] sm:$0x1] 0.0
  %1445 = vst [vmem:[%s1384 + $0x2e1] sm:$0x1] 0.0
  %1446 = vst [vmem:[%s1384 + $0x2f9] sm:$0x1] 0.0
  %1447 = vst [vmem:[%s1384 + $0x311] sm:$0x1] 0.0
  %1448 = vst [vmem:[%s1384 + $0x329] sm:$0x1] 0.0
  %1449 = vst [vmem:[%s1384 + $0x1] sm:$0xff] %v1307
  %1450 = vst [vmem:[%s1384 + $0x9] sm:$0xff] %v1308
  %1451 = vst [vmem:[%s1384 + $0x19] sm:$0xff] %v1309
  %1452 = vst [vmem:[%s1384 + $0x21] sm:$0xff] %v1310
  %1453 = vst [vmem:[%s1384 + $0x31] sm:$0xff] %v1311
  %1454 = vst [vmem:[%s1384 + $0x39] sm:$0xff] %v1312
  %1455 = vst [vmem:[%s1384 + $0x49] sm:$0xff] %v1313
  %1456 = vst [vmem:[%s1384 + $0x51] sm:$0xff] %v1314
  %1457 = vst [vmem:[%s1384 + $0x61] sm:$0xff] %v1315
  %1458 = vst [vmem:[%s1384 + $0x69] sm:$0xff] %v1316
  %1459 = vst [vmem:[%s1384 + $0x79] sm:$0xff] %v1317
  %1460 = vst [vmem:[%s1384 + $0x81] sm:$0xff] %v1318
  %1461 = vst [vmem:[%s1384 + $0x91] sm:$0xff] %v1319
  %1462 = vst [vmem:[%s1384 + $0x99] sm:$0xff] %v1320
  %1463 = vst [vmem:[%s1384 + $0xa9] sm:$0xff] %v1321
  %1464 = vst [vmem:[%s1384 + $0xb1] sm:$0xff] %v1322
  %1465 = vst [vmem:[%s1384 + $0xc1] sm:$0xff] %v1323
  %1466 = vst [vmem:[%s1384 + $0xc9] sm:$0xff] %v1324
  %1467 = vst [vmem:[%s1384 + $0xd9] sm:$0xff] %v1325
  %1468 = vst [vmem:[%s1384 + $0xe1] sm:$0xff] %v1326
  %1469 = vst [vmem:[%s1384 + $0xf1] sm:$0xff] %v1327
  %1470 = vst [vmem:[%s1384 + $0xf9] sm:$0xff] %v1328
  %1471 = vst [vmem:[%s1384 + $0x109] sm:$0xff] %v1329
  %1472 = vst [vmem:[%s1384 + $0x111] sm:$0xff] %v1330
  %1473 = vst [vmem:[%s1384 + $0x121] sm:$0xff] %v1331
  %1474 = vst [vmem:[%s1384 + $0x129] sm:$0xff] %v1332
  %1475 = vst [vmem:[%s1384 + $0x139] sm:$0xff] %v1333
  %1476 = vst [vmem:[%s1384 + $0x141] sm:$0xff] %v1334
  %1477 = vst [vmem:[%s1384 + $0x151] sm:$0xff] %v1335
  %1478 = vst [vmem:[%s1384 + $0x159] sm:$0xff] %v1336
  %1479 = vst [vmem:[%s1384 + $0x169] sm:$0xff] %v1337
  %1480 = vst [vmem:[%s1384 + $0x171] sm:$0xff] %v1338
  %1481 = vst [vmem:[%s1384 + $0x1b1] sm:$0xff] %v1339
  %1482 = vst [vmem:[%s1384 + $0x1b9] sm:$0xff] %v1340
  %1483 = vst [vmem:[%s1384 + $0x1c9] sm:$0xff] %v1341
  %1484 = vst [vmem:[%s1384 + $0x1d1] sm:$0xff] %v1342
  %1485 = vst [vmem:[%s1384 + $0x1e1] sm:$0xff] %v1343
  %1486 = vst [vmem:[%s1384 + $0x1e9] sm:$0xff] %v1344
  %1487 = vst [vmem:[%s1384 + $0x1f9] sm:$0xff] %v1345
  %1488 = vst [vmem:[%s1384 + $0x201] sm:$0xff] %v1346
  %1489 = vst [vmem:[%s1384 + $0x211] sm:$0xff] %v1347
  %1490 = vst [vmem:[%s1384 + $0x219] sm:$0xff] %v1348
  %1491 = vst [vmem:[%s1384 + $0x229] sm:$0xff] %v1349
  %1492 = vst [vmem:[%s1384 + $0x231] sm:$0xff] %v1350
  %1493 = vst [vmem:[%s1384 + $0x241] sm:$0xff] %v1351
  %1494 = vst [vmem:[%s1384 + $0x249] sm:$0xff] %v1352
  %1495 = vst [vmem:[%s1384 + $0x259] sm:$0xff] %v1353
  %1496 = vst [vmem:[%s1384 + $0x261] sm:$0xff] %v1354
  %1497 = vst [vmem:[%s1384 + $0x271] sm:$0xff] %v1355
  %1498 = vst [vmem:[%s1384 + $0x279] sm:$0xff] %v1356
  %1499 = vst [vmem:[%s1384 + $0x289] sm:$0xff] %v1357
  %1500 = vst [vmem:[%s1384 + $0x291] sm:$0xff] %v1358
  %1501 = vst [vmem:[%s1384 + $0x2a1] sm:$0xff] %v1359
  %1502 = vst [vmem:[%s1384 + $0x2a9] sm:$0xff] %v1360
  %1503 = vst [vmem:[%s1384 + $0x2b9] sm:$0xff] %v1361
  %1504 = vst [vmem:[%s1384 + $0x2c1] sm:$0xff] %v1362
  %1505 = vst [vmem:[%s1384 + $0x2d1] sm:$0xff] %v1363
  %1506 = vst [vmem:[%s1384 + $0x2d9] sm:$0xff] %v1364
  %1507 = vst [vmem:[%s1384 + $0x2e9] sm:$0xff] %v1365
  %1508 = vst [vmem:[%s1384 + $0x2f1] sm:$0xff] %v1366
  %1509 = vst [vmem:[%s1384 + $0x301] sm:$0xff] %v1367
  %1510 = vst [vmem:[%s1384 + $0x309] sm:$0xff] %v1368
  %1511 = vst [vmem:[%s1384 + $0x319] sm:$0xff] %v1369
  %1512 = vst [vmem:[%s1384 + $0x321] sm:$0xff] %v1370
  %v1513 = vld [vmem:[#allocation2] sm:$0xff]
  %v1514 = vld [vmem:[#allocation2 + $0x8] sm:$0xff]
  %v1515 = vld [vmem:[#allocation2 + $0x18] sm:$0xff]
  %v1516 = vld [vmem:[#allocation2 + $0x20] sm:$0xff]
  %v1517 = vld [vmem:[#allocation2 + $0x30] sm:$0xff]
  %v1518 = vld [vmem:[#allocation2 + $0x38] sm:$0xff]
  %v1519 = vld [vmem:[#allocation2 + $0x48] sm:$0xff]
  %v1520 = vld [vmem:[#allocation2 + $0x50] sm:$0xff]
  %v1521 = vld [vmem:[#allocation2 + $0x60] sm:$0xff]
  %v1522 = vld [vmem:[#allocation2 + $0x68] sm:$0xff]
  %v1523 = vld [vmem:[#allocation2 + $0x78] sm:$0xff]
  %v1524 = vld [vmem:[#allocation2 + $0x80] sm:$0xff]
  %v1525 = vld [vmem:[#allocation2 + $0x90] sm:$0xff]
  %v1526 = vld [vmem:[#allocation2 + $0x98] sm:$0xff]
  %v1527 = vld [vmem:[#allocation2 + $0xa8] sm:$0xff]
  %v1528 = vld [vmem:[#allocation2 + $0xb0] sm:$0xff]
  %v1529 = vld [vmem:[#allocation2 + $0xc0] sm:$0xff]
  %v1530 = vld [vmem:[#allocation2 + $0xc8] sm:$0xff]
  %v1531 = vld [vmem:[#allocation2 + $0xd8] sm:$0xff]
  %v1532 = vld [vmem:[#allocation2 + $0xe0] sm:$0xff]
  %v1533 = vld [vmem:[#allocation2 + $0xf0] sm:$0xff]
  %v1534 = vld [vmem:[#allocation2 + $0xf8] sm:$0xff]
  %v1535 = vld [vmem:[#allocation2 + $0x108] sm:$0xff]
  %v1536 = vld [vmem:[#allocation2 + $0x110] sm:$0xff]
  %v1537 = vld [vmem:[#allocation2 + $0x120] sm:$0xff]
  %v1538 = vld [vmem:[#allocation2 + $0x128] sm:$0xff]
  %v1539 = vld [vmem:[#allocation2 + $0x138] sm:$0xff]
  %v1540 = vld [vmem:[#allocation2 + $0x140] sm:$0xff]
  %v1541 = vld [vmem:[#allocation2 + $0x150] sm:$0xff]
  %v1542 = vld [vmem:[#allocation2 + $0x158] sm:$0xff]
  %v1543 = vld [vmem:[#allocation2 + $0x168] sm:$0xff]
  %v1544 = vld [vmem:[#allocation2 + $0x170] sm:$0xff]
  %v1545 = vld [vmem:[#allocation2 + $0x1b0] sm:$0xff]
  %v1546 = vld [vmem:[#allocation2 + $0x1b8] sm:$0xff]
  %v1547 = vld [vmem:[#allocation2 + $0x1c8] sm:$0xff]
  %v1548 = vld [vmem:[#allocation2 + $0x1d0] sm:$0xff]
  %v1549 = vld [vmem:[#allocation2 + $0x1e0] sm:$0xff]
  %v1550 = vld [vmem:[#allocation2 + $0x1e8] sm:$0xff]
  %v1551 = vld [vmem:[#allocation2 + $0x1f8] sm:$0xff]
  %v1552 = vld [vmem:[#allocation2 + $0x200] sm:$0xff]
  %v1553 = vld [vmem:[#allocation2 + $0x210] sm:$0xff]
  %v1554 = vld [vmem:[#allocation2 + $0x218] sm:$0xff]
  %v1555 = vld [vmem:[#allocation2 + $0x228] sm:$0xff]
  %v1556 = vld [vmem:[#allocation2 + $0x230] sm:$0xff]
  %v1557 = vld [vmem:[#allocation2 + $0x240] sm:$0xff]
  %v1558 = vld [vmem:[#allocation2 + $0x248] sm:$0xff]
  %v1559 = vld [vmem:[#allocation2 + $0x258] sm:$0xff]
  %v1560 = vld [vmem:[#allocation2 + $0x260] sm:$0xff]
  %v1561 = vld [vmem:[#allocation2 + $0x270] sm:$0xff]
  %v1562 = vld [vmem:[#allocation2 + $0x278] sm:$0xff]
  %v1563 = vld [vmem:[#allocation2 + $0x288] sm:$0xff]
  %v1564 = vld [vmem:[#allocation2 + $0x290] sm:$0xff]
  %v1565 = vld [vmem:[#allocation2 + $0x2a0] sm:$0xff]
  %v1566 = vld [vmem:[#allocation2 + $0x2a8] sm:$0xff]
  %v1567 = vld [vmem:[#allocation2 + $0x2b8] sm:$0xff]
  %v1568 = vld [vmem:[#allocation2 + $0x2c0] sm:$0xff]
  %v1569 = vld [vmem:[#allocation2 + $0x2d0] sm:$0xff]
  %v1570 = vld [vmem:[#allocation2 + $0x2d8] sm:$0xff]
  %v1571 = vld [vmem:[#allocation2 + $0x2e8] sm:$0xff]
  %v1572 = vld [vmem:[#allocation2 + $0x2f0] sm:$0xff]
  %v1573 = vld [vmem:[#allocation2 + $0x300] sm:$0xff]
  %v1574 = vld [vmem:[#allocation2 + $0x308] sm:$0xff]
  %v1575 = vld [vmem:[#allocation2 + $0x318] sm:$0xff]
  %v1576 = vld [vmem:[#allocation2 + $0x320] sm:$0xff]
  %v1577 = vpack.c.bf16 %v1514, %v1513
  %v1578 = vpack.c.bf16 %v1516, %v1515
  %v1579 = vpack.c.bf16 %v1518, %v1517
  %v1580 = vpack.c.bf16 %v1520, %v1519
  %v1581 = vpack.c.bf16 %v1522, %v1521
  %v1582 = vpack.c.bf16 %v1524, %v1523
  %v1583 = vpack.c.bf16 %v1526, %v1525
  %v1584 = vpack.c.bf16 %v1528, %v1527
  %v1585 = vpack.c.bf16 %v1530, %v1529
  %v1586 = vpack.c.bf16 %v1532, %v1531
  %v1587 = vpack.c.bf16 %v1534, %v1533
  %v1588 = vpack.c.bf16 %v1536, %v1535
  %v1589 = vpack.c.bf16 %v1538, %v1537
  %v1590 = vpack.c.bf16 %v1540, %v1539
  %v1591 = vpack.c.bf16 %v1542, %v1541
  %v1592 = vpack.c.bf16 %v1544, %v1543
  %v1593 = vpack.c.bf16 %v1546, %v1545
  %v1594 = vpack.c.bf16 %v1548, %v1547
  %v1595 = vpack.c.bf16 %v1550, %v1549
  %v1596 = vpack.c.bf16 %v1552, %v1551
  %v1597 = vpack.c.bf16 %v1554, %v1553
  %v1598 = vpack.c.bf16 %v1556, %v1555
  %v1599 = vpack.c.bf16 %v1558, %v1557
  %v1600 = vpack.c.bf16 %v1560, %v1559
  %v1601 = vpack.c.bf16 %v1562, %v1561
  %v1602 = vpack.c.bf16 %v1564, %v1563
  %v1603 = vpack.c.bf16 %v1566, %v1565
  %v1604 = vpack.c.bf16 %v1568, %v1567
  %v1605 = vpack.c.bf16 %v1570, %v1569
  %v1606 = vpack.c.bf16 %v1572, %v1571
  %v1607 = vpack.c.bf16 %v1574, %v1573
  %v1608 = vpack.c.bf16 %v1576, %v1575
  %v1609 = vld [vmem:[#allocation2 + $0x1] sm:$0xff]
  %v1610 = vld [vmem:[#allocation2 + $0x9] sm:$0xff]
  %v1611 = vld [vmem:[#allocation2 + $0x19] sm:$0xff]
  %v1612 = vld [vmem:[#allocation2 + $0x21] sm:$0xff]
  %v1613 = vld [vmem:[#allocation2 + $0x31] sm:$0xff]
  %v1614 = vld [vmem:[#allocation2 + $0x39] sm:$0xff]
  %v1615 = vld [vmem:[#allocation2 + $0x49] sm:$0xff]
  %v1616 = vld [vmem:[#allocation2 + $0x51] sm:$0xff]
  %v1617 = vld [vmem:[#allocation2 + $0x61] sm:$0xff]
  %v1618 = vld [vmem:[#allocation2 + $0x69] sm:$0xff]
  %v1619 = vld [vmem:[#allocation2 + $0x79] sm:$0xff]
  %v1620 = vld [vmem:[#allocation2 + $0x81] sm:$0xff]
  %v1621 = vld [vmem:[#allocation2 + $0x91] sm:$0xff]
  %v1622 = vld [vmem:[#allocation2 + $0x99] sm:$0xff]
  %v1623 = vld [vmem:[#allocation2 + $0xa9] sm:$0xff]
  %v1624 = vld [vmem:[#allocation2 + $0xb1] sm:$0xff]
  %v1625 = vld [vmem:[#allocation2 + $0xc1] sm:$0xff]
  %v1626 = vld [vmem:[#allocation2 + $0xc9] sm:$0xff]
  %v1627 = vld [vmem:[#allocation2 + $0xd9] sm:$0xff]
  %v1628 = vld [vmem:[#allocation2 + $0xe1] sm:$0xff]
  %v1629 = vld [vmem:[#allocation2 + $0xf1] sm:$0xff]
  %v1630 = vld [vmem:[#allocation2 + $0xf9] sm:$0xff]
  %v1631 = vld [vmem:[#allocation2 + $0x109] sm:$0xff]
  %v1632 = vld [vmem:[#allocation2 + $0x111] sm:$0xff]
  %v1633 = vld [vmem:[#allocation2 + $0x121] sm:$0xff]
  %v1634 = vld [vmem:[#allocation2 + $0x129] sm:$0xff]
  %v1635 = vld [vmem:[#allocation2 + $0x139] sm:$0xff]
  %v1636 = vld [vmem:[#allocation2 + $0x141] sm:$0xff]
  %v1637 = vld [vmem:[#allocation2 + $0x151] sm:$0xff]
  %v1638 = vld [vmem:[#allocation2 + $0x159] sm:$0xff]
  %v1639 = vld [vmem:[#allocation2 + $0x169] sm:$0xff]
  %v1640 = vld [vmem:[#allocation2 + $0x171] sm:$0xff]
  %v1641 = vld [vmem:[#allocation2 + $0x1b1] sm:$0xff]
  %v1642 = vld [vmem:[#allocation2 + $0x1b9] sm:$0xff]
  %v1643 = vld [vmem:[#allocation2 + $0x1c9] sm:$0xff]
  %v1644 = vld [vmem:[#allocation2 + $0x1d1] sm:$0xff]
  %v1645 = vld [vmem:[#allocation2 + $0x1e1] sm:$0xff]
  %v1646 = vld [vmem:[#allocation2 + $0x1e9] sm:$0xff]
  %v1647 = vld [vmem:[#allocation2 + $0x1f9] sm:$0xff]
  %v1648 = vld [vmem:[#allocation2 + $0x201] sm:$0xff]
  %v1649 = vld [vmem:[#allocation2 + $0x211] sm:$0xff]
  %v1650 = vld [vmem:[#allocation2 + $0x219] sm:$0xff]
  %v1651 = vld [vmem:[#allocation2 + $0x229] sm:$0xff]
  %v1652 = vld [vmem:[#allocation2 + $0x231] sm:$0xff]
  %v1653 = vld [vmem:[#allocation2 + $0x241] sm:$0xff]
  %v1654 = vld [vmem:[#allocation2 + $0x249] sm:$0xff]
  %v1655 = vld [vmem:[#allocation2 + $0x259] sm:$0xff]
  %v1656 = vld [vmem:[#allocation2 + $0x261] sm:$0xff]
  %v1657 = vld [vmem:[#allocation2 + $0x271] sm:$0xff]
  %v1658 = vld [vmem:[#allocation2 + $0x279] sm:$0xff]
  %v1659 = vld [vmem:[#allocation2 + $0x289] sm:$0xff]
  %v1660 = vld [vmem:[#allocation2 + $0x291] sm:$0xff]
  %v1661 = vld [vmem:[#allocation2 + $0x2a1] sm:$0xff]
  %v1662 = vld [vmem:[#allocation2 + $0x2a9] sm:$0xff]
  %v1663 = vld [vmem:[#allocation2 + $0x2b9] sm:$0xff]
  %v1664 = vld [vmem:[#allocation2 + $0x2c1] sm:$0xff]
  %v1665 = vld [vmem:[#allocation2 + $0x2d1] sm:$0xff]
  %v1666 = vld [vmem:[#allocation2 + $0x2d9] sm:$0xff]
  %v1667 = vld [vmem:[#allocation2 + $0x2e9] sm:$0xff]
  %v1668 = vld [vmem:[#allocation2 + $0x2f1] sm:$0xff]
  %v1669 = vld [vmem:[#allocation2 + $0x301] sm:$0xff]
  %v1670 = vld [vmem:[#allocation2 + $0x309] sm:$0xff]
  %v1671 = vld [vmem:[#allocation2 + $0x319] sm:$0xff]
  %v1672 = vld [vmem:[#allocation2 + $0x321] sm:$0xff]
  %v1673 = vpack.c.bf16 %v1610, %v1609
  %v1674 = vpack.c.bf16 %v1612, %v1611
  %v1675 = vpack.c.bf16 %v1614, %v1613
  %v1676 = vpack.c.bf16 %v1616, %v1615
  %v1677 = vpack.c.bf16 %v1618, %v1617
  %v1678 = vpack.c.bf16 %v1620, %v1619
  %v1679 = vpack.c.bf16 %v1622, %v1621
  %v1680 = vpack.c.bf16 %v1624, %v1623
  %v1681 = vpack.c.bf16 %v1626, %v1625
  %v1682 = vpack.c.bf16 %v1628, %v1627
  %v1683 = vpack.c.bf16 %v1630, %v1629
  %v1684 = vpack.c.bf16 %v1632, %v1631
  %v1685 = vpack.c.bf16 %v1634, %v1633
  %v1686 = vpack.c.bf16 %v1636, %v1635
  %v1687 = vpack.c.bf16 %v1638, %v1637
  %v1688 = vpack.c.bf16 %v1640, %v1639
  %v1689 = vpack.c.bf16 %v1642, %v1641
  %v1690 = vpack.c.bf16 %v1644, %v1643
  %v1691 = vpack.c.bf16 %v1646, %v1645
  %v1692 = vpack.c.bf16 %v1648, %v1647
  %v1693 = vpack.c.bf16 %v1650, %v1649
  %v1694 = vpack.c.bf16 %v1652, %v1651
  %v1695 = vpack.c.bf16 %v1654, %v1653
  %v1696 = vpack.c.bf16 %v1656, %v1655
  %v1697 = vpack.c.bf16 %v1658, %v1657
  %v1698 = vpack.c.bf16 %v1660, %v1659
  %v1699 = vpack.c.bf16 %v1662, %v1661
  %v1700 = vpack.c.bf16 %v1664, %v1663
  %v1701 = vpack.c.bf16 %v1666, %v1665
  %v1702 = vpack.c.bf16 %v1668, %v1667
  %v1703 = vpack.c.bf16 %v1670, %v1669
  %v1704 = vpack.c.bf16 %v1672, %v1671
  %v1705 = vld [vmem:[#allocation2 + $0x2] sm:$0xff]
  %v1706 = vld [vmem:[#allocation2 + $0xa] sm:$0xff]
  %v1707 = vld [vmem:[#allocation2 + $0x1a] sm:$0xff]
  %v1708 = vld [vmem:[#allocation2 + $0x22] sm:$0xff]
  %v1709 = vld [vmem:[#allocation2 + $0x32] sm:$0xff]
  %v1710 = vld [vmem:[#allocation2 + $0x3a] sm:$0xff]
  %v1711 = vld [vmem:[#allocation2 + $0x4a] sm:$0xff]
  %v1712 = vld [vmem:[#allocation2 + $0x52] sm:$0xff]
  %v1713 = vld [vmem:[#allocation2 + $0x62] sm:$0xff]
  %v1714 = vld [vmem:[#allocation2 + $0x6a] sm:$0xff]
  %v1715 = vld [vmem:[#allocation2 + $0x7a] sm:$0xff]
  %v1716 = vld [vmem:[#allocation2 + $0x82] sm:$0xff]
  %v1717 = vld [vmem:[#allocation2 + $0x92] sm:$0xff]
  %v1718 = vld [vmem:[#allocation2 + $0x9a] sm:$0xff]
  %v1719 = vld [vmem:[#allocation2 + $0xaa] sm:$0xff]
  %v1720 = vld [vmem:[#allocation2 + $0xb2] sm:$0xff]
  %v1721 = vld [vmem:[#allocation2 + $0xc2] sm:$0xff]
  %v1722 = vld [vmem:[#allocation2 + $0xca] sm:$0xff]
  %v1723 = vld [vmem:[#allocation2 + $0xda] sm:$0xff]
  %v1724 = vld [vmem:[#allocation2 + $0xe2] sm:$0xff]
  %v1725 = vld [vmem:[#allocation2 + $0xf2] sm:$0xff]
  %v1726 = vld [vmem:[#allocation2 + $0xfa] sm:$0xff]
  %v1727 = vld [vmem:[#allocation2 + $0x10a] sm:$0xff]
  %v1728 = vld [vmem:[#allocation2 + $0x112] sm:$0xff]
  %v1729 = vld [vmem:[#allocation2 + $0x122] sm:$0xff]
  %v1730 = vld [vmem:[#allocation2 + $0x12a] sm:$0xff]
  %v1731 = vld [vmem:[#allocation2 + $0x13a] sm:$0xff]
  %v1732 = vld [vmem:[#allocation2 + $0x142] sm:$0xff]
  %v1733 = vld [vmem:[#allocation2 + $0x152] sm:$0xff]
  %v1734 = vld [vmem:[#allocation2 + $0x15a] sm:$0xff]
  %v1735 = vld [vmem:[#allocation2 + $0x16a] sm:$0xff]
  %v1736 = vld [vmem:[#allocation2 + $0x172] sm:$0xff]
  %v1737 = vld [vmem:[#allocation2 + $0x1b2] sm:$0xff]
  %v1738 = vld [vmem:[#allocation2 + $0x1ba] sm:$0xff]
  %v1739 = vld [vmem:[#allocation2 + $0x1ca] sm:$0xff]
  %v1740 = vld [vmem:[#allocation2 + $0x1d2] sm:$0xff]
  %v1741 = vld [vmem:[#allocation2 + $0x1e2] sm:$0xff]
  %v1742 = vld [vmem:[#allocation2 + $0x1ea] sm:$0xff]
  %v1743 = vld [vmem:[#allocation2 + $0x1fa] sm:$0xff]
  %v1744 = vld [vmem:[#allocation2 + $0x202] sm:$0xff]
  %v1745 = vld [vmem:[#allocation2 + $0x212] sm:$0xff]
  %v1746 = vld [vmem:[#allocation2 + $0x21a] sm:$0xff]
  %v1747 = vld [vmem:[#allocation2 + $0x22a] sm:$0xff]
  %v1748 = vld [vmem:[#allocation2 + $0x232] sm:$0xff]
  %v1749 = vld [vmem:[#allocation2 + $0x242] sm:$0xff]
  %v1750 = vld [vmem:[#allocation2 + $0x24a] sm:$0xff]
  %v1751 = vld [vmem:[#allocation2 + $0x25a] sm:$0xff]
  %v1752 = vld [vmem:[#allocation2 + $0x262] sm:$0xff]
  %v1753 = vld [vmem:[#allocation2 + $0x272] sm:$0xff]
  %v1754 = vld [vmem:[#allocation2 + $0x27a] sm:$0xff]
  %v1755 = vld [vmem:[#allocation2 + $0x28a] sm:$0xff]
  %v1756 = vld [vmem:[#allocation2 + $0x292] sm:$0xff]
  %v1757 = vld [vmem:[#allocation2 + $0x2a2] sm:$0xff]
  %v1758 = vld [vmem:[#allocation2 + $0x2aa] sm:$0xff]
  %v1759 = vld [vmem:[#allocation2 + $0x2ba] sm:$0xff]
  %v1760 = vld [vmem:[#allocation2 + $0x2c2] sm:$0xff]
  %v1761 = vld [vmem:[#allocation2 + $0x2d2] sm:$0xff]
  %v1762 = vld [vmem:[#allocation2 + $0x2da] sm:$0xff]
  %v1763 = vld [vmem:[#allocation2 + $0x2ea] sm:$0xff]
  %v1764 = vld [vmem:[#allocation2 + $0x2f2] sm:$0xff]
  %v1765 = vld [vmem:[#allocation2 + $0x302] sm:$0xff]
  %v1766 = vld [vmem:[#allocation2 + $0x30a] sm:$0xff]
  %v1767 = vld [vmem:[#allocation2 + $0x31a] sm:$0xff]
  %v1768 = vld [vmem:[#allocation2 + $0x322] sm:$0xff]
  %v1769 = vpack.c.bf16 %v1706, %v1705
  %v1770 = vpack.c.bf16 %v1708, %v1707
  %v1771 = vpack.c.bf16 %v1710, %v1709
  %v1772 = vpack.c.bf16 %v1712, %v1711
  %v1773 = vpack.c.bf16 %v1714, %v1713
  %v1774 = vpack.c.bf16 %v1716, %v1715
  %v1775 = vpack.c.bf16 %v1718, %v1717
  %v1776 = vpack.c.bf16 %v1720, %v1719
  %v1777 = vpack.c.bf16 %v1722, %v1721
  %v1778 = vpack.c.bf16 %v1724, %v1723
  %v1779 = vpack.c.bf16 %v1726, %v1725
  %v1780 = vpack.c.bf16 %v1728, %v1727
  %v1781 = vpack.c.bf16 %v1730, %v1729
  %v1782 = vpack.c.bf16 %v1732, %v1731
  %v1783 = vpack.c.bf16 %v1734, %v1733
  %v1784 = vpack.c.bf16 %v1736, %v1735
  %v1785 = vpack.c.bf16 %v1738, %v1737
  %v1786 = vpack.c.bf16 %v1740, %v1739
  %v1787 = vpack.c.bf16 %v1742, %v1741
  %v1788 = vpack.c.bf16 %v1744, %v1743
  %v1789 = vpack.c.bf16 %v1746, %v1745
  %v1790 = vpack.c.bf16 %v1748, %v1747
  %v1791 = vpack.c.bf16 %v1750, %v1749
  %v1792 = vpack.c.bf16 %v1752, %v1751
  %v1793 = vpack.c.bf16 %v1754, %v1753
  %v1794 = vpack.c.bf16 %v1756, %v1755
  %v1795 = vpack.c.bf16 %v1758, %v1757
  %v1796 = vpack.c.bf16 %v1760, %v1759
  %v1797 = vpack.c.bf16 %v1762, %v1761
  %v1798 = vpack.c.bf16 %v1764, %v1763
  %v1799 = vpack.c.bf16 %v1766, %v1765
  %v1800 = vpack.c.bf16 %v1768, %v1767
  %v1801 = vld [vmem:[%s1384] sm:$0xff]
  %v1802 = vld [vmem:[%s1384 + $0x8] sm:$0xff]
  %v1803 = vld [vmem:[%s1384 + $0x18] sm:$0xff]
  %v1804 = vld [vmem:[%s1384 + $0x20] sm:$0xff]
  %v1805 = vld [vmem:[%s1384 + $0x30] sm:$0xff]
  %v1806 = vld [vmem:[%s1384 + $0x38] sm:$0xff]
  %v1807 = vld [vmem:[%s1384 + $0x48] sm:$0xff]
  %v1808 = vld [vmem:[%s1384 + $0x50] sm:$0xff]
  %v1809 = vld [vmem:[%s1384 + $0x60] sm:$0xff]
  %v1810 = vld [vmem:[%s1384 + $0x68] sm:$0xff]
  %v1811 = vld [vmem:[%s1384 + $0x78] sm:$0xff]
  %v1812 = vld [vmem:[%s1384 + $0x80] sm:$0xff]
  %v1813 = vld [vmem:[%s1384 + $0x90] sm:$0xff]
  %v1814 = vld [vmem:[%s1384 + $0x98] sm:$0xff]
  %v1815 = vld [vmem:[%s1384 + $0xa8] sm:$0xff]
  %v1816 = vld [vmem:[%s1384 + $0xb0] sm:$0xff]
  %v1817 = vld [vmem:[%s1384 + $0xc0] sm:$0xff]
  %v1818 = vld [vmem:[%s1384 + $0xc8] sm:$0xff]
  %v1819 = vld [vmem:[%s1384 + $0xd8] sm:$0xff]
  %v1820 = vld [vmem:[%s1384 + $0xe0] sm:$0xff]
  %v1821 = vld [vmem:[%s1384 + $0xf0] sm:$0xff]
  %v1822 = vld [vmem:[%s1384 + $0xf8] sm:$0xff]
  %v1823 = vld [vmem:[%s1384 + $0x108] sm:$0xff]
  %v1824 = vld [vmem:[%s1384 + $0x110] sm:$0xff]
  %v1825 = vld [vmem:[%s1384 + $0x120] sm:$0xff]
  %v1826 = vld [vmem:[%s1384 + $0x128] sm:$0xff]
  %v1827 = vld [vmem:[%s1384 + $0x138] sm:$0xff]
  %v1828 = vld [vmem:[%s1384 + $0x140] sm:$0xff]
  %v1829 = vld [vmem:[%s1384 + $0x150] sm:$0xff]
  %v1830 = vld [vmem:[%s1384 + $0x158] sm:$0xff]
  %v1831 = vld [vmem:[%s1384 + $0x168] sm:$0xff]
  %v1832 = vld [vmem:[%s1384 + $0x170] sm:$0xff]
  %v1833 = vld [vmem:[%s1384 + $0x1b0] sm:$0xff]
  %v1834 = vld [vmem:[%s1384 + $0x1b8] sm:$0xff]
  %v1835 = vld [vmem:[%s1384 + $0x1c8] sm:$0xff]
  %v1836 = vld [vmem:[%s1384 + $0x1d0] sm:$0xff]
  %v1837 = vld [vmem:[%s1384 + $0x1e0] sm:$0xff]
  %v1838 = vld [vmem:[%s1384 + $0x1e8] sm:$0xff]
  %v1839 = vld [vmem:[%s1384 + $0x1f8] sm:$0xff]
  %v1840 = vld [vmem:[%s1384 + $0x200] sm:$0xff]
  %v1841 = vld [vmem:[%s1384 + $0x210] sm:$0xff]
  %v1842 = vld [vmem:[%s1384 + $0x218] sm:$0xff]
  %v1843 = vld [vmem:[%s1384 + $0x228] sm:$0xff]
  %v1844 = vld [vmem:[%s1384 + $0x230] sm:$0xff]
  %v1845 = vld [vmem:[%s1384 + $0x240] sm:$0xff]
  %v1846 = vld [vmem:[%s1384 + $0x248] sm:$0xff]
  %v1847 = vld [vmem:[%s1384 + $0x258] sm:$0xff]
  %v1848 = vld [vmem:[%s1384 + $0x260] sm:$0xff]
  %v1849 = vld [vmem:[%s1384 + $0x270] sm:$0xff]
  %v1850 = vld [vmem:[%s1384 + $0x278] sm:$0xff]
  %v1851 = vld [vmem:[%s1384 + $0x288] sm:$0xff]
  %v1852 = vld [vmem:[%s1384 + $0x290] sm:$0xff]
  %v1853 = vld [vmem:[%s1384 + $0x2a0] sm:$0xff]
  %v1854 = vld [vmem:[%s1384 + $0x2a8] sm:$0xff]
  %v1855 = vld [vmem:[%s1384 + $0x2b8] sm:$0xff]
  %v1856 = vld [vmem:[%s1384 + $0x2c0] sm:$0xff]
  %v1857 = vld [vmem:[%s1384 + $0x2d0] sm:$0xff]
  %v1858 = vld [vmem:[%s1384 + $0x2d8] sm:$0xff]
  %v1859 = vld [vmem:[%s1384 + $0x2e8] sm:$0xff]
  %v1860 = vld [vmem:[%s1384 + $0x2f0] sm:$0xff]
  %v1861 = vld [vmem:[%s1384 + $0x300] sm:$0xff]
  %v1862 = vld [vmem:[%s1384 + $0x308] sm:$0xff]
  %v1863 = vld [vmem:[%s1384 + $0x318] sm:$0xff]
  %v1864 = vld [vmem:[%s1384 + $0x320] sm:$0xff]
  %v1865 = vpack.c.bf16 %v1802, %v1801
  %v1866 = vpack.c.bf16 %v1804, %v1803
  %v1867 = vpack.c.bf16 %v1806, %v1805
  %v1868 = vpack.c.bf16 %v1808, %v1807
  %v1869 = vpack.c.bf16 %v1810, %v1809
  %v1870 = vpack.c.bf16 %v1812, %v1811
  %v1871 = vpack.c.bf16 %v1814, %v1813
  %v1872 = vpack.c.bf16 %v1816, %v1815
  %v1873 = vpack.c.bf16 %v1818, %v1817
  %v1874 = vpack.c.bf16 %v1820, %v1819
  %v1875 = vpack.c.bf16 %v1822, %v1821
  %v1876 = vpack.c.bf16 %v1824, %v1823
  %v1877 = vpack.c.bf16 %v1826, %v1825
  %v1878 = vpack.c.bf16 %v1828, %v1827
  %v1879 = vpack.c.bf16 %v1830, %v1829
  %v1880 = vpack.c.bf16 %v1832, %v1831
  %v1881 = vpack.c.bf16 %v1834, %v1833
  %v1882 = vpack.c.bf16 %v1836, %v1835
  %v1883 = vpack.c.bf16 %v1838, %v1837
  %v1884 = vpack.c.bf16 %v1840, %v1839
  %v1885 = vpack.c.bf16 %v1842, %v1841
  %v1886 = vpack.c.bf16 %v1844, %v1843
  %v1887 = vpack.c.bf16 %v1846, %v1845
  %v1888 = vpack.c.bf16 %v1848, %v1847
  %v1889 = vpack.c.bf16 %v1850, %v1849
  %v1890 = vpack.c.bf16 %v1852, %v1851
  %v1891 = vpack.c.bf16 %v1854, %v1853
  %v1892 = vpack.c.bf16 %v1856, %v1855
  %v1893 = vpack.c.bf16 %v1858, %v1857
  %v1894 = vpack.c.bf16 %v1860, %v1859
  %v1895 = vpack.c.bf16 %v1862, %v1861
  %v1896 = vpack.c.bf16 %v1864, %v1863
  %v1897 = vld [vmem:[%s1384 + $0x1] sm:$0xff]
  %v1898 = vld [vmem:[%s1384 + $0x9] sm:$0xff]
  %v1899 = vld [vmem:[%s1384 + $0x19] sm:$0xff]
  %v1900 = vld [vmem:[%s1384 + $0x21] sm:$0xff]
  %v1901 = vld [vmem:[%s1384 + $0x31] sm:$0xff]
  %v1902 = vld [vmem:[%s1384 + $0x39] sm:$0xff]
  %v1903 = vld [vmem:[%s1384 + $0x49] sm:$0xff]
  %v1904 = vld [vmem:[%s1384 + $0x51] sm:$0xff]
  %v1905 = vld [vmem:[%s1384 + $0x61] sm:$0xff]
  %v1906 = vld [vmem:[%s1384 + $0x69] sm:$0xff]
  %v1907 = vld [vmem:[%s1384 + $0x79] sm:$0xff]
  %v1908 = vld [vmem:[%s1384 + $0x81] sm:$0xff]
  %v1909 = vld [vmem:[%s1384 + $0x91] sm:$0xff]
  %v1910 = vld [vmem:[%s1384 + $0x99] sm:$0xff]
  %v1911 = vld [vmem:[%s1384 + $0xa9] sm:$0xff]
  %v1912 = vld [vmem:[%s1384 + $0xb1] sm:$0xff]
  %v1913 = vld [vmem:[%s1384 + $0xc1] sm:$0xff]
  %v1914 = vld [vmem:[%s1384 + $0xc9] sm:$0xff]
  %v1915 = vld [vmem:[%s1384 + $0xd9] sm:$0xff]
  %v1916 = vld [vmem:[%s1384 + $0xe1] sm:$0xff]
  %v1917 = vld [vmem:[%s1384 + $0xf1] sm:$0xff]
  %v1918 = vld [vmem:[%s1384 + $0xf9] sm:$0xff]
  %v1919 = vld [vmem:[%s1384 + $0x109] sm:$0xff]
  %v1920 = vld [vmem:[%s1384 + $0x111] sm:$0xff]
  %v1921 = vld [vmem:[%s1384 + $0x121] sm:$0xff]
  %v1922 = vld [vmem:[%s1384 + $0x129] sm:$0xff]
  %v1923 = vld [vmem:[%s1384 + $0x139] sm:$0xff]
  %v1924 = vld [vmem:[%s1384 + $0x141] sm:$0xff]
  %v1925 = vld [vmem:[%s1384 + $0x151] sm:$0xff]
  %v1926 = vld [vmem:[%s1384 + $0x159] sm:$0xff]
  %v1927 = vld [vmem:[%s1384 + $0x169] sm:$0xff]
  %v1928 = vld [vmem:[%s1384 + $0x171] sm:$0xff]
  %v1929 = vld [vmem:[%s1384 + $0x1b1] sm:$0xff]
  %v1930 = vld [vmem:[%s1384 + $0x1b9] sm:$0xff]
  %v1931 = vld [vmem:[%s1384 + $0x1c9] sm:$0xff]
  %v1932 = vld [vmem:[%s1384 + $0x1d1] sm:$0xff]
  %v1933 = vld [vmem:[%s1384 + $0x1e1] sm:$0xff]
  %v1934 = vld [vmem:[%s1384 + $0x1e9] sm:$0xff]
  %v1935 = vld [vmem:[%s1384 + $0x1f9] sm:$0xff]
  %v1936 = vld [vmem:[%s1384 + $0x201] sm:$0xff]
  %v1937 = vld [vmem:[%s1384 + $0x211] sm:$0xff]
  %v1938 = vld [vmem:[%s1384 + $0x219] sm:$0xff]
  %v1939 = vld [vmem:[%s1384 + $0x229] sm:$0xff]
  %v1940 = vld [vmem:[%s1384 + $0x231] sm:$0xff]
  %v1941 = vld [vmem:[%s1384 + $0x241] sm:$0xff]
  %v1942 = vld [vmem:[%s1384 + $0x249] sm:$0xff]
  %v1943 = vld [vmem:[%s1384 + $0x259] sm:$0xff]
  %v1944 = vld [vmem:[%s1384 + $0x261] sm:$0xff]
  %v1945 = vld [vmem:[%s1384 + $0x271] sm:$0xff]
  %v1946 = vld [vmem:[%s1384 + $0x279] sm:$0xff]
  %v1947 = vld [vmem:[%s1384 + $0x289] sm:$0xff]
  %v1948 = vld [vmem:[%s1384 + $0x291] sm:$0xff]
  %v1949 = vld [vmem:[%s1384 + $0x2a1] sm:$0xff]
  %v1950 = vld [vmem:[%s1384 + $0x2a9] sm:$0xff]
  %v1951 = vld [vmem:[%s1384 + $0x2b9] sm:$0xff]
  %v1952 = vld [vmem:[%s1384 + $0x2c1] sm:$0xff]
  %v1953 = vld [vmem:[%s1384 + $0x2d1] sm:$0xff]
  %v1954 = vld [vmem:[%s1384 + $0x2d9] sm:$0xff]
  %v1955 = vld [vmem:[%s1384 + $0x2e9] sm:$0xff]
  %v1956 = vld [vmem:[%s1384 + $0x2f1] sm:$0xff]
  %v1957 = vld [vmem:[%s1384 + $0x301] sm:$0xff]
  %v1958 = vld [vmem:[%s1384 + $0x309] sm:$0xff]
  %v1959 = vld [vmem:[%s1384 + $0x319] sm:$0xff]
  %v1960 = vld [vmem:[%s1384 + $0x321] sm:$0xff]
  %v1961 = vpack.c.bf16 %v1898, %v1897
  %v1962 = vpack.c.bf16 %v1900, %v1899
  %v1963 = vpack.c.bf16 %v1902, %v1901
  %v1964 = vpack.c.bf16 %v1904, %v1903
  %v1965 = vpack.c.bf16 %v1906, %v1905
  %v1966 = vpack.c.bf16 %v1908, %v1907
  %v1967 = vpack.c.bf16 %v1910, %v1909
  %v1968 = vpack.c.bf16 %v1912, %v1911
  %v1969 = vpack.c.bf16 %v1914, %v1913
  %v1970 = vpack.c.bf16 %v1916, %v1915
  %v1971 = vpack.c.bf16 %v1918, %v1917
  %v1972 = vpack.c.bf16 %v1920, %v1919
  %v1973 = vpack.c.bf16 %v1922, %v1921
  %v1974 = vpack.c.bf16 %v1924, %v1923
  %v1975 = vpack.c.bf16 %v1926, %v1925
  %v1976 = vpack.c.bf16 %v1928, %v1927
  %v1977 = vpack.c.bf16 %v1930, %v1929
  %v1978 = vpack.c.bf16 %v1932, %v1931
  %v1979 = vpack.c.bf16 %v1934, %v1933
  %v1980 = vpack.c.bf16 %v1936, %v1935
  %v1981 = vpack.c.bf16 %v1938, %v1937
  %v1982 = vpack.c.bf16 %v1940, %v1939
  %v1983 = vpack.c.bf16 %v1942, %v1941
  %v1984 = vpack.c.bf16 %v1944, %v1943
  %v1985 = vpack.c.bf16 %v1946, %v1945
  %v1986 = vpack.c.bf16 %v1948, %v1947
  %v1987 = vpack.c.bf16 %v1950, %v1949
  %v1988 = vpack.c.bf16 %v1952, %v1951
  %v1989 = vpack.c.bf16 %v1954, %v1953
  %v1990 = vpack.c.bf16 %v1956, %v1955
  %v1991 = vpack.c.bf16 %v1958, %v1957
  %v1992 = vpack.c.bf16 %v1960, %v1959
  %v1993 = vld [vmem:[%s1384 + $0x2] sm:$0xff]
  %v1994 = vld [vmem:[%s1384 + $0xa] sm:$0xff]
  %v1995 = vld [vmem:[%s1384 + $0x1a] sm:$0xff]
  %v1996 = vld [vmem:[%s1384 + $0x22] sm:$0xff]
  %v1997 = vld [vmem:[%s1384 + $0x32] sm:$0xff]
  %v1998 = vld [vmem:[%s1384 + $0x3a] sm:$0xff]
  %v1999 = vld [vmem:[%s1384 + $0x4a] sm:$0xff]
  %v2000 = vld [vmem:[%s1384 + $0x52] sm:$0xff]
  %v2001 = vld [vmem:[%s1384 + $0x62] sm:$0xff]
  %v2002 = vld [vmem:[%s1384 + $0x6a] sm:$0xff]
  %v2003 = vld [vmem:[%s1384 + $0x7a] sm:$0xff]
  %v2004 = vld [vmem:[%s1384 + $0x82] sm:$0xff]
  %v2005 = vld [vmem:[%s1384 + $0x92] sm:$0xff]
  %v2006 = vld [vmem:[%s1384 + $0x9a] sm:$0xff]
  %v2007 = vld [vmem:[%s1384 + $0xaa] sm:$0xff]
  %v2008 = vld [vmem:[%s1384 + $0xb2] sm:$0xff]
  %v2009 = vld [vmem:[%s1384 + $0xc2] sm:$0xff]
  %v2010 = vld [vmem:[%s1384 + $0xca] sm:$0xff]
  %v2011 = vld [vmem:[%s1384 + $0xda] sm:$0xff]
  %v2012 = vld [vmem:[%s1384 + $0xe2] sm:$0xff]
  %v2013 = vld [vmem:[%s1384 + $0xf2] sm:$0xff]
  %v2014 = vld [vmem:[%s1384 + $0xfa] sm:$0xff]
  %v2015 = vld [vmem:[%s1384 + $0x10a] sm:$0xff]
  %v2016 = vld [vmem:[%s1384 + $0x112] sm:$0xff]
  %v2017 = vld [vmem:[%s1384 + $0x122] sm:$0xff]
  %v2018 = vld [vmem:[%s1384 + $0x12a] sm:$0xff]
  %v2019 = vld [vmem:[%s1384 + $0x13a] sm:$0xff]
  %v2020 = vld [vmem:[%s1384 + $0x142] sm:$0xff]
  %v2021 = vld [vmem:[%s1384 + $0x152] sm:$0xff]
  %v2022 = vld [vmem:[%s1384 + $0x15a] sm:$0xff]
  %v2023 = vld [vmem:[%s1384 + $0x16a] sm:$0xff]
  %v2024 = vld [vmem:[%s1384 + $0x172] sm:$0xff]
  %v2025 = vld [vmem:[%s1384 + $0x1b2] sm:$0xff]
  %v2026 = vld [vmem:[%s1384 + $0x1ba] sm:$0xff]
  %v2027 = vld [vmem:[%s1384 + $0x1ca] sm:$0xff]
  %v2028 = vld [vmem:[%s1384 + $0x1d2] sm:$0xff]
  %v2029 = vld [vmem:[%s1384 + $0x1e2] sm:$0xff]
  %v2030 = vld [vmem:[%s1384 + $0x1ea] sm:$0xff]
  %v2031 = vld [vmem:[%s1384 + $0x1fa] sm:$0xff]
  %v2032 = vld [vmem:[%s1384 + $0x202] sm:$0xff]
  %v2033 = vld [vmem:[%s1384 + $0x212] sm:$0xff]
  %v2034 = vld [vmem:[%s1384 + $0x21a] sm:$0xff]
  %v2035 = vld [vmem:[%s1384 + $0x22a] sm:$0xff]
  %v2036 = vld [vmem:[%s1384 + $0x232] sm:$0xff]
  %v2037 = vld [vmem:[%s1384 + $0x242] sm:$0xff]
  %v2038 = vld [vmem:[%s1384 + $0x24a] sm:$0xff]
  %v2039 = vld [vmem:[%s1384 + $0x25a] sm:$0xff]
  %v2040 = vld [vmem:[%s1384 + $0x262] sm:$0xff]
  %v2041 = vld [vmem:[%s1384 + $0x272] sm:$0xff]
  %v2042 = vld [vmem:[%s1384 + $0x27a] sm:$0xff]
  %v2043 = vld [vmem:[%s1384 + $0x28a] sm:$0xff]
  %v2044 = vld [vmem:[%s1384 + $0x292] sm:$0xff]
  %v2045 = vld [vmem:[%s1384 + $0x2a2] sm:$0xff]
  %v2046 = vld [vmem:[%s1384 + $0x2aa] sm:$0xff]
  %v2047 = vld [vmem:[%s1384 + $0x2ba] sm:$0xff]
  %v2048 = vld [vmem:[%s1384 + $0x2c2] sm:$0xff]
  %v2049 = vld [vmem:[%s1384 + $0x2d2] sm:$0xff]
  %v2050 = vld [vmem:[%s1384 + $0x2da] sm:$0xff]
  %v2051 = vld [vmem:[%s1384 + $0x2ea] sm:$0xff]
  %v2052 = vld [vmem:[%s1384 + $0x2f2] sm:$0xff]
  %v2053 = vld [vmem:[%s1384 + $0x302] sm:$0xff]
  %v2054 = vld [vmem:[%s1384 + $0x30a] sm:$0xff]
  %v2055 = vld [vmem:[%s1384 + $0x31a] sm:$0xff]
  %v2056 = vld [vmem:[%s1384 + $0x322] sm:$0xff]
  %v2057 = vpack.c.bf16 %v1994, %v1993
  %v2058 = vpack.c.bf16 %v1996, %v1995
  %v2059 = vpack.c.bf16 %v1998, %v1997
  %v2060 = vpack.c.bf16 %v2000, %v1999
  %v2061 = vpack.c.bf16 %v2002, %v2001
  %v2062 = vpack.c.bf16 %v2004, %v2003
  %v2063 = vpack.c.bf16 %v2006, %v2005
  %v2064 = vpack.c.bf16 %v2008, %v2007
  %v2065 = vpack.c.bf16 %v2010, %v2009
  %v2066 = vpack.c.bf16 %v2012, %v2011
  %v2067 = vpack.c.bf16 %v2014, %v2013
  %v2068 = vpack.c.bf16 %v2016, %v2015
  %v2069 = vpack.c.bf16 %v2018, %v2017
  %v2070 = vpack.c.bf16 %v2020, %v2019
  %v2071 = vpack.c.bf16 %v2022, %v2021
  %v2072 = vpack.c.bf16 %v2024, %v2023
  %v2073 = vpack.c.bf16 %v2026, %v2025
  %v2074 = vpack.c.bf16 %v2028, %v2027
  %v2075 = vpack.c.bf16 %v2030, %v2029
  %v2076 = vpack.c.bf16 %v2032, %v2031
  %v2077 = vpack.c.bf16 %v2034, %v2033
  %v2078 = vpack.c.bf16 %v2036, %v2035
  %v2079 = vpack.c.bf16 %v2038, %v2037
  %v2080 = vpack.c.bf16 %v2040, %v2039
  %v2081 = vpack.c.bf16 %v2042, %v2041
  %v2082 = vpack.c.bf16 %v2044, %v2043
  %v2083 = vpack.c.bf16 %v2046, %v2045
  %v2084 = vpack.c.bf16 %v2048, %v2047
  %v2085 = vpack.c.bf16 %v2050, %v2049
  %v2086 = vpack.c.bf16 %v2052, %v2051
  %v2087 = vpack.c.bf16 %v2054, %v2053
  %v2088 = vpack.c.bf16 %v2056, %v2055
  %s2089 = scalar_lea.vmem [#allocation2], 48
  %v2090 = vld [vmem:[%s2089] sm:$0xff]
  %v2091 = vld [vmem:[%s2089 + $0x8] sm:$0xff]
  %v2092 = vld [vmem:[%s2089 + $0x18] sm:$0xff]
  %v2093 = vld [vmem:[%s2089 + $0x20] sm:$0xff]
  %v2094 = vld [vmem:[%s2089 + $0x30] sm:$0xff]
  %v2095 = vld [vmem:[%s2089 + $0x38] sm:$0xff]
  %v2096 = vld [vmem:[%s2089 + $0x48] sm:$0xff]
  %v2097 = vld [vmem:[%s2089 + $0x50] sm:$0xff]
  %v2098 = vld [vmem:[%s2089 + $0x60] sm:$0xff]
  %v2099 = vld [vmem:[%s2089 + $0x68] sm:$0xff]
  %v2100 = vld [vmem:[%s2089 + $0x78] sm:$0xff]
  %v2101 = vld [vmem:[%s2089 + $0x80] sm:$0xff]
  %v2102 = vld [vmem:[%s2089 + $0x90] sm:$0xff]
  %v2103 = vld [vmem:[%s2089 + $0x98] sm:$0xff]
  %v2104 = vld [vmem:[%s2089 + $0xa8] sm:$0xff]
  %v2105 = vld [vmem:[%s2089 + $0xb0] sm:$0xff]
  %v2106 = vld [vmem:[%s2089 + $0xc0] sm:$0xff]
  %v2107 = vld [vmem:[%s2089 + $0xc8] sm:$0xff]
  %v2108 = vld [vmem:[%s2089 + $0xd8] sm:$0xff]
  %v2109 = vld [vmem:[%s2089 + $0xe0] sm:$0xff]
  %v2110 = vld [vmem:[%s2089 + $0xf0] sm:$0xff]
  %v2111 = vld [vmem:[%s2089 + $0xf8] sm:$0xff]
  %v2112 = vld [vmem:[%s2089 + $0x108] sm:$0xff]
  %v2113 = vld [vmem:[%s2089 + $0x110] sm:$0xff]
  %v2114 = vld [vmem:[%s2089 + $0x120] sm:$0xff]
  %v2115 = vld [vmem:[%s2089 + $0x128] sm:$0xff]
  %v2116 = vld [vmem:[%s2089 + $0x138] sm:$0xff]
  %v2117 = vld [vmem:[%s2089 + $0x140] sm:$0xff]
  %v2118 = vld [vmem:[%s2089 + $0x150] sm:$0xff]
  %v2119 = vld [vmem:[%s2089 + $0x158] sm:$0xff]
  %v2120 = vld [vmem:[%s2089 + $0x168] sm:$0xff]
  %v2121 = vld [vmem:[%s2089 + $0x170] sm:$0xff]
  %v2122 = vld [vmem:[%s2089 + $0x1b0] sm:$0xff]
  %v2123 = vld [vmem:[%s2089 + $0x1b8] sm:$0xff]
  %v2124 = vld [vmem:[%s2089 + $0x1c8] sm:$0xff]
  %v2125 = vld [vmem:[%s2089 + $0x1d0] sm:$0xff]
  %v2126 = vld [vmem:[%s2089 + $0x1e0] sm:$0xff]
  %v2127 = vld [vmem:[%s2089 + $0x1e8] sm:$0xff]
  %v2128 = vld [vmem:[%s2089 + $0x1f8] sm:$0xff]
  %v2129 = vld [vmem:[%s2089 + $0x200] sm:$0xff]
  %v2130 = vld [vmem:[%s2089 + $0x210] sm:$0xff]
  %v2131 = vld [vmem:[%s2089 + $0x218] sm:$0xff]
  %v2132 = vld [vmem:[%s2089 + $0x228] sm:$0xff]
  %v2133 = vld [vmem:[%s2089 + $0x230] sm:$0xff]
  %v2134 = vld [vmem:[%s2089 + $0x240] sm:$0xff]
  %v2135 = vld [vmem:[%s2089 + $0x248] sm:$0xff]
  %v2136 = vld [vmem:[%s2089 + $0x258] sm:$0xff]
  %v2137 = vld [vmem:[%s2089 + $0x260] sm:$0xff]
  %v2138 = vld [vmem:[%s2089 + $0x270] sm:$0xff]
  %v2139 = vld [vmem:[%s2089 + $0x278] sm:$0xff]
  %v2140 = vld [vmem:[%s2089 + $0x288] sm:$0xff]
  %v2141 = vld [vmem:[%s2089 + $0x290] sm:$0xff]
  %v2142 = vld [vmem:[%s2089 + $0x2a0] sm:$0xff]
  %v2143 = vld [vmem:[%s2089 + $0x2a8] sm:$0xff]
  %v2144 = vld [vmem:[%s2089 + $0x2b8] sm:$0xff]
  %v2145 = vld [vmem:[%s2089 + $0x2c0] sm:$0xff]
  %v2146 = vld [vmem:[%s2089 + $0x2d0] sm:$0xff]
  %v2147 = vld [vmem:[%s2089 + $0x2d8] sm:$0xff]
  %v2148 = vld [vmem:[%s2089 + $0x2e8] sm:$0xff]
  %v2149 = vld [vmem:[%s2089 + $0x2f0] sm:$0xff]
  %v2150 = vld [vmem:[%s2089 + $0x300] sm:$0xff]
  %v2151 = vld [vmem:[%s2089 + $0x308] sm:$0xff]
  %v2152 = vld [vmem:[%s2089 + $0x318] sm:$0xff]
  %v2153 = vld [vmem:[%s2089 + $0x320] sm:$0xff]
  %v2154 = vpack.c.bf16 %v2091, %v2090
  %v2155 = vpack.c.bf16 %v2093, %v2092
  %v2156 = vpack.c.bf16 %v2095, %v2094
  %v2157 = vpack.c.bf16 %v2097, %v2096
  %v2158 = vpack.c.bf16 %v2099, %v2098
  %v2159 = vpack.c.bf16 %v2101, %v2100
  %v2160 = vpack.c.bf16 %v2103, %v2102
  %v2161 = vpack.c.bf16 %v2105, %v2104
  %v2162 = vpack.c.bf16 %v2107, %v2106
  %v2163 = vpack.c.bf16 %v2109, %v2108
  %v2164 = vpack.c.bf16 %v2111, %v2110
  %v2165 = vpack.c.bf16 %v2113, %v2112
  %v2166 = vpack.c.bf16 %v2115, %v2114
  %v2167 = vpack.c.bf16 %v2117, %v2116
  %v2168 = vpack.c.bf16 %v2119, %v2118
  %v2169 = vpack.c.bf16 %v2121, %v2120
  %v2170 = vpack.c.bf16 %v2123, %v2122
  %v2171 = vpack.c.bf16 %v2125, %v2124
  %v2172 = vpack.c.bf16 %v2127, %v2126
  %v2173 = vpack.c.bf16 %v2129, %v2128
  %v2174 = vpack.c.bf16 %v2131, %v2130
  %v2175 = vpack.c.bf16 %v2133, %v2132
  %v2176 = vpack.c.bf16 %v2135, %v2134
  %v2177 = vpack.c.bf16 %v2137, %v2136
  %v2178 = vpack.c.bf16 %v2139, %v2138
  %v2179 = vpack.c.bf16 %v2141, %v2140
  %v2180 = vpack.c.bf16 %v2143, %v2142
  %v2181 = vpack.c.bf16 %v2145, %v2144
  %v2182 = vpack.c.bf16 %v2147, %v2146
  %v2183 = vpack.c.bf16 %v2149, %v2148
  %v2184 = vpack.c.bf16 %v2151, %v2150
  %v2185 = vpack.c.bf16 %v2153, %v2152
  %v2186 = vld [vmem:[%s2089 + $0x1] sm:$0xff]
  %v2187 = vld [vmem:[%s2089 + $0x9] sm:$0xff]
  %v2188 = vld [vmem:[%s2089 + $0x19] sm:$0xff]
  %v2189 = vld [vmem:[%s2089 + $0x21] sm:$0xff]
  %v2190 = vld [vmem:[%s2089 + $0x31] sm:$0xff]
  %v2191 = vld [vmem:[%s2089 + $0x39] sm:$0xff]
  %v2192 = vld [vmem:[%s2089 + $0x49] sm:$0xff]
  %v2193 = vld [vmem:[%s2089 + $0x51] sm:$0xff]
  %v2194 = vld [vmem:[%s2089 + $0x61] sm:$0xff]
  %v2195 = vld [vmem:[%s2089 + $0x69] sm:$0xff]
  %v2196 = vld [vmem:[%s2089 + $0x79] sm:$0xff]
  %v2197 = vld [vmem:[%s2089 + $0x81] sm:$0xff]
  %v2198 = vld [vmem:[%s2089 + $0x91] sm:$0xff]
  %v2199 = vld [vmem:[%s2089 + $0x99] sm:$0xff]
  %v2200 = vld [vmem:[%s2089 + $0xa9] sm:$0xff]
  %v2201 = vld [vmem:[%s2089 + $0xb1] sm:$0xff]
  %v2202 = vld [vmem:[%s2089 + $0xc1] sm:$0xff]
  %v2203 = vld [vmem:[%s2089 + $0xc9] sm:$0xff]
  %v2204 = vld [vmem:[%s2089 + $0xd9] sm:$0xff]
  %v2205 = vld [vmem:[%s2089 + $0xe1] sm:$0xff]
  %v2206 = vld [vmem:[%s2089 + $0xf1] sm:$0xff]
  %v2207 = vld [vmem:[%s2089 + $0xf9] sm:$0xff]
  %v2208 = vld [vmem:[%s2089 + $0x109] sm:$0xff]
  %v2209 = vld [vmem:[%s2089 + $0x111] sm:$0xff]
  %v2210 = vld [vmem:[%s2089 + $0x121] sm:$0xff]
  %v2211 = vld [vmem:[%s2089 + $0x129] sm:$0xff]
  %v2212 = vld [vmem:[%s2089 + $0x139] sm:$0xff]
  %v2213 = vld [vmem:[%s2089 + $0x141] sm:$0xff]
  %v2214 = vld [vmem:[%s2089 + $0x151] sm:$0xff]
  %v2215 = vld [vmem:[%s2089 + $0x159] sm:$0xff]
  %v2216 = vld [vmem:[%s2089 + $0x169] sm:$0xff]
  %v2217 = vld [vmem:[%s2089 + $0x171] sm:$0xff]
  %v2218 = vld [vmem:[%s2089 + $0x1b1] sm:$0xff]
  %v2219 = vld [vmem:[%s2089 + $0x1b9] sm:$0xff]
  %v2220 = vld [vmem:[%s2089 + $0x1c9] sm:$0xff]
  %v2221 = vld [vmem:[%s2089 + $0x1d1] sm:$0xff]
  %v2222 = vld [vmem:[%s2089 + $0x1e1] sm:$0xff]
  %v2223 = vld [vmem:[%s2089 + $0x1e9] sm:$0xff]
  %v2224 = vld [vmem:[%s2089 + $0x1f9] sm:$0xff]
  %v2225 = vld [vmem:[%s2089 + $0x201] sm:$0xff]
  %v2226 = vld [vmem:[%s2089 + $0x211] sm:$0xff]
  %v2227 = vld [vmem:[%s2089 + $0x219] sm:$0xff]
  %v2228 = vld [vmem:[%s2089 + $0x229] sm:$0xff]
  %v2229 = vld [vmem:[%s2089 + $0x231] sm:$0xff]
  %v2230 = vld [vmem:[%s2089 + $0x241] sm:$0xff]
  %v2231 = vld [vmem:[%s2089 + $0x249] sm:$0xff]
  %v2232 = vld [vmem:[%s2089 + $0x259] sm:$0xff]
  %v2233 = vld [vmem:[%s2089 + $0x261] sm:$0xff]
  %v2234 = vld [vmem:[%s2089 + $0x271] sm:$0xff]
  %v2235 = vld [vmem:[%s2089 + $0x279] sm:$0xff]
  %v2236 = vld [vmem:[%s2089 + $0x289] sm:$0xff]
  %v2237 = vld [vmem:[%s2089 + $0x291] sm:$0xff]
  %v2238 = vld [vmem:[%s2089 + $0x2a1] sm:$0xff]
  %v2239 = vld [vmem:[%s2089 + $0x2a9] sm:$0xff]
  %v2240 = vld [vmem:[%s2089 + $0x2b9] sm:$0xff]
  %v2241 = vld [vmem:[%s2089 + $0x2c1] sm:$0xff]
  %v2242 = vld [vmem:[%s2089 + $0x2d1] sm:$0xff]
  %v2243 = vld [vmem:[%s2089 + $0x2d9] sm:$0xff]
  %v2244 = vld [vmem:[%s2089 + $0x2e9] sm:$0xff]
  %v2245 = vld [vmem:[%s2089 + $0x2f1] sm:$0xff]
  %v2246 = vld [vmem:[%s2089 + $0x301] sm:$0xff]
  %v2247 = vld [vmem:[%s2089 + $0x309] sm:$0xff]
  %v2248 = vld [vmem:[%s2089 + $0x319] sm:$0xff]
  %v2249 = vld [vmem:[%s2089 + $0x321] sm:$0xff]
  %v2250 = vpack.c.bf16 %v2187, %v2186
  %v2251 = vpack.c.bf16 %v2189, %v2188
  %v2252 = vpack.c.bf16 %v2191, %v2190
  %v2253 = vpack.c.bf16 %v2193, %v2192
  %v2254 = vpack.c.bf16 %v2195, %v2194
  %v2255 = vpack.c.bf16 %v2197, %v2196
  %v2256 = vpack.c.bf16 %v2199, %v2198
  %v2257 = vpack.c.bf16 %v2201, %v2200
  %v2258 = vpack.c.bf16 %v2203, %v2202
  %v2259 = vpack.c.bf16 %v2205, %v2204
  %v2260 = vpack.c.bf16 %v2207, %v2206
  %v2261 = vpack.c.bf16 %v2209, %v2208
  %v2262 = vpack.c.bf16 %v2211, %v2210
  %v2263 = vpack.c.bf16 %v2213, %v2212
  %v2264 = vpack.c.bf16 %v2215, %v2214
  %v2265 = vpack.c.bf16 %v2217, %v2216
  %v2266 = vpack.c.bf16 %v2219, %v2218
  %v2267 = vpack.c.bf16 %v2221, %v2220
  %v2268 = vpack.c.bf16 %v2223, %v2222
  %v2269 = vpack.c.bf16 %v2225, %v2224
  %v2270 = vpack.c.bf16 %v2227, %v2226
  %v2271 = vpack.c.bf16 %v2229, %v2228
  %v2272 = vpack.c.bf16 %v2231, %v2230
  %v2273 = vpack.c.bf16 %v2233, %v2232
  %v2274 = vpack.c.bf16 %v2235, %v2234
  %v2275 = vpack.c.bf16 %v2237, %v2236
  %v2276 = vpack.c.bf16 %v2239, %v2238
  %v2277 = vpack.c.bf16 %v2241, %v2240
  %v2278 = vpack.c.bf16 %v2243, %v2242
  %v2279 = vpack.c.bf16 %v2245, %v2244
  %v2280 = vpack.c.bf16 %v2247, %v2246
  %v2281 = vpack.c.bf16 %v2249, %v2248
  %v2282 = vld [vmem:[%s2089 + $0x2] sm:$0xff]
  %v2283 = vld [vmem:[%s2089 + $0xa] sm:$0xff]
  %v2284 = vld [vmem:[%s2089 + $0x1a] sm:$0xff]
  %v2285 = vld [vmem:[%s2089 + $0x22] sm:$0xff]
  %v2286 = vld [vmem:[%s2089 + $0x32] sm:$0xff]
  %v2287 = vld [vmem:[%s2089 + $0x3a] sm:$0xff]
  %v2288 = vld [vmem:[%s2089 + $0x4a] sm:$0xff]
  %v2289 = vld [vmem:[%s2089 + $0x52] sm:$0xff]
  %v2290 = vld [vmem:[%s2089 + $0x62] sm:$0xff]
  %v2291 = vld [vmem:[%s2089 + $0x6a] sm:$0xff]
  %v2292 = vld [vmem:[%s2089 + $0x7a] sm:$0xff]
  %v2293 = vld [vmem:[%s2089 + $0x82] sm:$0xff]
  %v2294 = vld [vmem:[%s2089 + $0x92] sm:$0xff]
  %v2295 = vld [vmem:[%s2089 + $0x9a] sm:$0xff]
  %v2296 = vld [vmem:[%s2089 + $0xaa] sm:$0xff]
  %v2297 = vld [vmem:[%s2089 + $0xb2] sm:$0xff]
  %v2298 = vld [vmem:[%s2089 + $0xc2] sm:$0xff]
  %v2299 = vld [vmem:[%s2089 + $0xca] sm:$0xff]
  %v2300 = vld [vmem:[%s2089 + $0xda] sm:$0xff]
  %v2301 = vld [vmem:[%s2089 + $0xe2] sm:$0xff]
  %v2302 = vld [vmem:[%s2089 + $0xf2] sm:$0xff]
  %v2303 = vld [vmem:[%s2089 + $0xfa] sm:$0xff]
  %v2304 = vld [vmem:[%s2089 + $0x10a] sm:$0xff]
  %v2305 = vld [vmem:[%s2089 + $0x112] sm:$0xff]
  %v2306 = vld [vmem:[%s2089 + $0x122] sm:$0xff]
  %v2307 = vld [vmem:[%s2089 + $0x12a] sm:$0xff]
  %v2308 = vld [vmem:[%s2089 + $0x13a] sm:$0xff]
  %v2309 = vld [vmem:[%s2089 + $0x142] sm:$0xff]
  %v2310 = vld [vmem:[%s2089 + $0x152] sm:$0xff]
  %v2311 = vld [vmem:[%s2089 + $0x15a] sm:$0xff]
  %v2312 = vld [vmem:[%s2089 + $0x16a] sm:$0xff]
  %v2313 = vld [vmem:[%s2089 + $0x172] sm:$0xff]
  %v2314 = vld [vmem:[%s2089 + $0x1b2] sm:$0xff]
  %v2315 = vld [vmem:[%s2089 + $0x1ba] sm:$0xff]
  %v2316 = vld [vmem:[%s2089 + $0x1ca] sm:$0xff]
  %v2317 = vld [vmem:[%s2089 + $0x1d2] sm:$0xff]
  %v2318 = vld [vmem:[%s2089 + $0x1e2] sm:$0xff]
  %v2319 = vld [vmem:[%s2089 + $0x1ea] sm:$0xff]
  %v2320 = vld [vmem:[%s2089 + $0x1fa] sm:$0xff]
  %v2321 = vld [vmem:[%s2089 + $0x202] sm:$0xff]
  %v2322 = vld [vmem:[%s2089 + $0x212] sm:$0xff]
  %v2323 = vld [vmem:[%s2089 + $0x21a] sm:$0xff]
  %v2324 = vld [vmem:[%s2089 + $0x22a] sm:$0xff]
  %v2325 = vld [vmem:[%s2089 + $0x232] sm:$0xff]
  %v2326 = vld [vmem:[%s2089 + $0x242] sm:$0xff]
  %v2327 = vld [vmem:[%s2089 + $0x24a] sm:$0xff]
  %v2328 = vld [vmem:[%s2089 + $0x25a] sm:$0xff]
  %v2329 = vld [vmem:[%s2089 + $0x262] sm:$0xff]
  %v2330 = vld [vmem:[%s2089 + $0x272] sm:$0xff]
  %v2331 = vld [vmem:[%s2089 + $0x27a] sm:$0xff]
  %v2332 = vld [vmem:[%s2089 + $0x28a] sm:$0xff]
  %v2333 = vld [vmem:[%s2089 + $0x292] sm:$0xff]
  %v2334 = vld [vmem:[%s2089 + $0x2a2] sm:$0xff]
  %v2335 = vld [vmem:[%s2089 + $0x2aa] sm:$0xff]
  %v2336 = vld [vmem:[%s2089 + $0x2ba] sm:$0xff]
  %v2337 = vld [vmem:[%s2089 + $0x2c2] sm:$0xff]
  %v2338 = vld [vmem:[%s2089 + $0x2d2] sm:$0xff]
  %v2339 = vld [vmem:[%s2089 + $0x2da] sm:$0xff]
  %v2340 = vld [vmem:[%s2089 + $0x2ea] sm:$0xff]
  %v2341 = vld [vmem:[%s2089 + $0x2f2] sm:$0xff]
  %v2342 = vld [vmem:[%s2089 + $0x302] sm:$0xff]
  %v2343 = vld [vmem:[%s2089 + $0x30a] sm:$0xff]
  %v2344 = vld [vmem:[%s2089 + $0x31a] sm:$0xff]
  %v2345 = vld [vmem:[%s2089 + $0x322] sm:$0xff]
  %v2346 = vpack.c.bf16 %v2283, %v2282
  %v2347 = vpack.c.bf16 %v2285, %v2284
  %v2348 = vpack.c.bf16 %v2287, %v2286
  %v2349 = vpack.c.bf16 %v2289, %v2288
  %v2350 = vpack.c.bf16 %v2291, %v2290
  %v2351 = vpack.c.bf16 %v2293, %v2292
  %v2352 = vpack.c.bf16 %v2295, %v2294
  %v2353 = vpack.c.bf16 %v2297, %v2296
  %v2354 = vpack.c.bf16 %v2299, %v2298
  %v2355 = vpack.c.bf16 %v2301, %v2300
  %v2356 = vpack.c.bf16 %v2303, %v2302
  %v2357 = vpack.c.bf16 %v2305, %v2304
  %v2358 = vpack.c.bf16 %v2307, %v2306
  %v2359 = vpack.c.bf16 %v2309, %v2308
  %v2360 = vpack.c.bf16 %v2311, %v2310
  %v2361 = vpack.c.bf16 %v2313, %v2312
  %v2362 = vpack.c.bf16 %v2315, %v2314
  %v2363 = vpack.c.bf16 %v2317, %v2316
  %v2364 = vpack.c.bf16 %v2319, %v2318
  %v2365 = vpack.c.bf16 %v2321, %v2320
  %v2366 = vpack.c.bf16 %v2323, %v2322
  %v2367 = vpack.c.bf16 %v2325, %v2324
  %v2368 = vpack.c.bf16 %v2327, %v2326
  %v2369 = vpack.c.bf16 %v2329, %v2328
  %v2370 = vpack.c.bf16 %v2331, %v2330
  %v2371 = vpack.c.bf16 %v2333, %v2332
  %v2372 = vpack.c.bf16 %v2335, %v2334
  %v2373 = vpack.c.bf16 %v2337, %v2336
  %v2374 = vpack.c.bf16 %v2339, %v2338
  %v2375 = vpack.c.bf16 %v2341, %v2340
  %v2376 = vpack.c.bf16 %v2343, %v2342
  %v2377 = vpack.c.bf16 %v2345, %v2344
  %v2378 = vld [vmem:[%s4] sm:$0xf]
  %v2379 = vld [vmem:[%s4 + $0x4] sm:$0xf]
  %v2380 = vld [vmem:[%s4 + $0x8] sm:$0xf]
  %v2381 = vld [vmem:[%s4 + $0xc] sm:$0xf]
  %v2382 = vld [vmem:[%s4 + $0x10] sm:$0xf]
  %v2383 = vld [vmem:[%s4 + $0x14] sm:$0xf]
  %v2384 = vld [vmem:[%s4 + $0x18] sm:$0xf]
  %v2385 = vld [vmem:[%s4 + $0x1c] sm:$0xf]
  %v2386 = vld [vmem:[%s4 + $0x20] sm:$0xf]
  %v2387 = vld [vmem:[%s4 + $0x24] sm:$0xf]
  %v2388 = vld [vmem:[%s4 + $0x28] sm:$0xf]
  %v2389 = vld [vmem:[%s4 + $0x2c] sm:$0xf]
  %v2390 = vld [vmem:[%s4 + $0x30] sm:$0xf]
  %v2391 = vld [vmem:[%s4 + $0x34] sm:$0xf]
  %v2392 = vld [vmem:[%s4 + $0x38] sm:$0xf]
  %v2393 = vld [vmem:[%s4 + $0x3c] sm:$0xf]
  %v2394 = vld [vmem:[%s4 + $0x40] sm:$0xf]
  %v2395 = vld [vmem:[%s4 + $0x44] sm:$0xf]
  %v2396 = vld [vmem:[%s4 + $0x48] sm:$0xf]
  %v2397 = vld [vmem:[%s4 + $0x4c] sm:$0xf]
  %v2398 = vld [vmem:[%s4 + $0x50] sm:$0xf]
  %v2399 = vld [vmem:[%s4 + $0x54] sm:$0xf]
  %v2400 = vld [vmem:[%s4 + $0x58] sm:$0xf]
  %v2401 = vld [vmem:[%s4 + $0x5c] sm:$0xf]
  %v2402 = vld [vmem:[%s4 + $0x60] sm:$0xf]
  %v2403 = vld [vmem:[%s4 + $0x64] sm:$0xf]
  %v2404 = vld [vmem:[%s4 + $0x68] sm:$0xf]
  %v2405 = vld [vmem:[%s4 + $0x6c] sm:$0xf]
  %v2406 = vld [vmem:[%s4 + $0x70] sm:$0xf]
  %v2407 = vld [vmem:[%s4 + $0x74] sm:$0xf]
  %v2408 = vld [vmem:[%s4 + $0x78] sm:$0xf]
  %v2409 = vld [vmem:[%s4 + $0x7c] sm:$0xf]
  %v2410 = vld [vmem:[%s4 + $0x80] sm:$0xf]
  %v2411 = vld [vmem:[%s4 + $0x84] sm:$0xf]
  %v2412 = vld [vmem:[%s4 + $0x88] sm:$0xf]
  %v2413 = vld [vmem:[%s4 + $0x8c] sm:$0xf]
  %v2414 = vld [vmem:[%s4 + $0x90] sm:$0xf]
  %v2415 = vld [vmem:[%s4 + $0x94] sm:$0xf]
  %v2416 = vld [vmem:[%s4 + $0x98] sm:$0xf]
  %v2417 = vld [vmem:[%s4 + $0x9c] sm:$0xf]
  %v2418 = vld [vmem:[%s4 + $0xa0] sm:$0xf]
  %v2419 = vld [vmem:[%s4 + $0xa4] sm:$0xf]
  %v2420 = vld [vmem:[%s4 + $0xa8] sm:$0xf]
  %v2421 = vld [vmem:[%s4 + $0xac] sm:$0xf]
  %v2422 = vld [vmem:[%s4 + $0xb0] sm:$0xf]
  %v2423 = vld [vmem:[%s4 + $0xb4] sm:$0xf]
  %v2424 = vld [vmem:[%s4 + $0xb8] sm:$0xf]
  %v2425 = vld [vmem:[%s4 + $0xbc] sm:$0xf]
  %v2426 = vld [vmem:[%s4 + $0xc0] sm:$0xf]
  %v2427 = vld [vmem:[%s4 + $0xc4] sm:$0xf]
  %v2428 = vld [vmem:[%s4 + $0xc8] sm:$0xf]
  %v2429 = vld [vmem:[%s4 + $0xcc] sm:$0xf]
  %v2430 = vld [vmem:[%s4 + $0xd0] sm:$0xf]
  %v2431 = vld [vmem:[%s4 + $0xd4] sm:$0xf]
  %v2432 = vld [vmem:[%s4 + $0xd8] sm:$0xf]
  %v2433 = vld [vmem:[%s4 + $0xdc] sm:$0xf]
  %v2434 = vld [vmem:[%s4 + $0xe0] sm:$0xf]
  %v2435 = vld [vmem:[%s4 + $0xe4] sm:$0xf]
  %v2436 = vld [vmem:[%s4 + $0xe8] sm:$0xf]
  %v2437 = vld [vmem:[%s4 + $0xec] sm:$0xf]
  %v2438 = vld [vmem:[%s4 + $0xf0] sm:$0xf]
  %v2439 = vld [vmem:[%s4 + $0xf4] sm:$0xf]
  %v2440 = vld [vmem:[%s4 + $0xf8] sm:$0xf]
  %v2441 = vld [vmem:[%s4 + $0xfc] sm:$0xf]
  %v2442 = vld [vmem:[%s4 + $0x100] sm:$0xf]
  %v2443 = vld [vmem:[%s4 + $0x104] sm:$0xf]
  %v2444 = vld [vmem:[%s4 + $0x108] sm:$0xf]
  %v2445 = vld [vmem:[%s4 + $0x10c] sm:$0xf]
  %v2446 = vld [vmem:[%s4 + $0x110] sm:$0xf]
  %v2447 = vld [vmem:[%s4 + $0x114] sm:$0xf]
  %v2448 = vld [vmem:[%s4 + $0x118] sm:$0xf]
  %v2449 = vld [vmem:[%s4 + $0x11c] sm:$0xf]
  %v2450 = vld [vmem:[%s4 + $0x120] sm:$0xf]
  %v2451 = vld [vmem:[%s4 + $0x124] sm:$0xf]
  %v2452 = vld [vmem:[%s4 + $0x128] sm:$0xf]
  %v2453 = vld [vmem:[%s4 + $0x12c] sm:$0xf]
  %v2454 = vld [vmem:[%s4 + $0x130] sm:$0xf]
  %v2455 = vld [vmem:[%s4 + $0x134] sm:$0xf]
  %v2456 = vld [vmem:[%s4 + $0x138] sm:$0xf]
  %v2457 = vld [vmem:[%s4 + $0x13c] sm:$0xf]
  %v2458 = vld [vmem:[%s4 + $0x140] sm:$0xf]
  %v2459 = vld [vmem:[%s4 + $0x144] sm:$0xf]
  %v2460 = vld [vmem:[%s4 + $0x148] sm:$0xf]
  %v2461 = vld [vmem:[%s4 + $0x14c] sm:$0xf]
  %v2462 = vld [vmem:[%s4 + $0x150] sm:$0xf]
  %v2463 = vld [vmem:[%s4 + $0x154] sm:$0xf]
  %v2464 = vld [vmem:[%s4 + $0x158] sm:$0xf]
  %v2465 = vld [vmem:[%s4 + $0x15c] sm:$0xf]
  %v2466 = vld [vmem:[%s4 + $0x160] sm:$0xf]
  %v2467 = vld [vmem:[%s4 + $0x164] sm:$0xf]
  %v2468 = vld [vmem:[%s4 + $0x168] sm:$0xf]
  %v2469 = vld [vmem:[%s4 + $0x16c] sm:$0xf]
  %v2470 = vld [vmem:[%s4 + $0x170] sm:$0xf]
  %v2471 = vld [vmem:[%s4 + $0x174] sm:$0xf]
  %v2472 = vld [vmem:[%s4 + $0x178] sm:$0xf]
  %v2473 = vld [vmem:[%s4 + $0x17c] sm:$0xf]
  %v2474 = vld [vmem:[%s4 + $0x180] sm:$0xf]
  %v2475 = vld [vmem:[%s4 + $0x184] sm:$0xf]
  %v2476 = vld [vmem:[%s4 + $0x188] sm:$0xf]
  %v2477 = vld [vmem:[%s4 + $0x18c] sm:$0xf]
  %v2478 = vld [vmem:[%s4 + $0x190] sm:$0xf]
  %v2479 = vld [vmem:[%s4 + $0x194] sm:$0xf]
  %v2480 = vld [vmem:[%s4 + $0x198] sm:$0xf]
  %v2481 = vld [vmem:[%s4 + $0x19c] sm:$0xf]
  %v2482 = vld [vmem:[%s4 + $0x1a0] sm:$0xf]
  %v2483 = vld [vmem:[%s4 + $0x1a4] sm:$0xf]
  %v2484 = vld [vmem:[%s4 + $0x1a8] sm:$0xf]
  %v2485 = vld [vmem:[%s4 + $0x1ac] sm:$0xf]
  %v2486 = vld [vmem:[%s4 + $0x1b0] sm:$0xf]
  %v2487 = vld [vmem:[%s4 + $0x1b4] sm:$0xf]
  %v2488 = vld [vmem:[%s4 + $0x1b8] sm:$0xf]
  %v2489 = vld [vmem:[%s4 + $0x1bc] sm:$0xf]
  %v2490 = vld [vmem:[%s4 + $0x1c0] sm:$0xf]
  %v2491 = vld [vmem:[%s4 + $0x1c4] sm:$0xf]
  %v2492 = vld [vmem:[%s4 + $0x1c8] sm:$0xf]
  %v2493 = vld [vmem:[%s4 + $0x1cc] sm:$0xf]
  %v2494 = vld [vmem:[%s4 + $0x1d0] sm:$0xf]
  %v2495 = vld [vmem:[%s4 + $0x1d4] sm:$0xf]
  %v2496 = vld [vmem:[%s4 + $0x1d8] sm:$0xf]
  %v2497 = vld [vmem:[%s4 + $0x1dc] sm:$0xf]
  %v2498 = vld [vmem:[%s4 + $0x1e0] sm:$0xf]
  %v2499 = vld [vmem:[%s4 + $0x1e4] sm:$0xf]
  %v2500 = vld [vmem:[%s4 + $0x1e8] sm:$0xf]
  %v2501 = vld [vmem:[%s4 + $0x1ec] sm:$0xf]
  %v2502 = vld [vmem:[%s4 + $0x1f0] sm:$0xf]
  %v2503 = vld [vmem:[%s4 + $0x1f4] sm:$0xf]
  %v2504 = vld [vmem:[%s4 + $0x1f8] sm:$0xf]
  %v2505 = vld [vmem:[%s4 + $0x1fc] sm:$0xf]
  %v2506 = vld [vmem:[%s4 + $0x200] sm:$0xf]
  %v2507 = vld [vmem:[%s4 + $0x204] sm:$0xf]
  %v2508 = vld [vmem:[%s4 + $0x208] sm:$0xf]
  %v2509 = vld [vmem:[%s4 + $0x20c] sm:$0xf]
  %v2510 = vld [vmem:[%s4 + $0x210] sm:$0xf]
  %v2511 = vld [vmem:[%s4 + $0x214] sm:$0xf]
  %v2512 = vld [vmem:[%s4 + $0x218] sm:$0xf]
  %v2513 = vld [vmem:[%s4 + $0x21c] sm:$0xf]
  %v2514 = vld [vmem:[%s4 + $0x220] sm:$0xf]
  %v2515 = vld [vmem:[%s4 + $0x224] sm:$0xf]
  %v2516 = vld [vmem:[%s4 + $0x228] sm:$0xf]
  %v2517 = vld [vmem:[%s4 + $0x22c] sm:$0xf]
  %v2518 = vld [vmem:[%s4 + $0x230] sm:$0xf]
  %v2519 = vld [vmem:[%s4 + $0x234] sm:$0xf]
  %v2520 = vld [vmem:[%s4 + $0x238] sm:$0xf]
  %v2521 = vld [vmem:[%s4 + $0x23c] sm:$0xf]
  %v2666 = vunpack.c.l.b16 %v2378
  %v2667 = vunpack.c.l.b16 %v2379
  %v2668 = vunpack.c.l.b16 %v2380
  %v2669 = vunpack.c.l.b16 %v2381
  %v2670 = vunpack.c.l.b16 %v2382
  %v2671 = vunpack.c.l.b16 %v2383
  %v2672 = vunpack.c.l.b16 %v2384
  %v2673 = vunpack.c.l.b16 %v2385
  %v2674 = vunpack.c.l.b16 %v2386
  %v2675 = vunpack.c.l.b16 %v2387
  %v2676 = vunpack.c.l.b16 %v2388
  %v2677 = vunpack.c.l.b16 %v2389
  %v2678 = vunpack.c.l.b16 %v2390
  %v2679 = vunpack.c.l.b16 %v2391
  %v2680 = vunpack.c.l.b16 %v2392
  %v2681 = vunpack.c.l.b16 %v2393
  %v2682 = vunpack.c.l.b16 %v2394
  %v2683 = vunpack.c.l.b16 %v2395
  %v2684 = vunpack.c.l.b16 %v2396
  %v2685 = vunpack.c.l.b16 %v2397
  %v2686 = vunpack.c.l.b16 %v2398
  %v2687 = vunpack.c.l.b16 %v2399
  %v2688 = vunpack.c.l.b16 %v2400
  %v2689 = vunpack.c.l.b16 %v2401
  %v2690 = vunpack.c.l.b16 %v2402
  %v2691 = vunpack.c.l.b16 %v2403
  %v2692 = vunpack.c.l.b16 %v2404
  %v2693 = vunpack.c.l.b16 %v2405
  %v2694 = vunpack.c.l.b16 %v2406
  %v2695 = vunpack.c.l.b16 %v2407
  %v2696 = vunpack.c.l.b16 %v2408
  %v2697 = vunpack.c.l.b16 %v2409
  %v2698 = vunpack.c.l.b16 %v2410
  %v2699 = vunpack.c.l.b16 %v2411
  %v2700 = vunpack.c.l.b16 %v2412
  %v2701 = vunpack.c.l.b16 %v2413
  %v2702 = vunpack.c.l.b16 %v2414
  %v2703 = vunpack.c.l.b16 %v2415
  %v2704 = vunpack.c.l.b16 %v2416
  %v2705 = vunpack.c.l.b16 %v2417
  %v2706 = vunpack.c.l.b16 %v2418
  %v2707 = vunpack.c.l.b16 %v2419
  %v2708 = vunpack.c.l.b16 %v2420
  %v2709 = vunpack.c.l.b16 %v2421
  %v2710 = vunpack.c.l.b16 %v2422
  %v2711 = vunpack.c.l.b16 %v2423
  %v2712 = vunpack.c.l.b16 %v2424
  %v2713 = vunpack.c.l.b16 %v2425
  %v2714 = vunpack.c.l.b16 %v2426
  %v2715 = vunpack.c.l.b16 %v2427
  %v2716 = vunpack.c.l.b16 %v2428
  %v2717 = vunpack.c.l.b16 %v2429
  %v2718 = vunpack.c.l.b16 %v2430
  %v2719 = vunpack.c.l.b16 %v2431
  %v2720 = vunpack.c.l.b16 %v2432
  %v2721 = vunpack.c.l.b16 %v2433
  %v2722 = vunpack.c.l.b16 %v2434
  %v2723 = vunpack.c.l.b16 %v2435
  %v2724 = vunpack.c.l.b16 %v2436
  %v2725 = vunpack.c.l.b16 %v2437
  %v2726 = vunpack.c.l.b16 %v2438
  %v2727 = vunpack.c.l.b16 %v2439
  %v2728 = vunpack.c.l.b16 %v2440
  %v2729 = vunpack.c.l.b16 %v2441
  %v2730 = vunpack.c.l.b16 %v2442
  %v2731 = vunpack.c.l.b16 %v2443
  %v2732 = vunpack.c.l.b16 %v2444
  %v2733 = vunpack.c.l.b16 %v2445
  %v2734 = vunpack.c.l.b16 %v2446
  %v2735 = vunpack.c.l.b16 %v2447
  %v2736 = vunpack.c.l.b16 %v2448
  %v2737 = vunpack.c.l.b16 %v2449
  %v2738 = vunpack.c.l.b16 %v2450
  %v2739 = vunpack.c.l.b16 %v2451
  %v2740 = vunpack.c.l.b16 %v2452
  %v2741 = vunpack.c.l.b16 %v2453
  %v2742 = vunpack.c.l.b16 %v2454
  %v2743 = vunpack.c.l.b16 %v2455
  %v2744 = vunpack.c.l.b16 %v2456
  %v2745 = vunpack.c.l.b16 %v2457
  %v2746 = vunpack.c.l.b16 %v2458
  %v2747 = vunpack.c.l.b16 %v2459
  %v2748 = vunpack.c.l.b16 %v2460
  %v2749 = vunpack.c.l.b16 %v2461
  %v2750 = vunpack.c.l.b16 %v2462
  %v2751 = vunpack.c.l.b16 %v2463
  %v2752 = vunpack.c.l.b16 %v2464
  %v2753 = vunpack.c.l.b16 %v2465
  %v2754 = vunpack.c.l.b16 %v2466
  %v2755 = vunpack.c.l.b16 %v2467
  %v2756 = vunpack.c.l.b16 %v2468
  %v2757 = vunpack.c.l.b16 %v2469
  %v2758 = vunpack.c.l.b16 %v2470
  %v2759 = vunpack.c.l.b16 %v2471
  %v2760 = vunpack.c.l.b16 %v2472
  %v2761 = vunpack.c.l.b16 %v2473
  %v2762 = vunpack.c.l.b16 %v2474
  %v2763 = vunpack.c.l.b16 %v2475
  %v2764 = vunpack.c.l.b16 %v2476
  %v2765 = vunpack.c.l.b16 %v2477
  %v2766 = vunpack.c.l.b16 %v2478
  %v2767 = vunpack.c.l.b16 %v2479
  %v2768 = vunpack.c.l.b16 %v2480
  %v2769 = vunpack.c.l.b16 %v2481
  %v2770 = vunpack.c.l.b16 %v2482
  %v2771 = vunpack.c.l.b16 %v2483
  %v2772 = vunpack.c.l.b16 %v2484
  %v2773 = vunpack.c.l.b16 %v2485
  %v2774 = vunpack.c.l.b16 %v2486
  %v2775 = vunpack.c.l.b16 %v2487
  %v2776 = vunpack.c.l.b16 %v2488
  %v2777 = vunpack.c.l.b16 %v2489
  %v2778 = vunpack.c.l.b16 %v2490
  %v2779 = vunpack.c.l.b16 %v2491
  %v2780 = vunpack.c.l.b16 %v2492
  %v2781 = vunpack.c.l.b16 %v2493
  %v2782 = vunpack.c.l.b16 %v2494
  %v2783 = vunpack.c.l.b16 %v2495
  %v2784 = vunpack.c.l.b16 %v2496
  %v2785 = vunpack.c.l.b16 %v2497
  %v2786 = vunpack.c.l.b16 %v2498
  %v2787 = vunpack.c.l.b16 %v2499
  %v2788 = vunpack.c.l.b16 %v2500
  %v2789 = vunpack.c.l.b16 %v2501
  %v2790 = vunpack.c.l.b16 %v2502
  %v2791 = vunpack.c.l.b16 %v2503
  %v2792 = vunpack.c.l.b16 %v2504
  %v2793 = vunpack.c.l.b16 %v2505
  %v2794 = vunpack.c.l.b16 %v2506
  %v2795 = vunpack.c.l.b16 %v2507
  %v2796 = vunpack.c.l.b16 %v2508
  %v2797 = vunpack.c.l.b16 %v2509
  %v2798 = vunpack.c.l.b16 %v2510
  %v2799 = vunpack.c.l.b16 %v2511
  %v2800 = vunpack.c.l.b16 %v2512
  %v2801 = vunpack.c.l.b16 %v2513
  %v2802 = vunpack.c.l.b16 %v2514
  %v2803 = vunpack.c.l.b16 %v2515
  %v2804 = vunpack.c.l.b16 %v2516
  %v2805 = vunpack.c.l.b16 %v2517
  %v2806 = vunpack.c.l.b16 %v2518
  %v2807 = vunpack.c.l.b16 %v2519
  %v2808 = vunpack.c.l.b16 %v2520
  %v2809 = vunpack.c.l.b16 %v2521
  %v2810 = vpack.c.b16 %v2667, %v2666
  %v2811 = vpack.c.b16 %v2669, %v2668
  %v2812 = vpack.c.b16 %v2671, %v2670
  %v2813 = vpack.c.b16 %v2673, %v2672
  %v2814 = vpack.c.b16 %v2675, %v2674
  %v2815 = vpack.c.b16 %v2677, %v2676
  %v2816 = vpack.c.b16 %v2679, %v2678
  %v2817 = vpack.c.b16 %v2681, %v2680
  %v2818 = vpack.c.b16 %v2683, %v2682
  %v2819 = vpack.c.b16 %v2685, %v2684
  %v2820 = vpack.c.b16 %v2687, %v2686
  %v2821 = vpack.c.b16 %v2689, %v2688
  %v2822 = vpack.c.b16 %v2691, %v2690
  %v2823 = vpack.c.b16 %v2693, %v2692
  %v2824 = vpack.c.b16 %v2695, %v2694
  %v2825 = vpack.c.b16 %v2697, %v2696
  %v2826 = vpack.c.b16 %v2699, %v2698
  %v2827 = vpack.c.b16 %v2701, %v2700
  %v2828 = vpack.c.b16 %v2703, %v2702
  %v2829 = vpack.c.b16 %v2705, %v2704
  %v2830 = vpack.c.b16 %v2707, %v2706
  %v2831 = vpack.c.b16 %v2709, %v2708
  %v2832 = vpack.c.b16 %v2711, %v2710
  %v2833 = vpack.c.b16 %v2713, %v2712
  %v2834 = vpack.c.b16 %v2715, %v2714
  %v2835 = vpack.c.b16 %v2717, %v2716
  %v2836 = vpack.c.b16 %v2719, %v2718
  %v2837 = vpack.c.b16 %v2721, %v2720
  %v2838 = vpack.c.b16 %v2723, %v2722
  %v2839 = vpack.c.b16 %v2725, %v2724
  %v2840 = vpack.c.b16 %v2727, %v2726
  %v2841 = vpack.c.b16 %v2729, %v2728
  %v2842 = vpack.c.b16 %v2731, %v2730
  %v2843 = vpack.c.b16 %v2733, %v2732
  %v2844 = vpack.c.b16 %v2735, %v2734
  %v2845 = vpack.c.b16 %v2737, %v2736
  %v2846 = vpack.c.b16 %v2739, %v2738
  %v2847 = vpack.c.b16 %v2741, %v2740
  %v2848 = vpack.c.b16 %v2743, %v2742
  %v2849 = vpack.c.b16 %v2745, %v2744
  %v2850 = vpack.c.b16 %v2747, %v2746
  %v2851 = vpack.c.b16 %v2749, %v2748
  %v2852 = vpack.c.b16 %v2751, %v2750
  %v2853 = vpack.c.b16 %v2753, %v2752
  %v2854 = vpack.c.b16 %v2755, %v2754
  %v2855 = vpack.c.b16 %v2757, %v2756
  %v2856 = vpack.c.b16 %v2759, %v2758
  %v2857 = vpack.c.b16 %v2761, %v2760
  %v2858 = vpack.c.b16 %v2763, %v2762
  %v2859 = vpack.c.b16 %v2765, %v2764
  %v2860 = vpack.c.b16 %v2767, %v2766
  %v2861 = vpack.c.b16 %v2769, %v2768
  %v2862 = vpack.c.b16 %v2771, %v2770
  %v2863 = vpack.c.b16 %v2773, %v2772
  %v2864 = vpack.c.b16 %v2775, %v2774
  %v2865 = vpack.c.b16 %v2777, %v2776
  %v2866 = vpack.c.b16 %v2779, %v2778
  %v2867 = vpack.c.b16 %v2781, %v2780
  %v2868 = vpack.c.b16 %v2783, %v2782
  %v2869 = vpack.c.b16 %v2785, %v2784
  %v2870 = vpack.c.b16 %v2787, %v2786
  %v2871 = vpack.c.b16 %v2789, %v2788
  %v2872 = vpack.c.b16 %v2791, %v2790
  %v2873 = vpack.c.b16 %v2793, %v2792
  %v2874 = vpack.c.b16 %v2795, %v2794
  %v2875 = vpack.c.b16 %v2797, %v2796
  %v2876 = vpack.c.b16 %v2799, %v2798
  %v2877 = vpack.c.b16 %v2801, %v2800
  %v2878 = vpack.c.b16 %v2803, %v2802
  %v2879 = vpack.c.b16 %v2805, %v2804
  %v2880 = vpack.c.b16 %v2807, %v2806
  %v2881 = vpack.c.b16 %v2809, %v2808
  %2954 = vmatprep.subr.bf16.mxu0 0
  %2955 = vmatpush1.bf16.msra.mxu0 %v2810
  %2956 = vmatprep.subr.bf16.mxu0 0
  %2957 = vmatpush1.bf16.msra.mxu0 %v2811
  %2958 = vmatprep.subr.bf16.mxu0 0
  %2959 = vmatpush1.bf16.msra.mxu0 %v2812
  %2960 = vmatprep.subr.bf16.mxu0 0
  %2961 = vmatpush1.bf16.msra.mxu0 %v2813
  %2962 = vmatprep.subr.bf16.mxu0 0
  %2963 = vmatpush1.bf16.msra.mxu0 %v2814
  %2964 = vmatprep.subr.bf16.mxu0 0
  %2965 = vmatpush1.bf16.msra.mxu0 %v2815
  %2966 = vmatprep.subr.bf16.mxu0 0
  %2967 = vmatpush1.bf16.msra.mxu0 %v2816
  %2968 = vmatprep.subr.bf16.mxu0 0
  %2969 = vmatpush1.bf16.msra.mxu0 %v2817
  %2970 = vmatprep.subr.bf16.mxu0 0
  %2971 = vmatpush1.bf16.msra.mxu0 %v2818
  %2972 = vmatprep.subr.bf16.mxu0 0
  %2973 = vmatpush1.bf16.msra.mxu0 %v2819
  %2974 = vmatprep.subr.bf16.mxu0 0
  %2975 = vmatpush1.bf16.msra.mxu0 %v2820
  %2976 = vmatprep.subr.bf16.mxu0 0
  %2977 = vmatpush1.bf16.msra.mxu0 %v2821
  %2978 = vmatprep.subr.bf16.mxu0 0
  %2979 = vmatpush1.bf16.msra.mxu0 %v2822
  %2980 = vmatprep.subr.bf16.mxu0 0
  %2981 = vmatpush1.bf16.msra.mxu0 %v2823
  %2982 = vmatprep.subr.bf16.mxu0 0
  %2983 = vmatpush1.bf16.msra.mxu0 %v2824
  %2984 = vmatprep.subr.bf16.mxu0 0
  %2985 = vmatpush1.bf16.msra.mxu0 %v2825
  %2986 = vmatprep.mubr.bf16.mxu0 %v1673
  %2987 = vmatmul.mubr.bf16.gmra.mrb[0].mxu0 %v1577
  %v2988 = vpop.f32.mrb[0].mxu0
  %v2989 = vadd.f32 0.0, %v2988
  %v2990 = vpop.f32.mrb[0].mxu0
  %v2991 = vpop.f32.mrb[0].mxu0
  %v2992 = vadd.f32 0.0, %v2991
  %v2993 = vpop.f32.mrb[0].mxu0
  %2994 = vmatprep.mubr.bf16.mxu0 %v1674
  %2995 = vmatmul.mubr.bf16.gmra.mrb[0].mxu0 %v1578
  %v2996 = vpop.f32.mrb[0].mxu0
  %v2997 = vadd.f32 0.0, %v2996
  %v2998 = vpop.f32.mrb[0].mxu0
  %v2999 = vpop.f32.mrb[0].mxu0
  %v3000 = vadd.f32 0.0, %v2999
  %v3001 = vpop.f32.mrb[0].mxu0
  %3002 = vmatprep.mubr.bf16.mxu0 %v1675
  %3003 = vmatmul.mubr.bf16.gmra.mrb[0].mxu0 %v1579
  %v3004 = vpop.f32.mrb[0].mxu0
  %v3005 = vadd.f32 0.0, %v3004
  %v3006 = vpop.f32.mrb[0].mxu0
  %v3007 = vpop.f32.mrb[0].mxu0
  %v3008 = vadd.f32 0.0, %v3007
  %v3009 = vpop.f32.mrb[0].mxu0
  %3010 = vmatprep.mubr.bf16.mxu0 %v1676
  %3011 = vmatmul.mubr.bf16.gmra.mrb[0].mxu0 %v1580
  %v3012 = vpop.f32.mrb[0].mxu0
  %v3013 = vadd.f32 0.0, %v3012
  %v3014 = vpop.f32.mrb[0].mxu0
  %v3015 = vpop.f32.mrb[0].mxu0
  %v3016 = vadd.f32 0.0, %v3015
  %v3017 = vpop.f32.mrb[0].mxu0
  %3018 = vmatprep.mubr.bf16.mxu0 %v1677
  %3019 = vmatmul.mubr.bf16.gmra.mrb[0].mxu0 %v1581
  %v3020 = vpop.f32.mrb[0].mxu0
  %v3021 = vadd.f32 0.0, %v3020
  %v3022 = vpop.f32.mrb[0].mxu0
  %v3023 = vpop.f32.mrb[0].mxu0
  %v3024 = vadd.f32 0.0, %v3023
  %v3025 = vpop.f32.mrb[0].mxu0
  %3026 = vmatprep.mubr.bf16.mxu0 %v1678
  %3027 = vmatmul.mubr.bf16.gmra.mrb[0].mxu0 %v1582
  %v3028 = vpop.f32.mrb[0].mxu0
  %v3029 = vadd.f32 0.0, %v3028
  %v3030 = vpop.f32.mrb[0].mxu0
  %v3031 = vpop.f32.mrb[0].mxu0
  %v3032 = vadd.f32 0.0, %v3031
  %v3033 = vpop.f32.mrb[0].mxu0
  %3034 = vmatprep.mubr.bf16.mxu0 %v1679
  %3035 = vmatmul.mubr.bf16.gmra.mrb[0].mxu0 %v1583
  %v3036 = vpop.f32.mrb[0].mxu0
  %v3037 = vadd.f32 0.0, %v3036
  %v3038 = vpop.f32.mrb[0].mxu0
  %v3039 = vpop.f32.mrb[0].mxu0
  %v3040 = vadd.f32 0.0, %v3039
  %v3041 = vpop.f32.mrb[0].mxu0
  %3042 = vmatprep.mubr.bf16.mxu0 %v1680
  %3043 = vmatmul.mubr.bf16.gmra.mrb[0].mxu0 %v1584
  %v3044 = vpop.f32.mrb[0].mxu0
  %v3045 = vadd.f32 0.0, %v3044
  %v3046 = vpop.f32.mrb[0].mxu0
  %v3047 = vpop.f32.mrb[0].mxu0
  %v3048 = vadd.f32 0.0, %v3047
  %v3049 = vpop.f32.mrb[0].mxu0
  %3050 = vmatprep.mubr.bf16.mxu0 %v1681
  %3051 = vmatmul.mubr.bf16.gmra.mrb[0].mxu0 %v1585
  %v3052 = vpop.f32.mrb[0].mxu0
  %v3053 = vadd.f32 0.0, %v3052
  %v3054 = vpop.f32.mrb[0].mxu0
  %v3055 = vpop.f32.mrb[0].mxu0
  %v3056 = vadd.f32 0.0, %v3055
  %v3057 = vpop.f32.mrb[0].mxu0
  %3058 = vmatprep.mubr.bf16.mxu0 %v1682
  %3059 = vmatmul.mubr.bf16.gmra.mrb[0].mxu0 %v1586
  %v3060 = vpop.f32.mrb[0].mxu0
  %v3061 = vadd.f32 0.0, %v3060
  %v3062 = vpop.f32.mrb[0].mxu0
  %v3063 = vpop.f32.mrb[0].mxu0
  %v3064 = vadd.f32 0.0, %v3063
  %v3065 = vpop.f32.mrb[0].mxu0
  %3066 = vmatprep.mubr.bf16.mxu0 %v1683
  %3067 = vmatmul.mubr.bf16.gmra.mrb[0].mxu0 %v1587
  %v3068 = vpop.f32.mrb[0].mxu0
  %v3069 = vadd.f32 0.0, %v3068
  %v3070 = vpop.f32.mrb[0].mxu0
  %v3071 = vpop.f32.mrb[0].mxu0
  %v3072 = vadd.f32 0.0, %v3071
  %v3073 = vpop.f32.mrb[0].mxu0
  %3074 = vmatprep.mubr.bf16.mxu0 %v1684
  %3075 = vmatmul.mubr.bf16.gmra.mrb[0].mxu0 %v1588
  %v3076 = vpop.f32.mrb[0].mxu0
  %v3077 = vadd.f32 0.0, %v3076
  %v3078 = vpop.f32.mrb[0].mxu0
  %v3079 = vpop.f32.mrb[0].mxu0
  %v3080 = vadd.f32 0.0, %v3079
  %v3081 = vpop.f32.mrb[0].mxu0
  %3082 = vmatprep.mubr.bf16.mxu0 %v1685
  %3083 = vmatmul.mubr.bf16.gmra.mrb[0].mxu0 %v1589
  %v3084 = vpop.f32.mrb[0].mxu0
  %v3085 = vadd.f32 0.0, %v3084
  %v3086 = vpop.f32.mrb[0].mxu0
  %v3087 = vpop.f32.mrb[0].mxu0
  %v3088 = vadd.f32 0.0, %v3087
  %v3089 = vpop.f32.mrb[0].mxu0
  %3090 = vmatprep.mubr.bf16.mxu0 %v1686
  %3091 = vmatmul.mubr.bf16.gmra.mrb[0].mxu0 %v1590
  %v3092 = vpop.f32.mrb[0].mxu0
  %v3093 = vadd.f32 0.0, %v3092
  %v3094 = vpop.f32.mrb[0].mxu0
  %v3095 = vpop.f32.mrb[0].mxu0
  %v3096 = vadd.f32 0.0, %v3095
  %v3097 = vpop.f32.mrb[0].mxu0
  %3098 = vmatprep.mubr.bf16.mxu0 %v1687
  %3099 = vmatmul.mubr.bf16.gmra.mrb[0].mxu0 %v1591
  %v3100 = vpop.f32.mrb[0].mxu0
  %v3101 = vadd.f32 0.0, %v3100
  %v3102 = vpop.f32.mrb[0].mxu0
  %v3103 = vpop.f32.mrb[0].mxu0
  %v3104 = vadd.f32 0.0, %v3103
  %v3105 = vpop.f32.mrb[0].mxu0
  %3106 = vmatprep.mubr.bf16.mxu0 %v1688
  %3107 = vmatmul.mubr.bf16.gmra.mrb[0].mxu0 %v1592
  %v3108 = vpop.f32.mrb[0].mxu0
  %v3109 = vadd.f32 0.0, %v3108
  %v3110 = vpop.f32.mrb[0].mxu0
  %v3111 = vpop.f32.mrb[0].mxu0
  %v3112 = vadd.f32 0.0, %v3111
  %v3113 = vpop.f32.mrb[0].mxu0
  %3114 = vmatprep.mubr.bf16.mxu0 %v1689
  %3115 = vmatmul.mubr.bf16.gmra.mrb[0].mxu0 %v1593
  %v3116 = vpop.f32.mrb[0].mxu0
  %v3117 = vadd.f32 0.0, %v3116
  %v3118 = vpop.f32.mrb[0].mxu0
  %v3119 = vpop.f32.mrb[0].mxu0
  %v3120 = vadd.f32 0.0, %v3119
  %v3121 = vpop.f32.mrb[0].mxu0
  %3122 = vmatprep.mubr.bf16.mxu0 %v1690
  %3123 = vmatmul.mubr.bf16.gmra.mrb[0].mxu0 %v1594
  %v3124 = vpop.f32.mrb[0].mxu0
  %v3125 = vadd.f32 0.0, %v3124
  %v3126 = vpop.f32.mrb[0].mxu0
  %v3127 = vpop.f32.mrb[0].mxu0
  %v3128 = vadd.f32 0.0, %v3127
  %v3129 = vpop.f32.mrb[0].mxu0
  %3130 = vmatprep.mubr.bf16.mxu0 %v1691
  %3131 = vmatmul.mubr.bf16.gmra.mrb[0].mxu0 %v1595
  %v3132 = vpop.f32.mrb[0].mxu0
  %v3133 = vadd.f32 0.0, %v3132
  %v3134 = vpop.f32.mrb[0].mxu0
  %v3135 = vpop.f32.mrb[0].mxu0
  %v3136 = vadd.f32 0.0, %v3135
  %v3137 = vpop.f32.mrb[0].mxu0
  %3138 = vmatprep.mubr.bf16.mxu0 %v1692
  %3139 = vmatmul.mubr.bf16.gmra.mrb[0].mxu0 %v1596
  %v3140 = vpop.f32.mrb[0].mxu0
  %v3141 = vadd.f32 0.0, %v3140
  %v3142 = vpop.f32.mrb[0].mxu0
  %v3143 = vpop.f32.mrb[0].mxu0
  %v3144 = vadd.f32 0.0, %v3143
  %v3145 = vpop.f32.mrb[0].mxu0
  %3146 = vmatprep.mubr.bf16.mxu0 %v1693
  %3147 = vmatmul.mubr.bf16.gmra.mrb[0].mxu0 %v1597
  %v3148 = vpop.f32.mrb[0].mxu0
  %v3149 = vadd.f32 0.0, %v3148
  %v3150 = vpop.f32.mrb[0].mxu0
  %v3151 = vpop.f32.mrb[0].mxu0
  %v3152 = vadd.f32 0.0, %v3151
  %v3153 = vpop.f32.mrb[0].mxu0
  %3154 = vmatprep.mubr.bf16.mxu0 %v1694
  %3155 = vmatmul.mubr.bf16.gmra.mrb[0].mxu0 %v1598
  %v3156 = vpop.f32.mrb[0].mxu0
  %v3157 = vadd.f32 0.0, %v3156
  %v3158 = vpop.f32.mrb[0].mxu0
  %v3159 = vpop.f32.mrb[0].mxu0
  %v3160 = vadd.f32 0.0, %v3159
  %v3161 = vpop.f32.mrb[0].mxu0
  %3162 = vmatprep.mubr.bf16.mxu0 %v1695
  %3163 = vmatmul.mubr.bf16.gmra.mrb[0].mxu0 %v1599
  %v3164 = vpop.f32.mrb[0].mxu0
  %v3165 = vadd.f32 0.0, %v3164
  %v3166 = vpop.f32.mrb[0].mxu0
  %v3167 = vpop.f32.mrb[0].mxu0
  %v3168 = vadd.f32 0.0, %v3167
  %v3169 = vpop.f32.mrb[0].mxu0
  %3170 = vmatprep.mubr.bf16.mxu0 %v1696
  %3171 = vmatmul.mubr.bf16.gmra.mrb[0].mxu0 %v1600
  %v3172 = vpop.f32.mrb[0].mxu0
  %v3173 = vadd.f32 0.0, %v3172
  %v3174 = vpop.f32.mrb[0].mxu0
  %v3175 = vpop.f32.mrb[0].mxu0
  %v3176 = vadd.f32 0.0, %v3175
  %v3177 = vpop.f32.mrb[0].mxu0
  %3178 = vmatprep.mubr.bf16.mxu0 %v1697
  %3179 = vmatmul.mubr.bf16.gmra.mrb[0].mxu0 %v1601
  %v3180 = vpop.f32.mrb[0].mxu0
  %v3181 = vadd.f32 0.0, %v3180
  %v3182 = vpop.f32.mrb[0].mxu0
  %v3183 = vpop.f32.mrb[0].mxu0
  %v3184 = vadd.f32 0.0, %v3183
  %v3185 = vpop.f32.mrb[0].mxu0
  %3186 = vmatprep.mubr.bf16.mxu0 %v1698
  %3187 = vmatmul.mubr.bf16.gmra.mrb[0].mxu0 %v1602
  %v3188 = vpop.f32.mrb[0].mxu0
  %v3189 = vadd.f32 0.0, %v3188
  %v3190 = vpop.f32.mrb[0].mxu0
  %v3191 = vpop.f32.mrb[0].mxu0
  %v3192 = vadd.f32 0.0, %v3191
  %v3193 = vpop.f32.mrb[0].mxu0
  %3194 = vmatprep.mubr.bf16.mxu0 %v1699
  %3195 = vmatmul.mubr.bf16.gmra.mrb[0].mxu0 %v1603
  %v3196 = vpop.f32.mrb[0].mxu0
  %v3197 = vadd.f32 0.0, %v3196
  %v3198 = vpop.f32.mrb[0].mxu0
  %v3199 = vpop.f32.mrb[0].mxu0
  %v3200 = vadd.f32 0.0, %v3199
  %v3201 = vpop.f32.mrb[0].mxu0
  %3202 = vmatprep.mubr.bf16.mxu0 %v1700
  %3203 = vmatmul.mubr.bf16.gmra.mrb[0].mxu0 %v1604
  %v3204 = vpop.f32.mrb[0].mxu0
  %v3205 = vadd.f32 0.0, %v3204
  %v3206 = vpop.f32.mrb[0].mxu0
  %v3207 = vpop.f32.mrb[0].mxu0
  %v3208 = vadd.f32 0.0, %v3207
  %v3209 = vpop.f32.mrb[0].mxu0
  %3210 = vmatprep.mubr.bf16.mxu0 %v1701
  %3211 = vmatmul.mubr.bf16.gmra.mrb[0].mxu0 %v1605
  %v3212 = vpop.f32.mrb[0].mxu0
  %v3213 = vadd.f32 0.0, %v3212
  %v3214 = vpop.f32.mrb[0].mxu0
  %v3215 = vpop.f32.mrb[0].mxu0
  %v3216 = vadd.f32 0.0, %v3215
  %v3217 = vpop.f32.mrb[0].mxu0
  %3218 = vmatprep.mubr.bf16.mxu0 %v1702
  %3219 = vmatmul.mubr.bf16.gmra.mrb[0].mxu0 %v1606
  %v3220 = vpop.f32.mrb[0].mxu0
  %v3221 = vadd.f32 0.0, %v3220
  %v3222 = vpop.f32.mrb[0].mxu0
  %v3223 = vpop.f32.mrb[0].mxu0
  %v3224 = vadd.f32 0.0, %v3223
  %v3225 = vpop.f32.mrb[0].mxu0
  %3226 = vmatprep.mubr.bf16.mxu0 %v1703
  %3227 = vmatmul.mubr.bf16.gmra.mrb[0].mxu0 %v1607
  %v3228 = vpop.f32.mrb[0].mxu0
  %v3229 = vadd.f32 0.0, %v3228
  %v3230 = vpop.f32.mrb[0].mxu0
  %v3231 = vpop.f32.mrb[0].mxu0
  %v3232 = vadd.f32 0.0, %v3231
  %v3233 = vpop.f32.mrb[0].mxu0
  %3234 = vmatprep.mubr.bf16.mxu0 %v1704
  %3235 = vmatmul.mubr.bf16.gmra.mrb[0].mxu0 %v1608
  %v3236 = vpop.f32.mrb[0].mxu0
  %v3237 = vadd.f32 0.0, %v3236
  %v3238 = vpop.f32.mrb[0].mxu0
  %v3239 = vpop.f32.mrb[0].mxu0
  %v3240 = vadd.f32 0.0, %v3239
  %v3241 = vpop.f32.mrb[0].mxu0
  %3242 = vdwg.mxu0
  %3243 = vmatprep.subr.bf16.mxu0 0
  %3244 = vmatpush1.bf16.msra.mxu0 %v2826
  %3245 = vmatprep.subr.bf16.mxu0 0
  %3246 = vmatpush1.bf16.msra.mxu0 %v2827
  %3247 = vmatprep.subr.bf16.mxu0 0
  %3248 = vmatpush1.bf16.msra.mxu0 %v2828
  %3249 = vmatprep.subr.bf16.mxu0 0
  %3250 = vmatpush1.bf16.msra.mxu0 %v2829
  %3251 = vmatprep.subr.bf16.mxu0 0
  %3252 = vmatpush1.bf16.msra.mxu0 %v2830
  %3253 = vmatprep.subr.bf16.mxu0 0
  %3254 = vmatpush1.bf16.msra.mxu0 %v2831
  %3255 = vmatprep.subr.bf16.mxu0 0
  %3256 = vmatpush1.bf16.msra.mxu0 %v2832
  %3257 = vmatprep.subr.bf16.mxu0 0
  %3258 = vmatpush1.bf16.msra.mxu0 %v2833
  %3259 = vmatprep.subr.bf16.mxu0 0
  %3260 = vmatpush1.bf16.msra.mxu0 %v2834
  %3261 = vmatprep.subr.bf16.mxu0 0
  %3262 = vmatpush1.bf16.msra.mxu0 %v2835
  %3263 = vmatprep.subr.bf16.mxu0 0
  %3264 = vmatpush1.bf16.msra.mxu0 %v2836
  %3265 = vmatprep.subr.bf16.mxu0 0
  %3266 = vmatpush1.bf16.msra.mxu0 %v2837
  %3267 = vmatprep.subr.bf16.mxu0 0
  %3268 = vmatpush1.bf16.msra.mxu0 %v2838
  %3269 = vmatprep.subr.bf16.mxu0 0
  %3270 = vmatpush1.bf16.msra.mxu0 %v2839
  %3271 = vmatprep.subr.bf16.mxu0 0
  %3272 = vmatpush1.bf16.msra.mxu0 %v2840
  %3273 = vmatprep.subr.bf16.mxu0 0
  %3274 = vmatpush1.bf16.msra.mxu0 %v2841
  %3275 = vmatprep.mubr.bf16.mxu0 %v1865
  %3276 = vmatmul.mubr.bf16.gmra.mrb[0].mxu0 %v1769
  %v3277 = vpop.f32.mrb[0].mxu0
  %v3278 = vadd.f32 %v2989, %v3277
  %v3279 = vpop.f32.mrb[0].mxu0
  %v3280 = vpop.f32.mrb[0].mxu0
  %v3281 = vadd.f32 %v2992, %v3280
  %v3282 = vpop.f32.mrb[0].mxu0
  %3283 = vmatprep.mubr.bf16.mxu0 %v1866
  %3284 = vmatmul.mubr.bf16.gmra.mrb[0].mxu0 %v1770
  %v3285 = vpop.f32.mrb[0].mxu0
  %v3286 = vadd.f32 %v2997, %v3285
  %v3287 = vpop.f32.mrb[0].mxu0
  %v3288 = vpop.f32.mrb[0].mxu0
  %v3289 = vadd.f32 %v3000, %v3288
  %v3290 = vpop.f32.mrb[0].mxu0
  %3291 = vmatprep.mubr.bf16.mxu0 %v1867
  %3292 = vmatmul.mubr.bf16.gmra.mrb[0].mxu0 %v1771
  %v3293 = vpop.f32.mrb[0].mxu0
  %v3294 = vadd.f32 %v3005, %v3293
  %v3295 = vpop.f32.mrb[0].mxu0
  %v3296 = vpop.f32.mrb[0].mxu0
  %v3297 = vadd.f32 %v3008, %v3296
  %v3298 = vpop.f32.mrb[0].mxu0
  %3299 = vmatprep.mubr.bf16.mxu0 %v1868
  %3300 = vmatmul.mubr.bf16.gmra.mrb[0].mxu0 %v1772
  %v3301 = vpop.f32.mrb[0].mxu0
  %v3302 = vadd.f32 %v3013, %v3301
  %v3303 = vpop.f32.mrb[0].mxu0
  %v3304 = vpop.f32.mrb[0].mxu0
  %v3305 = vadd.f32 %v3016, %v3304
  %v3306 = vpop.f32.mrb[0].mxu0
  %3307 = vmatprep.mubr.bf16.mxu0 %v1869
  %3308 = vmatmul.mubr.bf16.gmra.mrb[0].mxu0 %v1773
  %v3309 = vpop.f32.mrb[0].mxu0
  %v3310 = vadd.f32 %v3021, %v3309
  %v3311 = vpop.f32.mrb[0].mxu0
  %v3312 = vpop.f32.mrb[0].mxu0
  %v3313 = vadd.f32 %v3024, %v3312
  %v3314 = vpop.f32.mrb[0].mxu0
  %3315 = vmatprep.mubr.bf16.mxu0 %v1870
  %3316 = vmatmul.mubr.bf16.gmra.mrb[0].mxu0 %v1774
  %v3317 = vpop.f32.mrb[0].mxu0
  %v3318 = vadd.f32 %v3029, %v3317
  %v3319 = vpop.f32.mrb[0].mxu0
  %v3320 = vpop.f32.mrb[0].mxu0
  %v3321 = vadd.f32 %v3032, %v3320
  %v3322 = vpop.f32.mrb[0].mxu0
  %3323 = vmatprep.mubr.bf16.mxu0 %v1871
  %3324 = vmatmul.mubr.bf16.gmra.mrb[0].mxu0 %v1775
  %v3325 = vpop.f32.mrb[0].mxu0
  %v3326 = vadd.f32 %v3037, %v3325
  %v3327 = vpop.f32.mrb[0].mxu0
  %v3328 = vpop.f32.mrb[0].mxu0
  %v3329 = vadd.f32 %v3040, %v3328
  %v3330 = vpop.f32.mrb[0].mxu0
  %3331 = vmatprep.mubr.bf16.mxu0 %v1872
  %3332 = vmatmul.mubr.bf16.gmra.mrb[0].mxu0 %v1776
  %v3333 = vpop.f32.mrb[0].mxu0
  %v3334 = vadd.f32 %v3045, %v3333
  %v3335 = vpop.f32.mrb[0].mxu0
  %v3336 = vpop.f32.mrb[0].mxu0
  %v3337 = vadd.f32 %v3048, %v3336
  %v3338 = vpop.f32.mrb[0].mxu0
  %3339 = vmatprep.mubr.bf16.mxu0 %v1873
  %3340 = vmatmul.mubr.bf16.gmra.mrb[0].mxu0 %v1777
  %v3341 = vpop.f32.mrb[0].mxu0
  %v3342 = vadd.f32 %v3053, %v3341
  %v3343 = vpop.f32.mrb[0].mxu0
  %v3344 = vpop.f32.mrb[0].mxu0
  %v3345 = vadd.f32 %v3056, %v3344
  %v3346 = vpop.f32.mrb[0].mxu0
  %3347 = vmatprep.mubr.bf16.mxu0 %v1874
  %3348 = vmatmul.mubr.bf16.gmra.mrb[0].mxu0 %v1778
  %v3349 = vpop.f32.mrb[0].mxu0
  %v3350 = vadd.f32 %v3061, %v3349
  %v3351 = vpop.f32.mrb[0].mxu0
  %v3352 = vpop.f32.mrb[0].mxu0
  %v3353 = vadd.f32 %v3064, %v3352
  %v3354 = vpop.f32.mrb[0].mxu0
  %3355 = vmatprep.mubr.bf16.mxu0 %v1875
  %3356 = vmatmul.mubr.bf16.gmra.mrb[0].mxu0 %v1779
  %v3357 = vpop.f32.mrb[0].mxu0
  %v3358 = vadd.f32 %v3069, %v3357
  %v3359 = vpop.f32.mrb[0].mxu0
  %v3360 = vpop.f32.mrb[0].mxu0
  %v3361 = vadd.f32 %v3072, %v3360
  %v3362 = vpop.f32.mrb[0].mxu0
  %3363 = vmatprep.mubr.bf16.mxu0 %v1876
  %3364 = vmatmul.mubr.bf16.gmra.mrb[0].mxu0 %v1780
  %v3365 = vpop.f32.mrb[0].mxu0
  %v3366 = vadd.f32 %v3077, %v3365
  %v3367 = vpop.f32.mrb[0].mxu0
  %v3368 = vpop.f32.mrb[0].mxu0
  %v3369 = vadd.f32 %v3080, %v3368
  %v3370 = vpop.f32.mrb[0].mxu0
  %3371 = vmatprep.mubr.bf16.mxu0 %v1877
  %3372 = vmatmul.mubr.bf16.gmra.mrb[0].mxu0 %v1781
  %v3373 = vpop.f32.mrb[0].mxu0
  %v3374 = vadd.f32 %v3085, %v3373
  %v3375 = vpop.f32.mrb[0].mxu0
  %v3376 = vpop.f32.mrb[0].mxu0
  %v3377 = vadd.f32 %v3088, %v3376
  %v3378 = vpop.f32.mrb[0].mxu0
  %3379 = vmatprep.mubr.bf16.mxu0 %v1878
  %3380 = vmatmul.mubr.bf16.gmra.mrb[0].mxu0 %v1782
  %v3381 = vpop.f32.mrb[0].mxu0
  %v3382 = vadd.f32 %v3093, %v3381
  %v3383 = vpop.f32.mrb[0].mxu0
  %v3384 = vpop.f32.mrb[0].mxu0
  %v3385 = vadd.f32 %v3096, %v3384
  %v3386 = vpop.f32.mrb[0].mxu0
  %3387 = vmatprep.mubr.bf16.mxu0 %v1879
  %3388 = vmatmul.mubr.bf16.gmra.mrb[0].mxu0 %v1783
  %v3389 = vpop.f32.mrb[0].mxu0
  %v3390 = vadd.f32 %v3101, %v3389
  %v3391 = vpop.f32.mrb[0].mxu0
  %v3392 = vpop.f32.mrb[0].mxu0
  %v3393 = vadd.f32 %v3104, %v3392
  %v3394 = vpop.f32.mrb[0].mxu0
  %3395 = vmatprep.mubr.bf16.mxu0 %v1880
  %3396 = vmatmul.mubr.bf16.gmra.mrb[0].mxu0 %v1784
  %v3397 = vpop.f32.mrb[0].mxu0
  %v3398 = vadd.f32 %v3109, %v3397
  %v3399 = vpop.f32.mrb[0].mxu0
  %v3400 = vpop.f32.mrb[0].mxu0
  %v3401 = vadd.f32 %v3112, %v3400
  %v3402 = vpop.f32.mrb[0].mxu0
  %3403 = vmatprep.mubr.bf16.mxu0 %v1881
  %3404 = vmatmul.mubr.bf16.gmra.mrb[0].mxu0 %v1785
  %v3405 = vpop.f32.mrb[0].mxu0
  %v3406 = vadd.f32 %v3117, %v3405
  %v3407 = vpop.f32.mrb[0].mxu0
  %v3408 = vpop.f32.mrb[0].mxu0
  %v3409 = vadd.f32 %v3120, %v3408
  %v3410 = vpop.f32.mrb[0].mxu0
  %3411 = vmatprep.mubr.bf16.mxu0 %v1882
  %3412 = vmatmul.mubr.bf16.gmra.mrb[0].mxu0 %v1786
  %v3413 = vpop.f32.mrb[0].mxu0
  %v3414 = vadd.f32 %v3125, %v3413
  %v3415 = vpop.f32.mrb[0].mxu0
  %v3416 = vpop.f32.mrb[0].mxu0
  %v3417 = vadd.f32 %v3128, %v3416
  %v3418 = vpop.f32.mrb[0].mxu0
  %3419 = vmatprep.mubr.bf16.mxu0 %v1883
  %3420 = vmatmul.mubr.bf16.gmra.mrb[0].mxu0 %v1787
  %v3421 = vpop.f32.mrb[0].mxu0
  %v3422 = vadd.f32 %v3133, %v3421
  %v3423 = vpop.f32.mrb[0].mxu0
  %v3424 = vpop.f32.mrb[0].mxu0
  %v3425 = vadd.f32 %v3136, %v3424
  %v3426 = vpop.f32.mrb[0].mxu0
  %3427 = vmatprep.mubr.bf16.mxu0 %v1884
  %3428 = vmatmul.mubr.bf16.gmra.mrb[0].mxu0 %v1788
  %v3429 = vpop.f32.mrb[0].mxu0
  %v3430 = vadd.f32 %v3141, %v3429
  %v3431 = vpop.f32.mrb[0].mxu0
  %v3432 = vpop.f32.mrb[0].mxu0
  %v3433 = vadd.f32 %v3144, %v3432
  %v3434 = vpop.f32.mrb[0].mxu0
  %3435 = vmatprep.mubr.bf16.mxu0 %v1885
  %3436 = vmatmul.mubr.bf16.gmra.mrb[0].mxu0 %v1789
  %v3437 = vpop.f32.mrb[0].mxu0
  %v3438 = vadd.f32 %v3149, %v3437
  %v3439 = vpop.f32.mrb[0].mxu0
  %v3440 = vpop.f32.mrb[0].mxu0
  %v3441 = vadd.f32 %v3152, %v3440
  %v3442 = vpop.f32.mrb[0].mxu0
  %3443 = vmatprep.mubr.bf16.mxu0 %v1886
  %3444 = vmatmul.mubr.bf16.gmra.mrb[0].mxu0 %v1790
  %v3445 = vpop.f32.mrb[0].mxu0
  %v3446 = vadd.f32 %v3157, %v3445
  %v3447 = vpop.f32.mrb[0].mxu0
  %v3448 = vpop.f32.mrb[0].mxu0
  %v3449 = vadd.f32 %v3160, %v3448
  %v3450 = vpop.f32.mrb[0].mxu0
  %3451 = vmatprep.mubr.bf16.mxu0 %v1887
  %3452 = vmatmul.mubr.bf16.gmra.mrb[0].mxu0 %v1791
  %v3453 = vpop.f32.mrb[0].mxu0
  %v3454 = vadd.f32 %v3165, %v3453
  %v3455 = vpop.f32.mrb[0].mxu0
  %v3456 = vpop.f32.mrb[0].mxu0
  %v3457 = vadd.f32 %v3168, %v3456
  %v3458 = vpop.f32.mrb[0].mxu0
  %3459 = vmatprep.mubr.bf16.mxu0 %v1888
  %3460 = vmatmul.mubr.bf16.gmra.mrb[0].mxu0 %v1792
  %v3461 = vpop.f32.mrb[0].mxu0
  %v3462 = vadd.f32 %v3173, %v3461
  %v3463 = vpop.f32.mrb[0].mxu0
  %v3464 = vpop.f32.mrb[0].mxu0
  %v3465 = vadd.f32 %v3176, %v3464
  %v3466 = vpop.f32.mrb[0].mxu0
  %3467 = vmatprep.mubr.bf16.mxu0 %v1889
  %3468 = vmatmul.mubr.bf16.gmra.mrb[0].mxu0 %v1793
  %v3469 = vpop.f32.mrb[0].mxu0
  %v3470 = vadd.f32 %v3181, %v3469
  %v3471 = vpop.f32.mrb[0].mxu0
  %v3472 = vpop.f32.mrb[0].mxu0
  %v3473 = vadd.f32 %v3184, %v3472
  %v3474 = vpop.f32.mrb[0].mxu0
  %3475 = vmatprep.mubr.bf16.mxu0 %v1890
  %3476 = vmatmul.mubr.bf16.gmra.mrb[0].mxu0 %v1794
  %v3477 = vpop.f32.mrb[0].mxu0
  %v3478 = vadd.f32 %v3189, %v3477
  %v3479 = vpop.f32.mrb[0].mxu0
  %v3480 = vpop.f32.mrb[0].mxu0
  %v3481 = vadd.f32 %v3192, %v3480
  %v3482 = vpop.f32.mrb[0].mxu0
  %3483 = vmatprep.mubr.bf16.mxu0 %v1891
  %3484 = vmatmul.mubr.bf16.gmra.mrb[0].mxu0 %v1795
  %v3485 = vpop.f32.mrb[0].mxu0
  %v3486 = vadd.f32 %v3197, %v3485
  %v3487 = vpop.f32.mrb[0].mxu0
  %v3488 = vpop.f32.mrb[0].mxu0
  %v3489 = vadd.f32 %v3200, %v3488
  %v3490 = vpop.f32.mrb[0].mxu0
  %3491 = vmatprep.mubr.bf16.mxu0 %v1892
  %3492 = vmatmul.mubr.bf16.gmra.mrb[0].mxu0 %v1796
  %v3493 = vpop.f32.mrb[0].mxu0
  %v3494 = vadd.f32 %v3205, %v3493
  %v3495 = vpop.f32.mrb[0].mxu0
  %v3496 = vpop.f32.mrb[0].mxu0
  %v3497 = vadd.f32 %v3208, %v3496
  %v3498 = vpop.f32.mrb[0].mxu0
  %3499 = vmatprep.mubr.bf16.mxu0 %v1893
  %3500 = vmatmul.mubr.bf16.gmra.mrb[0].mxu0 %v1797
  %v3501 = vpop.f32.mrb[0].mxu0
  %v3502 = vadd.f32 %v3213, %v3501
  %v3503 = vpop.f32.mrb[0].mxu0
  %v3504 = vpop.f32.mrb[0].mxu0
  %v3505 = vadd.f32 %v3216, %v3504
  %v3506 = vpop.f32.mrb[0].mxu0
  %3507 = vmatprep.mubr.bf16.mxu0 %v1894
  %3508 = vmatmul.mubr.bf16.gmra.mrb[0].mxu0 %v1798
  %v3509 = vpop.f32.mrb[0].mxu0
  %v3510 = vadd.f32 %v3221, %v3509
  %v3511 = vpop.f32.mrb[0].mxu0
  %v3512 = vpop.f32.mrb[0].mxu0
  %v3513 = vadd.f32 %v3224, %v3512
  %v3514 = vpop.f32.mrb[0].mxu0
  %3515 = vmatprep.mubr.bf16.mxu0 %v1895
  %3516 = vmatmul.mubr.bf16.gmra.mrb[0].mxu0 %v1799
  %v3517 = vpop.f32.mrb[0].mxu0
  %v3518 = vadd.f32 %v3229, %v3517
  %v3519 = vpop.f32.mrb[0].mxu0
  %v3520 = vpop.f32.mrb[0].mxu0
  %v3521 = vadd.f32 %v3232, %v3520
  %v3522 = vpop.f32.mrb[0].mxu0
  %3523 = vmatprep.mubr.bf16.mxu0 %v1896
  %3524 = vmatmul.mubr.bf16.gmra.mrb[0].mxu0 %v1800
  %v3525 = vpop.f32.mrb[0].mxu0
  %v3526 = vadd.f32 %v3237, %v3525
  %v3527 = vpop.f32.mrb[0].mxu0
  %v3528 = vpop.f32.mrb[0].mxu0
  %v3529 = vadd.f32 %v3240, %v3528
  %v3530 = vpop.f32.mrb[0].mxu0
  %3531 = vdwg.mxu0
  %3532 = vmatprep.subr.bf16.mxu0 0
  %3533 = vmatpush1.bf16.msra.mxu0 %v2842
  %3534 = vmatprep.subr.bf16.mxu0 0
  %3535 = vmatpush1.bf16.msra.mxu0 %v2843
  %3536 = vmatprep.subr.bf16.mxu0 0
  %3537 = vmatpush1.bf16.msra.mxu0 %v2844
  %3538 = vmatprep.subr.bf16.mxu0 0
  %3539 = vmatpush1.bf16.msra.mxu0 %v2845
  %3540 = vmatprep.subr.bf16.mxu0 0
  %3541 = vmatpush1.bf16.msra.mxu0 %v2846
  %3542 = vmatprep.subr.bf16.mxu0 0
  %3543 = vmatpush1.bf16.msra.mxu0 %v2847
  %3544 = vmatprep.subr.bf16.mxu0 0
  %3545 = vmatpush1.bf16.msra.mxu0 %v2848
  %3546 = vmatprep.subr.bf16.mxu0 0
  %3547 = vmatpush1.bf16.msra.mxu0 %v2849
  %3548 = vmatprep.subr.bf16.mxu0 0
  %3549 = vmatpush1.bf16.msra.mxu0 %v2850
  %3550 = vmatprep.subr.bf16.mxu0 0
  %3551 = vmatpush1.bf16.msra.mxu0 %v2851
  %3552 = vmatprep.subr.bf16.mxu0 0
  %3553 = vmatpush1.bf16.msra.mxu0 %v2852
  %3554 = vmatprep.subr.bf16.mxu0 0
  %3555 = vmatpush1.bf16.msra.mxu0 %v2853
  %3556 = vmatprep.subr.bf16.mxu0 0
  %3557 = vmatpush1.bf16.msra.mxu0 %v2854
  %3558 = vmatprep.subr.bf16.mxu0 0
  %3559 = vmatpush1.bf16.msra.mxu0 %v2855
  %3560 = vmatprep.subr.bf16.mxu0 0
  %3561 = vmatpush1.bf16.msra.mxu0 %v2856
  %3562 = vmatprep.subr.bf16.mxu0 0
  %3563 = vmatpush1.bf16.msra.mxu0 %v2857
  %3564 = vmatprep.mubr.bf16.mxu0 %v2057
  %3565 = vmatmul.mubr.bf16.gmra.mrb[0].mxu0 %v1961
  %v3566 = vpop.f32.mrb[0].mxu0
  %v3567 = vadd.f32 %v3278, %v3566
  %v3568 = vpop.f32.mrb[0].mxu0
  %v3569 = vpop.f32.mrb[0].mxu0
  %v3570 = vadd.f32 %v3281, %v3569
  %v3571 = vpop.f32.mrb[0].mxu0
  %3572 = vmatprep.mubr.bf16.mxu0 %v2058
  %3573 = vmatmul.mubr.bf16.gmra.mrb[0].mxu0 %v1962
  %v3574 = vpop.f32.mrb[0].mxu0
  %v3575 = vadd.f32 %v3286, %v3574
  %v3576 = vpop.f32.mrb[0].mxu0
  %v3577 = vpop.f32.mrb[0].mxu0
  %v3578 = vadd.f32 %v3289, %v3577
  %v3579 = vpop.f32.mrb[0].mxu0
  %3580 = vmatprep.mubr.bf16.mxu0 %v2059
  %3581 = vmatmul.mubr.bf16.gmra.mrb[0].mxu0 %v1963
  %v3582 = vpop.f32.mrb[0].mxu0
  %v3583 = vadd.f32 %v3294, %v3582
  %v3584 = vpop.f32.mrb[0].mxu0
  %v3585 = vpop.f32.mrb[0].mxu0
  %v3586 = vadd.f32 %v3297, %v3585
  %v3587 = vpop.f32.mrb[0].mxu0
  %3588 = vmatprep.mubr.bf16.mxu0 %v2060
  %3589 = vmatmul.mubr.bf16.gmra.mrb[0].mxu0 %v1964
  %v3590 = vpop.f32.mrb[0].mxu0
  %v3591 = vadd.f32 %v3302, %v3590
  %v3592 = vpop.f32.mrb[0].mxu0
  %v3593 = vpop.f32.mrb[0].mxu0
  %v3594 = vadd.f32 %v3305, %v3593
  %v3595 = vpop.f32.mrb[0].mxu0
  %3596 = vmatprep.mubr.bf16.mxu0 %v2061
  %3597 = vmatmul.mubr.bf16.gmra.mrb[0].mxu0 %v1965
  %v3598 = vpop.f32.mrb[0].mxu0
  %v3599 = vadd.f32 %v3310, %v3598
  %v3600 = vpop.f32.mrb[0].mxu0
  %v3601 = vpop.f32.mrb[0].mxu0
  %v3602 = vadd.f32 %v3313, %v3601
  %v3603 = vpop.f32.mrb[0].mxu0
  %3604 = vmatprep.mubr.bf16.mxu0 %v2062
  %3605 = vmatmul.mubr.bf16.gmra.mrb[0].mxu0 %v1966
  %v3606 = vpop.f32.mrb[0].mxu0
  %v3607 = vadd.f32 %v3318, %v3606
  %v3608 = vpop.f32.mrb[0].mxu0
  %v3609 = vpop.f32.mrb[0].mxu0
  %v3610 = vadd.f32 %v3321, %v3609
  %v3611 = vpop.f32.mrb[0].mxu0
  %3612 = vmatprep.mubr.bf16.mxu0 %v2063
  %3613 = vmatmul.mubr.bf16.gmra.mrb[0].mxu0 %v1967
  %v3614 = vpop.f32.mrb[0].mxu0
  %v3615 = vadd.f32 %v3326, %v3614
  %v3616 = vpop.f32.mrb[0].mxu0
  %v3617 = vpop.f32.mrb[0].mxu0
  %v3618 = vadd.f32 %v3329, %v3617
  %v3619 = vpop.f32.mrb[0].mxu0
  %3620 = vmatprep.mubr.bf16.mxu0 %v2064
  %3621 = vmatmul.mubr.bf16.gmra.mrb[0].mxu0 %v1968
  %v3622 = vpop.f32.mrb[0].mxu0
  %v3623 = vadd.f32 %v3334, %v3622
  %v3624 = vpop.f32.mrb[0].mxu0
  %v3625 = vpop.f32.mrb[0].mxu0
  %v3626 = vadd.f32 %v3337, %v3625
  %v3627 = vpop.f32.mrb[0].mxu0
  %3628 = vmatprep.mubr.bf16.mxu0 %v2065
  %3629 = vmatmul.mubr.bf16.gmra.mrb[0].mxu0 %v1969
  %v3630 = vpop.f32.mrb[0].mxu0
  %v3631 = vadd.f32 %v3342, %v3630
  %v3632 = vpop.f32.mrb[0].mxu0
  %v3633 = vpop.f32.mrb[0].mxu0
  %v3634 = vadd.f32 %v3345, %v3633
  %v3635 = vpop.f32.mrb[0].mxu0
  %3636 = vmatprep.mubr.bf16.mxu0 %v2066
  %3637 = vmatmul.mubr.bf16.gmra.mrb[0].mxu0 %v1970
  %v3638 = vpop.f32.mrb[0].mxu0
  %v3639 = vadd.f32 %v3350, %v3638
  %v3640 = vpop.f32.mrb[0].mxu0
  %v3641 = vpop.f32.mrb[0].mxu0
  %v3642 = vadd.f32 %v3353, %v3641
  %v3643 = vpop.f32.mrb[0].mxu0
  %3644 = vmatprep.mubr.bf16.mxu0 %v2067
  %3645 = vmatmul.mubr.bf16.gmra.mrb[0].mxu0 %v1971
  %v3646 = vpop.f32.mrb[0].mxu0
  %v3647 = vadd.f32 %v3358, %v3646
  %v3648 = vpop.f32.mrb[0].mxu0
  %v3649 = vpop.f32.mrb[0].mxu0
  %v3650 = vadd.f32 %v3361, %v3649
  %v3651 = vpop.f32.mrb[0].mxu0
  %3652 = vmatprep.mubr.bf16.mxu0 %v2068
  %3653 = vmatmul.mubr.bf16.gmra.mrb[0].mxu0 %v1972
  %v3654 = vpop.f32.mrb[0].mxu0
  %v3655 = vadd.f32 %v3366, %v3654
  %v3656 = vpop.f32.mrb[0].mxu0
  %v3657 = vpop.f32.mrb[0].mxu0
  %v3658 = vadd.f32 %v3369, %v3657
  %v3659 = vpop.f32.mrb[0].mxu0
  %3660 = vmatprep.mubr.bf16.mxu0 %v2069
  %3661 = vmatmul.mubr.bf16.gmra.mrb[0].mxu0 %v1973
  %v3662 = vpop.f32.mrb[0].mxu0
  %v3663 = vadd.f32 %v3374, %v3662
  %v3664 = vpop.f32.mrb[0].mxu0
  %v3665 = vpop.f32.mrb[0].mxu0
  %v3666 = vadd.f32 %v3377, %v3665
  %v3667 = vpop.f32.mrb[0].mxu0
  %3668 = vmatprep.mubr.bf16.mxu0 %v2070
  %3669 = vmatmul.mubr.bf16.gmra.mrb[0].mxu0 %v1974
  %v3670 = vpop.f32.mrb[0].mxu0
  %v3671 = vadd.f32 %v3382, %v3670
  %v3672 = vpop.f32.mrb[0].mxu0
  %v3673 = vpop.f32.mrb[0].mxu0
  %v3674 = vadd.f32 %v3385, %v3673
  %v3675 = vpop.f32.mrb[0].mxu0
  %3676 = vmatprep.mubr.bf16.mxu0 %v2071
  %3677 = vmatmul.mubr.bf16.gmra.mrb[0].mxu0 %v1975
  %v3678 = vpop.f32.mrb[0].mxu0
  %v3679 = vadd.f32 %v3390, %v3678
  %v3680 = vpop.f32.mrb[0].mxu0
  %v3681 = vpop.f32.mrb[0].mxu0
  %v3682 = vadd.f32 %v3393, %v3681
  %v3683 = vpop.f32.mrb[0].mxu0
  %3684 = vmatprep.mubr.bf16.mxu0 %v2072
  %3685 = vmatmul.mubr.bf16.gmra.mrb[0].mxu0 %v1976
  %v3686 = vpop.f32.mrb[0].mxu0
  %v3687 = vadd.f32 %v3398, %v3686
  %v3688 = vpop.f32.mrb[0].mxu0
  %v3689 = vpop.f32.mrb[0].mxu0
  %v3690 = vadd.f32 %v3401, %v3689
  %v3691 = vpop.f32.mrb[0].mxu0
  %3692 = vmatprep.mubr.bf16.mxu0 %v2073
  %3693 = vmatmul.mubr.bf16.gmra.mrb[0].mxu0 %v1977
  %v3694 = vpop.f32.mrb[0].mxu0
  %v3695 = vadd.f32 %v3406, %v3694
  %v3696 = vpop.f32.mrb[0].mxu0
  %v3697 = vpop.f32.mrb[0].mxu0
  %v3698 = vadd.f32 %v3409, %v3697
  %v3699 = vpop.f32.mrb[0].mxu0
  %3700 = vmatprep.mubr.bf16.mxu0 %v2074
  %3701 = vmatmul.mubr.bf16.gmra.mrb[0].mxu0 %v1978
  %v3702 = vpop.f32.mrb[0].mxu0
  %v3703 = vadd.f32 %v3414, %v3702
  %v3704 = vpop.f32.mrb[0].mxu0
  %v3705 = vpop.f32.mrb[0].mxu0
  %v3706 = vadd.f32 %v3417, %v3705
  %v3707 = vpop.f32.mrb[0].mxu0
  %3708 = vmatprep.mubr.bf16.mxu0 %v2075
  %3709 = vmatmul.mubr.bf16.gmra.mrb[0].mxu0 %v1979
  %v3710 = vpop.f32.mrb[0].mxu0
  %v3711 = vadd.f32 %v3422, %v3710
  %v3712 = vpop.f32.mrb[0].mxu0
  %v3713 = vpop.f32.mrb[0].mxu0
  %v3714 = vadd.f32 %v3425, %v3713
  %v3715 = vpop.f32.mrb[0].mxu0
  %3716 = vmatprep.mubr.bf16.mxu0 %v2076
  %3717 = vmatmul.mubr.bf16.gmra.mrb[0].mxu0 %v1980
  %v3718 = vpop.f32.mrb[0].mxu0
  %v3719 = vadd.f32 %v3430, %v3718
  %v3720 = vpop.f32.mrb[0].mxu0
  %v3721 = vpop.f32.mrb[0].mxu0
  %v3722 = vadd.f32 %v3433, %v3721
  %v3723 = vpop.f32.mrb[0].mxu0
  %3724 = vmatprep.mubr.bf16.mxu0 %v2077
  %3725 = vmatmul.mubr.bf16.gmra.mrb[0].mxu0 %v1981
  %v3726 = vpop.f32.mrb[0].mxu0
  %v3727 = vadd.f32 %v3438, %v3726
  %v3728 = vpop.f32.mrb[0].mxu0
  %v3729 = vpop.f32.mrb[0].mxu0
  %v3730 = vadd.f32 %v3441, %v3729
  %v3731 = vpop.f32.mrb[0].mxu0
  %3732 = vmatprep.mubr.bf16.mxu0 %v2078
  %3733 = vmatmul.mubr.bf16.gmra.mrb[0].mxu0 %v1982
  %v3734 = vpop.f32.mrb[0].mxu0
  %v3735 = vadd.f32 %v3446, %v3734
  %v3736 = vpop.f32.mrb[0].mxu0
  %v3737 = vpop.f32.mrb[0].mxu0
  %v3738 = vadd.f32 %v3449, %v3737
  %v3739 = vpop.f32.mrb[0].mxu0
  %3740 = vmatprep.mubr.bf16.mxu0 %v2079
  %3741 = vmatmul.mubr.bf16.gmra.mrb[0].mxu0 %v1983
  %v3742 = vpop.f32.mrb[0].mxu0
  %v3743 = vadd.f32 %v3454, %v3742
  %v3744 = vpop.f32.mrb[0].mxu0
  %v3745 = vpop.f32.mrb[0].mxu0
  %v3746 = vadd.f32 %v3457, %v3745
  %v3747 = vpop.f32.mrb[0].mxu0
  %3748 = vmatprep.mubr.bf16.mxu0 %v2080
  %3749 = vmatmul.mubr.bf16.gmra.mrb[0].mxu0 %v1984
  %v3750 = vpop.f32.mrb[0].mxu0
  %v3751 = vadd.f32 %v3462, %v3750
  %v3752 = vpop.f32.mrb[0].mxu0
  %v3753 = vpop.f32.mrb[0].mxu0
  %v3754 = vadd.f32 %v3465, %v3753
  %v3755 = vpop.f32.mrb[0].mxu0
  %3756 = vmatprep.mubr.bf16.mxu0 %v2081
  %3757 = vmatmul.mubr.bf16.gmra.mrb[0].mxu0 %v1985
  %v3758 = vpop.f32.mrb[0].mxu0
  %v3759 = vadd.f32 %v3470, %v3758
  %v3760 = vpop.f32.mrb[0].mxu0
  %v3761 = vpop.f32.mrb[0].mxu0
  %v3762 = vadd.f32 %v3473, %v3761
  %v3763 = vpop.f32.mrb[0].mxu0
  %3764 = vmatprep.mubr.bf16.mxu0 %v2082
  %3765 = vmatmul.mubr.bf16.gmra.mrb[0].mxu0 %v1986
  %v3766 = vpop.f32.mrb[0].mxu0
  %v3767 = vadd.f32 %v3478, %v3766
  %v3768 = vpop.f32.mrb[0].mxu0
  %v3769 = vpop.f32.mrb[0].mxu0
  %v3770 = vadd.f32 %v3481, %v3769
  %v3771 = vpop.f32.mrb[0].mxu0
  %3772 = vmatprep.mubr.bf16.mxu0 %v2083
  %3773 = vmatmul.mubr.bf16.gmra.mrb[0].mxu0 %v1987
  %v3774 = vpop.f32.mrb[0].mxu0
  %v3775 = vadd.f32 %v3486, %v3774
  %v3776 = vpop.f32.mrb[0].mxu0
  %v3777 = vpop.f32.mrb[0].mxu0
  %v3778 = vadd.f32 %v3489, %v3777
  %v3779 = vpop.f32.mrb[0].mxu0
  %3780 = vmatprep.mubr.bf16.mxu0 %v2084
  %3781 = vmatmul.mubr.bf16.gmra.mrb[0].mxu0 %v1988
  %v3782 = vpop.f32.mrb[0].mxu0
  %v3783 = vadd.f32 %v3494, %v3782
  %v3784 = vpop.f32.mrb[0].mxu0
  %v3785 = vpop.f32.mrb[0].mxu0
  %v3786 = vadd.f32 %v3497, %v3785
  %v3787 = vpop.f32.mrb[0].mxu0
  %3788 = vmatprep.mubr.bf16.mxu0 %v2085
  %3789 = vmatmul.mubr.bf16.gmra.mrb[0].mxu0 %v1989
  %v3790 = vpop.f32.mrb[0].mxu0
  %v3791 = vadd.f32 %v3502, %v3790
  %v3792 = vpop.f32.mrb[0].mxu0
  %v3793 = vpop.f32.mrb[0].mxu0
  %v3794 = vadd.f32 %v3505, %v3793
  %v3795 = vpop.f32.mrb[0].mxu0
  %3796 = vmatprep.mubr.bf16.mxu0 %v2086
  %3797 = vmatmul.mubr.bf16.gmra.mrb[0].mxu0 %v1990
  %v3798 = vpop.f32.mrb[0].mxu0
  %v3799 = vadd.f32 %v3510, %v3798
  %v3800 = vpop.f32.mrb[0].mxu0
  %v3801 = vpop.f32.mrb[0].mxu0
  %v3802 = vadd.f32 %v3513, %v3801
  %v3803 = vpop.f32.mrb[0].mxu0
  %3804 = vmatprep.mubr.bf16.mxu0 %v2087
  %3805 = vmatmul.mubr.bf16.gmra.mrb[0].mxu0 %v1991
  %v3806 = vpop.f32.mrb[0].mxu0
  %v3807 = vadd.f32 %v3518, %v3806
  %v3808 = vpop.f32.mrb[0].mxu0
  %v3809 = vpop.f32.mrb[0].mxu0
  %v3810 = vadd.f32 %v3521, %v3809
  %v3811 = vpop.f32.mrb[0].mxu0
  %3812 = vmatprep.mubr.bf16.mxu0 %v2088
  %3813 = vmatmul.mubr.bf16.gmra.mrb[0].mxu0 %v1992
  %v3814 = vpop.f32.mrb[0].mxu0
  %v3815 = vadd.f32 %v3526, %v3814
  %v3816 = vpop.f32.mrb[0].mxu0
  %v3817 = vpop.f32.mrb[0].mxu0
  %v3818 = vadd.f32 %v3529, %v3817
  %v3819 = vpop.f32.mrb[0].mxu0
  %3820 = vdwg.mxu0
  %3821 = vmatprep.subr.bf16.mxu0 0
  %3822 = vmatpush1.bf16.msra.mxu0 %v2858
  %3823 = vmatprep.subr.bf16.mxu0 0
  %3824 = vmatpush1.bf16.msra.mxu0 %v2859
  %3825 = vmatprep.subr.bf16.mxu0 0
  %3826 = vmatpush1.bf16.msra.mxu0 %v2860
  %3827 = vmatprep.subr.bf16.mxu0 0
  %3828 = vmatpush1.bf16.msra.mxu0 %v2861
  %3829 = vmatprep.subr.bf16.mxu0 0
  %3830 = vmatpush1.bf16.msra.mxu0 %v2862
  %3831 = vmatprep.subr.bf16.mxu0 0
  %3832 = vmatpush1.bf16.msra.mxu0 %v2863
  %3833 = vmatprep.subr.bf16.mxu0 0
  %3834 = vmatpush1.bf16.msra.mxu0 %v2864
  %3835 = vmatprep.subr.bf16.mxu0 0
  %3836 = vmatpush1.bf16.msra.mxu0 %v2865
  %3837 = vmatprep.subr.bf16.mxu0 0
  %3838 = vmatpush1.bf16.msra.mxu0 %v2866
  %3839 = vmatprep.subr.bf16.mxu0 0
  %3840 = vmatpush1.bf16.msra.mxu0 %v2867
  %3841 = vmatprep.subr.bf16.mxu0 0
  %3842 = vmatpush1.bf16.msra.mxu0 %v2868
  %3843 = vmatprep.subr.bf16.mxu0 0
  %3844 = vmatpush1.bf16.msra.mxu0 %v2869
  %3845 = vmatprep.subr.bf16.mxu0 0
  %3846 = vmatpush1.bf16.msra.mxu0 %v2870
  %3847 = vmatprep.subr.bf16.mxu0 0
  %3848 = vmatpush1.bf16.msra.mxu0 %v2871
  %3849 = vmatprep.subr.bf16.mxu0 0
  %3850 = vmatpush1.bf16.msra.mxu0 %v2872
  %3851 = vmatprep.subr.bf16.mxu0 0
  %3852 = vmatpush1.bf16.msra.mxu0 %v2873
  %3853 = vmatprep.mubr.bf16.mxu0 %v2250
  %3854 = vmatmul.mubr.bf16.gmra.mrb[0].mxu0 %v2154
  %v3855 = vpop.f32.mrb[0].mxu0
  %v3856 = vadd.f32 %v3567, %v3855
  %v3857 = vpop.f32.mrb[0].mxu0
  %v3858 = vpop.f32.mrb[0].mxu0
  %v3859 = vadd.f32 %v3570, %v3858
  %v3860 = vpop.f32.mrb[0].mxu0
  %3861 = vmatprep.mubr.bf16.mxu0 %v2251
  %3862 = vmatmul.mubr.bf16.gmra.mrb[0].mxu0 %v2155
  %v3863 = vpop.f32.mrb[0].mxu0
  %v3864 = vadd.f32 %v3575, %v3863
  %v3865 = vpop.f32.mrb[0].mxu0
  %v3866 = vpop.f32.mrb[0].mxu0
  %v3867 = vadd.f32 %v3578, %v3866
  %v3868 = vpop.f32.mrb[0].mxu0
  %3869 = vmatprep.mubr.bf16.mxu0 %v2252
  %3870 = vmatmul.mubr.bf16.gmra.mrb[0].mxu0 %v2156
  %v3871 = vpop.f32.mrb[0].mxu0
  %v3872 = vadd.f32 %v3583, %v3871
  %v3873 = vpop.f32.mrb[0].mxu0
  %v3874 = vpop.f32.mrb[0].mxu0
  %v3875 = vadd.f32 %v3586, %v3874
  %v3876 = vpop.f32.mrb[0].mxu0
  %3877 = vmatprep.mubr.bf16.mxu0 %v2253
  %3878 = vmatmul.mubr.bf16.gmra.mrb[0].mxu0 %v2157
  %v3879 = vpop.f32.mrb[0].mxu0
  %v3880 = vadd.f32 %v3591, %v3879
  %v3881 = vpop.f32.mrb[0].mxu0
  %v3882 = vpop.f32.mrb[0].mxu0
  %v3883 = vadd.f32 %v3594, %v3882
  %v3884 = vpop.f32.mrb[0].mxu0
  %3885 = vmatprep.mubr.bf16.mxu0 %v2254
  %3886 = vmatmul.mubr.bf16.gmra.mrb[0].mxu0 %v2158
  %v3887 = vpop.f32.mrb[0].mxu0
  %v3888 = vadd.f32 %v3599, %v3887
  %v3889 = vpop.f32.mrb[0].mxu0
  %v3890 = vpop.f32.mrb[0].mxu0
  %v3891 = vadd.f32 %v3602, %v3890
  %v3892 = vpop.f32.mrb[0].mxu0
  %3893 = vmatprep.mubr.bf16.mxu0 %v2255
  %3894 = vmatmul.mubr.bf16.gmra.mrb[0].mxu0 %v2159
  %v3895 = vpop.f32.mrb[0].mxu0
  %v3896 = vadd.f32 %v3607, %v3895
  %v3897 = vpop.f32.mrb[0].mxu0
  %v3898 = vpop.f32.mrb[0].mxu0
  %v3899 = vadd.f32 %v3610, %v3898
  %v3900 = vpop.f32.mrb[0].mxu0
  %3901 = vmatprep.mubr.bf16.mxu0 %v2256
  %3902 = vmatmul.mubr.bf16.gmra.mrb[0].mxu0 %v2160
  %v3903 = vpop.f32.mrb[0].mxu0
  %v3904 = vadd.f32 %v3615, %v3903
  %v3905 = vpop.f32.mrb[0].mxu0
  %v3906 = vpop.f32.mrb[0].mxu0
  %v3907 = vadd.f32 %v3618, %v3906
  %v3908 = vpop.f32.mrb[0].mxu0
  %3909 = vmatprep.mubr.bf16.mxu0 %v2257
  %3910 = vmatmul.mubr.bf16.gmra.mrb[0].mxu0 %v2161
  %v3911 = vpop.f32.mrb[0].mxu0
  %v3912 = vadd.f32 %v3623, %v3911
  %v3913 = vpop.f32.mrb[0].mxu0
  %v3914 = vpop.f32.mrb[0].mxu0
  %v3915 = vadd.f32 %v3626, %v3914
  %v3916 = vpop.f32.mrb[0].mxu0
  %3917 = vmatprep.mubr.bf16.mxu0 %v2258
  %3918 = vmatmul.mubr.bf16.gmra.mrb[0].mxu0 %v2162
  %v3919 = vpop.f32.mrb[0].mxu0
  %v3920 = vadd.f32 %v3631, %v3919
  %v3921 = vpop.f32.mrb[0].mxu0
  %v3922 = vpop.f32.mrb[0].mxu0
  %v3923 = vadd.f32 %v3634, %v3922
  %v3924 = vpop.f32.mrb[0].mxu0
  %3925 = vmatprep.mubr.bf16.mxu0 %v2259
  %3926 = vmatmul.mubr.bf16.gmra.mrb[0].mxu0 %v2163
  %v3927 = vpop.f32.mrb[0].mxu0
  %v3928 = vadd.f32 %v3639, %v3927
  %v3929 = vpop.f32.mrb[0].mxu0
  %v3930 = vpop.f32.mrb[0].mxu0
  %v3931 = vadd.f32 %v3642, %v3930
  %v3932 = vpop.f32.mrb[0].mxu0
  %3933 = vmatprep.mubr.bf16.mxu0 %v2260
  %3934 = vmatmul.mubr.bf16.gmra.mrb[0].mxu0 %v2164
  %v3935 = vpop.f32.mrb[0].mxu0
  %v3936 = vadd.f32 %v3647, %v3935
  %v3937 = vpop.f32.mrb[0].mxu0
  %v3938 = vpop.f32.mrb[0].mxu0
  %v3939 = vadd.f32 %v3650, %v3938
  %v3940 = vpop.f32.mrb[0].mxu0
  %3941 = vmatprep.mubr.bf16.mxu0 %v2261
  %3942 = vmatmul.mubr.bf16.gmra.mrb[0].mxu0 %v2165
  %v3943 = vpop.f32.mrb[0].mxu0
  %v3944 = vadd.f32 %v3655, %v3943
  %v3945 = vpop.f32.mrb[0].mxu0
  %v3946 = vpop.f32.mrb[0].mxu0
  %v3947 = vadd.f32 %v3658, %v3946
  %v3948 = vpop.f32.mrb[0].mxu0
  %3949 = vmatprep.mubr.bf16.mxu0 %v2262
  %3950 = vmatmul.mubr.bf16.gmra.mrb[0].mxu0 %v2166
  %v3951 = vpop.f32.mrb[0].mxu0
  %v3952 = vadd.f32 %v3663, %v3951
  %v3953 = vpop.f32.mrb[0].mxu0
  %v3954 = vpop.f32.mrb[0].mxu0
  %v3955 = vadd.f32 %v3666, %v3954
  %v3956 = vpop.f32.mrb[0].mxu0
  %3957 = vmatprep.mubr.bf16.mxu0 %v2263
  %3958 = vmatmul.mubr.bf16.gmra.mrb[0].mxu0 %v2167
  %v3959 = vpop.f32.mrb[0].mxu0
  %v3960 = vadd.f32 %v3671, %v3959
  %v3961 = vpop.f32.mrb[0].mxu0
  %v3962 = vpop.f32.mrb[0].mxu0
  %v3963 = vadd.f32 %v3674, %v3962
  %v3964 = vpop.f32.mrb[0].mxu0
  %3965 = vmatprep.mubr.bf16.mxu0 %v2264
  %3966 = vmatmul.mubr.bf16.gmra.mrb[0].mxu0 %v2168
  %v3967 = vpop.f32.mrb[0].mxu0
  %v3968 = vadd.f32 %v3679, %v3967
  %v3969 = vpop.f32.mrb[0].mxu0
  %v3970 = vpop.f32.mrb[0].mxu0
  %v3971 = vadd.f32 %v3682, %v3970
  %v3972 = vpop.f32.mrb[0].mxu0
  %3973 = vmatprep.mubr.bf16.mxu0 %v2265
  %3974 = vmatmul.mubr.bf16.gmra.mrb[0].mxu0 %v2169
  %v3975 = vpop.f32.mrb[0].mxu0
  %v3976 = vadd.f32 %v3687, %v3975
  %v3977 = vpop.f32.mrb[0].mxu0
  %v3978 = vpop.f32.mrb[0].mxu0
  %v3979 = vadd.f32 %v3690, %v3978
  %v3980 = vpop.f32.mrb[0].mxu0
  %3981 = vmatprep.mubr.bf16.mxu0 %v2266
  %3982 = vmatmul.mubr.bf16.gmra.mrb[0].mxu0 %v2170
  %v3983 = vpop.f32.mrb[0].mxu0
  %v3984 = vadd.f32 %v3695, %v3983
  %v3985 = vpop.f32.mrb[0].mxu0
  %v3986 = vpop.f32.mrb[0].mxu0
  %v3987 = vadd.f32 %v3698, %v3986
  %v3988 = vpop.f32.mrb[0].mxu0
  %3989 = vmatprep.mubr.bf16.mxu0 %v2267
  %3990 = vmatmul.mubr.bf16.gmra.mrb[0].mxu0 %v2171
  %v3991 = vpop.f32.mrb[0].mxu0
  %v3992 = vadd.f32 %v3703, %v3991
  %v3993 = vpop.f32.mrb[0].mxu0
  %v3994 = vpop.f32.mrb[0].mxu0
  %v3995 = vadd.f32 %v3706, %v3994
  %v3996 = vpop.f32.mrb[0].mxu0
  %3997 = vmatprep.mubr.bf16.mxu0 %v2268
  %3998 = vmatmul.mubr.bf16.gmra.mrb[0].mxu0 %v2172
  %v3999 = vpop.f32.mrb[0].mxu0
  %v4000 = vadd.f32 %v3711, %v3999
  %v4001 = vpop.f32.mrb[0].mxu0
  %v4002 = vpop.f32.mrb[0].mxu0
  %v4003 = vadd.f32 %v3714, %v4002
  %v4004 = vpop.f32.mrb[0].mxu0
  %4005 = vmatprep.mubr.bf16.mxu0 %v2269
  %4006 = vmatmul.mubr.bf16.gmra.mrb[0].mxu0 %v2173
  %v4007 = vpop.f32.mrb[0].mxu0
  %v4008 = vadd.f32 %v3719, %v4007
  %v4009 = vpop.f32.mrb[0].mxu0
  %v4010 = vpop.f32.mrb[0].mxu0
  %v4011 = vadd.f32 %v3722, %v4010
  %v4012 = vpop.f32.mrb[0].mxu0
  %4013 = vmatprep.mubr.bf16.mxu0 %v2270
  %4014 = vmatmul.mubr.bf16.gmra.mrb[0].mxu0 %v2174
  %v4015 = vpop.f32.mrb[0].mxu0
  %v4016 = vadd.f32 %v3727, %v4015
  %v4017 = vpop.f32.mrb[0].mxu0
  %v4018 = vpop.f32.mrb[0].mxu0
  %v4019 = vadd.f32 %v3730, %v4018
  %v4020 = vpop.f32.mrb[0].mxu0
  %4021 = vmatprep.mubr.bf16.mxu0 %v2271
  %4022 = vmatmul.mubr.bf16.gmra.mrb[0].mxu0 %v2175
  %v4023 = vpop.f32.mrb[0].mxu0
  %v4024 = vadd.f32 %v3735, %v4023
  %v4025 = vpop.f32.mrb[0].mxu0
  %v4026 = vpop.f32.mrb[0].mxu0
  %v4027 = vadd.f32 %v3738, %v4026
  %v4028 = vpop.f32.mrb[0].mxu0
  %4029 = vmatprep.mubr.bf16.mxu0 %v2272
  %4030 = vmatmul.mubr.bf16.gmra.mrb[0].mxu0 %v2176
  %v4031 = vpop.f32.mrb[0].mxu0
  %v4032 = vadd.f32 %v3743, %v4031
  %v4033 = vpop.f32.mrb[0].mxu0
  %v4034 = vpop.f32.mrb[0].mxu0
  %v4035 = vadd.f32 %v3746, %v4034
  %v4036 = vpop.f32.mrb[0].mxu0
  %4037 = vmatprep.mubr.bf16.mxu0 %v2273
  %4038 = vmatmul.mubr.bf16.gmra.mrb[0].mxu0 %v2177
  %v4039 = vpop.f32.mrb[0].mxu0
  %v4040 = vadd.f32 %v3751, %v4039
  %v4041 = vpop.f32.mrb[0].mxu0
  %v4042 = vpop.f32.mrb[0].mxu0
  %v4043 = vadd.f32 %v3754, %v4042
  %v4044 = vpop.f32.mrb[0].mxu0
  %4045 = vmatprep.mubr.bf16.mxu0 %v2274
  %4046 = vmatmul.mubr.bf16.gmra.mrb[0].mxu0 %v2178
  %v4047 = vpop.f32.mrb[0].mxu0
  %v4048 = vadd.f32 %v3759, %v4047
  %v4049 = vpop.f32.mrb[0].mxu0
  %v4050 = vpop.f32.mrb[0].mxu0
  %v4051 = vadd.f32 %v3762, %v4050
  %v4052 = vpop.f32.mrb[0].mxu0
  %4053 = vmatprep.mubr.bf16.mxu0 %v2275
  %4054 = vmatmul.mubr.bf16.gmra.mrb[0].mxu0 %v2179
  %v4055 = vpop.f32.mrb[0].mxu0
  %v4056 = vadd.f32 %v3767, %v4055
  %v4057 = vpop.f32.mrb[0].mxu0
  %v4058 = vpop.f32.mrb[0].mxu0
  %v4059 = vadd.f32 %v3770, %v4058
  %v4060 = vpop.f32.mrb[0].mxu0
  %4061 = vmatprep.mubr.bf16.mxu0 %v2276
  %4062 = vmatmul.mubr.bf16.gmra.mrb[0].mxu0 %v2180
  %v4063 = vpop.f32.mrb[0].mxu0
  %v4064 = vadd.f32 %v3775, %v4063
  %v4065 = vpop.f32.mrb[0].mxu0
  %v4066 = vpop.f32.mrb[0].mxu0
  %v4067 = vadd.f32 %v3778, %v4066
  %v4068 = vpop.f32.mrb[0].mxu0
  %4069 = vmatprep.mubr.bf16.mxu0 %v2277
  %4070 = vmatmul.mubr.bf16.gmra.mrb[0].mxu0 %v2181
  %v4071 = vpop.f32.mrb[0].mxu0
  %v4072 = vadd.f32 %v3783, %v4071
  %v4073 = vpop.f32.mrb[0].mxu0
  %v4074 = vpop.f32.mrb[0].mxu0
  %v4075 = vadd.f32 %v3786, %v4074
  %v4076 = vpop.f32.mrb[0].mxu0
  %4077 = vmatprep.mubr.bf16.mxu0 %v2278
  %4078 = vmatmul.mubr.bf16.gmra.mrb[0].mxu0 %v2182
  %v4079 = vpop.f32.mrb[0].mxu0
  %v4080 = vadd.f32 %v3791, %v4079
  %v4081 = vpop.f32.mrb[0].mxu0
  %v4082 = vpop.f32.mrb[0].mxu0
  %v4083 = vadd.f32 %v3794, %v4082
  %v4084 = vpop.f32.mrb[0].mxu0
  %4085 = vmatprep.mubr.bf16.mxu0 %v2279
  %4086 = vmatmul.mubr.bf16.gmra.mrb[0].mxu0 %v2183
  %v4087 = vpop.f32.mrb[0].mxu0
  %v4088 = vadd.f32 %v3799, %v4087
  %v4089 = vpop.f32.mrb[0].mxu0
  %v4090 = vpop.f32.mrb[0].mxu0
  %v4091 = vadd.f32 %v3802, %v4090
  %v4092 = vpop.f32.mrb[0].mxu0
  %4093 = vmatprep.mubr.bf16.mxu0 %v2280
  %4094 = vmatmul.mubr.bf16.gmra.mrb[0].mxu0 %v2184
  %v4095 = vpop.f32.mrb[0].mxu0
  %v4096 = vadd.f32 %v3807, %v4095
  %v4097 = vpop.f32.mrb[0].mxu0
  %v4098 = vpop.f32.mrb[0].mxu0
  %v4099 = vadd.f32 %v3810, %v4098
  %v4100 = vpop.f32.mrb[0].mxu0
  %4101 = vmatprep.mubr.bf16.mxu0 %v2281
  %4102 = vmatmul.mubr.bf16.gmra.mrb[0].mxu0 %v2185
  %v4103 = vpop.f32.mrb[0].mxu0
  %v4104 = vadd.f32 %v3815, %v4103
  %v4105 = vpop.f32.mrb[0].mxu0
  %v4106 = vpop.f32.mrb[0].mxu0
  %v4107 = vadd.f32 %v3818, %v4106
  %v4108 = vpop.f32.mrb[0].mxu0
  %4109 = vdwg.mxu0
  %4110 = vmatprep.subr.bf16.mxu0 0
  %4111 = vmatpush1.bf16.msra.mxu0 %v2874
  %4112 = vmatprep.subr.bf16.mxu0 0
  %4113 = vmatpush1.bf16.msra.mxu0 %v2875
  %4114 = vmatprep.subr.bf16.mxu0 0
  %4115 = vmatpush1.bf16.msra.mxu0 %v2876
  %4116 = vmatprep.subr.bf16.mxu0 0
  %4117 = vmatpush1.bf16.msra.mxu0 %v2877
  %4118 = vmatprep.subr.bf16.mxu0 0
  %4119 = vmatpush1.bf16.msra.mxu0 %v2878
  %4120 = vmatprep.subr.bf16.mxu0 0
  %4121 = vmatpush1.bf16.msra.mxu0 %v2879
  %4122 = vmatprep.subr.bf16.mxu0 0
  %4123 = vmatpush1.bf16.msra.mxu0 %v2880
  %4124 = vmatprep.subr.bf16.mxu0 0
  %4125 = vmatpush1.bf16.msra.mxu0 %v2881
  %4126 = vmatprep.subr.bf16.mxu0 0
  %4127 = vmatpush1.bf16.msra.mxu0 0
  %4128 = vmatprep.subr.bf16.mxu0 0
  %4129 = vmatpush1.bf16.msra.mxu0 0
  %4130 = vmatprep.subr.bf16.mxu0 0
  %4131 = vmatpush1.bf16.msra.mxu0 0
  %4132 = vmatprep.subr.bf16.mxu0 0
  %4133 = vmatpush1.bf16.msra.mxu0 0
  %4134 = vmatprep.subr.bf16.mxu0 0
  %4135 = vmatpush1.bf16.msra.mxu0 0
  %4136 = vmatprep.subr.bf16.mxu0 0
  %4137 = vmatpush1.bf16.msra.mxu0 0
  %4138 = vmatprep.subr.bf16.mxu0 0
  %4139 = vmatpush1.bf16.msra.mxu0 0
  %4140 = vmatprep.subr.bf16.mxu0 0
  %4141 = vmatpush1.bf16.msra.mxu0 0
  %4142 = vmatprep.mubr.bf16.mxu0 0
  %4143 = vmatmul.mubr.bf16.gmra.mrb[0].mxu0 %v2346
  %v4144 = vpop.f32.mrb[0].mxu0
  %v4145 = vadd.f32 %v3856, %v4144
  %v4146 = vpop.f32.mrb[0].mxu0
  %v4147 = vpop.f32.mrb[0].mxu0
  %v4148 = vadd.f32 %v3859, %v4147
  %v4149 = vpop.f32.mrb[0].mxu0
  %4150 = vmatprep.mubr.bf16.mxu0 0
  %4151 = vmatmul.mubr.bf16.gmra.mrb[0].mxu0 %v2347
  %v4152 = vpop.f32.mrb[0].mxu0
  %v4153 = vadd.f32 %v3864, %v4152
  %v4154 = vpop.f32.mrb[0].mxu0
  %v4155 = vpop.f32.mrb[0].mxu0
  %v4156 = vadd.f32 %v3867, %v4155
  %v4157 = vpop.f32.mrb[0].mxu0
  %4158 = vmatprep.mubr.bf16.mxu0 0
  %4159 = vmatmul.mubr.bf16.gmra.mrb[0].mxu0 %v2348
  %v4160 = vpop.f32.mrb[0].mxu0
  %v4161 = vadd.f32 %v3872, %v4160
  %v4162 = vpop.f32.mrb[0].mxu0
  %v4163 = vpop.f32.mrb[0].mxu0
  %v4164 = vadd.f32 %v3875, %v4163
  %v4165 = vpop.f32.mrb[0].mxu0
  %4166 = vmatprep.mubr.bf16.mxu0 0
  %4167 = vmatmul.mubr.bf16.gmra.mrb[0].mxu0 %v2349
  %v4168 = vpop.f32.mrb[0].mxu0
  %v4169 = vadd.f32 %v3880, %v4168
  %v4170 = vpop.f32.mrb[0].mxu0
  %v4171 = vpop.f32.mrb[0].mxu0
  %v4172 = vadd.f32 %v3883, %v4171
  %v4173 = vpop.f32.mrb[0].mxu0
  %4174 = vmatprep.mubr.bf16.mxu0 0
  %4175 = vmatmul.mubr.bf16.gmra.mrb[0].mxu0 %v2350
  %v4176 = vpop.f32.mrb[0].mxu0
  %v4177 = vadd.f32 %v3888, %v4176
  %v4178 = vpop.f32.mrb[0].mxu0
  %v4179 = vpop.f32.mrb[0].mxu0
  %v4180 = vadd.f32 %v3891, %v4179
  %v4181 = vpop.f32.mrb[0].mxu0
  %4182 = vmatprep.mubr.bf16.mxu0 0
  %4183 = vmatmul.mubr.bf16.gmra.mrb[0].mxu0 %v2351
  %v4184 = vpop.f32.mrb[0].mxu0
  %v4185 = vadd.f32 %v3896, %v4184
  %v4186 = vpop.f32.mrb[0].mxu0
  %v4187 = vpop.f32.mrb[0].mxu0
  %v4188 = vadd.f32 %v3899, %v4187
  %v4189 = vpop.f32.mrb[0].mxu0
  %4190 = vmatprep.mubr.bf16.mxu0 0
  %4191 = vmatmul.mubr.bf16.gmra.mrb[0].mxu0 %v2352
  %v4192 = vpop.f32.mrb[0].mxu0
  %v4193 = vadd.f32 %v3904, %v4192
  %v4194 = vpop.f32.mrb[0].mxu0
  %v4195 = vpop.f32.mrb[0].mxu0
  %v4196 = vadd.f32 %v3907, %v4195
  %v4197 = vpop.f32.mrb[0].mxu0
  %4198 = vmatprep.mubr.bf16.mxu0 0
  %4199 = vmatmul.mubr.bf16.gmra.mrb[0].mxu0 %v2353
  %v4200 = vpop.f32.mrb[0].mxu0
  %v4201 = vadd.f32 %v3912, %v4200
  %v4202 = vpop.f32.mrb[0].mxu0
  %v4203 = vpop.f32.mrb[0].mxu0
  %v4204 = vadd.f32 %v3915, %v4203
  %v4205 = vpop.f32.mrb[0].mxu0
  %4206 = vmatprep.mubr.bf16.mxu0 0
  %4207 = vmatmul.mubr.bf16.gmra.mrb[0].mxu0 %v2354
  %v4208 = vpop.f32.mrb[0].mxu0
  %v4209 = vadd.f32 %v3920, %v4208
  %v4210 = vpop.f32.mrb[0].mxu0
  %v4211 = vpop.f32.mrb[0].mxu0
  %v4212 = vadd.f32 %v3923, %v4211
  %v4213 = vpop.f32.mrb[0].mxu0
  %4214 = vmatprep.mubr.bf16.mxu0 0
  %4215 = vmatmul.mubr.bf16.gmra.mrb[0].mxu0 %v2355
  %v4216 = vpop.f32.mrb[0].mxu0
  %v4217 = vadd.f32 %v3928, %v4216
  %v4218 = vpop.f32.mrb[0].mxu0
  %v4219 = vpop.f32.mrb[0].mxu0
  %v4220 = vadd.f32 %v3931, %v4219
  %v4221 = vpop.f32.mrb[0].mxu0
  %4222 = vmatprep.mubr.bf16.mxu0 0
  %4223 = vmatmul.mubr.bf16.gmra.mrb[0].mxu0 %v2356
  %v4224 = vpop.f32.mrb[0].mxu0
  %v4225 = vadd.f32 %v3936, %v4224
  %v4226 = vpop.f32.mrb[0].mxu0
  %v4227 = vpop.f32.mrb[0].mxu0
  %v4228 = vadd.f32 %v3939, %v4227
  %v4229 = vpop.f32.mrb[0].mxu0
  %4230 = vmatprep.mubr.bf16.mxu0 0
  %4231 = vmatmul.mubr.bf16.gmra.mrb[0].mxu0 %v2357
  %v4232 = vpop.f32.mrb[0].mxu0
  %v4233 = vadd.f32 %v3944, %v4232
  %v4234 = vpop.f32.mrb[0].mxu0
  %v4235 = vpop.f32.mrb[0].mxu0
  %v4236 = vadd.f32 %v3947, %v4235
  %v4237 = vpop.f32.mrb[0].mxu0
  %4238 = vmatprep.mubr.bf16.mxu0 0
  %4239 = vmatmul.mubr.bf16.gmra.mrb[0].mxu0 %v2358
  %v4240 = vpop.f32.mrb[0].mxu0
  %v4241 = vadd.f32 %v3952, %v4240
  %v4242 = vpop.f32.mrb[0].mxu0
  %v4243 = vpop.f32.mrb[0].mxu0
  %v4244 = vadd.f32 %v3955, %v4243
  %v4245 = vpop.f32.mrb[0].mxu0
  %4246 = vmatprep.mubr.bf16.mxu0 0
  %4247 = vmatmul.mubr.bf16.gmra.mrb[0].mxu0 %v2359
  %v4248 = vpop.f32.mrb[0].mxu0
  %v4249 = vadd.f32 %v3960, %v4248
  %v4250 = vpop.f32.mrb[0].mxu0
  %v4251 = vpop.f32.mrb[0].mxu0
  %v4252 = vadd.f32 %v3963, %v4251
  %v4253 = vpop.f32.mrb[0].mxu0
  %4254 = vmatprep.mubr.bf16.mxu0 0
  %4255 = vmatmul.mubr.bf16.gmra.mrb[0].mxu0 %v2360
  %v4256 = vpop.f32.mrb[0].mxu0
  %v4257 = vadd.f32 %v3968, %v4256
  %v4258 = vpop.f32.mrb[0].mxu0
  %v4259 = vpop.f32.mrb[0].mxu0
  %v4260 = vadd.f32 %v3971, %v4259
  %v4261 = vpop.f32.mrb[0].mxu0
  %4262 = vmatprep.mubr.bf16.mxu0 0
  %4263 = vmatmul.mubr.bf16.gmra.mrb[0].mxu0 %v2361
  %v4264 = vpop.f32.mrb[0].mxu0
  %v4265 = vadd.f32 %v3976, %v4264
  %v4266 = vpop.f32.mrb[0].mxu0
  %v4267 = vpop.f32.mrb[0].mxu0
  %v4268 = vadd.f32 %v3979, %v4267
  %v4269 = vpop.f32.mrb[0].mxu0
  %4270 = vmatprep.mubr.bf16.mxu0 0
  %4271 = vmatmul.mubr.bf16.gmra.mrb[0].mxu0 %v2362
  %v4272 = vpop.f32.mrb[0].mxu0
  %v4273 = vadd.f32 %v3984, %v4272
  %v4274 = vpop.f32.mrb[0].mxu0
  %v4275 = vpop.f32.mrb[0].mxu0
  %v4276 = vadd.f32 %v3987, %v4275
  %v4277 = vpop.f32.mrb[0].mxu0
  %4278 = vmatprep.mubr.bf16.mxu0 0
  %4279 = vmatmul.mubr.bf16.gmra.mrb[0].mxu0 %v2363
  %v4280 = vpop.f32.mrb[0].mxu0
  %v4281 = vadd.f32 %v3992, %v4280
  %v4282 = vpop.f32.mrb[0].mxu0
  %v4283 = vpop.f32.mrb[0].mxu0
  %v4284 = vadd.f32 %v3995, %v4283
  %v4285 = vpop.f32.mrb[0].mxu0
  %4286 = vmatprep.mubr.bf16.mxu0 0
  %4287 = vmatmul.mubr.bf16.gmra.mrb[0].mxu0 %v2364
  %v4288 = vpop.f32.mrb[0].mxu0
  %v4289 = vadd.f32 %v4000, %v4288
  %v4290 = vpop.f32.mrb[0].mxu0
  %v4291 = vpop.f32.mrb[0].mxu0
  %v4292 = vadd.f32 %v4003, %v4291
  %v4293 = vpop.f32.mrb[0].mxu0
  %4294 = vmatprep.mubr.bf16.mxu0 0
  %4295 = vmatmul.mubr.bf16.gmra.mrb[0].mxu0 %v2365
  %v4296 = vpop.f32.mrb[0].mxu0
  %v4297 = vadd.f32 %v4008, %v4296
  %v4298 = vpop.f32.mrb[0].mxu0
  %v4299 = vpop.f32.mrb[0].mxu0
  %v4300 = vadd.f32 %v4011, %v4299
  %v4301 = vpop.f32.mrb[0].mxu0
  %4302 = vmatprep.mubr.bf16.mxu0 0
  %4303 = vmatmul.mubr.bf16.gmra.mrb[0].mxu0 %v2366
  %v4304 = vpop.f32.mrb[0].mxu0
  %v4305 = vadd.f32 %v4016, %v4304
  %v4306 = vpop.f32.mrb[0].mxu0
  %v4307 = vpop.f32.mrb[0].mxu0
  %v4308 = vadd.f32 %v4019, %v4307
  %v4309 = vpop.f32.mrb[0].mxu0
  %4310 = vmatprep.mubr.bf16.mxu0 0
  %4311 = vmatmul.mubr.bf16.gmra.mrb[0].mxu0 %v2367
  %v4312 = vpop.f32.mrb[0].mxu0
  %v4313 = vadd.f32 %v4024, %v4312
  %v4314 = vpop.f32.mrb[0].mxu0
  %v4315 = vpop.f32.mrb[0].mxu0
  %v4316 = vadd.f32 %v4027, %v4315
  %v4317 = vpop.f32.mrb[0].mxu0
  %4318 = vmatprep.mubr.bf16.mxu0 0
  %4319 = vmatmul.mubr.bf16.gmra.mrb[0].mxu0 %v2368
  %v4320 = vpop.f32.mrb[0].mxu0
  %v4321 = vadd.f32 %v4032, %v4320
  %v4322 = vpop.f32.mrb[0].mxu0
  %v4323 = vpop.f32.mrb[0].mxu0
  %v4324 = vadd.f32 %v4035, %v4323
  %v4325 = vpop.f32.mrb[0].mxu0
  %4326 = vmatprep.mubr.bf16.mxu0 0
  %4327 = vmatmul.mubr.bf16.gmra.mrb[0].mxu0 %v2369
  %v4328 = vpop.f32.mrb[0].mxu0
  %v4329 = vadd.f32 %v4040, %v4328
  %v4330 = vpop.f32.mrb[0].mxu0
  %v4331 = vpop.f32.mrb[0].mxu0
  %v4332 = vadd.f32 %v4043, %v4331
  %v4333 = vpop.f32.mrb[0].mxu0
  %4334 = vmatprep.mubr.bf16.mxu0 0
  %4335 = vmatmul.mubr.bf16.gmra.mrb[0].mxu0 %v2370
  %v4336 = vpop.f32.mrb[0].mxu0
  %v4337 = vadd.f32 %v4048, %v4336
  %v4338 = vpop.f32.mrb[0].mxu0
  %v4339 = vpop.f32.mrb[0].mxu0
  %v4340 = vadd.f32 %v4051, %v4339
  %v4341 = vpop.f32.mrb[0].mxu0
  %4342 = vmatprep.mubr.bf16.mxu0 0
  %4343 = vmatmul.mubr.bf16.gmra.mrb[0].mxu0 %v2371
  %v4344 = vpop.f32.mrb[0].mxu0
  %v4345 = vadd.f32 %v4056, %v4344
  %v4346 = vpop.f32.mrb[0].mxu0
  %v4347 = vpop.f32.mrb[0].mxu0
  %v4348 = vadd.f32 %v4059, %v4347
  %v4349 = vpop.f32.mrb[0].mxu0
  %4350 = vmatprep.mubr.bf16.mxu0 0
  %4351 = vmatmul.mubr.bf16.gmra.mrb[0].mxu0 %v2372
  %v4352 = vpop.f32.mrb[0].mxu0
  %v4353 = vadd.f32 %v4064, %v4352
  %v4354 = vpop.f32.mrb[0].mxu0
  %v4355 = vpop.f32.mrb[0].mxu0
  %v4356 = vadd.f32 %v4067, %v4355
  %v4357 = vpop.f32.mrb[0].mxu0
  %4358 = vmatprep.mubr.bf16.mxu0 0
  %4359 = vmatmul.mubr.bf16.gmra.mrb[0].mxu0 %v2373
  %v4360 = vpop.f32.mrb[0].mxu0
  %v4361 = vadd.f32 %v4072, %v4360
  %v4362 = vpop.f32.mrb[0].mxu0
  %v4363 = vpop.f32.mrb[0].mxu0
  %v4364 = vadd.f32 %v4075, %v4363
  %v4365 = vpop.f32.mrb[0].mxu0
  %4366 = vmatprep.mubr.bf16.mxu0 0
  %4367 = vmatmul.mubr.bf16.gmra.mrb[0].mxu0 %v2374
  %v4368 = vpop.f32.mrb[0].mxu0
  %v4369 = vadd.f32 %v4080, %v4368
  %v4370 = vpop.f32.mrb[0].mxu0
  %v4371 = vpop.f32.mrb[0].mxu0
  %v4372 = vadd.f32 %v4083, %v4371
  %v4373 = vpop.f32.mrb[0].mxu0
  %4374 = vmatprep.mubr.bf16.mxu0 0
  %4375 = vmatmul.mubr.bf16.gmra.mrb[0].mxu0 %v2375
  %v4376 = vpop.f32.mrb[0].mxu0
  %v4377 = vadd.f32 %v4088, %v4376
  %v4378 = vpop.f32.mrb[0].mxu0
  %v4379 = vpop.f32.mrb[0].mxu0
  %v4380 = vadd.f32 %v4091, %v4379
  %v4381 = vpop.f32.mrb[0].mxu0
  %4382 = vmatprep.mubr.bf16.mxu0 0
  %4383 = vmatmul.mubr.bf16.gmra.mrb[0].mxu0 %v2376
  %v4384 = vpop.f32.mrb[0].mxu0
  %v4385 = vadd.f32 %v4096, %v4384
  %v4386 = vpop.f32.mrb[0].mxu0
  %v4387 = vpop.f32.mrb[0].mxu0
  %v4388 = vadd.f32 %v4099, %v4387
  %v4389 = vpop.f32.mrb[0].mxu0
  %4390 = vmatprep.mubr.bf16.mxu0 0
  %4391 = vmatmul.mubr.bf16.gmra.mrb[0].mxu0 %v2377
  %v4392 = vpop.f32.mrb[0].mxu0
  %v4393 = vadd.f32 %v4104, %v4392
  %v4394 = vpop.f32.mrb[0].mxu0
  %v4395 = vpop.f32.mrb[0].mxu0
  %v4396 = vadd.f32 %v4107, %v4395
  %v4397 = vpop.f32.mrb[0].mxu0
  %4398 = vdwg.mxu0
  %v4399 = vld [vmem:[%s5] sm:$0x1]
  %v4400 = vld [vmem:[%s6] sm:$0x1]
  %v4401 = vadd.f32 %v4145, %v4148
  %v4402 = vadd.f32 %v4401, %v4153
  %v4403 = vadd.f32 %v4402, %v4156
  %v4404 = vadd.f32 %v4403, %v4161
  %v4405 = vadd.f32 %v4404, %v4164
  %v4406 = vadd.f32 %v4405, %v4169
  %v4407 = vadd.f32 %v4406, %v4172
  %v4408 = vadd.f32 %v4407, %v4177
  %v4409 = vadd.f32 %v4408, %v4180
  %v4410 = vadd.f32 %v4409, %v4185
  %v4411 = vadd.f32 %v4410, %v4188
  %v4412 = vadd.f32 %v4411, %v4193
  %v4413 = vadd.f32 %v4412, %v4196
  %v4414 = vadd.f32 %v4413, %v4201
  %v4415 = vadd.f32 %v4414, %v4204
  %v4416 = vadd.f32 %v4415, %v4209
  %v4417 = vadd.f32 %v4416, %v4212
  %v4418 = vadd.f32 %v4417, %v4217
  %v4419 = vadd.f32 %v4418, %v4220
  %v4420 = vadd.f32 %v4419, %v4225
  %v4421 = vadd.f32 %v4420, %v4228
  %v4422 = vadd.f32 %v4421, %v4233
  %v4423 = vadd.f32 %v4422, %v4236
  %v4424 = vadd.f32 %v4423, %v4241
  %v4425 = vadd.f32 %v4424, %v4244
  %v4426 = vadd.f32 %v4425, %v4249
  %v4427 = vadd.f32 %v4426, %v4252
  %v4428 = vadd.f32 %v4427, %v4257
  %v4429 = vadd.f32 %v4428, %v4260
  %v4430 = vadd.f32 %v4429, %v4265
  %v4431 = vadd.f32 %v4430, %v4268
  %v4432 = vadd.f32 %v4431, %v4273
  %v4433 = vadd.f32 %v4432, %v4276
  %v4434 = vadd.f32 %v4433, %v4281
  %v4435 = vadd.f32 %v4434, %v4284
  %v4436 = vadd.f32 %v4435, %v4289
  %v4437 = vadd.f32 %v4436, %v4292
  %v4438 = vadd.f32 %v4437, %v4297
  %v4439 = vadd.f32 %v4438, %v4300
  %v4440 = vadd.f32 %v4439, %v4305
  %v4441 = vadd.f32 %v4440, %v4308
  %v4442 = vadd.f32 %v4441, %v4313
  %v4443 = vadd.f32 %v4442, %v4316
  %v4444 = vadd.f32 %v4443, %v4321
  %v4445 = vadd.f32 %v4444, %v4324
  %v4446 = vadd.f32 %v4445, %v4329
  %v4447 = vadd.f32 %v4446, %v4332
  %v4448 = vadd.f32 %v4447, %v4337
  %v4449 = vadd.f32 %v4448, %v4340
  %v4450 = vadd.f32 %v4449, %v4345
  %v4451 = vadd.f32 %v4450, %v4348
  %v4452 = vadd.f32 %v4451, %v4353
  %v4453 = vadd.f32 %v4452, %v4356
  %v4454 = vadd.f32 %v4453, %v4361
  %v4455 = vadd.f32 %v4454, %v4364
  %v4456 = vadd.f32 %v4455, %v4369
  %v4457 = vadd.f32 %v4456, %v4372
  %v4458 = vadd.f32 %v4457, %v4377
  %v4459 = vadd.f32 %v4458, %v4380
  %v4460 = vadd.f32 %v4459, %v4385
  %v4461 = vadd.f32 %v4460, %v4388
  %v4462 = vadd.f32 %v4461, %v4393
  %v4463 = vadd.f32 %v4462, %v4396
  %v4464 = vrot.slane %v4463, 4
  %v4465 = vadd.f32 %v4463, %v4464
  %v4466 = vrot.slane %v4465, 2
  %v4467 = vadd.f32 %v4465, %v4466
  %v4468 = vrot.slane %v4467, 1
  %v4469 = vadd.f32 %v4467, %v4468
  %v4470 = vmul.f32 %v4469, 0.001953125
  %v4471 = vsub.f32 %v4145, %v4470
  %v4472 = vsub.f32 %v4148, %v4470
  %v4473 = vsub.f32 %v4153, %v4470
  %v4474 = vsub.f32 %v4156, %v4470
  %v4475 = vsub.f32 %v4161, %v4470
  %v4476 = vsub.f32 %v4164, %v4470
  %v4477 = vsub.f32 %v4169, %v4470
  %v4478 = vsub.f32 %v4172, %v4470
  %v4479 = vsub.f32 %v4177, %v4470
  %v4480 = vsub.f32 %v4180, %v4470
  %v4481 = vsub.f32 %v4185, %v4470
  %v4482 = vsub.f32 %v4188, %v4470
  %v4483 = vsub.f32 %v4193, %v4470
  %v4484 = vsub.f32 %v4196, %v4470
  %v4485 = vsub.f32 %v4201, %v4470
  %v4486 = vsub.f32 %v4204, %v4470
  %v4487 = vsub.f32 %v4209, %v4470
  %v4488 = vsub.f32 %v4212, %v4470
  %v4489 = vsub.f32 %v4217, %v4470
  %v4490 = vsub.f32 %v4220, %v4470
  %v4491 = vsub.f32 %v4225, %v4470
  %v4492 = vsub.f32 %v4228, %v4470
  %v4493 = vsub.f32 %v4233, %v4470
  %v4494 = vsub.f32 %v4236, %v4470
  %v4495 = vsub.f32 %v4241, %v4470
  %v4496 = vsub.f32 %v4244, %v4470
  %v4497 = vsub.f32 %v4249, %v4470
  %v4498 = vsub.f32 %v4252, %v4470
  %v4499 = vsub.f32 %v4257, %v4470
  %v4500 = vsub.f32 %v4260, %v4470
  %v4501 = vsub.f32 %v4265, %v4470
  %v4502 = vsub.f32 %v4268, %v4470
  %v4503 = vsub.f32 %v4273, %v4470
  %v4504 = vsub.f32 %v4276, %v4470
  %v4505 = vsub.f32 %v4281, %v4470
  %v4506 = vsub.f32 %v4284, %v4470
  %v4507 = vsub.f32 %v4289, %v4470
  %v4508 = vsub.f32 %v4292, %v4470
  %v4509 = vsub.f32 %v4297, %v4470
  %v4510 = vsub.f32 %v4300, %v4470
  %v4511 = vsub.f32 %v4305, %v4470
  %v4512 = vsub.f32 %v4308, %v4470
  %v4513 = vsub.f32 %v4313, %v4470
  %v4514 = vsub.f32 %v4316, %v4470
  %v4515 = vsub.f32 %v4321, %v4470
  %v4516 = vsub.f32 %v4324, %v4470
  %v4517 = vsub.f32 %v4329, %v4470
  %v4518 = vsub.f32 %v4332, %v4470
  %v4519 = vsub.f32 %v4337, %v4470
  %v4520 = vsub.f32 %v4340, %v4470
  %v4521 = vsub.f32 %v4345, %v4470
  %v4522 = vsub.f32 %v4348, %v4470
  %v4523 = vsub.f32 %v4353, %v4470
  %v4524 = vsub.f32 %v4356, %v4470
  %v4525 = vsub.f32 %v4361, %v4470
  %v4526 = vsub.f32 %v4364, %v4470
  %v4527 = vsub.f32 %v4369, %v4470
  %v4528 = vsub.f32 %v4372, %v4470
  %v4529 = vsub.f32 %v4377, %v4470
  %v4530 = vsub.f32 %v4380, %v4470
  %v4531 = vsub.f32 %v4385, %v4470
  %v4532 = vsub.f32 %v4388, %v4470
  %v4533 = vsub.f32 %v4393, %v4470
  %v4534 = vsub.f32 %v4396, %v4470
  %v4535 = vmul.f32 %v4471, %v4471
  %v4536 = vmul.f32 %v4472, %v4472
  %v4537 = vmul.f32 %v4473, %v4473
  %v4538 = vmul.f32 %v4474, %v4474
  %v4539 = vmul.f32 %v4475, %v4475
  %v4540 = vmul.f32 %v4476, %v4476
  %v4541 = vmul.f32 %v4477, %v4477
  %v4542 = vmul.f32 %v4478, %v4478
  %v4543 = vmul.f32 %v4479, %v4479
  %v4544 = vmul.f32 %v4480, %v4480
  %v4545 = vmul.f32 %v4481, %v4481
  %v4546 = vmul.f32 %v4482, %v4482
  %v4547 = vmul.f32 %v4483, %v4483
  %v4548 = vmul.f32 %v4484, %v4484
  %v4549 = vmul.f32 %v4485, %v4485
  %v4550 = vmul.f32 %v4486, %v4486
  %v4551 = vmul.f32 %v4487, %v4487
  %v4552 = vmul.f32 %v4488, %v4488
  %v4553 = vmul.f32 %v4489, %v4489
  %v4554 = vmul.f32 %v4490, %v4490
  %v4555 = vmul.f32 %v4491, %v4491
  %v4556 = vmul.f32 %v4492, %v4492
  %v4557 = vmul.f32 %v4493, %v4493
  %v4558 = vmul.f32 %v4494, %v4494
  %v4559 = vmul.f32 %v4495, %v4495
  %v4560 = vmul.f32 %v4496, %v4496
  %v4561 = vmul.f32 %v4497, %v4497
  %v4562 = vmul.f32 %v4498, %v4498
  %v4563 = vmul.f32 %v4499, %v4499
  %v4564 = vmul.f32 %v4500, %v4500
  %v4565 = vmul.f32 %v4501, %v4501
  %v4566 = vmul.f32 %v4502, %v4502
  %v4567 = vmul.f32 %v4503, %v4503
  %v4568 = vmul.f32 %v4504, %v4504
  %v4569 = vmul.f32 %v4505, %v4505
  %v4570 = vmul.f32 %v4506, %v4506
  %v4571 = vmul.f32 %v4507, %v4507
  %v4572 = vmul.f32 %v4508, %v4508
  %v4573 = vmul.f32 %v4509, %v4509
  %v4574 = vmul.f32 %v4510, %v4510
  %v4575 = vmul.f32 %v4511, %v4511
  %v4576 = vmul.f32 %v4512, %v4512
  %v4577 = vmul.f32 %v4513, %v4513
  %v4578 = vmul.f32 %v4514, %v4514
  %v4579 = vmul.f32 %v4515, %v4515
  %v4580 = vmul.f32 %v4516, %v4516
  %v4581 = vmul.f32 %v4517, %v4517
  %v4582 = vmul.f32 %v4518, %v4518
  %v4583 = vmul.f32 %v4519, %v4519
  %v4584 = vmul.f32 %v4520, %v4520
  %v4585 = vmul.f32 %v4521, %v4521
  %v4586 = vmul.f32 %v4522, %v4522
  %v4587 = vmul.f32 %v4523, %v4523
  %v4588 = vmul.f32 %v4524, %v4524
  %v4589 = vmul.f32 %v4525, %v4525
  %v4590 = vmul.f32 %v4526, %v4526
  %v4591 = vmul.f32 %v4527, %v4527
  %v4592 = vmul.f32 %v4528, %v4528
  %v4593 = vmul.f32 %v4529, %v4529
  %v4594 = vmul.f32 %v4530, %v4530
  %v4595 = vmul.f32 %v4531, %v4531
  %v4596 = vmul.f32 %v4532, %v4532
  %v4597 = vmul.f32 %v4533, %v4533
  %v4598 = vmul.f32 %v4534, %v4534
  %v4599 = vadd.f32 %v4535, %v4536
  %v4600 = vadd.f32 %v4599, %v4537
  %v4601 = vadd.f32 %v4600, %v4538
  %v4602 = vadd.f32 %v4601, %v4539
  %v4603 = vadd.f32 %v4602, %v4540
  %v4604 = vadd.f32 %v4603, %v4541
  %v4605 = vadd.f32 %v4604, %v4542
  %v4606 = vadd.f32 %v4605, %v4543
  %v4607 = vadd.f32 %v4606, %v4544
  %v4608 = vadd.f32 %v4607, %v4545
  %v4609 = vadd.f32 %v4608, %v4546
  %v4610 = vadd.f32 %v4609, %v4547
  %v4611 = vadd.f32 %v4610, %v4548
  %v4612 = vadd.f32 %v4611, %v4549
  %v4613 = vadd.f32 %v4612, %v4550
  %v4614 = vadd.f32 %v4613, %v4551
  %v4615 = vadd.f32 %v4614, %v4552
  %v4616 = vadd.f32 %v4615, %v4553
  %v4617 = vadd.f32 %v4616, %v4554
  %v4618 = vadd.f32 %v4617, %v4555
  %v4619 = vadd.f32 %v4618, %v4556
  %v4620 = vadd.f32 %v4619, %v4557
  %v4621 = vadd.f32 %v4620, %v4558
  %v4622 = vadd.f32 %v4621, %v4559
  %v4623 = vadd.f32 %v4622, %v4560
  %v4624 = vadd.f32 %v4623, %v4561
  %v4625 = vadd.f32 %v4624, %v4562
  %v4626 = vadd.f32 %v4625, %v4563
  %v4627 = vadd.f32 %v4626, %v4564
  %v4628 = vadd.f32 %v4627, %v4565
  %v4629 = vadd.f32 %v4628, %v4566
  %v4630 = vadd.f32 %v4629, %v4567
  %v4631 = vadd.f32 %v4630, %v4568
  %v4632 = vadd.f32 %v4631, %v4569
  %v4633 = vadd.f32 %v4632, %v4570
  %v4634 = vadd.f32 %v4633, %v4571
  %v4635 = vadd.f32 %v4634, %v4572
  %v4636 = vadd.f32 %v4635, %v4573
  %v4637 = vadd.f32 %v4636, %v4574
  %v4638 = vadd.f32 %v4637, %v4575
  %v4639 = vadd.f32 %v4638, %v4576
  %v4640 = vadd.f32 %v4639, %v4577
  %v4641 = vadd.f32 %v4640, %v4578
  %v4642 = vadd.f32 %v4641, %v4579
  %v4643 = vadd.f32 %v4642, %v4580
  %v4644 = vadd.f32 %v4643, %v4581
  %v4645 = vadd.f32 %v4644, %v4582
  %v4646 = vadd.f32 %v4645, %v4583
  %v4647 = vadd.f32 %v4646, %v4584
  %v4648 = vadd.f32 %v4647, %v4585
  %v4649 = vadd.f32 %v4648, %v4586
  %v4650 = vadd.f32 %v4649, %v4587
  %v4651 = vadd.f32 %v4650, %v4588
  %v4652 = vadd.f32 %v4651, %v4589
  %v4653 = vadd.f32 %v4652, %v4590
  %v4654 = vadd.f32 %v4653, %v4591
  %v4655 = vadd.f32 %v4654, %v4592
  %v4656 = vadd.f32 %v4655, %v4593
  %v4657 = vadd.f32 %v4656, %v4594
  %v4658 = vadd.f32 %v4657, %v4595
  %v4659 = vadd.f32 %v4658, %v4596
  %v4660 = vadd.f32 %v4659, %v4597
  %v4661 = vadd.f32 %v4660, %v4598
  %v4662 = vrot.slane %v4661, 4
  %v4663 = vadd.f32 %v4661, %v4662
  %v4664 = vrot.slane %v4663, 2
  %v4665 = vadd.f32 %v4663, %v4664
  %v4666 = vrot.slane %v4665, 1
  %v4667 = vadd.f32 %v4665, %v4666
  %v4668 = vmul.f32 %v4667, 0.001953125
  %v4669 = vadd.f32 %v4668, 1e-05
  %v4670 = vrsqrt.pop %v4669
  %v4671 = vmul.f32 %v4471, %v4670
  %v4672 = vmul.f32 %v4472, %v4670
  %v4673 = vmul.f32 %v4473, %v4670
  %v4674 = vmul.f32 %v4474, %v4670
  %v4675 = vmul.f32 %v4475, %v4670
  %v4676 = vmul.f32 %v4476, %v4670
  %v4677 = vmul.f32 %v4477, %v4670
  %v4678 = vmul.f32 %v4478, %v4670
  %v4679 = vmul.f32 %v4479, %v4670
  %v4680 = vmul.f32 %v4480, %v4670
  %v4681 = vmul.f32 %v4481, %v4670
  %v4682 = vmul.f32 %v4482, %v4670
  %v4683 = vmul.f32 %v4483, %v4670
  %v4684 = vmul.f32 %v4484, %v4670
  %v4685 = vmul.f32 %v4485, %v4670
  %v4686 = vmul.f32 %v4486, %v4670
  %v4687 = vmul.f32 %v4487, %v4670
  %v4688 = vmul.f32 %v4488, %v4670
  %v4689 = vmul.f32 %v4489, %v4670
  %v4690 = vmul.f32 %v4490, %v4670
  %v4691 = vmul.f32 %v4491, %v4670
  %v4692 = vmul.f32 %v4492, %v4670
  %v4693 = vmul.f32 %v4493, %v4670
  %v4694 = vmul.f32 %v4494, %v4670
  %v4695 = vmul.f32 %v4495, %v4670
  %v4696 = vmul.f32 %v4496, %v4670
  %v4697 = vmul.f32 %v4497, %v4670
  %v4698 = vmul.f32 %v4498, %v4670
  %v4699 = vmul.f32 %v4499, %v4670
  %v4700 = vmul.f32 %v4500, %v4670
  %v4701 = vmul.f32 %v4501, %v4670
  %v4702 = vmul.f32 %v4502, %v4670
  %v4703 = vmul.f32 %v4503, %v4670
  %v4704 = vmul.f32 %v4504, %v4670
  %v4705 = vmul.f32 %v4505, %v4670
  %v4706 = vmul.f32 %v4506, %v4670
  %v4707 = vmul.f32 %v4507, %v4670
  %v4708 = vmul.f32 %v4508, %v4670
  %v4709 = vmul.f32 %v4509, %v4670
  %v4710 = vmul.f32 %v4510, %v4670
  %v4711 = vmul.f32 %v4511, %v4670
  %v4712 = vmul.f32 %v4512, %v4670
  %v4713 = vmul.f32 %v4513, %v4670
  %v4714 = vmul.f32 %v4514, %v4670
  %v4715 = vmul.f32 %v4515, %v4670
  %v4716 = vmul.f32 %v4516, %v4670
  %v4717 = vmul.f32 %v4517, %v4670
  %v4718 = vmul.f32 %v4518, %v4670
  %v4719 = vmul.f32 %v4519, %v4670
  %v4720 = vmul.f32 %v4520, %v4670
  %v4721 = vmul.f32 %v4521, %v4670
  %v4722 = vmul.f32 %v4522, %v4670
  %v4723 = vmul.f32 %v4523, %v4670
  %v4724 = vmul.f32 %v4524, %v4670
  %v4725 = vmul.f32 %v4525, %v4670
  %v4726 = vmul.f32 %v4526, %v4670
  %v4727 = vmul.f32 %v4527, %v4670
  %v4728 = vmul.f32 %v4528, %v4670
  %v4729 = vmul.f32 %v4529, %v4670
  %v4730 = vmul.f32 %v4530, %v4670
  %v4731 = vmul.f32 %v4531, %v4670
  %v4732 = vmul.f32 %v4532, %v4670
  %v4733 = vmul.f32 %v4533, %v4670
  %v4734 = vmul.f32 %v4534, %v4670
  %v4736 = vlaneseq
  %v4737 = vshrl.u32 %v4736, 7
  %v4738 = vsub.s32 0, %v4737
  %v4739 = vrot.slane %v4399, %v4738
  %v4741 = vmul.f32 %v4671, %v4739
  %v4742 = vmul.f32 %v4672, %v4739
  %v4743 = vmul.f32 %v4673, %v4739
  %v4744 = vmul.f32 %v4674, %v4739
  %v4745 = vmul.f32 %v4675, %v4739
  %v4746 = vmul.f32 %v4676, %v4739
  %v4747 = vmul.f32 %v4677, %v4739
  %v4748 = vmul.f32 %v4678, %v4739
  %v4749 = vmul.f32 %v4679, %v4739
  %v4750 = vmul.f32 %v4680, %v4739
  %v4751 = vmul.f32 %v4681, %v4739
  %v4752 = vmul.f32 %v4682, %v4739
  %v4753 = vmul.f32 %v4683, %v4739
  %v4754 = vmul.f32 %v4684, %v4739
  %v4755 = vmul.f32 %v4685, %v4739
  %v4756 = vmul.f32 %v4686, %v4739
  %v4757 = vmul.f32 %v4687, %v4739
  %v4758 = vmul.f32 %v4688, %v4739
  %v4759 = vmul.f32 %v4689, %v4739
  %v4760 = vmul.f32 %v4690, %v4739
  %v4761 = vmul.f32 %v4691, %v4739
  %v4762 = vmul.f32 %v4692, %v4739
  %v4763 = vmul.f32 %v4693, %v4739
  %v4764 = vmul.f32 %v4694, %v4739
  %v4765 = vmul.f32 %v4695, %v4739
  %v4766 = vmul.f32 %v4696, %v4739
  %v4767 = vmul.f32 %v4697, %v4739
  %v4768 = vmul.f32 %v4698, %v4739
  %v4769 = vmul.f32 %v4699, %v4739
  %v4770 = vmul.f32 %v4700, %v4739
  %v4771 = vmul.f32 %v4701, %v4739
  %v4772 = vmul.f32 %v4702, %v4739
  %v4773 = vmul.f32 %v4703, %v4739
  %v4774 = vmul.f32 %v4704, %v4739
  %v4775 = vmul.f32 %v4705, %v4739
  %v4776 = vmul.f32 %v4706, %v4739
  %v4777 = vmul.f32 %v4707, %v4739
  %v4778 = vmul.f32 %v4708, %v4739
  %v4779 = vmul.f32 %v4709, %v4739
  %v4780 = vmul.f32 %v4710, %v4739
  %v4781 = vmul.f32 %v4711, %v4739
  %v4782 = vmul.f32 %v4712, %v4739
  %v4783 = vmul.f32 %v4713, %v4739
  %v4784 = vmul.f32 %v4714, %v4739
  %v4785 = vmul.f32 %v4715, %v4739
  %v4786 = vmul.f32 %v4716, %v4739
  %v4787 = vmul.f32 %v4717, %v4739
  %v4788 = vmul.f32 %v4718, %v4739
  %v4789 = vmul.f32 %v4719, %v4739
  %v4790 = vmul.f32 %v4720, %v4739
  %v4791 = vmul.f32 %v4721, %v4739
  %v4792 = vmul.f32 %v4722, %v4739
  %v4793 = vmul.f32 %v4723, %v4739
  %v4794 = vmul.f32 %v4724, %v4739
  %v4795 = vmul.f32 %v4725, %v4739
  %v4796 = vmul.f32 %v4726, %v4739
  %v4797 = vmul.f32 %v4727, %v4739
  %v4798 = vmul.f32 %v4728, %v4739
  %v4799 = vmul.f32 %v4729, %v4739
  %v4800 = vmul.f32 %v4730, %v4739
  %v4801 = vmul.f32 %v4731, %v4739
  %v4802 = vmul.f32 %v4732, %v4739
  %v4803 = vmul.f32 %v4733, %v4739
  %v4804 = vmul.f32 %v4734, %v4739
  %v4806 = vlaneseq
  %v4807 = vshrl.u32 %v4806, 7
  %v4808 = vsub.s32 0, %v4807
  %v4809 = vrot.slane %v4400, %v4808
  %v4811 = vadd.f32 %v4741, %v4809
  %v4812 = vadd.f32 %v4742, %v4809
  %v4813 = vadd.f32 %v4743, %v4809
  %v4814 = vadd.f32 %v4744, %v4809
  %v4815 = vadd.f32 %v4745, %v4809
  %v4816 = vadd.f32 %v4746, %v4809
  %v4817 = vadd.f32 %v4747, %v4809
  %v4818 = vadd.f32 %v4748, %v4809
  %v4819 = vadd.f32 %v4749, %v4809
  %v4820 = vadd.f32 %v4750, %v4809
  %v4821 = vadd.f32 %v4751, %v4809
  %v4822 = vadd.f32 %v4752, %v4809
  %v4823 = vadd.f32 %v4753, %v4809
  %v4824 = vadd.f32 %v4754, %v4809
  %v4825 = vadd.f32 %v4755, %v4809
  %v4826 = vadd.f32 %v4756, %v4809
  %v4827 = vadd.f32 %v4757, %v4809
  %v4828 = vadd.f32 %v4758, %v4809
  %v4829 = vadd.f32 %v4759, %v4809
  %v4830 = vadd.f32 %v4760, %v4809
  %v4831 = vadd.f32 %v4761, %v4809
  %v4832 = vadd.f32 %v4762, %v4809
  %v4833 = vadd.f32 %v4763, %v4809
  %v4834 = vadd.f32 %v4764, %v4809
  %v4835 = vadd.f32 %v4765, %v4809
  %v4836 = vadd.f32 %v4766, %v4809
  %v4837 = vadd.f32 %v4767, %v4809
  %v4838 = vadd.f32 %v4768, %v4809
  %v4839 = vadd.f32 %v4769, %v4809
  %v4840 = vadd.f32 %v4770, %v4809
  %v4841 = vadd.f32 %v4771, %v4809
  %v4842 = vadd.f32 %v4772, %v4809
  %v4843 = vadd.f32 %v4773, %v4809
  %v4844 = vadd.f32 %v4774, %v4809
  %v4845 = vadd.f32 %v4775, %v4809
  %v4846 = vadd.f32 %v4776, %v4809
  %v4847 = vadd.f32 %v4777, %v4809
  %v4848 = vadd.f32 %v4778, %v4809
  %v4849 = vadd.f32 %v4779, %v4809
  %v4850 = vadd.f32 %v4780, %v4809
  %v4851 = vadd.f32 %v4781, %v4809
  %v4852 = vadd.f32 %v4782, %v4809
  %v4853 = vadd.f32 %v4783, %v4809
  %v4854 = vadd.f32 %v4784, %v4809
  %v4855 = vadd.f32 %v4785, %v4809
  %v4856 = vadd.f32 %v4786, %v4809
  %v4857 = vadd.f32 %v4787, %v4809
  %v4858 = vadd.f32 %v4788, %v4809
  %v4859 = vadd.f32 %v4789, %v4809
  %v4860 = vadd.f32 %v4790, %v4809
  %v4861 = vadd.f32 %v4791, %v4809
  %v4862 = vadd.f32 %v4792, %v4809
  %v4863 = vadd.f32 %v4793, %v4809
  %v4864 = vadd.f32 %v4794, %v4809
  %v4865 = vadd.f32 %v4795, %v4809
  %v4866 = vadd.f32 %v4796, %v4809
  %v4867 = vadd.f32 %v4797, %v4809
  %v4868 = vadd.f32 %v4798, %v4809
  %v4869 = vadd.f32 %v4799, %v4809
  %v4870 = vadd.f32 %v4800, %v4809
  %v4871 = vadd.f32 %v4801, %v4809
  %v4872 = vadd.f32 %v4802, %v4809
  %v4873 = vadd.f32 %v4803, %v4809
  %v4874 = vadd.f32 %v4804, %v4809
  %v4875 = vld [vmem:[%s7] sm:$0xff]
  %v4876 = vld [vmem:[%s7 + $0x8] sm:$0xff]
  %v4877 = vld [vmem:[%s7 + $0x10] sm:$0xff]
  %v4878 = vld [vmem:[%s7 + $0x18] sm:$0xff]
  %v4879 = vld [vmem:[%s7 + $0x20] sm:$0xff]
  %v4880 = vld [vmem:[%s7 + $0x28] sm:$0xff]
  %v4881 = vld [vmem:[%s7 + $0x30] sm:$0xff]
  %v4882 = vld [vmem:[%s7 + $0x38] sm:$0xff]
  %v4883 = vld [vmem:[%s7 + $0x40] sm:$0xff]
  %v4884 = vld [vmem:[%s7 + $0x48] sm:$0xff]
  %v4885 = vld [vmem:[%s7 + $0x50] sm:$0xff]
  %v4886 = vld [vmem:[%s7 + $0x58] sm:$0xff]
  %v4887 = vld [vmem:[%s7 + $0x60] sm:$0xff]
  %v4888 = vld [vmem:[%s7 + $0x68] sm:$0xff]
  %v4889 = vld [vmem:[%s7 + $0x70] sm:$0xff]
  %v4890 = vld [vmem:[%s7 + $0x78] sm:$0xff]
  %v4891 = vld [vmem:[%s7 + $0x80] sm:$0xff]
  %v4892 = vld [vmem:[%s7 + $0x88] sm:$0xff]
  %v4893 = vld [vmem:[%s7 + $0x90] sm:$0xff]
  %v4894 = vld [vmem:[%s7 + $0x98] sm:$0xff]
  %v4895 = vld [vmem:[%s7 + $0xa0] sm:$0xff]
  %v4896 = vld [vmem:[%s7 + $0xa8] sm:$0xff]
  %v4897 = vld [vmem:[%s7 + $0xb0] sm:$0xff]
  %v4898 = vld [vmem:[%s7 + $0xb8] sm:$0xff]
  %v4899 = vld [vmem:[%s7 + $0xc0] sm:$0xff]
  %v4900 = vld [vmem:[%s7 + $0xc8] sm:$0xff]
  %v4901 = vld [vmem:[%s7 + $0xd0] sm:$0xff]
  %v4902 = vld [vmem:[%s7 + $0xd8] sm:$0xff]
  %v4903 = vld [vmem:[%s7 + $0xe0] sm:$0xff]
  %v4904 = vld [vmem:[%s7 + $0xe8] sm:$0xff]
  %v4905 = vld [vmem:[%s7 + $0xf0] sm:$0xff]
  %v4906 = vld [vmem:[%s7 + $0xf8] sm:$0xff]
  %v4907 = vld [vmem:[%s7 + $0x100] sm:$0xff]
  %v4908 = vld [vmem:[%s7 + $0x108] sm:$0xff]
  %v4909 = vld [vmem:[%s7 + $0x110] sm:$0xff]
  %v4910 = vld [vmem:[%s7 + $0x118] sm:$0xff]
  %v4911 = vld [vmem:[%s7 + $0x120] sm:$0xff]
  %v4912 = vld [vmem:[%s7 + $0x128] sm:$0xff]
  %v4913 = vld [vmem:[%s7 + $0x130] sm:$0xff]
  %v4914 = vld [vmem:[%s7 + $0x138] sm:$0xff]
  %v4915 = vld [vmem:[%s7 + $0x140] sm:$0xff]
  %v4916 = vld [vmem:[%s7 + $0x148] sm:$0xff]
  %v4917 = vld [vmem:[%s7 + $0x150] sm:$0xff]
  %v4918 = vld [vmem:[%s7 + $0x158] sm:$0xff]
  %v4919 = vld [vmem:[%s7 + $0x160] sm:$0xff]
  %v4920 = vld [vmem:[%s7 + $0x168] sm:$0xff]
  %v4921 = vld [vmem:[%s7 + $0x170] sm:$0xff]
  %v4922 = vld [vmem:[%s7 + $0x178] sm:$0xff]
  %v4923 = vld [vmem:[%s7 + $0x180] sm:$0xff]
  %v4924 = vld [vmem:[%s7 + $0x188] sm:$0xff]
  %v4925 = vld [vmem:[%s7 + $0x190] sm:$0xff]
  %v4926 = vld [vmem:[%s7 + $0x198] sm:$0xff]
  %v4927 = vld [vmem:[%s7 + $0x1a0] sm:$0xff]
  %v4928 = vld [vmem:[%s7 + $0x1a8] sm:$0xff]
  %v4929 = vld [vmem:[%s7 + $0x1b0] sm:$0xff]
  %v4930 = vld [vmem:[%s7 + $0x1b8] sm:$0xff]
  %v4931 = vld [vmem:[%s7 + $0x1c0] sm:$0xff]
  %v4932 = vld [vmem:[%s7 + $0x1c8] sm:$0xff]
  %v4933 = vld [vmem:[%s7 + $0x1d0] sm:$0xff]
  %v4934 = vld [vmem:[%s7 + $0x1d8] sm:$0xff]
  %v4935 = vld [vmem:[%s7 + $0x1e0] sm:$0xff]
  %v4936 = vld [vmem:[%s7 + $0x1e8] sm:$0xff]
  %v4937 = vld [vmem:[%s7 + $0x1f0] sm:$0xff]
  %v4938 = vld [vmem:[%s7 + $0x1f8] sm:$0xff]
  %v4939 = vadd.f32 %v4811, %v4875
  %v4940 = vadd.f32 %v4812, %v4876
  %v4941 = vadd.f32 %v4813, %v4877
  %v4942 = vadd.f32 %v4814, %v4878
  %v4943 = vadd.f32 %v4815, %v4879
  %v4944 = vadd.f32 %v4816, %v4880
  %v4945 = vadd.f32 %v4817, %v4881
  %v4946 = vadd.f32 %v4818, %v4882
  %v4947 = vadd.f32 %v4819, %v4883
  %v4948 = vadd.f32 %v4820, %v4884
  %v4949 = vadd.f32 %v4821, %v4885
  %v4950 = vadd.f32 %v4822, %v4886
  %v4951 = vadd.f32 %v4823, %v4887
  %v4952 = vadd.f32 %v4824, %v4888
  %v4953 = vadd.f32 %v4825, %v4889
  %v4954 = vadd.f32 %v4826, %v4890
  %v4955 = vadd.f32 %v4827, %v4891
  %v4956 = vadd.f32 %v4828, %v4892
  %v4957 = vadd.f32 %v4829, %v4893
  %v4958 = vadd.f32 %v4830, %v4894
  %v4959 = vadd.f32 %v4831, %v4895
  %v4960 = vadd.f32 %v4832, %v4896
  %v4961 = vadd.f32 %v4833, %v4897
  %v4962 = vadd.f32 %v4834, %v4898
  %v4963 = vadd.f32 %v4835, %v4899
  %v4964 = vadd.f32 %v4836, %v4900
  %v4965 = vadd.f32 %v4837, %v4901
  %v4966 = vadd.f32 %v4838, %v4902
  %v4967 = vadd.f32 %v4839, %v4903
  %v4968 = vadd.f32 %v4840, %v4904
  %v4969 = vadd.f32 %v4841, %v4905
  %v4970 = vadd.f32 %v4842, %v4906
  %v4971 = vadd.f32 %v4843, %v4907
  %v4972 = vadd.f32 %v4844, %v4908
  %v4973 = vadd.f32 %v4845, %v4909
  %v4974 = vadd.f32 %v4846, %v4910
  %v4975 = vadd.f32 %v4847, %v4911
  %v4976 = vadd.f32 %v4848, %v4912
  %v4977 = vadd.f32 %v4849, %v4913
  %v4978 = vadd.f32 %v4850, %v4914
  %v4979 = vadd.f32 %v4851, %v4915
  %v4980 = vadd.f32 %v4852, %v4916
  %v4981 = vadd.f32 %v4853, %v4917
  %v4982 = vadd.f32 %v4854, %v4918
  %v4983 = vadd.f32 %v4855, %v4919
  %v4984 = vadd.f32 %v4856, %v4920
  %v4985 = vadd.f32 %v4857, %v4921
  %v4986 = vadd.f32 %v4858, %v4922
  %v4987 = vadd.f32 %v4859, %v4923
  %v4988 = vadd.f32 %v4860, %v4924
  %v4989 = vadd.f32 %v4861, %v4925
  %v4990 = vadd.f32 %v4862, %v4926
  %v4991 = vadd.f32 %v4863, %v4927
  %v4992 = vadd.f32 %v4864, %v4928
  %v4993 = vadd.f32 %v4865, %v4929
  %v4994 = vadd.f32 %v4866, %v4930
  %v4995 = vadd.f32 %v4867, %v4931
  %v4996 = vadd.f32 %v4868, %v4932
  %v4997 = vadd.f32 %v4869, %v4933
  %v4998 = vadd.f32 %v4870, %v4934
  %v4999 = vadd.f32 %v4871, %v4935
  %v5000 = vadd.f32 %v4872, %v4936
  %v5001 = vadd.f32 %v4873, %v4937
  %v5002 = vadd.f32 %v4874, %v4938
  %v5003 = vmax.f32 %v4939, 0.0
  %v5004 = vmax.f32 %v4940, 0.0
  %v5005 = vmax.f32 %v4941, 0.0
  %v5006 = vmax.f32 %v4942, 0.0
  %v5007 = vmax.f32 %v4943, 0.0
  %v5008 = vmax.f32 %v4944, 0.0
  %v5009 = vmax.f32 %v4945, 0.0
  %v5010 = vmax.f32 %v4946, 0.0
  %v5011 = vmax.f32 %v4947, 0.0
  %v5012 = vmax.f32 %v4948, 0.0
  %v5013 = vmax.f32 %v4949, 0.0
  %v5014 = vmax.f32 %v4950, 0.0
  %v5015 = vmax.f32 %v4951, 0.0
  %v5016 = vmax.f32 %v4952, 0.0
  %v5017 = vmax.f32 %v4953, 0.0
  %v5018 = vmax.f32 %v4954, 0.0
  %v5019 = vmax.f32 %v4955, 0.0
  %v5020 = vmax.f32 %v4956, 0.0
  %v5021 = vmax.f32 %v4957, 0.0
  %v5022 = vmax.f32 %v4958, 0.0
  %v5023 = vmax.f32 %v4959, 0.0
  %v5024 = vmax.f32 %v4960, 0.0
  %v5025 = vmax.f32 %v4961, 0.0
  %v5026 = vmax.f32 %v4962, 0.0
  %v5027 = vmax.f32 %v4963, 0.0
  %v5028 = vmax.f32 %v4964, 0.0
  %v5029 = vmax.f32 %v4965, 0.0
  %v5030 = vmax.f32 %v4966, 0.0
  %v5031 = vmax.f32 %v4967, 0.0
  %v5032 = vmax.f32 %v4968, 0.0
  %v5033 = vmax.f32 %v4969, 0.0
  %v5034 = vmax.f32 %v4970, 0.0
  %v5035 = vmax.f32 %v4971, 0.0
  %v5036 = vmax.f32 %v4972, 0.0
  %v5037 = vmax.f32 %v4973, 0.0
  %v5038 = vmax.f32 %v4974, 0.0
  %v5039 = vmax.f32 %v4975, 0.0
  %v5040 = vmax.f32 %v4976, 0.0
  %v5041 = vmax.f32 %v4977, 0.0
  %v5042 = vmax.f32 %v4978, 0.0
  %v5043 = vmax.f32 %v4979, 0.0
  %v5044 = vmax.f32 %v4980, 0.0
  %v5045 = vmax.f32 %v4981, 0.0
  %v5046 = vmax.f32 %v4982, 0.0
  %v5047 = vmax.f32 %v4983, 0.0
  %v5048 = vmax.f32 %v4984, 0.0
  %v5049 = vmax.f32 %v4985, 0.0
  %v5050 = vmax.f32 %v4986, 0.0
  %v5051 = vmax.f32 %v4987, 0.0
  %v5052 = vmax.f32 %v4988, 0.0
  %v5053 = vmax.f32 %v4989, 0.0
  %v5054 = vmax.f32 %v4990, 0.0
  %v5055 = vmax.f32 %v4991, 0.0
  %v5056 = vmax.f32 %v4992, 0.0
  %v5057 = vmax.f32 %v4993, 0.0
  %v5058 = vmax.f32 %v4994, 0.0
  %v5059 = vmax.f32 %v4995, 0.0
  %v5060 = vmax.f32 %v4996, 0.0
  %v5061 = vmax.f32 %v4997, 0.0
  %v5062 = vmax.f32 %v4998, 0.0
  %v5063 = vmax.f32 %v4999, 0.0
  %v5064 = vmax.f32 %v5000, 0.0
  %v5065 = vmax.f32 %v5001, 0.0
  %v5066 = vmax.f32 %v5002, 0.0
  %v5067 = vpack.c.bf16 %v5004, %v5003
  %v5068 = vpack.c.bf16 %v5006, %v5005
  %v5069 = vpack.c.bf16 %v5008, %v5007
  %v5070 = vpack.c.bf16 %v5010, %v5009
  %v5071 = vpack.c.bf16 %v5012, %v5011
  %v5072 = vpack.c.bf16 %v5014, %v5013
  %v5073 = vpack.c.bf16 %v5016, %v5015
  %v5074 = vpack.c.bf16 %v5018, %v5017
  %v5075 = vpack.c.bf16 %v5020, %v5019
  %v5076 = vpack.c.bf16 %v5022, %v5021
  %v5077 = vpack.c.bf16 %v5024, %v5023
  %v5078 = vpack.c.bf16 %v5026, %v5025
  %v5079 = vpack.c.bf16 %v5028, %v5027
  %v5080 = vpack.c.bf16 %v5030, %v5029
  %v5081 = vpack.c.bf16 %v5032, %v5031
  %v5082 = vpack.c.bf16 %v5034, %v5033
  %v5083 = vpack.c.bf16 %v5036, %v5035
  %v5084 = vpack.c.bf16 %v5038, %v5037
  %v5085 = vpack.c.bf16 %v5040, %v5039
  %v5086 = vpack.c.bf16 %v5042, %v5041
  %v5087 = vpack.c.bf16 %v5044, %v5043
  %v5088 = vpack.c.bf16 %v5046, %v5045
  %v5089 = vpack.c.bf16 %v5048, %v5047
  %v5090 = vpack.c.bf16 %v5050, %v5049
  %v5091 = vpack.c.bf16 %v5052, %v5051
  %v5092 = vpack.c.bf16 %v5054, %v5053
  %v5093 = vpack.c.bf16 %v5056, %v5055
  %v5094 = vpack.c.bf16 %v5058, %v5057
  %v5095 = vpack.c.bf16 %v5060, %v5059
  %v5096 = vpack.c.bf16 %v5062, %v5061
  %v5097 = vpack.c.bf16 %v5064, %v5063
  %v5098 = vpack.c.bf16 %v5066, %v5065
  %v5131 = vunpack.c.l.b16 %v5067
  %v5132 = vunpack.c.h.b16 %v5067
  %v5133 = vunpack.c.l.b16 %v5068
  %v5134 = vunpack.c.h.b16 %v5068
  %v5135 = vunpack.c.l.b16 %v5069
  %v5136 = vunpack.c.h.b16 %v5069
  %v5137 = vunpack.c.l.b16 %v5070
  %v5138 = vunpack.c.h.b16 %v5070
  %v5139 = vunpack.c.l.b16 %v5071
  %v5140 = vunpack.c.h.b16 %v5071
  %v5141 = vunpack.c.l.b16 %v5072
  %v5142 = vunpack.c.h.b16 %v5072
  %v5143 = vunpack.c.l.b16 %v5073
  %v5144 = vunpack.c.h.b16 %v5073
  %v5145 = vunpack.c.l.b16 %v5074
  %v5146 = vunpack.c.h.b16 %v5074
  %v5147 = vunpack.c.l.b16 %v5075
  %v5148 = vunpack.c.h.b16 %v5075
  %v5149 = vunpack.c.l.b16 %v5076
  %v5150 = vunpack.c.h.b16 %v5076
  %v5151 = vunpack.c.l.b16 %v5077
  %v5152 = vunpack.c.h.b16 %v5077
  %v5153 = vunpack.c.l.b16 %v5078
  %v5154 = vunpack.c.h.b16 %v5078
  %v5155 = vunpack.c.l.b16 %v5079
  %v5156 = vunpack.c.h.b16 %v5079
  %v5157 = vunpack.c.l.b16 %v5080
  %v5158 = vunpack.c.h.b16 %v5080
  %v5159 = vunpack.c.l.b16 %v5081
  %v5160 = vunpack.c.h.b16 %v5081
  %v5161 = vunpack.c.l.b16 %v5082
  %v5162 = vunpack.c.h.b16 %v5082
  %v5163 = vunpack.c.l.b16 %v5083
  %v5164 = vunpack.c.h.b16 %v5083
  %v5165 = vunpack.c.l.b16 %v5084
  %v5166 = vunpack.c.h.b16 %v5084
  %v5167 = vunpack.c.l.b16 %v5085
  %v5168 = vunpack.c.h.b16 %v5085
  %v5169 = vunpack.c.l.b16 %v5086
  %v5170 = vunpack.c.h.b16 %v5086
  %v5171 = vunpack.c.l.b16 %v5087
  %v5172 = vunpack.c.h.b16 %v5087
  %v5173 = vunpack.c.l.b16 %v5088
  %v5174 = vunpack.c.h.b16 %v5088
  %v5175 = vunpack.c.l.b16 %v5089
  %v5176 = vunpack.c.h.b16 %v5089
  %v5177 = vunpack.c.l.b16 %v5090
  %v5178 = vunpack.c.h.b16 %v5090
  %v5179 = vunpack.c.l.b16 %v5091
  %v5180 = vunpack.c.h.b16 %v5091
  %v5181 = vunpack.c.l.b16 %v5092
  %v5182 = vunpack.c.h.b16 %v5092
  %v5183 = vunpack.c.l.b16 %v5093
  %v5184 = vunpack.c.h.b16 %v5093
  %v5185 = vunpack.c.l.b16 %v5094
  %v5186 = vunpack.c.h.b16 %v5094
  %v5187 = vunpack.c.l.b16 %v5095
  %v5188 = vunpack.c.h.b16 %v5095
  %v5189 = vunpack.c.l.b16 %v5096
  %v5190 = vunpack.c.h.b16 %v5096
  %v5191 = vunpack.c.l.b16 %v5097
  %v5192 = vunpack.c.h.b16 %v5097
  %v5193 = vunpack.c.l.b16 %v5098
  %v5194 = vunpack.c.h.b16 %v5098
  %v5195 = vpack.c.b16 %v5131, %v5131
  %v5196 = vpack.c.b16 %v5132, %v5132
  %v5197 = vpack.c.b16 %v5133, %v5133
  %v5198 = vpack.c.b16 %v5134, %v5134
  %v5199 = vpack.c.b16 %v5135, %v5135
  %v5200 = vpack.c.b16 %v5136, %v5136
  %v5201 = vpack.c.b16 %v5137, %v5137
  %v5202 = vpack.c.b16 %v5138, %v5138
  %v5203 = vpack.c.b16 %v5139, %v5139
  %v5204 = vpack.c.b16 %v5140, %v5140
  %v5205 = vpack.c.b16 %v5141, %v5141
  %v5206 = vpack.c.b16 %v5142, %v5142
  %v5207 = vpack.c.b16 %v5143, %v5143
  %v5208 = vpack.c.b16 %v5144, %v5144
  %v5209 = vpack.c.b16 %v5145, %v5145
  %v5210 = vpack.c.b16 %v5146, %v5146
  %v5211 = vpack.c.b16 %v5147, %v5147
  %v5212 = vpack.c.b16 %v5148, %v5148
  %v5213 = vpack.c.b16 %v5149, %v5149
  %v5214 = vpack.c.b16 %v5150, %v5150
  %v5215 = vpack.c.b16 %v5151, %v5151
  %v5216 = vpack.c.b16 %v5152, %v5152
  %v5217 = vpack.c.b16 %v5153, %v5153
  %v5218 = vpack.c.b16 %v5154, %v5154
  %v5219 = vpack.c.b16 %v5155, %v5155
  %v5220 = vpack.c.b16 %v5156, %v5156
  %v5221 = vpack.c.b16 %v5157, %v5157
  %v5222 = vpack.c.b16 %v5158, %v5158
  %v5223 = vpack.c.b16 %v5159, %v5159
  %v5224 = vpack.c.b16 %v5160, %v5160
  %v5225 = vpack.c.b16 %v5161, %v5161
  %v5226 = vpack.c.b16 %v5162, %v5162
  %v5227 = vpack.c.b16 %v5163, %v5163
  %v5228 = vpack.c.b16 %v5164, %v5164
  %v5229 = vpack.c.b16 %v5165, %v5165
  %v5230 = vpack.c.b16 %v5166, %v5166
  %v5231 = vpack.c.b16 %v5167, %v5167
  %v5232 = vpack.c.b16 %v5168, %v5168
  %v5233 = vpack.c.b16 %v5169, %v5169
  %v5234 = vpack.c.b16 %v5170, %v5170
  %v5235 = vpack.c.b16 %v5171, %v5171
  %v5236 = vpack.c.b16 %v5172, %v5172
  %v5237 = vpack.c.b16 %v5173, %v5173
  %v5238 = vpack.c.b16 %v5174, %v5174
  %v5239 = vpack.c.b16 %v5175, %v5175
  %v5240 = vpack.c.b16 %v5176, %v5176
  %v5241 = vpack.c.b16 %v5177, %v5177
  %v5242 = vpack.c.b16 %v5178, %v5178
  %v5243 = vpack.c.b16 %v5179, %v5179
  %v5244 = vpack.c.b16 %v5180, %v5180
  %v5245 = vpack.c.b16 %v5181, %v5181
  %v5246 = vpack.c.b16 %v5182, %v5182
  %v5247 = vpack.c.b16 %v5183, %v5183
  %v5248 = vpack.c.b16 %v5184, %v5184
  %v5249 = vpack.c.b16 %v5185, %v5185
  %v5250 = vpack.c.b16 %v5186, %v5186
  %v5251 = vpack.c.b16 %v5187, %v5187
  %v5252 = vpack.c.b16 %v5188, %v5188
  %v5253 = vpack.c.b16 %v5189, %v5189
  %v5254 = vpack.c.b16 %v5190, %v5190
  %v5255 = vpack.c.b16 %v5191, %v5191
  %v5256 = vpack.c.b16 %v5192, %v5192
  %v5257 = vpack.c.b16 %v5193, %v5193
  %v5258 = vpack.c.b16 %v5194, %v5194
  %5323 = vst [vmem:[%s8] sm:$0xf] %v5195
  %5324 = vst [vmem:[%s8 + $0x4] sm:$0xf] %v5196
  %5325 = vst [vmem:[%s8 + $0x8] sm:$0xf] %v5197
  %5326 = vst [vmem:[%s8 + $0xc] sm:$0xf] %v5198
  %5327 = vst [vmem:[%s8 + $0x10] sm:$0xf] %v5199
  %5328 = vst [vmem:[%s8 + $0x14] sm:$0xf] %v5200
  %5329 = vst [vmem:[%s8 + $0x18] sm:$0xf] %v5201
  %5330 = vst [vmem:[%s8 + $0x1c] sm:$0xf] %v5202
  %5331 = vst [vmem:[%s8 + $0x20] sm:$0xf] %v5203
  %5332 = vst [vmem:[%s8 + $0x24] sm:$0xf] %v5204
  %5333 = vst [vmem:[%s8 + $0x28] sm:$0xf] %v5205
  %5334 = vst [vmem:[%s8 + $0x2c] sm:$0xf] %v5206
  %5335 = vst [vmem:[%s8 + $0x30] sm:$0xf] %v5207
  %5336 = vst [vmem:[%s8 + $0x34] sm:$0xf] %v5208
  %5337 = vst [vmem:[%s8 + $0x38] sm:$0xf] %v5209
  %5338 = vst [vmem:[%s8 + $0x3c] sm:$0xf] %v5210
  %5339 = vst [vmem:[%s8 + $0x40] sm:$0xf] %v5211
  %5340 = vst [vmem:[%s8 + $0x44] sm:$0xf] %v5212
  %5341 = vst [vmem:[%s8 + $0x48] sm:$0xf] %v5213
  %5342 = vst [vmem:[%s8 + $0x4c] sm:$0xf] %v5214
  %5343 = vst [vmem:[%s8 + $0x50] sm:$0xf] %v5215
  %5344 = vst [vmem:[%s8 + $0x54] sm:$0xf] %v5216
  %5345 = vst [vmem:[%s8 + $0x58] sm:$0xf] %v5217
  %5346 = vst [vmem:[%s8 + $0x5c] sm:$0xf] %v5218
  %5347 = vst [vmem:[%s8 + $0x60] sm:$0xf] %v5219
  %5348 = vst [vmem:[%s8 + $0x64] sm:$0xf] %v5220
  %5349 = vst [vmem:[%s8 + $0x68] sm:$0xf] %v5221
  %5350 = vst [vmem:[%s8 + $0x6c] sm:$0xf] %v5222
  %5351 = vst [vmem:[%s8 + $0x70] sm:$0xf] %v5223
  %5352 = vst [vmem:[%s8 + $0x74] sm:$0xf] %v5224
  %5353 = vst [vmem:[%s8 + $0x78] sm:$0xf] %v5225
  %5354 = vst [vmem:[%s8 + $0x7c] sm:$0xf] %v5226
  %5355 = vst [vmem:[%s8 + $0x80] sm:$0xf] %v5227
  %5356 = vst [vmem:[%s8 + $0x84] sm:$0xf] %v5228
  %5357 = vst [vmem:[%s8 + $0x88] sm:$0xf] %v5229
  %5358 = vst [vmem:[%s8 + $0x8c] sm:$0xf] %v5230
  %5359 = vst [vmem:[%s8 + $0x90] sm:$0xf] %v5231
  %5360 = vst [vmem:[%s8 + $0x94] sm:$0xf] %v5232
  %5361 = vst [vmem:[%s8 + $0x98] sm:$0xf] %v5233
  %5362 = vst [vmem:[%s8 + $0x9c] sm:$0xf] %v5234
  %5363 = vst [vmem:[%s8 + $0xa0] sm:$0xf] %v5235
  %5364 = vst [vmem:[%s8 + $0xa4] sm:$0xf] %v5236
  %5365 = vst [vmem:[%s8 + $0xa8] sm:$0xf] %v5237
  %5366 = vst [vmem:[%s8 + $0xac] sm:$0xf] %v5238
  %5367 = vst [vmem:[%s8 + $0xb0] sm:$0xf] %v5239
  %5368 = vst [vmem:[%s8 + $0xb4] sm:$0xf] %v5240
  %5369 = vst [vmem:[%s8 + $0xb8] sm:$0xf] %v5241
  %5370 = vst [vmem:[%s8 + $0xbc] sm:$0xf] %v5242
  %5371 = vst [vmem:[%s8 + $0xc0] sm:$0xf] %v5243
  %5372 = vst [vmem:[%s8 + $0xc4] sm:$0xf] %v5244
  %5373 = vst [vmem:[%s8 + $0xc8] sm:$0xf] %v5245
  %5374 = vst [vmem:[%s8 + $0xcc] sm:$0xf] %v5246
  %5375 = vst [vmem:[%s8 + $0xd0] sm:$0xf] %v5247
  %5376 = vst [vmem:[%s8 + $0xd4] sm:$0xf] %v5248
  %5377 = vst [vmem:[%s8 + $0xd8] sm:$0xf] %v5249
  %5378 = vst [vmem:[%s8 + $0xdc] sm:$0xf] %v5250
  %5379 = vst [vmem:[%s8 + $0xe0] sm:$0xf] %v5251
  %5380 = vst [vmem:[%s8 + $0xe4] sm:$0xf] %v5252
  %5381 = vst [vmem:[%s8 + $0xe8] sm:$0xf] %v5253
  %5382 = vst [vmem:[%s8 + $0xec] sm:$0xf] %v5254
  %5383 = vst [vmem:[%s8 + $0xf0] sm:$0xf] %v5255
  %5384 = vst [vmem:[%s8 + $0xf4] sm:$0xf] %v5256
  %5385 = vst [vmem:[%s8 + $0xf8] sm:$0xf] %v5257
  %5386 = vst [vmem:[%s8 + $0xfc] sm:$0xf] %v5258
  // Predicated region
  $region34: #{forward.2} parent=0 // pred_check
    _
  $region35: #{forward.2} parent=0 // pred_check_branch
    %5388 = sbr.rel (0) target = $region37
  $region36: #{forward.2} parent=0 // pred_region
    _
  $region37: #{forward.2} parent=0 // pred_fallthru
    _
  // Predicated region
  $region38: #{forward.2} parent=0 // pred_check
    _
  $region39: #{forward.2} parent=0 // pred_check_branch
    %5390 = sbr.rel (0) target = $region41
  $region40: #{forward.2} parent=0 // pred_region
    _
  $region41: #{forward.2} parent=0 // pred_fallthru
    _

</llo_original>
